<compile_context>
chip_gen: v5e
topology: v5e:2x2
jax: 0.10.0
libtpu: 0.0.40
codegen_flags: <defaults>
</compile_context>

<pallas_src>
import functools
import math

import jax
import jax.numpy as jnp
from jax.experimental import pallas as pl
from jax.experimental.pallas import tpu as pltpu


CFG = dict(
    image_size=16,
    patch_size=8,
    channels=3,
    hidden=32,
    heads=4,
    layers=2,
    mlp=128,
    num_regioes=5,
    num_especies=7,
    ln_eps=1e-12,          # HF ViT default layer_norm_eps
)

_VMEM = pl.BlockSpec(memory_space=pltpu.MemorySpace.VMEM)


# ----------------------------------------------------------------------------
# Single fused forward kernel
# ----------------------------------------------------------------------------

def _vit_fused_kernel(
    # inputs
    patches_ref, patch_w_ref, patch_b_ref, cls_ref, pos_ref,
    ln1_g_ref, ln1_b_ref, wqkv_ref, bqkv_ref, wo_ref, bo_ref,
    ln2_g_ref, ln2_b_ref, w1_ref, b1_ref, w2_ref, b2_ref,
    fin_g_ref, fin_b_ref, pool_w_ref, pool_b_ref, head_w_ref, head_b_ref,
    # output (fused regiao|especie logits)
    logits_ref,
    *, B, n_imgs, S, H, heads, layers, eps):
  N = B * n_imgs
  dh = H // heads
  f32 = jnp.float32
  bf16 = jnp.bfloat16

  def layer_norm(x, g, b):
    mean = jnp.mean(x, axis=-1, keepdims=True)
    var = jnp.mean((x - mean) ** 2, axis=-1, keepdims=True)   # biased, like torch
    return (x - mean) * jax.lax.rsqrt(var + eps) * g + b

  # ---- patch embedding (== Conv2d(C, H, P, stride=P), channel-major flatten).
  # Row 0 of each image's patch block is all-zero (host-padded), so its
  # embedding is just patch_b and gets replaced by [CLS] below.
  emb = jnp.dot(patches_ref[...], patch_w_ref[...],
                preferred_element_type=f32) + patch_b_ref[...]          # (N*S, H)
  emb3 = emb.reshape(N, S, H)

  # ---- insert [CLS] at position 0 via a register-resident select, add pos ----
  row = jax.lax.broadcasted_iota(jnp.int32, (N, S, H), 1)
  cls_b = jnp.broadcast_to(cls_ref[...].reshape(1, 1, H), (N, S, H))
  h = (jnp.where(row == 0, cls_b, emb3) + pos_ref[...]).reshape(N * S, H)

  # ---- transformer encoder (pre-LN), fully unrolled, VMEM/vreg resident ----
  for l in range(layers):
    # attention block (fused QKV projection; q columns pre-scaled by 1/sqrt(dh))
    x1 = layer_norm(h, ln1_g_ref[l], ln1_b_ref[l])
    qkv = jnp.dot(x1.astype(bf16), wqkv_ref[l],
                  preferred_element_type=f32) + bqkv_ref[l]             # (N*S, 3H)
    qkv_bf = qkv.astype(bf16)
    wo_l = wo_ref[l]                                                    # (H, H) bf16

    attn = jnp.zeros((N * S, H), f32)
    for hd in range(heads):
      q_h = qkv_bf[:, 0 * H + hd * dh:0 * H + (hd + 1) * dh].reshape(N, S, dh)
      k_h = qkv_bf[:, 1 * H + hd * dh:1 * H + (hd + 1) * dh].reshape(N, S, dh)
      v_h = qkv_bf[:, 2 * H + hd * dh:2 * H + (hd + 1) * dh].reshape(N, S, dh)
      s = jnp.einsum("bqd,bkd->bqk", q_h, k_h,
                     preferred_element_type=f32)                        # (N, S, S)
      m = jnp.max(s, axis=-1, keepdims=True)
      p = jnp.exp(s - m)
      denom = jnp.sum(p, axis=-1, keepdims=True)
      ctx_h = jnp.einsum("bqk,bkd->bqd", p.astype(bf16), v_h,
                         preferred_element_type=f32)                    # (N, S, dh)
      ctx_h = ctx_h * pl.reciprocal(denom, approx=True)     # deferred softmax norm
      # Fold this head's out-projection slice straight into the accumulator:
      # no (N,S,H) ctx scratch, no masked 8-lane stores between the matmuls.
      attn = attn + jnp.dot(ctx_h.reshape(N * S, dh).astype(bf16),
                            wo_l[hd * dh:(hd + 1) * dh, :],
                            preferred_element_type=f32)
    h = h + attn + bo_ref[l]                                            # residual

    # MLP block
    x2 = layer_norm(h, ln2_g_ref[l], ln2_b_ref[l])
    m1 = jnp.dot(x2.astype(bf16), w1_ref[l],
                 preferred_element_type=f32) + b1_ref[l]
    # TODO(synk): HF ViT uses exact-erf GELU; the tanh form runs on the EUP
    # slot and avoids a VPU polynomial, at a tiny numeric deviation.
    m1 = jax.nn.gelu(m1, approximate=True)
    m2 = jnp.dot(m1.astype(bf16), w2_ref[l],
                 preferred_element_type=f32) + b2_ref[l]
    h = h + m2                                                          # residual

  # ---- final LN on CLS rows only (LN is per-row => exact) -> pooler ----
  cls_tok = h.reshape(N, S, H)[:, 0, :]                                 # (N, H)
  fin = layer_norm(cls_tok, fin_g_ref[...], fin_b_ref[...])
  pooled = jnp.tanh(jnp.dot(fin.astype(bf16), pool_w_ref[...],
                            preferred_element_type=f32) + pool_b_ref[...])

  # ---- mean over n_imgs -> fused classifier heads (regiao | especie) ----
  agg = jnp.mean(pooled.reshape(B, n_imgs, H), axis=1)                  # (B, H)
  logits = jnp.dot(agg.astype(bf16), head_w_ref[...],
                   preferred_element_type=f32) + head_b_ref[...]        # (B, R+E)
  logits_ref[...] = logits.astype(logits_ref.dtype)


# ----------------------------------------------------------------------------
# Parameters (deterministic init, HF-ViT-like structure) + packing
# ----------------------------------------------------------------------------

def init_params(key, cfg):
  n_patches = (cfg["image_size"] // cfg["patch_size"]) ** 2
  seq = n_patches + 1
  H = cfg["hidden"]
  patch_dim = cfg["channels"] * cfg["patch_size"] ** 2
  keys = iter(jax.random.split(key, 16 + 16 * cfg["layers"]))

  def nrm(shape, scale=0.02):
    return (scale * jax.random.normal(next(keys), shape)).astype(jnp.float32)

  params = {
      "patch_w": nrm((patch_dim, H)),
      "patch_b": jnp.zeros((1, H), jnp.float32),
      "cls": nrm((1, 1, H)),
      "pos": nrm((1, seq, H)),
      "final_ln_g": jnp.ones((1, H), jnp.float32),
      "final_ln_b": jnp.zeros((1, H), jnp.float32),
      "pooler_w": nrm((H, H)),
      "pooler_b": jnp.zeros((1, H), jnp.float32),
      "cls_regiao_w": nrm((H, cfg["num_regioes"])),
      "cls_regiao_b": jnp.zeros((1, cfg["num_regioes"]), jnp.float32),
      "cls_especie_w": nrm((H, cfg["num_especies"])),
      "cls_especie_b": jnp.zeros((1, cfg["num_especies"]), jnp.float32),
      "layers": [],
  }
  for _ in range(cfg["layers"]):
    params["layers"].append({
        "ln1_g": jnp.ones((1, H), jnp.float32),
        "ln1_b": jnp.zeros((1, H), jnp.float32),
        "wq": nrm((H, H)), "bq": jnp.zeros((1, H), jnp.float32),
        "wk": nrm((H, H)), "bk": jnp.zeros((1, H), jnp.float32),
        "wv": nrm((H, H)), "bv": jnp.zeros((1, H), jnp.float32),
        "wo": nrm((H, H)), "bo": jnp.zeros((1, H), jnp.float32),
        "ln2_g": jnp.ones((1, H), jnp.float32),
        "ln2_b": jnp.zeros((1, H), jnp.float32),
        "w1": nrm((H, cfg["mlp"])), "b1": jnp.zeros((1, cfg["mlp"]), jnp.float32),
        "w2": nrm((cfg["mlp"], H)), "b2": jnp.zeros((1, H), jnp.float32),
    })
  return params


def pack_params(params, cfg):
  """Stack per-layer weights, fuse QKV / classifier heads, fold the attention
  scale into the Q columns, and cast all matmul weights to bf16 (done once,
  host side)."""
  layers = params["layers"]
  H = cfg["hidden"]
  bf16 = jnp.bfloat16
  scale = 1.0 / math.sqrt(H // cfg["heads"])
  return dict(
      patch_w=params["patch_w"].astype(bf16),
      patch_b=params["patch_b"],
      cls=params["cls"].reshape(1, H),
      pos=params["pos"],
      ln1_g=jnp.stack([lp["ln1_g"] for lp in layers]),
      ln1_b=jnp.stack([lp["ln1_b"] for lp in layers]),
      # fused QKV with 1/sqrt(dh) folded into the Q slice
      wqkv=jnp.stack([jnp.concatenate(
          [lp["wq"] * scale, lp["wk"], lp["wv"]], axis=1)
          for lp in layers]).astype(bf16),
      bqkv=jnp.stack([jnp.concatenate(
          [lp["bq"] * scale, lp["bk"], lp["bv"]], axis=1)
          for lp in layers]),
      wo=jnp.stack([lp["wo"] for lp in layers]).astype(bf16),
      bo=jnp.stack([lp["bo"] for lp in layers]),
      ln2_g=jnp.stack([lp["ln2_g"] for lp in layers]),
      ln2_b=jnp.stack([lp["ln2_b"] for lp in layers]),
      w1=jnp.stack([lp["w1"] for lp in layers]).astype(bf16),
      b1=jnp.stack([lp["b1"] for lp in layers]),
      w2=jnp.stack([lp["w2"] for lp in layers]).astype(bf16),
      b2=jnp.stack([lp["b2"] for lp in layers]),
      fin_g=params["final_ln_g"], fin_b=params["final_ln_b"],
      pool_w=params["pooler_w"].astype(bf16), pool_b=params["pooler_b"],
      head_w=jnp.concatenate(
          [params["cls_regiao_w"], params["cls_especie_w"]], axis=1).astype(bf16),
      head_b=jnp.concatenate(
          [params["cls_regiao_b"], params["cls_especie_b"]], axis=1),
  )


# ----------------------------------------------------------------------------
# Forward wrapper: one host-side patch pre-pack + ONE pallas_call
# ----------------------------------------------------------------------------

def vit_multilabel_forward(x, packed, cfg):
  """x: (batch, n_imgs, C, H, W) float32 -> (regiao_logits, especie_logits)."""
  B, n_imgs, C, Himg, Wimg = x.shape
  P = cfg["patch_size"]
  H = cfg["hidden"]
  N = B * n_imgs
  Hn, Wn = Himg // P, Wimg // P
  S = Hn * Wn + 1
  R, E = cfg["num_regioes"], cfg["num_especies"]
  patch_dim = C * P * P

  # One-time host-side patch pre-pack (channel-major flatten matches
  # nn.Conv2d(C, H, P, stride=P) exactly). A zero row is prepended per image
  # so the kernel can place [CLS] with a select (no in-kernel concat/scratch).
  patches = (x.reshape(N, C, Hn, P, Wn, P)
               .transpose(0, 2, 4, 1, 3, 5)
               .reshape(N, Hn * Wn, patch_dim))
  patches = jnp.concatenate(
      [jnp.zeros((N, 1, patch_dim), patches.dtype), patches], axis=1)
  patches = patches.reshape(N * S, patch_dim).astype(jnp.bfloat16)

  kernel = functools.partial(
      _vit_fused_kernel,
      B=B, n_imgs=n_imgs, S=S, H=H,
      heads=cfg["heads"], layers=cfg["layers"], eps=cfg["ln_eps"])

  # Everything (weights + activations) fits VMEM at these shapes, so
  # whole-array VMEM blocks and no grid are used (gridless => one TC).
  logits = pl.pallas_call(
      kernel,
      out_shape=jax.ShapeDtypeStruct((B, R + E), jnp.float32),
      in_specs=[_VMEM] * 23,
      out_specs=_VMEM,
  )(patches,
    packed["patch_w"], packed["patch_b"], packed["cls"], packed["pos"],
    packed["ln1_g"], packed["ln1_b"], packed["wqkv"], packed["bqkv"],
    packed["wo"], packed["bo"], packed["ln2_g"], packed["ln2_b"],
    packed["w1"], packed["b1"], packed["w2"], packed["b2"],
    packed["fin_g"], packed["fin_b"], packed["pool_w"], packed["pool_b"],
    packed["head_w"], packed["head_b"])

  # split the fused classifier output outside the kernel
  return logits[:, :R], logits[:, R:R + E]


# ----------------------------------------------------------------------------
# main
# ----------------------------------------------------------------------------

if __name__ == "__main__":
  key = jax.random.PRNGKey(0)
  k_params, k_x = jax.random.split(key)

  params = init_params(k_params, CFG)
  packed = pack_params(params, CFG)

  batch, n_imgs = 2, 2
  x = jax.random.normal(
      k_x, (batch, n_imgs, CFG["channels"], CFG["image_size"], CFG["image_size"]),
      dtype=jnp.float32)

  fwd = jax.jit(functools.partial(vit_multilabel_forward, cfg=CFG))
  regiao_logits, especie_logits = fwd(x, packed)
  jax.block_until_ready((regiao_logits, especie_logits))

  assert regiao_logits.shape == (batch, CFG["num_regioes"])
  assert especie_logits.shape == (batch, CFG["num_especies"])
  assert bool(jnp.all(jnp.isfinite(regiao_logits)))
  assert bool(jnp.all(jnp.isfinite(especie_logits)))

  print("KERNEL_OK")
</pallas_src>

<mosaic_0001>
module attributes {stable_mosaic.version = 11 : i64} {
  func.func @_vit_fused_kernel(%arg0: memref<20x192xbf16, #tpu.memory_space<vmem>>, %arg1: memref<192x32xbf16, #tpu.memory_space<vmem>>, %arg2: memref<1x32xf32, #tpu.memory_space<vmem>>, %arg3: memref<1x32xf32, #tpu.memory_space<vmem>>, %arg4: memref<1x5x32xf32, #tpu.memory_space<vmem>>, %arg5: memref<2x1x32xf32, #tpu.memory_space<vmem>>, %arg6: memref<2x1x32xf32, #tpu.memory_space<vmem>>, %arg7: memref<2x32x96xbf16, #tpu.memory_space<vmem>>, %arg8: memref<2x1x96xf32, #tpu.memory_space<vmem>>, %arg9: memref<2x32x32xbf16, #tpu.memory_space<vmem>>, %arg10: memref<2x1x32xf32, #tpu.memory_space<vmem>>, %arg11: memref<2x1x32xf32, #tpu.memory_space<vmem>>, %arg12: memref<2x1x32xf32, #tpu.memory_space<vmem>>, %arg13: memref<2x32x128xbf16, #tpu.memory_space<vmem>>, %arg14: memref<2x1x128xf32, #tpu.memory_space<vmem>>, %arg15: memref<2x128x32xbf16, #tpu.memory_space<vmem>>, %arg16: memref<2x1x32xf32, #tpu.memory_space<vmem>>, %arg17: memref<1x32xf32, #tpu.memory_space<vmem>>, %arg18: memref<1x32xf32, #tpu.memory_space<vmem>>, %arg19: memref<32x32xbf16, #tpu.memory_space<vmem>>, %arg20: memref<1x32xf32, #tpu.memory_space<vmem>>, %arg21: memref<32x12xbf16, #tpu.memory_space<vmem>>, %arg22: memref<1x12xf32, #tpu.memory_space<vmem>>, %arg23: memref<2x12xf32, #tpu.memory_space<vmem>>) attributes {dimension_semantics = [], scalar_prefetch = 0 : i64, scratch_operands = 0 : i64, tpu.core_type = #tpu.core_type<tc>} {
    %c0 = arith.constant 0 : index
    %c0_0 = arith.constant 0 : index
    %0 = vector.load %arg0[%c0, %c0_0] : memref<20x192xbf16, #tpu.memory_space<vmem>>, vector<20x192xbf16>
    %c0_1 = arith.constant 0 : index
    %c0_2 = arith.constant 0 : index
    %1 = vector.load %arg1[%c0_1, %c0_2] : memref<192x32xbf16, #tpu.memory_space<vmem>>, vector<192x32xbf16>
    %cst = arith.constant dense<0.000000e+00> : vector<20x32xf32>
    %2 = tpu.matmul %0, %1, %cst {dimension_numbers = #tpu.dot_dimension_numbers<[1], [0], [0], [1], [0, 0, 1, 1], [], []>} : vector<20x192xbf16>, vector<192x32xbf16>, vector<20x32xf32> -> vector<20x32xf32>
    %c0_3 = arith.constant 0 : index
    %c0_4 = arith.constant 0 : index
    %3 = vector.load %arg2[%c0_3, %c0_4] : memref<1x32xf32, #tpu.memory_space<vmem>>, vector<1x32xf32>
    %4 = vector.broadcast %3 : vector<1x32xf32> to vector<20x32xf32>
    %5 = arith.addf %2, %4 : vector<20x32xf32>
    %6 = vector.shape_cast %5 : vector<20x32xf32> to vector<4x5x32xf32>
    %7 = tpu.iota {dimensions = array<i32: 1>} : vector<4x5x32xi32>
    %c0_5 = arith.constant 0 : index
    %c0_6 = arith.constant 0 : index
    %8 = vector.load %arg3[%c0_5, %c0_6] : memref<1x32xf32, #tpu.memory_space<vmem>>, vector<1x32xf32>
    %9 = vector.shape_cast %8 : vector<1x32xf32> to vector<1x1x32xf32>
    %10 = vector.shape_cast %9 : vector<1x1x32xf32> to vector<1x1x32xf32>
    %11 = vector.broadcast %10 : vector<1x1x32xf32> to vector<4x5x32xf32>
    %c0_i32 = arith.constant 0 : i32
    %12 = vector.broadcast %c0_i32 : i32 to vector<4x5x32xi32>
    %13 = arith.cmpi eq, %7, %12 : vector<4x5x32xi32>
    %14 = arith.select %13, %11, %6 : vector<4x5x32xi1>, vector<4x5x32xf32>
    %c0_7 = arith.constant 0 : index
    %c0_8 = arith.constant 0 : index
    %c0_9 = arith.constant 0 : index
    %15 = vector.load %arg4[%c0_7, %c0_8, %c0_9] : memref<1x5x32xf32, #tpu.memory_space<vmem>>, vector<1x5x32xf32>
    %16 = vector.broadcast %15 : vector<1x5x32xf32> to vector<4x5x32xf32>
    %17 = arith.addf %14, %16 : vector<4x5x32xf32>
    %18 = vector.shape_cast %17 : vector<4x5x32xf32> to vector<20x32xf32>
    %c0_10 = arith.constant 0 : index
    %c0_11 = arith.constant 0 : index
    %c0_12 = arith.constant 0 : index
    %19 = vector.load %arg5[%c0_10, %c0_11, %c0_12] : memref<2x1x32xf32, #tpu.memory_space<vmem>>, vector<1x1x32xf32>
    %20 = vector.shape_cast %19 : vector<1x1x32xf32> to vector<1x32xf32>
    %c0_13 = arith.constant 0 : index
    %c0_14 = arith.constant 0 : index
    %c0_15 = arith.constant 0 : index
    %21 = vector.load %arg6[%c0_13, %c0_14, %c0_15] : memref<2x1x32xf32, #tpu.memory_space<vmem>>, vector<1x1x32xf32>
    %22 = vector.shape_cast %21 : vector<1x1x32xf32> to vector<1x32xf32>
    %cst_16 = arith.constant dense<0.000000e+00> : vector<20xf32>
    %23 = vector.multi_reduction <add>, %18, %cst_16 [1] : vector<20x32xf32> to vector<20xf32>
    %24 = vector.shape_cast %23 : vector<20xf32> to vector<20x1xf32>
    %cst_17 = arith.constant 3.200000e+01 : f32
    %25 = vector.broadcast %cst_17 : f32 to vector<20x1xf32>
    %26 = arith.divf %24, %25 : vector<20x1xf32>
    %27 = vector.broadcast %26 : vector<20x1xf32> to vector<20x32xf32>
    %28 = arith.subf %18, %27 : vector<20x32xf32>
    %29 = arith.mulf %28, %28 : vector<20x32xf32>
    %cst_18 = arith.constant dense<0.000000e+00> : vector<20xf32>
    %30 = vector.multi_reduction <add>, %29, %cst_18 [1] : vector<20x32xf32> to vector<20xf32>
    %31 = vector.shape_cast %30 : vector<20xf32> to vector<20x1xf32>
    %cst_19 = arith.constant 3.200000e+01 : f32
    %32 = vector.broadcast %cst_19 : f32 to vector<20x1xf32>
    %33 = arith.divf %31, %32 : vector<20x1xf32>
    %34 = vector.broadcast %26 : vector<20x1xf32> to vector<20x32xf32>
    %35 = arith.subf %18, %34 : vector<20x32xf32>
    %cst_20 = arith.constant 9.99999996E-13 : f32
    %36 = vector.broadcast %cst_20 : f32 to vector<20x1xf32>
    %37 = arith.addf %33, %36 : vector<20x1xf32>
    %38 = math.rsqrt %37 : vector<20x1xf32>
    %39 = vector.broadcast %38 : vector<20x1xf32> to vector<20x32xf32>
    %40 = arith.mulf %35, %39 : vector<20x32xf32>
    %41 = vector.broadcast %20 : vector<1x32xf32> to vector<20x32xf32>
    %42 = arith.mulf %40, %41 : vector<20x32xf32>
    %43 = vector.broadcast %22 : vector<1x32xf32> to vector<20x32xf32>
    %44 = arith.addf %42, %43 : vector<20x32xf32>
    %45 = arith.truncf %44 : vector<20x32xf32> to vector<20x32xbf16>
    %c0_21 = arith.constant 0 : index
    %c0_22 = arith.constant 0 : index
    %c0_23 = arith.constant 0 : index
    %46 = vector.load %arg7[%c0_21, %c0_22, %c0_23] : memref<2x32x96xbf16, #tpu.memory_space<vmem>>, vector<1x32x96xbf16>
    %47 = vector.shape_cast %46 : vector<1x32x96xbf16> to vector<32x96xbf16>
    %cst_24 = arith.constant dense<0.000000e+00> : vector<20x96xf32>
    %48 = tpu.matmul %45, %47, %cst_24 {dimension_numbers = #tpu.dot_dimension_numbers<[1], [0], [0], [1], [0, 0, 1, 1], [], []>} : vector<20x32xbf16>, vector<32x96xbf16>, vector<20x96xf32> -> vector<20x96xf32>
    %c0_25 = arith.constant 0 : index
    %c0_26 = arith.constant 0 : index
    %c0_27 = arith.constant 0 : index
    %49 = vector.load %arg8[%c0_25, %c0_26, %c0_27] : memref<2x1x96xf32, #tpu.memory_space<vmem>>, vector<1x1x96xf32>
    %50 = vector.shape_cast %49 : vector<1x1x96xf32> to vector<1x96xf32>
    %51 = vector.broadcast %50 : vector<1x96xf32> to vector<20x96xf32>
    %52 = arith.addf %48, %51 : vector<20x96xf32>
    %53 = arith.truncf %52 : vector<20x96xf32> to vector<20x96xbf16>
    %c0_28 = arith.constant 0 : index
    %c0_29 = arith.constant 0 : index
    %c0_30 = arith.constant 0 : index
    %54 = vector.load %arg9[%c0_28, %c0_29, %c0_30] : memref<2x32x32xbf16, #tpu.memory_space<vmem>>, vector<1x32x32xbf16>
    %55 = vector.shape_cast %54 : vector<1x32x32xbf16> to vector<32x32xbf16>
    %cst_31 = arith.constant 0.000000e+00 : f32
    %56 = vector.broadcast %cst_31 : f32 to vector<20x32xf32>
    %57 = vector.extract_strided_slice %53 {offsets = [0, 0], sizes = [20, 8], strides = [1, 1]} : vector<20x96xbf16> to vector<20x8xbf16>
    %58 = vector.shape_cast %57 : vector<20x8xbf16> to vector<4x5x8xbf16>
    %59 = vector.extract_strided_slice %53 {offsets = [0, 32], sizes = [20, 8], strides = [1, 1]} : vector<20x96xbf16> to vector<20x8xbf16>
    %60 = vector.shape_cast %59 : vector<20x8xbf16> to vector<4x5x8xbf16>
    %61 = vector.extract_strided_slice %53 {offsets = [0, 64], sizes = [20, 8], strides = [1, 1]} : vector<20x96xbf16> to vector<20x8xbf16>
    %62 = vector.shape_cast %61 : vector<20x8xbf16> to vector<4x5x8xbf16>
    "tpu.trace_start"() <{level = 10 : i32, message = "bqd,bkd->bqk"}> : () -> ()
    %cst_32 = arith.constant dense<0.000000e+00> : vector<4x5x5xf32>
    %63 = tpu.matmul %58, %60, %cst_32 {dimension_numbers = #tpu.dot_dimension_numbers<[2], [2], [1], [1], [0, 0, 0, 1, 1, 1], [0], [0]>} : vector<4x5x8xbf16>, vector<4x5x8xbf16>, vector<4x5x5xf32> -> vector<4x5x5xf32>
    "tpu.trace_stop"() : () -> ()
    %cst_33 = arith.constant dense<0xFF800000> : vector<4x5xf32>
    %64 = vector.multi_reduction <maximumf>, %63, %cst_33 [2] : vector<4x5x5xf32> to vector<4x5xf32>
    %65 = vector.shape_cast %64 : vector<4x5xf32> to vector<4x5x1xf32>
    %66 = vector.broadcast %65 : vector<4x5x1xf32> to vector<4x5x5xf32>
    %67 = arith.subf %63, %66 : vector<4x5x5xf32>
    %68 = math.exp %67 : vector<4x5x5xf32>
    %cst_34 = arith.constant dense<0.000000e+00> : vector<4x5xf32>
    %69 = vector.multi_reduction <add>, %68, %cst_34 [2] : vector<4x5x5xf32> to vector<4x5xf32>
    %70 = vector.shape_cast %69 : vector<4x5xf32> to vector<4x5x1xf32>
    %71 = arith.truncf %68 : vector<4x5x5xf32> to vector<4x5x5xbf16>
    "tpu.trace_start"() <{level = 10 : i32, message = "bqk,bkd->bqd"}> : () -> ()
    %cst_35 = arith.constant dense<0.000000e+00> : vector<4x5x8xf32>
    %72 = tpu.matmul %71, %62, %cst_35 {dimension_numbers = #tpu.dot_dimension_numbers<[2], [1], [1], [2], [0, 0, 0, 1, 1, 2], [0], [0]>} : vector<4x5x5xbf16>, vector<4x5x8xbf16>, vector<4x5x8xf32> -> vector<4x5x8xf32>
    "tpu.trace_stop"() : () -> ()
    %73 = tpu.reciprocal %70 {approx = true} : vector<4x5x1xf32> -> vector<4x5x1xf32>
    %74 = vector.broadcast %73 : vector<4x5x1xf32> to vector<4x5x8xf32>
    %75 = arith.mulf %72, %74 : vector<4x5x8xf32>
    %76 = vector.shape_cast %75 : vector<4x5x8xf32> to vector<20x8xf32>
    %77 = arith.truncf %76 : vector<20x8xf32> to vector<20x8xbf16>
    %78 = vector.extract_strided_slice %55 {offsets = [0, 0], sizes = [8, 32], strides = [1, 1]} : vector<32x32xbf16> to vector<8x32xbf16>
    %cst_36 = arith.constant dense<0.000000e+00> : vector<20x32xf32>
    %79 = tpu.matmul %77, %78, %cst_36 {dimension_numbers = #tpu.dot_dimension_numbers<[1], [0], [0], [1], [0, 0, 1, 1], [], []>} : vector<20x8xbf16>, vector<8x32xbf16>, vector<20x32xf32> -> vector<20x32xf32>
    %80 = arith.addf %56, %79 : vector<20x32xf32>
    %81 = vector.extract_strided_slice %53 {offsets = [0, 8], sizes = [20, 8], strides = [1, 1]} : vector<20x96xbf16> to vector<20x8xbf16>
    %82 = vector.shape_cast %81 : vector<20x8xbf16> to vector<4x5x8xbf16>
    %83 = vector.extract_strided_slice %53 {offsets = [0, 40], sizes = [20, 8], strides = [1, 1]} : vector<20x96xbf16> to vector<20x8xbf16>
    %84 = vector.shape_cast %83 : vector<20x8xbf16> to vector<4x5x8xbf16>
    %85 = vector.extract_strided_slice %53 {offsets = [0, 72], sizes = [20, 8], strides = [1, 1]} : vector<20x96xbf16> to vector<20x8xbf16>
    %86 = vector.shape_cast %85 : vector<20x8xbf16> to vector<4x5x8xbf16>
    "tpu.trace_start"() <{level = 10 : i32, message = "bqd,bkd->bqk"}> : () -> ()
    %cst_37 = arith.constant dense<0.000000e+00> : vector<4x5x5xf32>
    %87 = tpu.matmul %82, %84, %cst_37 {dimension_numbers = #tpu.dot_dimension_numbers<[2], [2], [1], [1], [0, 0, 0, 1, 1, 1], [0], [0]>} : vector<4x5x8xbf16>, vector<4x5x8xbf16>, vector<4x5x5xf32> -> vector<4x5x5xf32>
    "tpu.trace_stop"() : () -> ()
    %cst_38 = arith.constant dense<0xFF800000> : vector<4x5xf32>
    %88 = vector.multi_reduction <maximumf>, %87, %cst_38 [2] : vector<4x5x5xf32> to vector<4x5xf32>
    %89 = vector.shape_cast %88 : vector<4x5xf32> to vector<4x5x1xf32>
    %90 = vector.broadcast %89 : vector<4x5x1xf32> to vector<4x5x5xf32>
    %91 = arith.subf %87, %90 : vector<4x5x5xf32>
    %92 = math.exp %91 : vector<4x5x5xf32>
    %cst_39 = arith.constant dense<0.000000e+00> : vector<4x5xf32>
    %93 = vector.multi_reduction <add>, %92, %cst_39 [2] : vector<4x5x5xf32> to vector<4x5xf32>
    %94 = vector.shape_cast %93 : vector<4x5xf32> to vector<4x5x1xf32>
    %95 = arith.truncf %92 : vector<4x5x5xf32> to vector<4x5x5xbf16>
    "tpu.trace_start"() <{level = 10 : i32, message = "bqk,bkd->bqd"}> : () -> ()
    %cst_40 = arith.constant dense<0.000000e+00> : vector<4x5x8xf32>
    %96 = tpu.matmul %95, %86, %cst_40 {dimension_numbers = #tpu.dot_dimension_numbers<[2], [1], [1], [2], [0, 0, 0, 1, 1, 2], [0], [0]>} : vector<4x5x5xbf16>, vector<4x5x8xbf16>, vector<4x5x8xf32> -> vector<4x5x8xf32>
    "tpu.trace_stop"() : () -> ()
    %97 = tpu.reciprocal %94 {approx = true} : vector<4x5x1xf32> -> vector<4x5x1xf32>
    %98 = vector.broadcast %97 : vector<4x5x1xf32> to vector<4x5x8xf32>
    %99 = arith.mulf %96, %98 : vector<4x5x8xf32>
    %100 = vector.shape_cast %99 : vector<4x5x8xf32> to vector<20x8xf32>
    %101 = arith.truncf %100 : vector<20x8xf32> to vector<20x8xbf16>
    %102 = vector.extract_strided_slice %55 {offsets = [8, 0], sizes = [8, 32], strides = [1, 1]} : vector<32x32xbf16> to vector<8x32xbf16>
    %cst_41 = arith.constant dense<0.000000e+00> : vector<20x32xf32>
    %103 = tpu.matmul %101, %102, %cst_41 {dimension_numbers = #tpu.dot_dimension_numbers<[1], [0], [0], [1], [0, 0, 1, 1], [], []>} : vector<20x8xbf16>, vector<8x32xbf16>, vector<20x32xf32> -> vector<20x32xf32>
    %104 = arith.addf %80, %103 : vector<20x32xf32>
    %105 = vector.extract_strided_slice %53 {offsets = [0, 16], sizes = [20, 8], strides = [1, 1]} : vector<20x96xbf16> to vector<20x8xbf16>
    %106 = vector.shape_cast %105 : vector<20x8xbf16> to vector<4x5x8xbf16>
    %107 = vector.extract_strided_slice %53 {offsets = [0, 48], sizes = [20, 8], strides = [1, 1]} : vector<20x96xbf16> to vector<20x8xbf16>
    %108 = vector.shape_cast %107 : vector<20x8xbf16> to vector<4x5x8xbf16>
    %109 = vector.extract_strided_slice %53 {offsets = [0, 80], sizes = [20, 8], strides = [1, 1]} : vector<20x96xbf16> to vector<20x8xbf16>
    %110 = vector.shape_cast %109 : vector<20x8xbf16> to vector<4x5x8xbf16>
    "tpu.trace_start"() <{level = 10 : i32, message = "bqd,bkd->bqk"}> : () -> ()
    %cst_42 = arith.constant dense<0.000000e+00> : vector<4x5x5xf32>
    %111 = tpu.matmul %106, %108, %cst_42 {dimension_numbers = #tpu.dot_dimension_numbers<[2], [2], [1], [1], [0, 0, 0, 1, 1, 1], [0], [0]>} : vector<4x5x8xbf16>, vector<4x5x8xbf16>, vector<4x5x5xf32> -> vector<4x5x5xf32>
    "tpu.trace_stop"() : () -> ()
    %cst_43 = arith.constant dense<0xFF800000> : vector<4x5xf32>
    %112 = vector.multi_reduction <maximumf>, %111, %cst_43 [2] : vector<4x5x5xf32> to vector<4x5xf32>
    %113 = vector.shape_cast %112 : vector<4x5xf32> to vector<4x5x1xf32>
    %114 = vector.broadcast %113 : vector<4x5x1xf32> to vector<4x5x5xf32>
    %115 = arith.subf %111, %114 : vector<4x5x5xf32>
    %116 = math.exp %115 : vector<4x5x5xf32>
    %cst_44 = arith.constant dense<0.000000e+00> : vector<4x5xf32>
    %117 = vector.multi_reduction <add>, %116, %cst_44 [2] : vector<4x5x5xf32> to vector<4x5xf32>
    %118 = vector.shape_cast %117 : vector<4x5xf32> to vector<4x5x1xf32>
    %119 = arith.truncf %116 : vector<4x5x5xf32> to vector<4x5x5xbf16>
    "tpu.trace_start"() <{level = 10 : i32, message = "bqk,bkd->bqd"}> : () -> ()
    %cst_45 = arith.constant dense<0.000000e+00> : vector<4x5x8xf32>
    %120 = tpu.matmul %119, %110, %cst_45 {dimension_numbers = #tpu.dot_dimension_numbers<[2], [1], [1], [2], [0, 0, 0, 1, 1, 2], [0], [0]>} : vector<4x5x5xbf16>, vector<4x5x8xbf16>, vector<4x5x8xf32> -> vector<4x5x8xf32>
    "tpu.trace_stop"() : () -> ()
    %121 = tpu.reciprocal %118 {approx = true} : vector<4x5x1xf32> -> vector<4x5x1xf32>
    %122 = vector.broadcast %121 : vector<4x5x1xf32> to vector<4x5x8xf32>
    %123 = arith.mulf %120, %122 : vector<4x5x8xf32>
    %124 = vector.shape_cast %123 : vector<4x5x8xf32> to vector<20x8xf32>
    %125 = arith.truncf %124 : vector<20x8xf32> to vector<20x8xbf16>
    %126 = vector.extract_strided_slice %55 {offsets = [16, 0], sizes = [8, 32], strides = [1, 1]} : vector<32x32xbf16> to vector<8x32xbf16>
    %cst_46 = arith.constant dense<0.000000e+00> : vector<20x32xf32>
    %127 = tpu.matmul %125, %126, %cst_46 {dimension_numbers = #tpu.dot_dimension_numbers<[1], [0], [0], [1], [0, 0, 1, 1], [], []>} : vector<20x8xbf16>, vector<8x32xbf16>, vector<20x32xf32> -> vector<20x32xf32>
    %128 = arith.addf %104, %127 : vector<20x32xf32>
    %129 = vector.extract_strided_slice %53 {offsets = [0, 24], sizes = [20, 8], strides = [1, 1]} : vector<20x96xbf16> to vector<20x8xbf16>
    %130 = vector.shape_cast %129 : vector<20x8xbf16> to vector<4x5x8xbf16>
    %131 = vector.extract_strided_slice %53 {offsets = [0, 56], sizes = [20, 8], strides = [1, 1]} : vector<20x96xbf16> to vector<20x8xbf16>
    %132 = vector.shape_cast %131 : vector<20x8xbf16> to vector<4x5x8xbf16>
    %133 = vector.extract_strided_slice %53 {offsets = [0, 88], sizes = [20, 8], strides = [1, 1]} : vector<20x96xbf16> to vector<20x8xbf16>
    %134 = vector.shape_cast %133 : vector<20x8xbf16> to vector<4x5x8xbf16>
    "tpu.trace_start"() <{level = 10 : i32, message = "bqd,bkd->bqk"}> : () -> ()
    %cst_47 = arith.constant dense<0.000000e+00> : vector<4x5x5xf32>
    %135 = tpu.matmul %130, %132, %cst_47 {dimension_numbers = #tpu.dot_dimension_numbers<[2], [2], [1], [1], [0, 0, 0, 1, 1, 1], [0], [0]>} : vector<4x5x8xbf16>, vector<4x5x8xbf16>, vector<4x5x5xf32> -> vector<4x5x5xf32>
    "tpu.trace_stop"() : () -> ()
    %cst_48 = arith.constant dense<0xFF800000> : vector<4x5xf32>
    %136 = vector.multi_reduction <maximumf>, %135, %cst_48 [2] : vector<4x5x5xf32> to vector<4x5xf32>
    %137 = vector.shape_cast %136 : vector<4x5xf32> to vector<4x5x1xf32>
    %138 = vector.broadcast %137 : vector<4x5x1xf32> to vector<4x5x5xf32>
    %139 = arith.subf %135, %138 : vector<4x5x5xf32>
    %140 = math.exp %139 : vector<4x5x5xf32>
    %cst_49 = arith.constant dense<0.000000e+00> : vector<4x5xf32>
    %141 = vector.multi_reduction <add>, %140, %cst_49 [2] : vector<4x5x5xf32> to vector<4x5xf32>
    %142 = vector.shape_cast %141 : vector<4x5xf32> to vector<4x5x1xf32>
    %143 = arith.truncf %140 : vector<4x5x5xf32> to vector<4x5x5xbf16>
    "tpu.trace_start"() <{level = 10 : i32, message = "bqk,bkd->bqd"}> : () -> ()
    %cst_50 = arith.constant dense<0.000000e+00> : vector<4x5x8xf32>
    %144 = tpu.matmul %143, %134, %cst_50 {dimension_numbers = #tpu.dot_dimension_numbers<[2], [1], [1], [2], [0, 0, 0, 1, 1, 2], [0], [0]>} : vector<4x5x5xbf16>, vector<4x5x8xbf16>, vector<4x5x8xf32> -> vector<4x5x8xf32>
    "tpu.trace_stop"() : () -> ()
    %145 = tpu.reciprocal %142 {approx = true} : vector<4x5x1xf32> -> vector<4x5x1xf32>
    %146 = vector.broadcast %145 : vector<4x5x1xf32> to vector<4x5x8xf32>
    %147 = arith.mulf %144, %146 : vector<4x5x8xf32>
    %148 = vector.shape_cast %147 : vector<4x5x8xf32> to vector<20x8xf32>
    %149 = arith.truncf %148 : vector<20x8xf32> to vector<20x8xbf16>
    %150 = vector.extract_strided_slice %55 {offsets = [24, 0], sizes = [8, 32], strides = [1, 1]} : vector<32x32xbf16> to vector<8x32xbf16>
    %cst_51 = arith.constant dense<0.000000e+00> : vector<20x32xf32>
    %151 = tpu.matmul %149, %150, %cst_51 {dimension_numbers = #tpu.dot_dimension_numbers<[1], [0], [0], [1], [0, 0, 1, 1], [], []>} : vector<20x8xbf16>, vector<8x32xbf16>, vector<20x32xf32> -> vector<20x32xf32>
    %152 = arith.addf %128, %151 : vector<20x32xf32>
    %153 = arith.addf %18, %152 : vector<20x32xf32>
    %c0_52 = arith.constant 0 : index
    %c0_53 = arith.constant 0 : index
    %c0_54 = arith.constant 0 : index
    %154 = vector.load %arg10[%c0_52, %c0_53, %c0_54] : memref<2x1x32xf32, #tpu.memory_space<vmem>>, vector<1x1x32xf32>
    %155 = vector.shape_cast %154 : vector<1x1x32xf32> to vector<1x32xf32>
    %156 = vector.broadcast %155 : vector<1x32xf32> to vector<20x32xf32>
    %157 = arith.addf %153, %156 : vector<20x32xf32>
    %c0_55 = arith.constant 0 : index
    %c0_56 = arith.constant 0 : index
    %c0_57 = arith.constant 0 : index
    %158 = vector.load %arg11[%c0_55, %c0_56, %c0_57] : memref<2x1x32xf32, #tpu.memory_space<vmem>>, vector<1x1x32xf32>
    %159 = vector.shape_cast %158 : vector<1x1x32xf32> to vector<1x32xf32>
    %c0_58 = arith.constant 0 : index
    %c0_59 = arith.constant 0 : index
    %c0_60 = arith.constant 0 : index
    %160 = vector.load %arg12[%c0_58, %c0_59, %c0_60] : memref<2x1x32xf32, #tpu.memory_space<vmem>>, vector<1x1x32xf32>
    %161 = vector.shape_cast %160 : vector<1x1x32xf32> to vector<1x32xf32>
    %cst_61 = arith.constant dense<0.000000e+00> : vector<20xf32>
    %162 = vector.multi_reduction <add>, %157, %cst_61 [1] : vector<20x32xf32> to vector<20xf32>
    %163 = vector.shape_cast %162 : vector<20xf32> to vector<20x1xf32>
    %cst_62 = arith.constant 3.200000e+01 : f32
    %164 = vector.broadcast %cst_62 : f32 to vector<20x1xf32>
    %165 = arith.divf %163, %164 : vector<20x1xf32>
    %166 = vector.broadcast %165 : vector<20x1xf32> to vector<20x32xf32>
    %167 = arith.subf %157, %166 : vector<20x32xf32>
    %168 = arith.mulf %167, %167 : vector<20x32xf32>
    %cst_63 = arith.constant dense<0.000000e+00> : vector<20xf32>
    %169 = vector.multi_reduction <add>, %168, %cst_63 [1] : vector<20x32xf32> to vector<20xf32>
    %170 = vector.shape_cast %169 : vector<20xf32> to vector<20x1xf32>
    %cst_64 = arith.constant 3.200000e+01 : f32
    %171 = vector.broadcast %cst_64 : f32 to vector<20x1xf32>
    %172 = arith.divf %170, %171 : vector<20x1xf32>
    %173 = vector.broadcast %165 : vector<20x1xf32> to vector<20x32xf32>
    %174 = arith.subf %157, %173 : vector<20x32xf32>
    %cst_65 = arith.constant 9.99999996E-13 : f32
    %175 = vector.broadcast %cst_65 : f32 to vector<20x1xf32>
    %176 = arith.addf %172, %175 : vector<20x1xf32>
    %177 = math.rsqrt %176 : vector<20x1xf32>
    %178 = vector.broadcast %177 : vector<20x1xf32> to vector<20x32xf32>
    %179 = arith.mulf %174, %178 : vector<20x32xf32>
    %180 = vector.broadcast %159 : vector<1x32xf32> to vector<20x32xf32>
    %181 = arith.mulf %179, %180 : vector<20x32xf32>
    %182 = vector.broadcast %161 : vector<1x32xf32> to vector<20x32xf32>
    %183 = arith.addf %181, %182 : vector<20x32xf32>
    %184 = arith.truncf %183 : vector<20x32xf32> to vector<20x32xbf16>
    %c0_66 = arith.constant 0 : index
    %c0_67 = arith.constant 0 : index
    %c0_68 = arith.constant 0 : index
    %185 = vector.load %arg13[%c0_66, %c0_67, %c0_68] : memref<2x32x128xbf16, #tpu.memory_space<vmem>>, vector<1x32x128xbf16>
    %186 = vector.shape_cast %185 : vector<1x32x128xbf16> to vector<32x128xbf16>
    %cst_69 = arith.constant dense<0.000000e+00> : vector<20x128xf32>
    %187 = tpu.matmul %184, %186, %cst_69 {dimension_numbers = #tpu.dot_dimension_numbers<[1], [0], [0], [1], [0, 0, 1, 1], [], []>} : vector<20x32xbf16>, vector<32x128xbf16>, vector<20x128xf32> -> vector<20x128xf32>
    %c0_70 = arith.constant 0 : index
    %c0_71 = arith.constant 0 : index
    %c0_72 = arith.constant 0 : index
    %188 = vector.load %arg14[%c0_70, %c0_71, %c0_72] : memref<2x1x128xf32, #tpu.memory_space<vmem>>, vector<1x1x128xf32>
    %189 = vector.shape_cast %188 : vector<1x1x128xf32> to vector<1x128xf32>
    %190 = vector.broadcast %189 : vector<1x128xf32> to vector<20x128xf32>
    %191 = arith.addf %187, %190 : vector<20x128xf32>
    %192 = arith.mulf %191, %191 : vector<20x128xf32>
    %193 = arith.mulf %191, %192 : vector<20x128xf32>
    %cst_73 = arith.constant 4.471500e-02 : f32
    %194 = vector.broadcast %cst_73 : f32 to vector<20x128xf32>
    %195 = arith.mulf %194, %193 : vector<20x128xf32>
    %196 = arith.addf %191, %195 : vector<20x128xf32>
    %cst_74 = arith.constant 0.797884583 : f32
    %197 = vector.broadcast %cst_74 : f32 to vector<20x128xf32>
    %198 = arith.mulf %197, %196 : vector<20x128xf32>
    %199 = math.tanh %198 : vector<20x128xf32>
    %cst_75 = arith.constant 1.000000e+00 : f32
    %200 = vector.broadcast %cst_75 : f32 to vector<20x128xf32>
    %201 = arith.addf %200, %199 : vector<20x128xf32>
    %cst_76 = arith.constant 5.000000e-01 : f32
    %202 = vector.broadcast %cst_76 : f32 to vector<20x128xf32>
    %203 = arith.mulf %202, %201 : vector<20x128xf32>
    %204 = arith.mulf %191, %203 : vector<20x128xf32>
    %205 = arith.truncf %204 : vector<20x128xf32> to vector<20x128xbf16>
    %c0_77 = arith.constant 0 : index
    %c0_78 = arith.constant 0 : index
    %c0_79 = arith.constant 0 : index
    %206 = vector.load %arg15[%c0_77, %c0_78, %c0_79] : memref<2x128x32xbf16, #tpu.memory_space<vmem>>, vector<1x128x32xbf16>
    %207 = vector.shape_cast %206 : vector<1x128x32xbf16> to vector<128x32xbf16>
    %cst_80 = arith.constant dense<0.000000e+00> : vector<20x32xf32>
    %208 = tpu.matmul %205, %207, %cst_80 {dimension_numbers = #tpu.dot_dimension_numbers<[1], [0], [0], [1], [0, 0, 1, 1], [], []>} : vector<20x128xbf16>, vector<128x32xbf16>, vector<20x32xf32> -> vector<20x32xf32>
    %c0_81 = arith.constant 0 : index
    %c0_82 = arith.constant 0 : index
    %c0_83 = arith.constant 0 : index
    %209 = vector.load %arg16[%c0_81, %c0_82, %c0_83] : memref<2x1x32xf32, #tpu.memory_space<vmem>>, vector<1x1x32xf32>
    %210 = vector.shape_cast %209 : vector<1x1x32xf32> to vector<1x32xf32>
    %211 = vector.broadcast %210 : vector<1x32xf32> to vector<20x32xf32>
    %212 = arith.addf %208, %211 : vector<20x32xf32>
    %213 = arith.addf %157, %212 : vector<20x32xf32>
    %c1 = arith.constant 1 : index
    %c0_84 = arith.constant 0 : index
    %c0_85 = arith.constant 0 : index
    %214 = vector.load %arg5[%c1, %c0_84, %c0_85] : memref<2x1x32xf32, #tpu.memory_space<vmem>>, vector<1x1x32xf32>
    %215 = vector.shape_cast %214 : vector<1x1x32xf32> to vector<1x32xf32>
    %c1_86 = arith.constant 1 : index
    %c0_87 = arith.constant 0 : index
    %c0_88 = arith.constant 0 : index
    %216 = vector.load %arg6[%c1_86, %c0_87, %c0_88] : memref<2x1x32xf32, #tpu.memory_space<vmem>>, vector<1x1x32xf32>
    %217 = vector.shape_cast %216 : vector<1x1x32xf32> to vector<1x32xf32>
    %cst_89 = arith.constant dense<0.000000e+00> : vector<20xf32>
    %218 = vector.multi_reduction <add>, %213, %cst_89 [1] : vector<20x32xf32> to vector<20xf32>
    %219 = vector.shape_cast %218 : vector<20xf32> to vector<20x1xf32>
    %cst_90 = arith.constant 3.200000e+01 : f32
    %220 = vector.broadcast %cst_90 : f32 to vector<20x1xf32>
    %221 = arith.divf %219, %220 : vector<20x1xf32>
    %222 = vector.broadcast %221 : vector<20x1xf32> to vector<20x32xf32>
    %223 = arith.subf %213, %222 : vector<20x32xf32>
    %224 = arith.mulf %223, %223 : vector<20x32xf32>
    %cst_91 = arith.constant dense<0.000000e+00> : vector<20xf32>
    %225 = vector.multi_reduction <add>, %224, %cst_91 [1] : vector<20x32xf32> to vector<20xf32>
    %226 = vector.shape_cast %225 : vector<20xf32> to vector<20x1xf32>
    %cst_92 = arith.constant 3.200000e+01 : f32
    %227 = vector.broadcast %cst_92 : f32 to vector<20x1xf32>
    %228 = arith.divf %226, %227 : vector<20x1xf32>
    %229 = vector.broadcast %221 : vector<20x1xf32> to vector<20x32xf32>
    %230 = arith.subf %213, %229 : vector<20x32xf32>
    %cst_93 = arith.constant 9.99999996E-13 : f32
    %231 = vector.broadcast %cst_93 : f32 to vector<20x1xf32>
    %232 = arith.addf %228, %231 : vector<20x1xf32>
    %233 = math.rsqrt %232 : vector<20x1xf32>
    %234 = vector.broadcast %233 : vector<20x1xf32> to vector<20x32xf32>
    %235 = arith.mulf %230, %234 : vector<20x32xf32>
    %236 = vector.broadcast %215 : vector<1x32xf32> to vector<20x32xf32>
    %237 = arith.mulf %235, %236 : vector<20x32xf32>
    %238 = vector.broadcast %217 : vector<1x32xf32> to vector<20x32xf32>
    %239 = arith.addf %237, %238 : vector<20x32xf32>
    %240 = arith.truncf %239 : vector<20x32xf32> to vector<20x32xbf16>
    %c1_94 = arith.constant 1 : index
    %c0_95 = arith.constant 0 : index
    %c0_96 = arith.constant 0 : index
    %241 = vector.load %arg7[%c1_94, %c0_95, %c0_96] : memref<2x32x96xbf16, #tpu.memory_space<vmem>>, vector<1x32x96xbf16>
    %242 = vector.shape_cast %241 : vector<1x32x96xbf16> to vector<32x96xbf16>
    %cst_97 = arith.constant dense<0.000000e+00> : vector<20x96xf32>
    %243 = tpu.matmul %240, %242, %cst_97 {dimension_numbers = #tpu.dot_dimension_numbers<[1], [0], [0], [1], [0, 0, 1, 1], [], []>} : vector<20x32xbf16>, vector<32x96xbf16>, vector<20x96xf32> -> vector<20x96xf32>
    %c1_98 = arith.constant 1 : index
    %c0_99 = arith.constant 0 : index
    %c0_100 = arith.constant 0 : index
    %244 = vector.load %arg8[%c1_98, %c0_99, %c0_100] : memref<2x1x96xf32, #tpu.memory_space<vmem>>, vector<1x1x96xf32>
    %245 = vector.shape_cast %244 : vector<1x1x96xf32> to vector<1x96xf32>
    %246 = vector.broadcast %245 : vector<1x96xf32> to vector<20x96xf32>
    %247 = arith.addf %243, %246 : vector<20x96xf32>
    %248 = arith.truncf %247 : vector<20x96xf32> to vector<20x96xbf16>
    %c1_101 = arith.constant 1 : index
    %c0_102 = arith.constant 0 : index
    %c0_103 = arith.constant 0 : index
    %249 = vector.load %arg9[%c1_101, %c0_102, %c0_103] : memref<2x32x32xbf16, #tpu.memory_space<vmem>>, vector<1x32x32xbf16>
    %250 = vector.shape_cast %249 : vector<1x32x32xbf16> to vector<32x32xbf16>
    %cst_104 = arith.constant 0.000000e+00 : f32
    %251 = vector.broadcast %cst_104 : f32 to vector<20x32xf32>
    %252 = vector.extract_strided_slice %248 {offsets = [0, 0], sizes = [20, 8], strides = [1, 1]} : vector<20x96xbf16> to vector<20x8xbf16>
    %253 = vector.shape_cast %252 : vector<20x8xbf16> to vector<4x5x8xbf16>
    %254 = vector.extract_strided_slice %248 {offsets = [0, 32], sizes = [20, 8], strides = [1, 1]} : vector<20x96xbf16> to vector<20x8xbf16>
    %255 = vector.shape_cast %254 : vector<20x8xbf16> to vector<4x5x8xbf16>
    %256 = vector.extract_strided_slice %248 {offsets = [0, 64], sizes = [20, 8], strides = [1, 1]} : vector<20x96xbf16> to vector<20x8xbf16>
    %257 = vector.shape_cast %256 : vector<20x8xbf16> to vector<4x5x8xbf16>
    "tpu.trace_start"() <{level = 10 : i32, message = "bqd,bkd->bqk"}> : () -> ()
    %cst_105 = arith.constant dense<0.000000e+00> : vector<4x5x5xf32>
    %258 = tpu.matmul %253, %255, %cst_105 {dimension_numbers = #tpu.dot_dimension_numbers<[2], [2], [1], [1], [0, 0, 0, 1, 1, 1], [0], [0]>} : vector<4x5x8xbf16>, vector<4x5x8xbf16>, vector<4x5x5xf32> -> vector<4x5x5xf32>
    "tpu.trace_stop"() : () -> ()
    %cst_106 = arith.constant dense<0xFF800000> : vector<4x5xf32>
    %259 = vector.multi_reduction <maximumf>, %258, %cst_106 [2] : vector<4x5x5xf32> to vector<4x5xf32>
    %260 = vector.shape_cast %259 : vector<4x5xf32> to vector<4x5x1xf32>
    %261 = vector.broadcast %260 : vector<4x5x1xf32> to vector<4x5x5xf32>
    %262 = arith.subf %258, %261 : vector<4x5x5xf32>
    %263 = math.exp %262 : vector<4x5x5xf32>
    %cst_107 = arith.constant dense<0.000000e+00> : vector<4x5xf32>
    %264 = vector.multi_reduction <add>, %263, %cst_107 [2] : vector<4x5x5xf32> to vector<4x5xf32>
    %265 = vector.shape_cast %264 : vector<4x5xf32> to vector<4x5x1xf32>
    %266 = arith.truncf %263 : vector<4x5x5xf32> to vector<4x5x5xbf16>
    "tpu.trace_start"() <{level = 10 : i32, message = "bqk,bkd->bqd"}> : () -> ()
    %cst_108 = arith.constant dense<0.000000e+00> : vector<4x5x8xf32>
    %267 = tpu.matmul %266, %257, %cst_108 {dimension_numbers = #tpu.dot_dimension_numbers<[2], [1], [1], [2], [0, 0, 0, 1, 1, 2], [0], [0]>} : vector<4x5x5xbf16>, vector<4x5x8xbf16>, vector<4x5x8xf32> -> vector<4x5x8xf32>
    "tpu.trace_stop"() : () -> ()
    %268 = tpu.reciprocal %265 {approx = true} : vector<4x5x1xf32> -> vector<4x5x1xf32>
    %269 = vector.broadcast %268 : vector<4x5x1xf32> to vector<4x5x8xf32>
    %270 = arith.mulf %267, %269 : vector<4x5x8xf32>
    %271 = vector.shape_cast %270 : vector<4x5x8xf32> to vector<20x8xf32>
    %272 = arith.truncf %271 : vector<20x8xf32> to vector<20x8xbf16>
    %273 = vector.extract_strided_slice %250 {offsets = [0, 0], sizes = [8, 32], strides = [1, 1]} : vector<32x32xbf16> to vector<8x32xbf16>
    %cst_109 = arith.constant dense<0.000000e+00> : vector<20x32xf32>
    %274 = tpu.matmul %272, %273, %cst_109 {dimension_numbers = #tpu.dot_dimension_numbers<[1], [0], [0], [1], [0, 0, 1, 1], [], []>} : vector<20x8xbf16>, vector<8x32xbf16>, vector<20x32xf32> -> vector<20x32xf32>
    %275 = arith.addf %251, %274 : vector<20x32xf32>
    %276 = vector.extract_strided_slice %248 {offsets = [0, 8], sizes = [20, 8], strides = [1, 1]} : vector<20x96xbf16> to vector<20x8xbf16>
    %277 = vector.shape_cast %276 : vector<20x8xbf16> to vector<4x5x8xbf16>
    %278 = vector.extract_strided_slice %248 {offsets = [0, 40], sizes = [20, 8], strides = [1, 1]} : vector<20x96xbf16> to vector<20x8xbf16>
    %279 = vector.shape_cast %278 : vector<20x8xbf16> to vector<4x5x8xbf16>
    %280 = vector.extract_strided_slice %248 {offsets = [0, 72], sizes = [20, 8], strides = [1, 1]} : vector<20x96xbf16> to vector<20x8xbf16>
    %281 = vector.shape_cast %280 : vector<20x8xbf16> to vector<4x5x8xbf16>
    "tpu.trace_start"() <{level = 10 : i32, message = "bqd,bkd->bqk"}> : () -> ()
    %cst_110 = arith.constant dense<0.000000e+00> : vector<4x5x5xf32>
    %282 = tpu.matmul %277, %279, %cst_110 {dimension_numbers = #tpu.dot_dimension_numbers<[2], [2], [1], [1], [0, 0, 0, 1, 1, 1], [0], [0]>} : vector<4x5x8xbf16>, vector<4x5x8xbf16>, vector<4x5x5xf32> -> vector<4x5x5xf32>
    "tpu.trace_stop"() : () -> ()
    %cst_111 = arith.constant dense<0xFF800000> : vector<4x5xf32>
    %283 = vector.multi_reduction <maximumf>, %282, %cst_111 [2] : vector<4x5x5xf32> to vector<4x5xf32>
    %284 = vector.shape_cast %283 : vector<4x5xf32> to vector<4x5x1xf32>
    %285 = vector.broadcast %284 : vector<4x5x1xf32> to vector<4x5x5xf32>
    %286 = arith.subf %282, %285 : vector<4x5x5xf32>
    %287 = math.exp %286 : vector<4x5x5xf32>
    %cst_112 = arith.constant dense<0.000000e+00> : vector<4x5xf32>
    %288 = vector.multi_reduction <add>, %287, %cst_112 [2] : vector<4x5x5xf32> to vector<4x5xf32>
    %289 = vector.shape_cast %288 : vector<4x5xf32> to vector<4x5x1xf32>
    %290 = arith.truncf %287 : vector<4x5x5xf32> to vector<4x5x5xbf16>
    "tpu.trace_start"() <{level = 10 : i32, message = "bqk,bkd->bqd"}> : () -> ()
    %cst_113 = arith.constant dense<0.000000e+00> : vector<4x5x8xf32>
    %291 = tpu.matmul %290, %281, %cst_113 {dimension_numbers = #tpu.dot_dimension_numbers<[2], [1], [1], [2], [0, 0, 0, 1, 1, 2], [0], [0]>} : vector<4x5x5xbf16>, vector<4x5x8xbf16>, vector<4x5x8xf32> -> vector<4x5x8xf32>
    "tpu.trace_stop"() : () -> ()
    %292 = tpu.reciprocal %289 {approx = true} : vector<4x5x1xf32> -> vector<4x5x1xf32>
    %293 = vector.broadcast %292 : vector<4x5x1xf32> to vector<4x5x8xf32>
    %294 = arith.mulf %291, %293 : vector<4x5x8xf32>
    %295 = vector.shape_cast %294 : vector<4x5x8xf32> to vector<20x8xf32>
    %296 = arith.truncf %295 : vector<20x8xf32> to vector<20x8xbf16>
    %297 = vector.extract_strided_slice %250 {offsets = [8, 0], sizes = [8, 32], strides = [1, 1]} : vector<32x32xbf16> to vector<8x32xbf16>
    %cst_114 = arith.constant dense<0.000000e+00> : vector<20x32xf32>
    %298 = tpu.matmul %296, %297, %cst_114 {dimension_numbers = #tpu.dot_dimension_numbers<[1], [0], [0], [1], [0, 0, 1, 1], [], []>} : vector<20x8xbf16>, vector<8x32xbf16>, vector<20x32xf32> -> vector<20x32xf32>
    %299 = arith.addf %275, %298 : vector<20x32xf32>
    %300 = vector.extract_strided_slice %248 {offsets = [0, 16], sizes = [20, 8], strides = [1, 1]} : vector<20x96xbf16> to vector<20x8xbf16>
    %301 = vector.shape_cast %300 : vector<20x8xbf16> to vector<4x5x8xbf16>
    %302 = vector.extract_strided_slice %248 {offsets = [0, 48], sizes = [20, 8], strides = [1, 1]} : vector<20x96xbf16> to vector<20x8xbf16>
    %303 = vector.shape_cast %302 : vector<20x8xbf16> to vector<4x5x8xbf16>
    %304 = vector.extract_strided_slice %248 {offsets = [0, 80], sizes = [20, 8], strides = [1, 1]} : vector<20x96xbf16> to vector<20x8xbf16>
    %305 = vector.shape_cast %304 : vector<20x8xbf16> to vector<4x5x8xbf16>
    "tpu.trace_start"() <{level = 10 : i32, message = "bqd,bkd->bqk"}> : () -> ()
    %cst_115 = arith.constant dense<0.000000e+00> : vector<4x5x5xf32>
    %306 = tpu.matmul %301, %303, %cst_115 {dimension_numbers = #tpu.dot_dimension_numbers<[2], [2], [1], [1], [0, 0, 0, 1, 1, 1], [0], [0]>} : vector<4x5x8xbf16>, vector<4x5x8xbf16>, vector<4x5x5xf32> -> vector<4x5x5xf32>
    "tpu.trace_stop"() : () -> ()
    %cst_116 = arith.constant dense<0xFF800000> : vector<4x5xf32>
    %307 = vector.multi_reduction <maximumf>, %306, %cst_116 [2] : vector<4x5x5xf32> to vector<4x5xf32>
    %308 = vector.shape_cast %307 : vector<4x5xf32> to vector<4x5x1xf32>
    %309 = vector.broadcast %308 : vector<4x5x1xf32> to vector<4x5x5xf32>
    %310 = arith.subf %306, %309 : vector<4x5x5xf32>
    %311 = math.exp %310 : vector<4x5x5xf32>
    %cst_117 = arith.constant dense<0.000000e+00> : vector<4x5xf32>
    %312 = vector.multi_reduction <add>, %311, %cst_117 [2] : vector<4x5x5xf32> to vector<4x5xf32>
    %313 = vector.shape_cast %312 : vector<4x5xf32> to vector<4x5x1xf32>
    %314 = arith.truncf %311 : vector<4x5x5xf32> to vector<4x5x5xbf16>
    "tpu.trace_start"() <{level = 10 : i32, message = "bqk,bkd->bqd"}> : () -> ()
    %cst_118 = arith.constant dense<0.000000e+00> : vector<4x5x8xf32>
    %315 = tpu.matmul %314, %305, %cst_118 {dimension_numbers = #tpu.dot_dimension_numbers<[2], [1], [1], [2], [0, 0, 0, 1, 1, 2], [0], [0]>} : vector<4x5x5xbf16>, vector<4x5x8xbf16>, vector<4x5x8xf32> -> vector<4x5x8xf32>
    "tpu.trace_stop"() : () -> ()
    %316 = tpu.reciprocal %313 {approx = true} : vector<4x5x1xf32> -> vector<4x5x1xf32>
    %317 = vector.broadcast %316 : vector<4x5x1xf32> to vector<4x5x8xf32>
    %318 = arith.mulf %315, %317 : vector<4x5x8xf32>
    %319 = vector.shape_cast %318 : vector<4x5x8xf32> to vector<20x8xf32>
    %320 = arith.truncf %319 : vector<20x8xf32> to vector<20x8xbf16>
    %321 = vector.extract_strided_slice %250 {offsets = [16, 0], sizes = [8, 32], strides = [1, 1]} : vector<32x32xbf16> to vector<8x32xbf16>
    %cst_119 = arith.constant dense<0.000000e+00> : vector<20x32xf32>
    %322 = tpu.matmul %320, %321, %cst_119 {dimension_numbers = #tpu.dot_dimension_numbers<[1], [0], [0], [1], [0, 0, 1, 1], [], []>} : vector<20x8xbf16>, vector<8x32xbf16>, vector<20x32xf32> -> vector<20x32xf32>
    %323 = arith.addf %299, %322 : vector<20x32xf32>
    %324 = vector.extract_strided_slice %248 {offsets = [0, 24], sizes = [20, 8], strides = [1, 1]} : vector<20x96xbf16> to vector<20x8xbf16>
    %325 = vector.shape_cast %324 : vector<20x8xbf16> to vector<4x5x8xbf16>
    %326 = vector.extract_strided_slice %248 {offsets = [0, 56], sizes = [20, 8], strides = [1, 1]} : vector<20x96xbf16> to vector<20x8xbf16>
    %327 = vector.shape_cast %326 : vector<20x8xbf16> to vector<4x5x8xbf16>
    %328 = vector.extract_strided_slice %248 {offsets = [0, 88], sizes = [20, 8], strides = [1, 1]} : vector<20x96xbf16> to vector<20x8xbf16>
    %329 = vector.shape_cast %328 : vector<20x8xbf16> to vector<4x5x8xbf16>
    "tpu.trace_start"() <{level = 10 : i32, message = "bqd,bkd->bqk"}> : () -> ()
    %cst_120 = arith.constant dense<0.000000e+00> : vector<4x5x5xf32>
    %330 = tpu.matmul %325, %327, %cst_120 {dimension_numbers = #tpu.dot_dimension_numbers<[2], [2], [1], [1], [0, 0, 0, 1, 1, 1], [0], [0]>} : vector<4x5x8xbf16>, vector<4x5x8xbf16>, vector<4x5x5xf32> -> vector<4x5x5xf32>
    "tpu.trace_stop"() : () -> ()
    %cst_121 = arith.constant dense<0xFF800000> : vector<4x5xf32>
    %331 = vector.multi_reduction <maximumf>, %330, %cst_121 [2] : vector<4x5x5xf32> to vector<4x5xf32>
    %332 = vector.shape_cast %331 : vector<4x5xf32> to vector<4x5x1xf32>
    %333 = vector.broadcast %332 : vector<4x5x1xf32> to vector<4x5x5xf32>
    %334 = arith.subf %330, %333 : vector<4x5x5xf32>
    %335 = math.exp %334 : vector<4x5x5xf32>
    %cst_122 = arith.constant dense<0.000000e+00> : vector<4x5xf32>
    %336 = vector.multi_reduction <add>, %335, %cst_122 [2] : vector<4x5x5xf32> to vector<4x5xf32>
    %337 = vector.shape_cast %336 : vector<4x5xf32> to vector<4x5x1xf32>
    %338 = arith.truncf %335 : vector<4x5x5xf32> to vector<4x5x5xbf16>
    "tpu.trace_start"() <{level = 10 : i32, message = "bqk,bkd->bqd"}> : () -> ()
    %cst_123 = arith.constant dense<0.000000e+00> : vector<4x5x8xf32>
    %339 = tpu.matmul %338, %329, %cst_123 {dimension_numbers = #tpu.dot_dimension_numbers<[2], [1], [1], [2], [0, 0, 0, 1, 1, 2], [0], [0]>} : vector<4x5x5xbf16>, vector<4x5x8xbf16>, vector<4x5x8xf32> -> vector<4x5x8xf32>
    "tpu.trace_stop"() : () -> ()
    %340 = tpu.reciprocal %337 {approx = true} : vector<4x5x1xf32> -> vector<4x5x1xf32>
    %341 = vector.broadcast %340 : vector<4x5x1xf32> to vector<4x5x8xf32>
    %342 = arith.mulf %339, %341 : vector<4x5x8xf32>
    %343 = vector.shape_cast %342 : vector<4x5x8xf32> to vector<20x8xf32>
    %344 = arith.truncf %343 : vector<20x8xf32> to vector<20x8xbf16>
    %345 = vector.extract_strided_slice %250 {offsets = [24, 0], sizes = [8, 32], strides = [1, 1]} : vector<32x32xbf16> to vector<8x32xbf16>
    %cst_124 = arith.constant dense<0.000000e+00> : vector<20x32xf32>
    %346 = tpu.matmul %344, %345, %cst_124 {dimension_numbers = #tpu.dot_dimension_numbers<[1], [0], [0], [1], [0, 0, 1, 1], [], []>} : vector<20x8xbf16>, vector<8x32xbf16>, vector<20x32xf32> -> vector<20x32xf32>
    %347 = arith.addf %323, %346 : vector<20x32xf32>
    %348 = arith.addf %213, %347 : vector<20x32xf32>
    %c1_125 = arith.constant 1 : index
    %c0_126 = arith.constant 0 : index
    %c0_127 = arith.constant 0 : index
    %349 = vector.load %arg10[%c1_125, %c0_126, %c0_127] : memref<2x1x32xf32, #tpu.memory_space<vmem>>, vector<1x1x32xf32>
    %350 = vector.shape_cast %349 : vector<1x1x32xf32> to vector<1x32xf32>
    %351 = vector.broadcast %350 : vector<1x32xf32> to vector<20x32xf32>
    %352 = arith.addf %348, %351 : vector<20x32xf32>
    %c1_128 = arith.constant 1 : index
    %c0_129 = arith.constant 0 : index
    %c0_130 = arith.constant 0 : index
    %353 = vector.load %arg11[%c1_128, %c0_129, %c0_130] : memref<2x1x32xf32, #tpu.memory_space<vmem>>, vector<1x1x32xf32>
    %354 = vector.shape_cast %353 : vector<1x1x32xf32> to vector<1x32xf32>
    %c1_131 = arith.constant 1 : index
    %c0_132 = arith.constant 0 : index
    %c0_133 = arith.constant 0 : index
    %355 = vector.load %arg12[%c1_131, %c0_132, %c0_133] : memref<2x1x32xf32, #tpu.memory_space<vmem>>, vector<1x1x32xf32>
    %356 = vector.shape_cast %355 : vector<1x1x32xf32> to vector<1x32xf32>
    %cst_134 = arith.constant dense<0.000000e+00> : vector<20xf32>
    %357 = vector.multi_reduction <add>, %352, %cst_134 [1] : vector<20x32xf32> to vector<20xf32>
    %358 = vector.shape_cast %357 : vector<20xf32> to vector<20x1xf32>
    %cst_135 = arith.constant 3.200000e+01 : f32
    %359 = vector.broadcast %cst_135 : f32 to vector<20x1xf32>
    %360 = arith.divf %358, %359 : vector<20x1xf32>
    %361 = vector.broadcast %360 : vector<20x1xf32> to vector<20x32xf32>
    %362 = arith.subf %352, %361 : vector<20x32xf32>
    %363 = arith.mulf %362, %362 : vector<20x32xf32>
    %cst_136 = arith.constant dense<0.000000e+00> : vector<20xf32>
    %364 = vector.multi_reduction <add>, %363, %cst_136 [1] : vector<20x32xf32> to vector<20xf32>
    %365 = vector.shape_cast %364 : vector<20xf32> to vector<20x1xf32>
    %cst_137 = arith.constant 3.200000e+01 : f32
    %366 = vector.broadcast %cst_137 : f32 to vector<20x1xf32>
    %367 = arith.divf %365, %366 : vector<20x1xf32>
    %368 = vector.broadcast %360 : vector<20x1xf32> to vector<20x32xf32>
    %369 = arith.subf %352, %368 : vector<20x32xf32>
    %cst_138 = arith.constant 9.99999996E-13 : f32
    %370 = vector.broadcast %cst_138 : f32 to vector<20x1xf32>
    %371 = arith.addf %367, %370 : vector<20x1xf32>
    %372 = math.rsqrt %371 : vector<20x1xf32>
    %373 = vector.broadcast %372 : vector<20x1xf32> to vector<20x32xf32>
    %374 = arith.mulf %369, %373 : vector<20x32xf32>
    %375 = vector.broadcast %354 : vector<1x32xf32> to vector<20x32xf32>
    %376 = arith.mulf %374, %375 : vector<20x32xf32>
    %377 = vector.broadcast %356 : vector<1x32xf32> to vector<20x32xf32>
    %378 = arith.addf %376, %377 : vector<20x32xf32>
    %379 = arith.truncf %378 : vector<20x32xf32> to vector<20x32xbf16>
    %c1_139 = arith.constant 1 : index
    %c0_140 = arith.constant 0 : index
    %c0_141 = arith.constant 0 : index
    %380 = vector.load %arg13[%c1_139, %c0_140, %c0_141] : memref<2x32x128xbf16, #tpu.memory_space<vmem>>, vector<1x32x128xbf16>
    %381 = vector.shape_cast %380 : vector<1x32x128xbf16> to vector<32x128xbf16>
    %cst_142 = arith.constant dense<0.000000e+00> : vector<20x128xf32>
    %382 = tpu.matmul %379, %381, %cst_142 {dimension_numbers = #tpu.dot_dimension_numbers<[1], [0], [0], [1], [0, 0, 1, 1], [], []>} : vector<20x32xbf16>, vector<32x128xbf16>, vector<20x128xf32> -> vector<20x128xf32>
    %c1_143 = arith.constant 1 : index
    %c0_144 = arith.constant 0 : index
    %c0_145 = arith.constant 0 : index
    %383 = vector.load %arg14[%c1_143, %c0_144, %c0_145] : memref<2x1x128xf32, #tpu.memory_space<vmem>>, vector<1x1x128xf32>
    %384 = vector.shape_cast %383 : vector<1x1x128xf32> to vector<1x128xf32>
    %385 = vector.broadcast %384 : vector<1x128xf32> to vector<20x128xf32>
    %386 = arith.addf %382, %385 : vector<20x128xf32>
    %387 = arith.mulf %386, %386 : vector<20x128xf32>
    %388 = arith.mulf %386, %387 : vector<20x128xf32>
    %cst_146 = arith.constant 4.471500e-02 : f32
    %389 = vector.broadcast %cst_146 : f32 to vector<20x128xf32>
    %390 = arith.mulf %389, %388 : vector<20x128xf32>
    %391 = arith.addf %386, %390 : vector<20x128xf32>
    %cst_147 = arith.constant 0.797884583 : f32
    %392 = vector.broadcast %cst_147 : f32 to vector<20x128xf32>
    %393 = arith.mulf %392, %391 : vector<20x128xf32>
    %394 = math.tanh %393 : vector<20x128xf32>
    %cst_148 = arith.constant 1.000000e+00 : f32
    %395 = vector.broadcast %cst_148 : f32 to vector<20x128xf32>
    %396 = arith.addf %395, %394 : vector<20x128xf32>
    %cst_149 = arith.constant 5.000000e-01 : f32
    %397 = vector.broadcast %cst_149 : f32 to vector<20x128xf32>
    %398 = arith.mulf %397, %396 : vector<20x128xf32>
    %399 = arith.mulf %386, %398 : vector<20x128xf32>
    %400 = arith.truncf %399 : vector<20x128xf32> to vector<20x128xbf16>
    %c1_150 = arith.constant 1 : index
    %c0_151 = arith.constant 0 : index
    %c0_152 = arith.constant 0 : index
    %401 = vector.load %arg15[%c1_150, %c0_151, %c0_152] : memref<2x128x32xbf16, #tpu.memory_space<vmem>>, vector<1x128x32xbf16>
    %402 = vector.shape_cast %401 : vector<1x128x32xbf16> to vector<128x32xbf16>
    %cst_153 = arith.constant dense<0.000000e+00> : vector<20x32xf32>
    %403 = tpu.matmul %400, %402, %cst_153 {dimension_numbers = #tpu.dot_dimension_numbers<[1], [0], [0], [1], [0, 0, 1, 1], [], []>} : vector<20x128xbf16>, vector<128x32xbf16>, vector<20x32xf32> -> vector<20x32xf32>
    %c1_154 = arith.constant 1 : index
    %c0_155 = arith.constant 0 : index
    %c0_156 = arith.constant 0 : index
    %404 = vector.load %arg16[%c1_154, %c0_155, %c0_156] : memref<2x1x32xf32, #tpu.memory_space<vmem>>, vector<1x1x32xf32>
    %405 = vector.shape_cast %404 : vector<1x1x32xf32> to vector<1x32xf32>
    %406 = vector.broadcast %405 : vector<1x32xf32> to vector<20x32xf32>
    %407 = arith.addf %403, %406 : vector<20x32xf32>
    %408 = arith.addf %352, %407 : vector<20x32xf32>
    %409 = vector.shape_cast %408 : vector<20x32xf32> to vector<4x5x32xf32>
    %410 = vector.extract_strided_slice %409 {offsets = [0, 0, 0], sizes = [4, 1, 32], strides = [1, 1, 1]} : vector<4x5x32xf32> to vector<4x1x32xf32>
    %411 = vector.shape_cast %410 : vector<4x1x32xf32> to vector<4x32xf32>
    %c0_157 = arith.constant 0 : index
    %c0_158 = arith.constant 0 : index
    %412 = vector.load %arg17[%c0_157, %c0_158] : memref<1x32xf32, #tpu.memory_space<vmem>>, vector<1x32xf32>
    %c0_159 = arith.constant 0 : index
    %c0_160 = arith.constant 0 : index
    %413 = vector.load %arg18[%c0_159, %c0_160] : memref<1x32xf32, #tpu.memory_space<vmem>>, vector<1x32xf32>
    %cst_161 = arith.constant dense<0.000000e+00> : vector<4xf32>
    %414 = vector.multi_reduction <add>, %411, %cst_161 [1] : vector<4x32xf32> to vector<4xf32>
    %415 = vector.shape_cast %414 : vector<4xf32> to vector<4x1xf32>
    %cst_162 = arith.constant 3.200000e+01 : f32
    %416 = vector.broadcast %cst_162 : f32 to vector<4x1xf32>
    %417 = arith.divf %415, %416 : vector<4x1xf32>
    %418 = vector.broadcast %417 : vector<4x1xf32> to vector<4x32xf32>
    %419 = arith.subf %411, %418 : vector<4x32xf32>
    %420 = arith.mulf %419, %419 : vector<4x32xf32>
    %cst_163 = arith.constant dense<0.000000e+00> : vector<4xf32>
    %421 = vector.multi_reduction <add>, %420, %cst_163 [1] : vector<4x32xf32> to vector<4xf32>
    %422 = vector.shape_cast %421 : vector<4xf32> to vector<4x1xf32>
    %cst_164 = arith.constant 3.200000e+01 : f32
    %423 = vector.broadcast %cst_164 : f32 to vector<4x1xf32>
    %424 = arith.divf %422, %423 : vector<4x1xf32>
    %425 = vector.broadcast %417 : vector<4x1xf32> to vector<4x32xf32>
    %426 = arith.subf %411, %425 : vector<4x32xf32>
    %cst_165 = arith.constant 9.99999996E-13 : f32
    %427 = vector.broadcast %cst_165 : f32 to vector<4x1xf32>
    %428 = arith.addf %424, %427 : vector<4x1xf32>
    %429 = math.rsqrt %428 : vector<4x1xf32>
    %430 = vector.broadcast %429 : vector<4x1xf32> to vector<4x32xf32>
    %431 = arith.mulf %426, %430 : vector<4x32xf32>
    %432 = vector.broadcast %412 : vector<1x32xf32> to vector<4x32xf32>
    %433 = arith.mulf %431, %432 : vector<4x32xf32>
    %434 = vector.broadcast %413 : vector<1x32xf32> to vector<4x32xf32>
    %435 = arith.addf %433, %434 : vector<4x32xf32>
    %436 = arith.truncf %435 : vector<4x32xf32> to vector<4x32xbf16>
    %c0_166 = arith.constant 0 : index
    %c0_167 = arith.constant 0 : index
    %437 = vector.load %arg19[%c0_166, %c0_167] : memref<32x32xbf16, #tpu.memory_space<vmem>>, vector<32x32xbf16>
    %cst_168 = arith.constant dense<0.000000e+00> : vector<4x32xf32>
    %438 = tpu.matmul %436, %437, %cst_168 {dimension_numbers = #tpu.dot_dimension_numbers<[1], [0], [0], [1], [0, 0, 1, 1], [], []>} : vector<4x32xbf16>, vector<32x32xbf16>, vector<4x32xf32> -> vector<4x32xf32>
    %c0_169 = arith.constant 0 : index
    %c0_170 = arith.constant 0 : index
    %439 = vector.load %arg20[%c0_169, %c0_170] : memref<1x32xf32, #tpu.memory_space<vmem>>, vector<1x32xf32>
    %440 = vector.broadcast %439 : vector<1x32xf32> to vector<4x32xf32>
    %441 = arith.addf %438, %440 : vector<4x32xf32>
    %442 = math.tanh %441 : vector<4x32xf32>
    %443 = vector.shape_cast %442 : vector<4x32xf32> to vector<2x2x32xf32>
    %cst_171 = arith.constant dense<0.000000e+00> : vector<2x32xf32>
    %444 = vector.multi_reduction <add>, %443, %cst_171 [1] : vector<2x2x32xf32> to vector<2x32xf32>
    %cst_172 = arith.constant 2.000000e+00 : f32
    %445 = vector.broadcast %cst_172 : f32 to vector<2x32xf32>
    %446 = arith.divf %444, %445 : vector<2x32xf32>
    %447 = arith.truncf %446 : vector<2x32xf32> to vector<2x32xbf16>
    %c0_173 = arith.constant 0 : index
    %c0_174 = arith.constant 0 : index
    %448 = vector.load %arg21[%c0_173, %c0_174] : memref<32x12xbf16, #tpu.memory_space<vmem>>, vector<32x12xbf16>
    %cst_175 = arith.constant dense<0.000000e+00> : vector<2x12xf32>
    %449 = tpu.matmul %447, %448, %cst_175 {dimension_numbers = #tpu.dot_dimension_numbers<[1], [0], [0], [1], [0, 0, 1, 1], [], []>} : vector<2x32xbf16>, vector<32x12xbf16>, vector<2x12xf32> -> vector<2x12xf32>
    %c0_176 = arith.constant 0 : index
    %c0_177 = arith.constant 0 : index
    %450 = vector.load %arg22[%c0_176, %c0_177] : memref<1x12xf32, #tpu.memory_space<vmem>>, vector<1x12xf32>
    %451 = vector.broadcast %450 : vector<1x12xf32> to vector<2x12xf32>
    %452 = arith.addf %449, %451 : vector<2x12xf32>
    %c0_178 = arith.constant 0 : index
    %c0_179 = arith.constant 0 : index
    %453 = vector.load %arg23[%c0_178, %c0_179] : memref<2x12xf32, #tpu.memory_space<vmem>>, vector<2x12xf32>
    tpu.vector_store %arg23[%c0_178, %c0_179], %452 {strides = array<i32>} : memref<2x12xf32, #tpu.memory_space<vmem>>, vector<2x12xf32>,
    return
  }
}

</mosaic_0001>

<llo_original>
// kernel: vit_multilabel_forward.1
$region0: #{vit_multilabel_forward.1}
  #allocation0 [shape = 'u32[]', space=smem, size = 0x4, offset = 0x4, fixed_abs, tag = 'smem constant byte address 0x4 - core index']
  #allocation1 [shape = 'u32[72,128]{1,0:T(1,128)}', space=vmem, size = 0x9000, scoped, tag = 'internal scratch']
  %s0 = inlined_call_operand.vmem [shape: bf16[20,192], index: 0, kind: input, shape index: {}]
  %s1 = inlined_call_operand.vmem [shape: bf16[192,32], index: 1, kind: input, shape index: {}]
  %s2 = inlined_call_operand.vmem [shape: f32[1,32], index: 2, kind: input, shape index: {}]
  %s3 = inlined_call_operand.vmem [shape: f32[1,32], index: 3, kind: input, shape index: {}]
  %s4 = inlined_call_operand.vmem [shape: f32[1,5,32], index: 4, kind: input, shape index: {}]
  %s5 = inlined_call_operand.vmem [shape: f32[2,1,32], index: 5, kind: input, shape index: {}]
  %s6 = inlined_call_operand.vmem [shape: f32[2,1,32], index: 6, kind: input, shape index: {}]
  %s7 = inlined_call_operand.vmem [shape: bf16[2,32,96], index: 7, kind: input, shape index: {}]
  %s8 = inlined_call_operand.vmem [shape: f32[2,1,96], index: 8, kind: input, shape index: {}]
  %s9 = inlined_call_operand.vmem [shape: bf16[2,32,32], index: 9, kind: input, shape index: {}]
  %s10 = inlined_call_operand.vmem [shape: f32[2,1,32], index: 10, kind: input, shape index: {}]
  %s11 = inlined_call_operand.vmem [shape: f32[2,1,32], index: 11, kind: input, shape index: {}]
  %s12 = inlined_call_operand.vmem [shape: f32[2,1,32], index: 12, kind: input, shape index: {}]
  %s13 = inlined_call_operand.vmem [shape: bf16[2,32,128], index: 13, kind: input, shape index: {}]
  %s14 = inlined_call_operand.vmem [shape: f32[2,1,128], index: 14, kind: input, shape index: {}]
  %s15 = inlined_call_operand.vmem [shape: bf16[2,128,32], index: 15, kind: input, shape index: {}]
  %s16 = inlined_call_operand.vmem [shape: f32[2,1,32], index: 16, kind: input, shape index: {}]
  %s17 = inlined_call_operand.vmem [shape: f32[1,32], index: 17, kind: input, shape index: {}]
  %s18 = inlined_call_operand.vmem [shape: f32[1,32], index: 18, kind: input, shape index: {}]
  %s19 = inlined_call_operand.vmem [shape: bf16[32,32], index: 19, kind: input, shape index: {}]
  %s20 = inlined_call_operand.vmem [shape: f32[1,32], index: 20, kind: input, shape index: {}]
  %s21 = inlined_call_operand.vmem [shape: bf16[32,12], index: 21, kind: input, shape index: {}]
  %s22 = inlined_call_operand.vmem [shape: f32[1,12], index: 22, kind: input, shape index: {}]
  %s23 = inlined_call_operand.vmem [shape: f32[2,12], index: 23, kind: output, shape index: {}]
  %s24 = sld [smem:[#allocation0]]
  $region102: #{vit_multilabel_forward.1} parent=0
    _
  %s26 = ssub.s32 1, %s24
  %s27 = scalar_select 0, %s26, %s24
  // Predicated region
  $region2: #{vit_multilabel_forward.1} parent=0 // pred_check
    _
  $region3: #{vit_multilabel_forward.1} parent=0 // pred_check_branch
    %29 = sbr.rel (0) target = $region5
  $region4: #{vit_multilabel_forward.1} parent=0 // pred_region
    _
  $region5: #{vit_multilabel_forward.1} parent=0 // pred_fallthru
    _
  // Predicated region
  $region6: #{vit_multilabel_forward.1} parent=0 // pred_check
    _
  $region7: #{vit_multilabel_forward.1} parent=0 // pred_check_branch
    %31 = sbr.rel (0) target = $region9
  $region8: #{vit_multilabel_forward.1} parent=0 // pred_region
    _
  $region9: #{vit_multilabel_forward.1} parent=0 // pred_fallthru
    _
  // Predicated region
  $region10: #{vit_multilabel_forward.1} parent=0 // pred_check
    _
  $region11: #{vit_multilabel_forward.1} parent=0 // pred_check_branch
    %33 = sbr.rel (0) target = $region13
  $region12: #{vit_multilabel_forward.1} parent=0 // pred_region
    _
  $region13: #{vit_multilabel_forward.1} parent=0 // pred_fallthru
    _
  // Predicated region
  $region14: #{vit_multilabel_forward.1} parent=0 // pred_check
    _
  $region15: #{vit_multilabel_forward.1} parent=0 // pred_check_branch
    %35 = sbr.rel (0) target = $region17
  $region16: #{vit_multilabel_forward.1} parent=0 // pred_region
    _
  $region17: #{vit_multilabel_forward.1} parent=0 // pred_fallthru
    _
  // Predicated region
  $region18: #{vit_multilabel_forward.1} parent=0 // pred_check
    _
  $region19: #{vit_multilabel_forward.1} parent=0 // pred_check_branch
    %37 = sbr.rel (0) target = $region21
  $region20: #{vit_multilabel_forward.1} parent=0 // pred_region
    _
  $region21: #{vit_multilabel_forward.1} parent=0 // pred_fallthru
    _
  // Predicated region
  $region22: #{vit_multilabel_forward.1} parent=0 // pred_check
    _
  $region23: #{vit_multilabel_forward.1} parent=0 // pred_check_branch
    %39 = sbr.rel (0) target = $region25
  $region24: #{vit_multilabel_forward.1} parent=0 // pred_region
    _
  $region25: #{vit_multilabel_forward.1} parent=0 // pred_fallthru
    _
  // Predicated region
  $region26: #{vit_multilabel_forward.1} parent=0 // pred_check
    _
  $region27: #{vit_multilabel_forward.1} parent=0 // pred_check_branch
    %41 = sbr.rel (0) target = $region29
  $region28: #{vit_multilabel_forward.1} parent=0 // pred_region
    _
  $region29: #{vit_multilabel_forward.1} parent=0 // pred_fallthru
    _
  // Predicated region
  $region30: #{vit_multilabel_forward.1} parent=0 // pred_check
    _
  $region31: #{vit_multilabel_forward.1} parent=0 // pred_check_branch
    %43 = sbr.rel (0) target = $region33
  $region32: #{vit_multilabel_forward.1} parent=0 // pred_region
    _
  $region33: #{vit_multilabel_forward.1} parent=0 // pred_fallthru
    _
  // Predicated region
  $region34: #{vit_multilabel_forward.1} parent=0 // pred_check
    _
  $region35: #{vit_multilabel_forward.1} parent=0 // pred_check_branch
    %45 = sbr.rel (0) target = $region37
  $region36: #{vit_multilabel_forward.1} parent=0 // pred_region
    _
  $region37: #{vit_multilabel_forward.1} parent=0 // pred_fallthru
    _
  // Predicated region
  $region38: #{vit_multilabel_forward.1} parent=0 // pred_check
    _
  $region39: #{vit_multilabel_forward.1} parent=0 // pred_check_branch
    %47 = sbr.rel (0) target = $region41
  $region40: #{vit_multilabel_forward.1} parent=0 // pred_region
    _
  $region41: #{vit_multilabel_forward.1} parent=0 // pred_fallthru
    _
  // Predicated region
  $region42: #{vit_multilabel_forward.1} parent=0 // pred_check
    _
  $region43: #{vit_multilabel_forward.1} parent=0 // pred_check_branch
    %49 = sbr.rel (0) target = $region45
  $region44: #{vit_multilabel_forward.1} parent=0 // pred_region
    _
  $region45: #{vit_multilabel_forward.1} parent=0 // pred_fallthru
    _
  // Predicated region
  $region46: #{vit_multilabel_forward.1} parent=0 // pred_check
    _
  $region47: #{vit_multilabel_forward.1} parent=0 // pred_check_branch
    %51 = sbr.rel (0) target = $region49
  $region48: #{vit_multilabel_forward.1} parent=0 // pred_region
    _
  $region49: #{vit_multilabel_forward.1} parent=0 // pred_fallthru
    _
  // Predicated region
  $region50: #{vit_multilabel_forward.1} parent=0 // pred_check
    _
  $region51: #{vit_multilabel_forward.1} parent=0 // pred_check_branch
    %53 = sbr.rel (0) target = $region53
  $region52: #{vit_multilabel_forward.1} parent=0 // pred_region
    _
  $region53: #{vit_multilabel_forward.1} parent=0 // pred_fallthru
    _
  // Predicated region
  $region54: #{vit_multilabel_forward.1} parent=0 // pred_check
    _
  $region55: #{vit_multilabel_forward.1} parent=0 // pred_check_branch
    %55 = sbr.rel (0) target = $region57
  $region56: #{vit_multilabel_forward.1} parent=0 // pred_region
    _
  $region57: #{vit_multilabel_forward.1} parent=0 // pred_fallthru
    _
  // Predicated region
  $region58: #{vit_multilabel_forward.1} parent=0 // pred_check
    _
  $region59: #{vit_multilabel_forward.1} parent=0 // pred_check_branch
    %57 = sbr.rel (0) target = $region61
  $region60: #{vit_multilabel_forward.1} parent=0 // pred_region
    _
  $region61: #{vit_multilabel_forward.1} parent=0 // pred_fallthru
    _
  // Predicated region
  $region62: #{vit_multilabel_forward.1} parent=0 // pred_check
    _
  $region63: #{vit_multilabel_forward.1} parent=0 // pred_check_branch
    %59 = sbr.rel (0) target = $region65
  $region64: #{vit_multilabel_forward.1} parent=0 // pred_region
    _
  $region65: #{vit_multilabel_forward.1} parent=0 // pred_fallthru
    _
  // Predicated region
  $region66: #{vit_multilabel_forward.1} parent=0 // pred_check
    _
  $region67: #{vit_multilabel_forward.1} parent=0 // pred_check_branch
    %61 = sbr.rel (0) target = $region69
  $region68: #{vit_multilabel_forward.1} parent=0 // pred_region
    _
  $region69: #{vit_multilabel_forward.1} parent=0 // pred_fallthru
    _
  // Predicated region
  $region70: #{vit_multilabel_forward.1} parent=0 // pred_check
    _
  $region71: #{vit_multilabel_forward.1} parent=0 // pred_check_branch
    %63 = sbr.rel (0) target = $region73
  $region72: #{vit_multilabel_forward.1} parent=0 // pred_region
    _
  $region73: #{vit_multilabel_forward.1} parent=0 // pred_fallthru
    _
  // Predicated region
  $region74: #{vit_multilabel_forward.1} parent=0 // pred_check
    _
  $region75: #{vit_multilabel_forward.1} parent=0 // pred_check_branch
    %65 = sbr.rel (0) target = $region77
  $region76: #{vit_multilabel_forward.1} parent=0 // pred_region
    _
  $region77: #{vit_multilabel_forward.1} parent=0 // pred_fallthru
    _
  // Predicated region
  $region78: #{vit_multilabel_forward.1} parent=0 // pred_check
    _
  $region79: #{vit_multilabel_forward.1} parent=0 // pred_check_branch
    %67 = sbr.rel (0) target = $region81
  $region80: #{vit_multilabel_forward.1} parent=0 // pred_region
    _
  $region81: #{vit_multilabel_forward.1} parent=0 // pred_fallthru
    _
  // Predicated region
  $region82: #{vit_multilabel_forward.1} parent=0 // pred_check
    _
  $region83: #{vit_multilabel_forward.1} parent=0 // pred_check_branch
    %69 = sbr.rel (0) target = $region85
  $region84: #{vit_multilabel_forward.1} parent=0 // pred_region
    _
  $region85: #{vit_multilabel_forward.1} parent=0 // pred_fallthru
    _
  // Predicated region
  $region86: #{vit_multilabel_forward.1} parent=0 // pred_check
    _
  $region87: #{vit_multilabel_forward.1} parent=0 // pred_check_branch
    %71 = sbr.rel (0) target = $region89
  $region88: #{vit_multilabel_forward.1} parent=0 // pred_region
    _
  $region89: #{vit_multilabel_forward.1} parent=0 // pred_fallthru
    _
  // Predicated region
  $region90: #{vit_multilabel_forward.1} parent=0 // pred_check
    _
  $region91: #{vit_multilabel_forward.1} parent=0 // pred_check_branch
    %73 = sbr.rel (0) target = $region93
  $region92: #{vit_multilabel_forward.1} parent=0 // pred_region
    _
  $region93: #{vit_multilabel_forward.1} parent=0 // pred_fallthru
    _
  %v75 = vld [vmem:[%s0] sm:$0xff]
  %v76 = vld [vmem:[%s0 + $0x8] sm:$0xff]
  %v77 = vld [vmem:[%s0 + $0x10] sm:$0x33]
  %v78 = vld [vmem:[%s1] sm:$0xf]
  %v79 = vld [vmem:[%s1 + $0x4] sm:$0xf]
  %v80 = vld [vmem:[%s1 + $0x8] sm:$0xf]
  %v81 = vld [vmem:[%s1 + $0xc] sm:$0xf]
  %v82 = vld [vmem:[%s1 + $0x10] sm:$0xf]
  %v83 = vld [vmem:[%s1 + $0x14] sm:$0xf]
  %v84 = vld [vmem:[%s1 + $0x18] sm:$0xf]
  %v85 = vld [vmem:[%s1 + $0x1c] sm:$0xf]
  %v86 = vld [vmem:[%s1 + $0x20] sm:$0xf]
  %v87 = vld [vmem:[%s1 + $0x24] sm:$0xf]
  %v88 = vld [vmem:[%s1 + $0x28] sm:$0xf]
  %v89 = vld [vmem:[%s1 + $0x2c] sm:$0xf]
  %v90 = vld [vmem:[%s1 + $0x30] sm:$0xf]
  %v91 = vld [vmem:[%s1 + $0x34] sm:$0xf]
  %v92 = vld [vmem:[%s1 + $0x38] sm:$0xf]
  %v93 = vld [vmem:[%s1 + $0x3c] sm:$0xf]
  %v94 = vld [vmem:[%s1 + $0x40] sm:$0xf]
  %v95 = vld [vmem:[%s1 + $0x44] sm:$0xf]
  %v96 = vld [vmem:[%s1 + $0x48] sm:$0xf]
  %v97 = vld [vmem:[%s1 + $0x4c] sm:$0xf]
  %v98 = vld [vmem:[%s1 + $0x50] sm:$0xf]
  %v99 = vld [vmem:[%s1 + $0x54] sm:$0xf]
  %v100 = vld [vmem:[%s1 + $0x58] sm:$0xf]
  %v101 = vld [vmem:[%s1 + $0x5c] sm:$0xf]
  %v102 = vld [vmem:[%s2] sm:$0x1]
  %v104 = vperm.slane %v102, 0
  %v109 = vunpack.c.l.b16 %v75
  %v110 = vunpack.c.h.b16 %v75
  %v111 = vunpack.c.l.b16 %v76
  %v112 = vunpack.c.h.b16 %v76
  %v113 = vunpack.c.l.b16 %v77
  %v114 = vunpack.c.h.b16 %v77
  %v115 = vpack.c.b16 %v111, %v109
  %v116 = vpack.c.b16 %v112, %v110
  %v117 = vpack.c.b16 %v113, %v113
  %v118 = vpack.c.b16 %v114, %v114
  %v145 = vunpack.c.l.b16 %v78
  %v146 = vunpack.c.l.b16 %v79
  %v147 = vunpack.c.l.b16 %v80
  %v148 = vunpack.c.l.b16 %v81
  %v149 = vunpack.c.l.b16 %v82
  %v150 = vunpack.c.l.b16 %v83
  %v151 = vunpack.c.l.b16 %v84
  %v152 = vunpack.c.l.b16 %v85
  %v153 = vunpack.c.l.b16 %v86
  %v154 = vunpack.c.l.b16 %v87
  %v155 = vunpack.c.l.b16 %v88
  %v156 = vunpack.c.l.b16 %v89
  %v157 = vunpack.c.l.b16 %v90
  %v158 = vunpack.c.l.b16 %v91
  %v159 = vunpack.c.l.b16 %v92
  %v160 = vunpack.c.l.b16 %v93
  %v161 = vunpack.c.l.b16 %v94
  %v162 = vunpack.c.l.b16 %v95
  %v163 = vunpack.c.l.b16 %v96
  %v164 = vunpack.c.l.b16 %v97
  %v165 = vunpack.c.l.b16 %v98
  %v166 = vunpack.c.l.b16 %v99
  %v167 = vunpack.c.l.b16 %v100
  %v168 = vunpack.c.l.b16 %v101
  %v169 = vpack.c.b16 %v146, %v145
  %v170 = vpack.c.b16 %v148, %v147
  %v171 = vpack.c.b16 %v150, %v149
  %v172 = vpack.c.b16 %v152, %v151
  %v173 = vpack.c.b16 %v154, %v153
  %v174 = vpack.c.b16 %v156, %v155
  %v175 = vpack.c.b16 %v158, %v157
  %v176 = vpack.c.b16 %v160, %v159
  %v177 = vpack.c.b16 %v162, %v161
  %v178 = vpack.c.b16 %v164, %v163
  %v179 = vpack.c.b16 %v166, %v165
  %v180 = vpack.c.b16 %v168, %v167
  %vm193 = vcmask 523264
  %v195 = vsel %vm193, %v116, 0
  %v198 = vsel %vm193, %v118, 0
  %200 = vmatpush.bf16.msra.mxu0 %v176
  %201 = vmatpush.bf16.msra.mxu0 %v175
  %202 = vmatpush.bf16.msra.mxu0 %v174
  %203 = vmatpush.bf16.msra.mxu0 %v173
  %204 = vmatpush.bf16.msra.mxu0 %v172
  %205 = vmatpush.bf16.msra.mxu0 %v171
  %206 = vmatpush.bf16.msra.mxu0 %v170
  %207 = vmatpush.bf16.msra.mxu0 %v169
  %208 = vmatmul.bf16.gmra.mxu0 %v115
  %v209 = vpop.f32.mrf.mxu0
  %v210 = vadd.f32 %v104, %v209
  %v211 = vpop.f32.mrf.mxu0
  %v212 = vadd.f32 %v104, %v211
  %213 = vmatmul.bf16.gmra.mxu0 %v117
  %v214 = vpop.f32.mrf.mxu0
  %v215 = vadd.f32 %v104, %v214
  %v216 = vpop.f32.mrf.mxu0
  %217 = vdwg.mxu0
  %218 = vmatpush.bf16.msra.mxu0 0
  %219 = vmatpush.bf16.msra.mxu0 0
  %220 = vmatpush.bf16.msra.mxu0 0
  %221 = vmatpush.bf16.msra.mxu0 0
  %222 = vmatpush.bf16.msra.mxu0 %v180
  %223 = vmatpush.bf16.msra.mxu0 %v179
  %224 = vmatpush.bf16.msra.mxu0 %v178
  %225 = vmatpush.bf16.msra.mxu0 %v177
  %226 = vmatmul.bf16.gmra.mxu0 %v195
  %v227 = vpop.f32.mrf.mxu0
  %v228 = vadd.f32 %v210, %v227
  %v229 = vpop.f32.mrf.mxu0
  %v230 = vadd.f32 %v212, %v229
  %231 = vmatmul.bf16.gmra.mxu0 %v198
  %v232 = vpop.f32.mrf.mxu0
  %v233 = vadd.f32 %v215, %v232
  %v234 = vpop.f32.mrf.mxu0
  %235 = vdwg.mxu0
  %v239 = vrot.slane %v228, 1
  %v240 = vrot.slane %v228, 2
  %v241 = vrot.slane %v228, 3
  %v242 = vrot.slane %v228, 4
  %v243 = vrot.slane %v228, 5
  %v244 = vrot.slane %v228, 6
  %v245 = vrot.slane %v228, 7
  %v246 = vrot.slane %v230, 1
  %v247 = vrot.slane %v230, 2
  %v248 = vrot.slane %v230, 3
  %v249 = vrot.slane %v230, 4
  %v250 = vrot.slane %v230, 5
  %v251 = vrot.slane %v230, 6
  %v252 = vrot.slane %v230, 7
  %v253 = vrot.slane %v233, 1
  %v254 = vrot.slane %v233, 2
  %v255 = vrot.slane %v233, 3
  %v256 = vlaneseq
  %v257 = vshrl.u32 %v256, 7
  %v258 = vld [vmem:[%s3] sm:$0x1]
  %v260 = vperm.slane %v258, 0
  %vm262 = vcmp.eq.s32.totalorder %v257, 0
  %263 = vst [vmem:[#allocation1] ss:$9 sm:$0xff] %v228
  %s264 = scalar_lea.vmem [#allocation1], 1
  %265 = vst [vmem:[%s264] ss:$9 sm:$0xff] %v239
  %s266 = scalar_lea.vmem [#allocation1], 2
  %267 = vst [vmem:[%s266] ss:$9 sm:$0xff] %v240
  %s268 = scalar_lea.vmem [#allocation1], 3
  %269 = vst [vmem:[%s268] ss:$9 sm:$0xff] %v241
  %s270 = scalar_lea.vmem [#allocation1], 4
  %271 = vst [vmem:[%s270] ss:$9 sm:$0xff] %v242
  %v272 = vld [vmem:[#allocation1] sm:$0xff]
  %273 = vst [vmem:[#allocation1] ss:$9 sm:$0xff] %v243
  %274 = vst [vmem:[%s264] ss:$9 sm:$0xff] %v244
  %275 = vst [vmem:[%s266] ss:$9 sm:$0xff] %v245
  %276 = vst [vmem:[%s268] ss:$9 sm:$0xff] %v230
  %277 = vst [vmem:[%s270] ss:$9 sm:$0xff] %v246
  %v278 = vld [vmem:[#allocation1] sm:$0xff]
  %279 = vst [vmem:[#allocation1] ss:$9 sm:$0xff] %v247
  %280 = vst [vmem:[%s264] ss:$9 sm:$0xff] %v248
  %281 = vst [vmem:[%s266] ss:$9 sm:$0xff] %v249
  %282 = vst [vmem:[%s268] ss:$9 sm:$0xff] %v250
  %283 = vst [vmem:[%s270] ss:$9 sm:$0xff] %v251
  %v284 = vld [vmem:[#allocation1] sm:$0xff]
  %285 = vst [vmem:[#allocation1] ss:$9 sm:$0xff] %v252
  %286 = vst [vmem:[%s264] ss:$9 sm:$0xff] %v233
  %287 = vst [vmem:[%s266] ss:$9 sm:$0xff] %v253
  %288 = vst [vmem:[%s268] ss:$9 sm:$0xff] %v254
  %289 = vst [vmem:[%s270] ss:$9 sm:$0xff] %v255
  %v290 = vld [vmem:[#allocation1] sm:$0xff]
  %v295 = vsel %vm262, %v260, %v272
  %v296 = vsel %vm262, %v260, %v278
  %v297 = vsel %vm262, %v260, %v284
  %v298 = vsel %vm262, %v260, %v290
  %v299 = vld [vmem:[%s4] sm:$0x1f]
  %v300 = vadd.f32 %v295, %v299
  %v301 = vadd.f32 %v296, %v299
  %v302 = vadd.f32 %v297, %v299
  %v303 = vadd.f32 %v298, %v299
  %v308 = vrot.slane %v300, 1
  %v309 = vrot.slane %v300, 2
  %v310 = vrot.slane %v300, 3
  %v311 = vrot.slane %v300, 4
  %v312 = vrot.slane %v301, 1
  %v313 = vrot.slane %v301, 2
  %v314 = vrot.slane %v301, 3
  %v315 = vrot.slane %v301, 4
  %v316 = vrot.slane %v302, 1
  %v317 = vrot.slane %v302, 2
  %v318 = vrot.slane %v302, 3
  %v319 = vrot.slane %v302, 4
  %v320 = vrot.slane %v303, 1
  %v321 = vrot.slane %v303, 2
  %v322 = vrot.slane %v303, 3
  %v323 = vrot.slane %v303, 4
  %v340 = vld [vmem:[%s5] sm:$0x1]
  %v341 = vld [vmem:[%s6] sm:$0x1]
  %342 = vst [vmem:[#allocation1] ss:$9 sm:$0xff] %v300
  %s343 = scalar_lea.vmem [#allocation1], 1
  %344 = vst [vmem:[%s343] ss:$9 sm:$0xff] %v308
  %s345 = scalar_lea.vmem [#allocation1], 2
  %346 = vst [vmem:[%s345] ss:$9 sm:$0xff] %v309
  %s347 = scalar_lea.vmem [#allocation1], 3
  %348 = vst [vmem:[%s347] ss:$9 sm:$0xff] %v310
  %s349 = scalar_lea.vmem [#allocation1], 4
  %350 = vst [vmem:[%s349] ss:$9 sm:$0xff] %v311
  %s351 = scalar_lea.vmem [#allocation1], 5
  %352 = vst [vmem:[%s351] ss:$9 sm:$0xff] %v301
  %s353 = scalar_lea.vmem [#allocation1], 6
  %354 = vst [vmem:[%s353] ss:$9 sm:$0xff] %v312
  %s355 = scalar_lea.vmem [#allocation1], 7
  %356 = vst [vmem:[%s355] ss:$9 sm:$0xff] %v313
  %v357 = vld [vmem:[#allocation1] sm:$0xff]
  %358 = vst [vmem:[#allocation1] ss:$9 sm:$0xff] %v314
  %359 = vst [vmem:[%s343] ss:$9 sm:$0xff] %v315
  %360 = vst [vmem:[%s345] ss:$9 sm:$0xff] %v302
  %361 = vst [vmem:[%s347] ss:$9 sm:$0xff] %v316
  %362 = vst [vmem:[%s349] ss:$9 sm:$0xff] %v317
  %363 = vst [vmem:[%s351] ss:$9 sm:$0xff] %v318
  %364 = vst [vmem:[%s353] ss:$9 sm:$0xff] %v319
  %365 = vst [vmem:[%s355] ss:$9 sm:$0xff] %v303
  %v366 = vld [vmem:[#allocation1] sm:$0xff]
  %367 = vst [vmem:[#allocation1] ss:$9 sm:$0xff] %v320
  %368 = vst [vmem:[%s343] ss:$9 sm:$0xff] %v321
  %369 = vst [vmem:[%s345] ss:$9 sm:$0xff] %v322
  %370 = vst [vmem:[%s347] ss:$9 sm:$0xff] %v323
  %v371 = vld [vmem:[#allocation1] sm:$0xff]
  %vm375 = vcmask 261120
  %v376 = vsel %vm375, %v357, 0.0
  %377 = vadd.xlane.f32.xlu0 %v376
  %v378 = vpop.xlane.xlu0 %377
  %v379 = vsel %vm375, %v366, 0.0
  %380 = vadd.xlane.f32.xlu0 %v379
  %v381 = vpop.xlane.xlu0 %380
  %vm382 = vcmask 257024
  %v383 = vsel %vm382, %v371, 0.0
  %384 = vadd.xlane.f32.xlu0 %v383
  %v385 = vpop.xlane.xlu0 %384
  %v386 = vrcp.pop 32.0
  %v387 = vmul.f32 32.0, %v386
  %v388 = vsub.f32 1.0, %v387
  %v389 = vmul.f32 %v386, %v388
  %v390 = vadd.f32 %v386, %v389
  %vm391 = vweird.f32 %v386
  %v392 = vsel %vm391, %v386, %v390
  %v393 = vmul.f32 %v378, %v392
  %v394 = vmul.f32 %v381, %v392
  %v395 = vmul.f32 %v385, %v392
  %v399 = vperm.slane %v393, 0
  %v400 = vperm.slane %v393, 1
  %v401 = vperm.slane %v393, 2
  %v402 = vperm.slane %v393, 3
  %v403 = vperm.slane %v393, 4
  %v404 = vperm.slane %v393, 5
  %v405 = vperm.slane %v393, 6
  %v406 = vperm.slane %v393, 7
  %v407 = vperm.slane %v394, 0
  %v408 = vperm.slane %v394, 1
  %v409 = vperm.slane %v394, 2
  %v410 = vperm.slane %v394, 3
  %v411 = vperm.slane %v394, 4
  %v412 = vperm.slane %v394, 5
  %v413 = vperm.slane %v394, 6
  %v414 = vperm.slane %v394, 7
  %v415 = vperm.slane %v395, 0
  %v416 = vperm.slane %v395, 1
  %v417 = vperm.slane %v395, 2
  %v418 = vperm.slane %v395, 3
  %v439 = vsub.f32 %v300, %v399
  %v440 = vsub.f32 %v308, %v400
  %v441 = vsub.f32 %v309, %v401
  %v442 = vsub.f32 %v310, %v402
  %v443 = vsub.f32 %v311, %v403
  %v444 = vsub.f32 %v301, %v404
  %v445 = vsub.f32 %v312, %v405
  %v446 = vsub.f32 %v313, %v406
  %v447 = vsub.f32 %v314, %v407
  %v448 = vsub.f32 %v315, %v408
  %v449 = vsub.f32 %v302, %v409
  %v450 = vsub.f32 %v316, %v410
  %v451 = vsub.f32 %v317, %v411
  %v452 = vsub.f32 %v318, %v412
  %v453 = vsub.f32 %v319, %v413
  %v454 = vsub.f32 %v303, %v414
  %v455 = vsub.f32 %v320, %v415
  %v456 = vsub.f32 %v321, %v416
  %v457 = vsub.f32 %v322, %v417
  %v458 = vsub.f32 %v323, %v418
  %v459 = vmul.f32 %v439, %v439
  %v460 = vmul.f32 %v440, %v440
  %v461 = vmul.f32 %v441, %v441
  %v462 = vmul.f32 %v442, %v442
  %v463 = vmul.f32 %v443, %v443
  %v464 = vmul.f32 %v444, %v444
  %v465 = vmul.f32 %v445, %v445
  %v466 = vmul.f32 %v446, %v446
  %v467 = vmul.f32 %v447, %v447
  %v468 = vmul.f32 %v448, %v448
  %v469 = vmul.f32 %v449, %v449
  %v470 = vmul.f32 %v450, %v450
  %v471 = vmul.f32 %v451, %v451
  %v472 = vmul.f32 %v452, %v452
  %v473 = vmul.f32 %v453, %v453
  %v474 = vmul.f32 %v454, %v454
  %v475 = vmul.f32 %v455, %v455
  %v476 = vmul.f32 %v456, %v456
  %v477 = vmul.f32 %v457, %v457
  %v478 = vmul.f32 %v458, %v458
  %499 = vst [vmem:[#allocation1] ss:$9 sm:$0xff] %v459
  %s500 = scalar_lea.vmem [#allocation1], 1
  %501 = vst [vmem:[%s500] ss:$9 sm:$0xff] %v460
  %s502 = scalar_lea.vmem [#allocation1], 2
  %503 = vst [vmem:[%s502] ss:$9 sm:$0xff] %v461
  %s504 = scalar_lea.vmem [#allocation1], 3
  %505 = vst [vmem:[%s504] ss:$9 sm:$0xff] %v462
  %s506 = scalar_lea.vmem [#allocation1], 4
  %507 = vst [vmem:[%s506] ss:$9 sm:$0xff] %v463
  %s508 = scalar_lea.vmem [#allocation1], 5
  %509 = vst [vmem:[%s508] ss:$9 sm:$0xff] %v464
  %s510 = scalar_lea.vmem [#allocation1], 6
  %511 = vst [vmem:[%s510] ss:$9 sm:$0xff] %v465
  %s512 = scalar_lea.vmem [#allocation1], 7
  %513 = vst [vmem:[%s512] ss:$9 sm:$0xff] %v466
  %v514 = vld [vmem:[#allocation1] sm:$0xff]
  %515 = vst [vmem:[#allocation1] ss:$9 sm:$0xff] %v467
  %516 = vst [vmem:[%s500] ss:$9 sm:$0xff] %v468
  %517 = vst [vmem:[%s502] ss:$9 sm:$0xff] %v469
  %518 = vst [vmem:[%s504] ss:$9 sm:$0xff] %v470
  %519 = vst [vmem:[%s506] ss:$9 sm:$0xff] %v471
  %520 = vst [vmem:[%s508] ss:$9 sm:$0xff] %v472
  %521 = vst [vmem:[%s510] ss:$9 sm:$0xff] %v473
  %522 = vst [vmem:[%s512] ss:$9 sm:$0xff] %v474
  %v523 = vld [vmem:[#allocation1] sm:$0xff]
  %524 = vst [vmem:[#allocation1] ss:$9 sm:$0xff] %v475
  %525 = vst [vmem:[%s500] ss:$9 sm:$0xff] %v476
  %526 = vst [vmem:[%s502] ss:$9 sm:$0xff] %v477
  %527 = vst [vmem:[%s504] ss:$9 sm:$0xff] %v478
  %v528 = vld [vmem:[#allocation1] sm:$0xff]
  %v532 = vsel %vm375, %v514, 0.0
  %533 = vadd.xlane.f32.xlu0 %v532
  %v534 = vpop.xlane.xlu0 %533
  %v535 = vsel %vm375, %v523, 0.0
  %536 = vadd.xlane.f32.xlu0 %v535
  %v537 = vpop.xlane.xlu0 %536
  %v538 = vsel %vm382, %v528, 0.0
  %539 = vadd.xlane.f32.xlu0 %v538
  %v540 = vpop.xlane.xlu0 %539
  %v541 = vmul.f32 %v534, %v392
  %v542 = vmul.f32 %v537, %v392
  %v543 = vmul.f32 %v540, %v392
  %v544 = vadd.f32 %v541, 1e-12
  %v545 = vadd.f32 %v542, 1e-12
  %v546 = vadd.f32 %v543, 1e-12
  %v547 = vrsqrt.pop %v544
  %v548 = vmul.f32 %v547, %v544
  %v549 = vmul.f32 %v548, %v547
  %v550 = vmul.f32 0.5, %v549
  %v551 = vsub.f32 1.5, %v550
  %v552 = vmul.f32 %v547, %v551
  %vm553 = vweird.f32 %v544
  %vm554 = vweird.f32 %v547
  %vm555 = vmor %vm553, %vm554
  %v556 = vsel %vm555, %v547, %v552
  %v557 = vrsqrt.pop %v545
  %v558 = vmul.f32 %v557, %v545
  %v559 = vmul.f32 %v558, %v557
  %v560 = vmul.f32 0.5, %v559
  %v561 = vsub.f32 1.5, %v560
  %v562 = vmul.f32 %v557, %v561
  %vm563 = vweird.f32 %v545
  %vm564 = vweird.f32 %v557
  %vm565 = vmor %vm563, %vm564
  %v566 = vsel %vm565, %v557, %v562
  %v567 = vrsqrt.pop %v546
  %v568 = vmul.f32 %v567, %v546
  %v569 = vmul.f32 %v568, %v567
  %v570 = vmul.f32 0.5, %v569
  %v571 = vsub.f32 1.5, %v570
  %v572 = vmul.f32 %v567, %v571
  %vm573 = vweird.f32 %v546
  %vm574 = vweird.f32 %v567
  %vm575 = vmor %vm573, %vm574
  %v576 = vsel %vm575, %v567, %v572
  %v580 = vperm.slane %v556, 0
  %v581 = vperm.slane %v556, 1
  %v582 = vperm.slane %v556, 2
  %v583 = vperm.slane %v556, 3
  %v584 = vperm.slane %v556, 4
  %v585 = vperm.slane %v556, 5
  %v586 = vperm.slane %v556, 6
  %v587 = vperm.slane %v556, 7
  %v588 = vperm.slane %v566, 0
  %v589 = vperm.slane %v566, 1
  %v590 = vperm.slane %v566, 2
  %v591 = vperm.slane %v566, 3
  %v592 = vperm.slane %v566, 4
  %v593 = vperm.slane %v566, 5
  %v594 = vperm.slane %v566, 6
  %v595 = vperm.slane %v566, 7
  %v596 = vperm.slane %v576, 0
  %v597 = vperm.slane %v576, 1
  %v598 = vperm.slane %v576, 2
  %v599 = vperm.slane %v576, 3
  %v620 = vmul.f32 %v439, %v580
  %v621 = vmul.f32 %v440, %v581
  %v622 = vmul.f32 %v441, %v582
  %v623 = vmul.f32 %v442, %v583
  %v624 = vmul.f32 %v443, %v584
  %v625 = vmul.f32 %v444, %v585
  %v626 = vmul.f32 %v445, %v586
  %v627 = vmul.f32 %v446, %v587
  %v628 = vmul.f32 %v447, %v588
  %v629 = vmul.f32 %v448, %v589
  %v630 = vmul.f32 %v449, %v590
  %v631 = vmul.f32 %v450, %v591
  %v632 = vmul.f32 %v451, %v592
  %v633 = vmul.f32 %v452, %v593
  %v634 = vmul.f32 %v453, %v594
  %v635 = vmul.f32 %v454, %v595
  %v636 = vmul.f32 %v455, %v596
  %v637 = vmul.f32 %v456, %v597
  %v638 = vmul.f32 %v457, %v598
  %v639 = vmul.f32 %v458, %v599
  %v641 = vperm.slane %v340, 0
  %v643 = vrot.slane %v641, 1
  %v644 = vrot.slane %v641, 2
  %v645 = vrot.slane %v641, 3
  %v646 = vrot.slane %v641, 4
  %v647 = vrot.slane %v641, 5
  %v648 = vrot.slane %v641, 6
  %v649 = vrot.slane %v641, 7
  %v657 = vmul.f32 %v620, %v641
  %v658 = vmul.f32 %v621, %v643
  %v659 = vmul.f32 %v622, %v644
  %v660 = vmul.f32 %v623, %v645
  %v661 = vmul.f32 %v624, %v646
  %v662 = vmul.f32 %v625, %v647
  %v663 = vmul.f32 %v626, %v648
  %v664 = vmul.f32 %v627, %v649
  %v665 = vmul.f32 %v628, %v641
  %v666 = vmul.f32 %v629, %v643
  %v667 = vmul.f32 %v630, %v644
  %v668 = vmul.f32 %v631, %v645
  %v669 = vmul.f32 %v632, %v646
  %v670 = vmul.f32 %v633, %v647
  %v671 = vmul.f32 %v634, %v648
  %v672 = vmul.f32 %v635, %v649
  %v673 = vmul.f32 %v636, %v641
  %v674 = vmul.f32 %v637, %v643
  %v675 = vmul.f32 %v638, %v644
  %v676 = vmul.f32 %v639, %v645
  %v678 = vperm.slane %v341, 0
  %v680 = vrot.slane %v678, 1
  %v681 = vrot.slane %v678, 2
  %v682 = vrot.slane %v678, 3
  %v683 = vrot.slane %v678, 4
  %v684 = vrot.slane %v678, 5
  %v685 = vrot.slane %v678, 6
  %v686 = vrot.slane %v678, 7
  %v694 = vadd.f32 %v657, %v678
  %v695 = vadd.f32 %v658, %v680
  %v696 = vadd.f32 %v659, %v681
  %v697 = vadd.f32 %v660, %v682
  %v698 = vadd.f32 %v661, %v683
  %v699 = vadd.f32 %v662, %v684
  %v700 = vadd.f32 %v663, %v685
  %v701 = vadd.f32 %v664, %v686
  %v702 = vadd.f32 %v665, %v678
  %v703 = vadd.f32 %v666, %v680
  %v704 = vadd.f32 %v667, %v681
  %v705 = vadd.f32 %v668, %v682
  %v706 = vadd.f32 %v669, %v683
  %v707 = vadd.f32 %v670, %v684
  %v708 = vadd.f32 %v671, %v685
  %v709 = vadd.f32 %v672, %v686
  %v710 = vadd.f32 %v673, %v678
  %v711 = vadd.f32 %v674, %v680
  %v712 = vadd.f32 %v675, %v681
  %v713 = vadd.f32 %v676, %v682
  %734 = vst [vmem:[#allocation1] ss:$9 sm:$0xff] %v694
  %s735 = scalar_lea.vmem [#allocation1], 1
  %736 = vst [vmem:[%s735] ss:$9 sm:$0xff] %v695
  %s737 = scalar_lea.vmem [#allocation1], 2
  %738 = vst [vmem:[%s737] ss:$9 sm:$0xff] %v696
  %s739 = scalar_lea.vmem [#allocation1], 3
  %740 = vst [vmem:[%s739] ss:$9 sm:$0xff] %v697
  %s741 = scalar_lea.vmem [#allocation1], 4
  %742 = vst [vmem:[%s741] ss:$9 sm:$0xff] %v698
  %s743 = scalar_lea.vmem [#allocation1], 5
  %744 = vst [vmem:[%s743] ss:$9 sm:$0xff] %v699
  %s745 = scalar_lea.vmem [#allocation1], 6
  %746 = vst [vmem:[%s745] ss:$9 sm:$0xff] %v700
  %s747 = scalar_lea.vmem [#allocation1], 7
  %748 = vst [vmem:[%s747] ss:$9 sm:$0xff] %v701
  %v749 = vld [vmem:[#allocation1] sm:$0xff]
  %750 = vst [vmem:[#allocation1] ss:$9 sm:$0xff] %v702
  %751 = vst [vmem:[%s735] ss:$9 sm:$0xff] %v703
  %752 = vst [vmem:[%s737] ss:$9 sm:$0xff] %v704
  %753 = vst [vmem:[%s739] ss:$9 sm:$0xff] %v705
  %754 = vst [vmem:[%s741] ss:$9 sm:$0xff] %v706
  %755 = vst [vmem:[%s743] ss:$9 sm:$0xff] %v707
  %756 = vst [vmem:[%s745] ss:$9 sm:$0xff] %v708
  %757 = vst [vmem:[%s747] ss:$9 sm:$0xff] %v709
  %v758 = vld [vmem:[#allocation1] sm:$0xff]
  %759 = vst [vmem:[#allocation1] ss:$9 sm:$0xff] %v710
  %760 = vst [vmem:[%s735] ss:$9 sm:$0xff] %v711
  %761 = vst [vmem:[%s737] ss:$9 sm:$0xff] %v712
  %762 = vst [vmem:[%s739] ss:$9 sm:$0xff] %v713
  %v763 = vld [vmem:[#allocation1] sm:$0xff]
  %v767 = vpack.c.bf16 %v758, %v749
  %v768 = vpack.c.bf16 %v763, %v763
  %v769 = vld [vmem:[%s7] sm:$0xf]
  %v770 = vld [vmem:[%s7 + $0x4] sm:$0xf]
  %v771 = vld [vmem:[%s7 + $0x8] sm:$0xf]
  %v772 = vld [vmem:[%s7 + $0xc] sm:$0xf]
  %v773 = vld [vmem:[%s8] sm:$0x1]
  %v775 = vperm.slane %v773, 0
  %v781 = vunpack.c.l.b16 %v769
  %v782 = vunpack.c.l.b16 %v770
  %v783 = vunpack.c.l.b16 %v771
  %v784 = vunpack.c.l.b16 %v772
  %v785 = vpack.c.b16 %v782, %v781
  %v786 = vpack.c.b16 %v784, %v783
  %v790 = vsel %vm375, %v767, 0
  %v793 = vsel %vm375, %v768, 0
  %795 = vmatpush.bf16.msra.mxu0 0
  %796 = vmatpush.bf16.msra.mxu0 0
  %797 = vmatpush.bf16.msra.mxu0 0
  %798 = vmatpush.bf16.msra.mxu0 0
  %799 = vmatpush.bf16.msra.mxu0 0
  %800 = vmatpush.bf16.msra.mxu0 0
  %801 = vmatpush.bf16.msra.mxu0 %v786
  %802 = vmatpush.bf16.msra.mxu0 %v785
  %803 = vmatmul.bf16.gmra.mxu0 %v790
  %v804 = vpop.f32.mrf.mxu0
  %v805 = vadd.f32 %v775, %v804
  %v806 = vpop.f32.mrf.mxu0
  %v807 = vadd.f32 %v775, %v806
  %808 = vmatmul.bf16.gmra.mxu0 %v793
  %v809 = vpop.f32.mrf.mxu0
  %v810 = vadd.f32 %v775, %v809
  %v811 = vpop.f32.mrf.mxu0
  %812 = vdwg.mxu0
  %v813 = vpack.c.bf16 %v805, %v805
  %v814 = vpack.c.bf16 %v807, %v807
  %v815 = vpack.c.bf16 %v810, %v810
  %v816 = vld [vmem:[%s9] sm:$0xf]
  %v817 = vld [vmem:[%s9 + $0x4] sm:$0xf]
  %v818 = vld [vmem:[%s9 + $0x8] sm:$0xf]
  %v819 = vld [vmem:[%s9 + $0xc] sm:$0xf]
  %v823 = vrot.slane %v813, 3
  %v824 = vrot.slane %v814, 3
  %v825 = vrot.slane %v815, 3
  %vm826 = vcmask 1040384
  %v829 = vsel %vm826, %v813, %v823
  %vm831 = vcmask 1041409
  %v832 = vsel %vm831, %v813, %v823
  %v834 = vrot.slane %v832, 1
  %vm835 = vcmask 1042434
  %v836 = vsel %vm835, %v813, %v823
  %v838 = vrot.slane %v836, 2
  %vm839 = vcmask 1043459
  %v840 = vsel %vm839, %v813, %v823
  %v842 = vrot.slane %v840, 3
  %v845 = vsel %vm826, %v814, %v824
  %v847 = vsel %vm831, %v814, %v824
  %v849 = vrot.slane %v847, 1
  %v850 = vsel %vm835, %v814, %v824
  %v852 = vrot.slane %v850, 2
  %v853 = vsel %vm839, %v814, %v824
  %v855 = vrot.slane %v853, 3
  %v858 = vsel %vm826, %v815, %v825
  %v860 = vsel %vm831, %v815, %v825
  %v862 = vrot.slane %v860, 1
  %v863 = vunpack.i.l.s16 %v829
  %v864 = vunpack.i.h.s16 %v829
  %v865 = vunpack.i.l.s16 %v834
  %v866 = vunpack.i.h.s16 %v834
  %v867 = vunpack.i.l.s16 %v838
  %v868 = vunpack.i.h.s16 %v838
  %v869 = vunpack.i.l.s16 %v842
  %v870 = vunpack.i.h.s16 %v842
  %v871 = vunpack.i.l.s16 %v845
  %v872 = vunpack.i.h.s16 %v845
  %v873 = vunpack.i.l.s16 %v849
  %v874 = vunpack.i.h.s16 %v849
  %v875 = vunpack.i.l.s16 %v852
  %v876 = vunpack.i.h.s16 %v852
  %v877 = vunpack.i.l.s16 %v855
  %v878 = vunpack.i.h.s16 %v855
  %v879 = vunpack.i.l.s16 %v858
  %v880 = vunpack.i.h.s16 %v858
  %v881 = vunpack.i.l.s16 %v862
  %v882 = vunpack.i.h.s16 %v862
  %v883 = vpack.i.b16 %v864, %v863
  %v884 = vpack.i.b16 %v866, %v865
  %887 = vst [vmem:[#allocation1] ss:$9 sm:$0xff] %v883
  %s889 = scalar_lea.vmem [#allocation1], 1
  %890 = vst [vmem:[%s889] ss:$9 sm:$0xff] %v884
  %s892 = scalar_lea.vmem [#allocation1], 2
  %893 = vst [vmem:[%s892] ss:$9 sm:$0xff] %v867
  %v894 = vld [vmem:[#allocation1] sm:$0xff]
  %895 = vst [vmem:[#allocation1] ss:$9 sm:$0xff] %v883
  %s896 = scalar_lea.vmem [#allocation1], 1
  %897 = vst [vmem:[%s896] ss:$9 sm:$0xff] %v884
  %s898 = scalar_lea.vmem [#allocation1], 2
  %899 = vst [vmem:[%s898] ss:$9 sm:$0xff] %v867
  %v900 = vld [vmem:[#allocation1] sm:$0xff]
  %902 = vrot.lane.b32.xlu0 %v900, 96
  %v903 = vpop.permute.xlu0 %902
  %vm904 = vcmask 64512
  %v905 = vsel %vm904, %v894, 0
  %v908 = vsel %vm904, %v903, 0
  %910 = vmatpush.bf16.xpose.msra.mxu0 0
  %911 = vmatpush.bf16.xpose.msra.mxu0 0
  %912 = vmatpush.bf16.xpose.msra.mxu0 0
  %913 = vmatpush.bf16.xpose.msra.mxu0 0
  %914 = vmatpush.bf16.xpose.msra.mxu0 0
  %915 = vmatpush.bf16.xpose.msra.mxu0 0
  %916 = vmatpush.bf16.xpose.msra.mxu0 0
  %917 = vmatpush.bf16.xpose.msra.mxu0 %v908
  %918 = vmatmul.bf16.gmra.mxu0 %v905
  %v919 = vpop.f32.mrf.mxu0
  %v920 = vadd.f32 0.0, %v919
  %v921 = vpop.f32.mrf.mxu0
  %922 = vdwg.mxu0
  %v923 = vpack.i.b16 %v869, %v868
  %v924 = vpack.i.b16 %v871, %v870
  %927 = vst [vmem:[#allocation1] ss:$9 sm:$0xff] %v923
  %s929 = scalar_lea.vmem [#allocation1], 1
  %930 = vst [vmem:[%s929] ss:$9 sm:$0xff] %v924
  %s932 = scalar_lea.vmem [#allocation1], 2
  %933 = vst [vmem:[%s932] ss:$9 sm:$0xff] %v872
  %v934 = vld [vmem:[#allocation1] sm:$0xff]
  %935 = vst [vmem:[#allocation1] ss:$9 sm:$0xff] %v923
  %s936 = scalar_lea.vmem [#allocation1], 1
  %937 = vst [vmem:[%s936] ss:$9 sm:$0xff] %v924
  %s938 = scalar_lea.vmem [#allocation1], 2
  %939 = vst [vmem:[%s938] ss:$9 sm:$0xff] %v872
  %v940 = vld [vmem:[#allocation1] sm:$0xff]
  %942 = vrot.lane.b32.xlu0 %v940, 96
  %v943 = vpop.permute.xlu0 %942
  %v944 = vsel %vm904, %v934, 0
  %v947 = vsel %vm904, %v943, 0
  %949 = vmatpush.bf16.xpose.msra.mxu0 0
  %950 = vmatpush.bf16.xpose.msra.mxu0 0
  %951 = vmatpush.bf16.xpose.msra.mxu0 0
  %952 = vmatpush.bf16.xpose.msra.mxu0 0
  %953 = vmatpush.bf16.xpose.msra.mxu0 0
  %954 = vmatpush.bf16.xpose.msra.mxu0 0
  %955 = vmatpush.bf16.xpose.msra.mxu0 0
  %956 = vmatpush.bf16.xpose.msra.mxu0 %v947
  %957 = vmatmul.bf16.gmra.mxu0 %v944
  %v958 = vpop.f32.mrf.mxu0
  %v959 = vadd.f32 0.0, %v958
  %v960 = vpop.f32.mrf.mxu0
  %961 = vdwg.mxu0
  %v962 = vpack.i.b16 %v874, %v873
  %v963 = vpack.i.b16 %v876, %v875
  %966 = vst [vmem:[#allocation1] ss:$9 sm:$0xff] %v962
  %s968 = scalar_lea.vmem [#allocation1], 1
  %969 = vst [vmem:[%s968] ss:$9 sm:$0xff] %v963
  %s971 = scalar_lea.vmem [#allocation1], 2
  %972 = vst [vmem:[%s971] ss:$9 sm:$0xff] %v877
  %v973 = vld [vmem:[#allocation1] sm:$0xff]
  %974 = vst [vmem:[#allocation1] ss:$9 sm:$0xff] %v962
  %s975 = scalar_lea.vmem [#allocation1], 1
  %976 = vst [vmem:[%s975] ss:$9 sm:$0xff] %v963
  %s977 = scalar_lea.vmem [#allocation1], 2
  %978 = vst [vmem:[%s977] ss:$9 sm:$0xff] %v877
  %v979 = vld [vmem:[#allocation1] sm:$0xff]
  %981 = vrot.lane.b32.xlu0 %v979, 96
  %v982 = vpop.permute.xlu0 %981
  %v983 = vsel %vm904, %v973, 0
  %v986 = vsel %vm904, %v982, 0
  %988 = vmatpush.bf16.xpose.msra.mxu0 0
  %989 = vmatpush.bf16.xpose.msra.mxu0 0
  %990 = vmatpush.bf16.xpose.msra.mxu0 0
  %991 = vmatpush.bf16.xpose.msra.mxu0 0
  %992 = vmatpush.bf16.xpose.msra.mxu0 0
  %993 = vmatpush.bf16.xpose.msra.mxu0 0
  %994 = vmatpush.bf16.xpose.msra.mxu0 0
  %995 = vmatpush.bf16.xpose.msra.mxu0 %v986
  %996 = vmatmul.bf16.gmra.mxu0 %v983
  %v997 = vpop.f32.mrf.mxu0
  %v998 = vadd.f32 0.0, %v997
  %v999 = vpop.f32.mrf.mxu0
  %1000 = vdwg.mxu0
  %v1001 = vpack.i.b16 %v879, %v878
  %v1002 = vpack.i.b16 %v881, %v880
  %1005 = vst [vmem:[#allocation1] ss:$9 sm:$0xff] %v1001
  %s1007 = scalar_lea.vmem [#allocation1], 1
  %1008 = vst [vmem:[%s1007] ss:$9 sm:$0xff] %v1002
  %s1010 = scalar_lea.vmem [#allocation1], 2
  %1011 = vst [vmem:[%s1010] ss:$9 sm:$0xff] %v882
  %v1012 = vld [vmem:[#allocation1] sm:$0xff]
  %1013 = vst [vmem:[#allocation1] ss:$9 sm:$0xff] %v1001
  %s1014 = scalar_lea.vmem [#allocation1], 1
  %1015 = vst [vmem:[%s1014] ss:$9 sm:$0xff] %v1002
  %s1016 = scalar_lea.vmem [#allocation1], 2
  %1017 = vst [vmem:[%s1016] ss:$9 sm:$0xff] %v882
  %v1018 = vld [vmem:[#allocation1] sm:$0xff]
  %1020 = vrot.lane.b32.xlu0 %v1018, 96
  %v1021 = vpop.permute.xlu0 %1020
  %v1022 = vsel %vm904, %v1012, 0
  %v1025 = vsel %vm904, %v1021, 0
  %1027 = vmatpush.bf16.xpose.msra.mxu0 0
  %1028 = vmatpush.bf16.xpose.msra.mxu0 0
  %1029 = vmatpush.bf16.xpose.msra.mxu0 0
  %1030 = vmatpush.bf16.xpose.msra.mxu0 0
  %1031 = vmatpush.bf16.xpose.msra.mxu0 0
  %1032 = vmatpush.bf16.xpose.msra.mxu0 0
  %1033 = vmatpush.bf16.xpose.msra.mxu0 0
  %1034 = vmatpush.bf16.xpose.msra.mxu0 %v1025
  %1035 = vmatmul.bf16.gmra.mxu0 %v1022
  %v1036 = vpop.f32.mrf.mxu0
  %v1037 = vadd.f32 0.0, %v1036
  %v1038 = vpop.f32.mrf.mxu0
  %1039 = vdwg.mxu0
  %vm1040 = vcmask 36864
  %v1041 = vsel %vm1040, %v920, -inf
  %1042 = vmax.xlane.f32.xlu0 %v1041
  %v1043 = vpop.xlane.xlu0 %1042
  %v1044 = vsel %vm1040, %v959, -inf
  %1045 = vmax.xlane.f32.xlu0 %v1044
  %v1046 = vpop.xlane.xlu0 %1045
  %v1047 = vsel %vm1040, %v998, -inf
  %1048 = vmax.xlane.f32.xlu0 %v1047
  %v1049 = vpop.xlane.xlu0 %1048
  %v1050 = vsel %vm1040, %v1037, -inf
  %1051 = vmax.xlane.f32.xlu0 %v1050
  %v1052 = vpop.xlane.xlu0 %1051
  %v1053 = vsub.f32 %v920, %v1043
  %v1054 = vsub.f32 %v959, %v1046
  %v1055 = vsub.f32 %v998, %v1049
  %v1056 = vsub.f32 %v1037, %v1052
  %v1057 = vmul.f32 %v1053, 1.442695
  %v1058 = vpow.pop %v1057
  %v1059 = vmul.f32 %v1054, 1.442695
  %v1060 = vpow.pop %v1059
  %v1061 = vmul.f32 %v1055, 1.442695
  %v1062 = vpow.pop %v1061
  %v1063 = vmul.f32 %v1056, 1.442695
  %v1064 = vpow.pop %v1063
  %v1065 = vsel %vm1040, %v1058, 0.0
  %1066 = vadd.xlane.f32.xlu0 %v1065
  %v1067 = vpop.xlane.xlu0 %1066
  %v1068 = vsel %vm1040, %v1060, 0.0
  %1069 = vadd.xlane.f32.xlu0 %v1068
  %v1070 = vpop.xlane.xlu0 %1069
  %v1071 = vsel %vm1040, %v1062, 0.0
  %1072 = vadd.xlane.f32.xlu0 %v1071
  %v1073 = vpop.xlane.xlu0 %1072
  %v1074 = vsel %vm1040, %v1064, 0.0
  %1075 = vadd.xlane.f32.xlu0 %v1074
  %v1076 = vpop.xlane.xlu0 %1075
  %v1077 = vpack.c.bf16 %v1058, %v1058
  %v1078 = vpack.c.bf16 %v1060, %v1060
  %v1079 = vpack.c.bf16 %v1062, %v1062
  %v1080 = vpack.c.bf16 %v1064, %v1064
  %1081 = vst [vmem:[#allocation1] ss:$9 sm:$0xff] %v883
  %s1082 = scalar_lea.vmem [#allocation1], 1
  %1083 = vst [vmem:[%s1082] ss:$9 sm:$0xff] %v884
  %s1084 = scalar_lea.vmem [#allocation1], 2
  %1085 = vst [vmem:[%s1084] ss:$9 sm:$0xff] %v867
  %v1086 = vld [vmem:[#allocation1] sm:$0xff]
  %1088 = vrot.lane.b32.xlu0 %v1086, 64
  %v1089 = vpop.permute.xlu0 %1088
  %vm1090 = vcmask 39936
  %v1092 = vsel %vm1090, %v1077, 0
  %vm1094 = vcmask 1041408
  %vm1095 = vcmask 1042432
  %v1096 = vsel %vm1094, 4294967295, 65535
  %v1097 = vsel %vm1095, %v1096, 0
  %v1099 = vand.u32 %v1089, %v1097
  %1101 = vmatpush.bf16.msra.mxu0 0
  %1102 = vmatpush.bf16.msra.mxu0 0
  %1103 = vmatpush.bf16.msra.mxu0 0
  %1104 = vmatpush.bf16.msra.mxu0 0
  %1105 = vmatpush.bf16.msra.mxu0 0
  %1106 = vmatpush.bf16.msra.mxu0 0
  %1107 = vmatpush.bf16.msra.mxu0 0
  %1108 = vmatpush.bf16.msra.mxu0 %v1099
  %1109 = vmatmul.bf16.gmra.mxu0 %v1092
  %v1110 = vpop.f32.mrf.mxu0
  %v1111 = vadd.f32 0.0, %v1110
  %v1112 = vpop.f32.mrf.mxu0
  %1113 = vdwg.mxu0
  %1114 = vst [vmem:[#allocation1] ss:$9 sm:$0xff] %v923
  %s1115 = scalar_lea.vmem [#allocation1], 1
  %1116 = vst [vmem:[%s1115] ss:$9 sm:$0xff] %v924
  %s1117 = scalar_lea.vmem [#allocation1], 2
  %1118 = vst [vmem:[%s1117] ss:$9 sm:$0xff] %v872
  %v1119 = vld [vmem:[#allocation1] sm:$0xff]
  %1121 = vrot.lane.b32.xlu0 %v1119, 64
  %v1122 = vpop.permute.xlu0 %1121
  %v1124 = vsel %vm1090, %v1078, 0
  %v1127 = vand.u32 %v1122, %v1097
  %1129 = vmatpush.bf16.msra.mxu0 0
  %1130 = vmatpush.bf16.msra.mxu0 0
  %1131 = vmatpush.bf16.msra.mxu0 0
  %1132 = vmatpush.bf16.msra.mxu0 0
  %1133 = vmatpush.bf16.msra.mxu0 0
  %1134 = vmatpush.bf16.msra.mxu0 0
  %1135 = vmatpush.bf16.msra.mxu0 0
  %1136 = vmatpush.bf16.msra.mxu0 %v1127
  %1137 = vmatmul.bf16.gmra.mxu0 %v1124
  %v1138 = vpop.f32.mrf.mxu0
  %v1139 = vadd.f32 0.0, %v1138
  %v1140 = vpop.f32.mrf.mxu0
  %1141 = vdwg.mxu0
  %1142 = vst [vmem:[#allocation1] ss:$9 sm:$0xff] %v962
  %s1143 = scalar_lea.vmem [#allocation1], 1
  %1144 = vst [vmem:[%s1143] ss:$9 sm:$0xff] %v963
  %s1145 = scalar_lea.vmem [#allocation1], 2
  %1146 = vst [vmem:[%s1145] ss:$9 sm:$0xff] %v877
  %v1147 = vld [vmem:[#allocation1] sm:$0xff]
  %1149 = vrot.lane.b32.xlu0 %v1147, 64
  %v1150 = vpop.permute.xlu0 %1149
  %v1152 = vsel %vm1090, %v1079, 0
  %v1155 = vand.u32 %v1150, %v1097
  %1157 = vmatpush.bf16.msra.mxu0 0
  %1158 = vmatpush.bf16.msra.mxu0 0
  %1159 = vmatpush.bf16.msra.mxu0 0
  %1160 = vmatpush.bf16.msra.mxu0 0
  %1161 = vmatpush.bf16.msra.mxu0 0
  %1162 = vmatpush.bf16.msra.mxu0 0
  %1163 = vmatpush.bf16.msra.mxu0 0
  %1164 = vmatpush.bf16.msra.mxu0 %v1155
  %1165 = vmatmul.bf16.gmra.mxu0 %v1152
  %v1166 = vpop.f32.mrf.mxu0
  %v1167 = vadd.f32 0.0, %v1166
  %v1168 = vpop.f32.mrf.mxu0
  %1169 = vdwg.mxu0
  %1170 = vst [vmem:[#allocation1] ss:$9 sm:$0xff] %v1001
  %s1171 = scalar_lea.vmem [#allocation1], 1
  %1172 = vst [vmem:[%s1171] ss:$9 sm:$0xff] %v1002
  %s1173 = scalar_lea.vmem [#allocation1], 2
  %1174 = vst [vmem:[%s1173] ss:$9 sm:$0xff] %v882
  %v1175 = vld [vmem:[#allocation1] sm:$0xff]
  %1177 = vrot.lane.b32.xlu0 %v1175, 64
  %v1178 = vpop.permute.xlu0 %1177
  %v1180 = vsel %vm1090, %v1080, 0
  %v1183 = vand.u32 %v1178, %v1097
  %1185 = vmatpush.bf16.msra.mxu0 0
  %1186 = vmatpush.bf16.msra.mxu0 0
  %1187 = vmatpush.bf16.msra.mxu0 0
  %1188 = vmatpush.bf16.msra.mxu0 0
  %1189 = vmatpush.bf16.msra.mxu0 0
  %1190 = vmatpush.bf16.msra.mxu0 0
  %1191 = vmatpush.bf16.msra.mxu0 0
  %1192 = vmatpush.bf16.msra.mxu0 %v1183
  %1193 = vmatmul.bf16.gmra.mxu0 %v1180
  %v1194 = vpop.f32.mrf.mxu0
  %v1195 = vadd.f32 0.0, %v1194
  %v1196 = vpop.f32.mrf.mxu0
  %1197 = vdwg.mxu0
  %v1198 = vrcp.pop %v1067
  %v1199 = vrcp.pop %v1070
  %v1200 = vrcp.pop %v1073
  %v1201 = vrcp.pop %v1076
  %v1202 = vmul.f32 %v1111, %v1198
  %v1203 = vmul.f32 %v1139, %v1199
  %v1204 = vmul.f32 %v1167, %v1200
  %v1205 = vmul.f32 %v1195, %v1201
  %v1210 = vrot.slane %v1202, 1
  %v1211 = vrot.slane %v1202, 2
  %v1212 = vrot.slane %v1202, 3
  %v1213 = vrot.slane %v1202, 4
  %v1214 = vrot.slane %v1203, 1
  %v1215 = vrot.slane %v1203, 2
  %v1216 = vrot.slane %v1203, 3
  %v1217 = vrot.slane %v1203, 4
  %v1218 = vrot.slane %v1204, 1
  %v1219 = vrot.slane %v1204, 2
  %v1220 = vrot.slane %v1204, 3
  %v1221 = vrot.slane %v1204, 4
  %v1222 = vrot.slane %v1205, 1
  %v1223 = vrot.slane %v1205, 2
  %v1224 = vrot.slane %v1205, 3
  %v1225 = vrot.slane %v1205, 4
  %1226 = vst [vmem:[#allocation1] ss:$9 sm:$0xff] %v1202
  %s1227 = scalar_lea.vmem [#allocation1], 1
  %1228 = vst [vmem:[%s1227] ss:$9 sm:$0xff] %v1210
  %s1229 = scalar_lea.vmem [#allocation1], 2
  %1230 = vst [vmem:[%s1229] ss:$9 sm:$0xff] %v1211
  %s1231 = scalar_lea.vmem [#allocation1], 3
  %1232 = vst [vmem:[%s1231] ss:$9 sm:$0xff] %v1212
  %s1233 = scalar_lea.vmem [#allocation1], 4
  %1234 = vst [vmem:[%s1233] ss:$9 sm:$0xff] %v1213
  %s1235 = scalar_lea.vmem [#allocation1], 5
  %1236 = vst [vmem:[%s1235] ss:$9 sm:$0xff] %v1203
  %s1237 = scalar_lea.vmem [#allocation1], 6
  %1238 = vst [vmem:[%s1237] ss:$9 sm:$0xff] %v1214
  %s1239 = scalar_lea.vmem [#allocation1], 7
  %1240 = vst [vmem:[%s1239] ss:$9 sm:$0xff] %v1215
  %v1241 = vld [vmem:[#allocation1] sm:$0xff]
  %1242 = vst [vmem:[#allocation1] ss:$9 sm:$0xff] %v1216
  %1243 = vst [vmem:[%s1227] ss:$9 sm:$0xff] %v1217
  %1244 = vst [vmem:[%s1229] ss:$9 sm:$0xff] %v1204
  %1245 = vst [vmem:[%s1231] ss:$9 sm:$0xff] %v1218
  %1246 = vst [vmem:[%s1233] ss:$9 sm:$0xff] %v1219
  %1247 = vst [vmem:[%s1235] ss:$9 sm:$0xff] %v1220
  %1248 = vst [vmem:[%s1237] ss:$9 sm:$0xff] %v1221
  %1249 = vst [vmem:[%s1239] ss:$9 sm:$0xff] %v1205
  %v1250 = vld [vmem:[#allocation1] sm:$0xff]
  %1251 = vst [vmem:[#allocation1] ss:$9 sm:$0xff] %v1222
  %1252 = vst [vmem:[%s1227] ss:$9 sm:$0xff] %v1223
  %1253 = vst [vmem:[%s1229] ss:$9 sm:$0xff] %v1224
  %1254 = vst [vmem:[%s1231] ss:$9 sm:$0xff] %v1225
  %v1255 = vld [vmem:[#allocation1] sm:$0xff]
  %v1259 = vpack.c.bf16 %v1250, %v1241
  %v1260 = vpack.c.bf16 %v1255, %v1255
  %1261 = vst [vmem:[#allocation1] ss:$9 sm:$0xff] %v883
  %s1262 = scalar_lea.vmem [#allocation1], 1
  %1263 = vst [vmem:[%s1262] ss:$9 sm:$0xff] %v884
  %s1264 = scalar_lea.vmem [#allocation1], 2
  %1265 = vst [vmem:[%s1264] ss:$9 sm:$0xff] %v867
  %v1266 = vld [vmem:[#allocation1] sm:$0xff]
  %1268 = vrot.lane.b32.xlu0 %v1266, 120
  %v1269 = vpop.permute.xlu0 %1268
  %1270 = vst [vmem:[#allocation1] ss:$9 sm:$0xff] %v883
  %s1271 = scalar_lea.vmem [#allocation1], 1
  %1272 = vst [vmem:[%s1271] ss:$9 sm:$0xff] %v884
  %s1273 = scalar_lea.vmem [#allocation1], 2
  %1274 = vst [vmem:[%s1273] ss:$9 sm:$0xff] %v867
  %v1275 = vld [vmem:[#allocation1] sm:$0xff]
  %1277 = vrot.lane.b32.xlu0 %v1275, 88
  %v1278 = vpop.permute.xlu0 %1277
  %v1280 = vsel %vm904, %v1269, 0
  %v1283 = vsel %vm904, %v1278, 0
  %1285 = vmatpush.bf16.xpose.msra.mxu0 0
  %1286 = vmatpush.bf16.xpose.msra.mxu0 0
  %1287 = vmatpush.bf16.xpose.msra.mxu0 0
  %1288 = vmatpush.bf16.xpose.msra.mxu0 0
  %1289 = vmatpush.bf16.xpose.msra.mxu0 0
  %1290 = vmatpush.bf16.xpose.msra.mxu0 0
  %1291 = vmatpush.bf16.xpose.msra.mxu0 0
  %1292 = vmatpush.bf16.xpose.msra.mxu0 %v1283
  %1293 = vmatmul.bf16.gmra.mxu0 %v1280
  %v1294 = vpop.f32.mrf.mxu0
  %v1295 = vadd.f32 0.0, %v1294
  %v1296 = vpop.f32.mrf.mxu0
  %1297 = vdwg.mxu0
  %1298 = vst [vmem:[#allocation1] ss:$9 sm:$0xff] %v923
  %s1299 = scalar_lea.vmem [#allocation1], 1
  %1300 = vst [vmem:[%s1299] ss:$9 sm:$0xff] %v924
  %s1301 = scalar_lea.vmem [#allocation1], 2
  %1302 = vst [vmem:[%s1301] ss:$9 sm:$0xff] %v872
  %v1303 = vld [vmem:[#allocation1] sm:$0xff]
  %1305 = vrot.lane.b32.xlu0 %v1303, 120
  %v1306 = vpop.permute.xlu0 %1305
  %1307 = vst [vmem:[#allocation1] ss:$9 sm:$0xff] %v923
  %s1308 = scalar_lea.vmem [#allocation1], 1
  %1309 = vst [vmem:[%s1308] ss:$9 sm:$0xff] %v924
  %s1310 = scalar_lea.vmem [#allocation1], 2
  %1311 = vst [vmem:[%s1310] ss:$9 sm:$0xff] %v872
  %v1312 = vld [vmem:[#allocation1] sm:$0xff]
  %1314 = vrot.lane.b32.xlu0 %v1312, 88
  %v1315 = vpop.permute.xlu0 %1314
  %v1317 = vsel %vm904, %v1306, 0
  %v1320 = vsel %vm904, %v1315, 0
  %1322 = vmatpush.bf16.xpose.msra.mxu0 0
  %1323 = vmatpush.bf16.xpose.msra.mxu0 0
  %1324 = vmatpush.bf16.xpose.msra.mxu0 0
  %1325 = vmatpush.bf16.xpose.msra.mxu0 0
  %1326 = vmatpush.bf16.xpose.msra.mxu0 0
  %1327 = vmatpush.bf16.xpose.msra.mxu0 0
  %1328 = vmatpush.bf16.xpose.msra.mxu0 0
  %1329 = vmatpush.bf16.xpose.msra.mxu0 %v1320
  %1330 = vmatmul.bf16.gmra.mxu0 %v1317
  %v1331 = vpop.f32.mrf.mxu0
  %v1332 = vadd.f32 0.0, %v1331
  %v1333 = vpop.f32.mrf.mxu0
  %1334 = vdwg.mxu0
  %1335 = vst [vmem:[#allocation1] ss:$9 sm:$0xff] %v962
  %s1336 = scalar_lea.vmem [#allocation1], 1
  %1337 = vst [vmem:[%s1336] ss:$9 sm:$0xff] %v963
  %s1338 = scalar_lea.vmem [#allocation1], 2
  %1339 = vst [vmem:[%s1338] ss:$9 sm:$0xff] %v877
  %v1340 = vld [vmem:[#allocation1] sm:$0xff]
  %1342 = vrot.lane.b32.xlu0 %v1340, 120
  %v1343 = vpop.permute.xlu0 %1342
  %1344 = vst [vmem:[#allocation1] ss:$9 sm:$0xff] %v962
  %s1345 = scalar_lea.vmem [#allocation1], 1
  %1346 = vst [vmem:[%s1345] ss:$9 sm:$0xff] %v963
  %s1347 = scalar_lea.vmem [#allocation1], 2
  %1348 = vst [vmem:[%s1347] ss:$9 sm:$0xff] %v877
  %v1349 = vld [vmem:[#allocation1] sm:$0xff]
  %1351 = vrot.lane.b32.xlu0 %v1349, 88
  %v1352 = vpop.permute.xlu0 %1351
  %v1354 = vsel %vm904, %v1343, 0
  %v1357 = vsel %vm904, %v1352, 0
  %1359 = vmatpush.bf16.xpose.msra.mxu0 0
  %1360 = vmatpush.bf16.xpose.msra.mxu0 0
  %1361 = vmatpush.bf16.xpose.msra.mxu0 0
  %1362 = vmatpush.bf16.xpose.msra.mxu0 0
  %1363 = vmatpush.bf16.xpose.msra.mxu0 0
  %1364 = vmatpush.bf16.xpose.msra.mxu0 0
  %1365 = vmatpush.bf16.xpose.msra.mxu0 0
  %1366 = vmatpush.bf16.xpose.msra.mxu0 %v1357
  %1367 = vmatmul.bf16.gmra.mxu0 %v1354
  %v1368 = vpop.f32.mrf.mxu0
  %v1369 = vadd.f32 0.0, %v1368
  %v1370 = vpop.f32.mrf.mxu0
  %1371 = vdwg.mxu0
  %1372 = vst [vmem:[#allocation1] ss:$9 sm:$0xff] %v1001
  %s1373 = scalar_lea.vmem [#allocation1], 1
  %1374 = vst [vmem:[%s1373] ss:$9 sm:$0xff] %v1002
  %s1375 = scalar_lea.vmem [#allocation1], 2
  %1376 = vst [vmem:[%s1375] ss:$9 sm:$0xff] %v882
  %v1377 = vld [vmem:[#allocation1] sm:$0xff]
  %1379 = vrot.lane.b32.xlu0 %v1377, 120
  %v1380 = vpop.permute.xlu0 %1379
  %1381 = vst [vmem:[#allocation1] ss:$9 sm:$0xff] %v1001
  %s1382 = scalar_lea.vmem [#allocation1], 1
  %1383 = vst [vmem:[%s1382] ss:$9 sm:$0xff] %v1002
  %s1384 = scalar_lea.vmem [#allocation1], 2
  %1385 = vst [vmem:[%s1384] ss:$9 sm:$0xff] %v882
  %v1386 = vld [vmem:[#allocation1] sm:$0xff]
  %1388 = vrot.lane.b32.xlu0 %v1386, 88
  %v1389 = vpop.permute.xlu0 %1388
  %v1391 = vsel %vm904, %v1380, 0
  %v1394 = vsel %vm904, %v1389, 0
  %1396 = vmatpush.bf16.xpose.msra.mxu0 0
  %1397 = vmatpush.bf16.xpose.msra.mxu0 0
  %1398 = vmatpush.bf16.xpose.msra.mxu0 0
  %1399 = vmatpush.bf16.xpose.msra.mxu0 0
  %1400 = vmatpush.bf16.xpose.msra.mxu0 0
  %1401 = vmatpush.bf16.xpose.msra.mxu0 0
  %1402 = vmatpush.bf16.xpose.msra.mxu0 0
  %1403 = vmatpush.bf16.xpose.msra.mxu0 %v1394
  %1404 = vmatmul.bf16.gmra.mxu0 %v1391
  %v1405 = vpop.f32.mrf.mxu0
  %v1406 = vadd.f32 0.0, %v1405
  %v1407 = vpop.f32.mrf.mxu0
  %1408 = vdwg.mxu0
  %v1409 = vsel %vm1040, %v1295, -inf
  %1410 = vmax.xlane.f32.xlu0 %v1409
  %v1411 = vpop.xlane.xlu0 %1410
  %v1412 = vsel %vm1040, %v1332, -inf
  %1413 = vmax.xlane.f32.xlu0 %v1412
  %v1414 = vpop.xlane.xlu0 %1413
  %v1415 = vsel %vm1040, %v1369, -inf
  %1416 = vmax.xlane.f32.xlu0 %v1415
  %v1417 = vpop.xlane.xlu0 %1416
  %v1418 = vsel %vm1040, %v1406, -inf
  %1419 = vmax.xlane.f32.xlu0 %v1418
  %v1420 = vpop.xlane.xlu0 %1419
  %v1421 = vsub.f32 %v1295, %v1411
  %v1422 = vsub.f32 %v1332, %v1414
  %v1423 = vsub.f32 %v1369, %v1417
  %v1424 = vsub.f32 %v1406, %v1420
  %v1425 = vmul.f32 %v1421, 1.442695
  %v1426 = vpow.pop %v1425
  %v1427 = vmul.f32 %v1422, 1.442695
  %v1428 = vpow.pop %v1427
  %v1429 = vmul.f32 %v1423, 1.442695
  %v1430 = vpow.pop %v1429
  %v1431 = vmul.f32 %v1424, 1.442695
  %v1432 = vpow.pop %v1431
  %v1433 = vsel %vm1040, %v1426, 0.0
  %1434 = vadd.xlane.f32.xlu0 %v1433
  %v1435 = vpop.xlane.xlu0 %1434
  %v1436 = vsel %vm1040, %v1428, 0.0
  %1437 = vadd.xlane.f32.xlu0 %v1436
  %v1438 = vpop.xlane.xlu0 %1437
  %v1439 = vsel %vm1040, %v1430, 0.0
  %1440 = vadd.xlane.f32.xlu0 %v1439
  %v1441 = vpop.xlane.xlu0 %1440
  %v1442 = vsel %vm1040, %v1432, 0.0
  %1443 = vadd.xlane.f32.xlu0 %v1442
  %v1444 = vpop.xlane.xlu0 %1443
  %v1445 = vpack.c.bf16 %v1426, %v1426
  %v1446 = vpack.c.bf16 %v1428, %v1428
  %v1447 = vpack.c.bf16 %v1430, %v1430
  %v1448 = vpack.c.bf16 %v1432, %v1432
  %1449 = vst [vmem:[#allocation1] ss:$9 sm:$0xff] %v883
  %s1450 = scalar_lea.vmem [#allocation1], 1
  %1451 = vst [vmem:[%s1450] ss:$9 sm:$0xff] %v884
  %s1452 = scalar_lea.vmem [#allocation1], 2
  %1453 = vst [vmem:[%s1452] ss:$9 sm:$0xff] %v867
  %v1454 = vld [vmem:[#allocation1] sm:$0xff]
  %1456 = vrot.lane.b32.xlu0 %v1454, 56
  %v1457 = vpop.permute.xlu0 %1456
  %v1459 = vsel %vm1090, %v1445, 0
  %v1462 = vand.u32 %v1457, %v1097
  %1464 = vmatpush.bf16.msra.mxu0 0
  %1465 = vmatpush.bf16.msra.mxu0 0
  %1466 = vmatpush.bf16.msra.mxu0 0
  %1467 = vmatpush.bf16.msra.mxu0 0
  %1468 = vmatpush.bf16.msra.mxu0 0
  %1469 = vmatpush.bf16.msra.mxu0 0
  %1470 = vmatpush.bf16.msra.mxu0 0
  %1471 = vmatpush.bf16.msra.mxu0 %v1462
  %1472 = vmatmul.bf16.gmra.mxu0 %v1459
  %v1473 = vpop.f32.mrf.mxu0
  %v1474 = vadd.f32 0.0, %v1473
  %v1475 = vpop.f32.mrf.mxu0
  %1476 = vdwg.mxu0
  %1477 = vst [vmem:[#allocation1] ss:$9 sm:$0xff] %v923
  %s1478 = scalar_lea.vmem [#allocation1], 1
  %1479 = vst [vmem:[%s1478] ss:$9 sm:$0xff] %v924
  %s1480 = scalar_lea.vmem [#allocation1], 2
  %1481 = vst [vmem:[%s1480] ss:$9 sm:$0xff] %v872
  %v1482 = vld [vmem:[#allocation1] sm:$0xff]
  %1484 = vrot.lane.b32.xlu0 %v1482, 56
  %v1485 = vpop.permute.xlu0 %1484
  %v1487 = vsel %vm1090, %v1446, 0
  %v1490 = vand.u32 %v1485, %v1097
  %1492 = vmatpush.bf16.msra.mxu0 0
  %1493 = vmatpush.bf16.msra.mxu0 0
  %1494 = vmatpush.bf16.msra.mxu0 0
  %1495 = vmatpush.bf16.msra.mxu0 0
  %1496 = vmatpush.bf16.msra.mxu0 0
  %1497 = vmatpush.bf16.msra.mxu0 0
  %1498 = vmatpush.bf16.msra.mxu0 0
  %1499 = vmatpush.bf16.msra.mxu0 %v1490
  %1500 = vmatmul.bf16.gmra.mxu0 %v1487
  %v1501 = vpop.f32.mrf.mxu0
  %v1502 = vadd.f32 0.0, %v1501
  %v1503 = vpop.f32.mrf.mxu0
  %1504 = vdwg.mxu0
  %1505 = vst [vmem:[#allocation1] ss:$9 sm:$0xff] %v962
  %s1506 = scalar_lea.vmem [#allocation1], 1
  %1507 = vst [vmem:[%s1506] ss:$9 sm:$0xff] %v963
  %s1508 = scalar_lea.vmem [#allocation1], 2
  %1509 = vst [vmem:[%s1508] ss:$9 sm:$0xff] %v877
  %v1510 = vld [vmem:[#allocation1] sm:$0xff]
  %1512 = vrot.lane.b32.xlu0 %v1510, 56
  %v1513 = vpop.permute.xlu0 %1512
  %v1515 = vsel %vm1090, %v1447, 0
  %v1518 = vand.u32 %v1513, %v1097
  %1520 = vmatpush.bf16.msra.mxu0 0
  %1521 = vmatpush.bf16.msra.mxu0 0
  %1522 = vmatpush.bf16.msra.mxu0 0
  %1523 = vmatpush.bf16.msra.mxu0 0
  %1524 = vmatpush.bf16.msra.mxu0 0
  %1525 = vmatpush.bf16.msra.mxu0 0
  %1526 = vmatpush.bf16.msra.mxu0 0
  %1527 = vmatpush.bf16.msra.mxu0 %v1518
  %1528 = vmatmul.bf16.gmra.mxu0 %v1515
  %v1529 = vpop.f32.mrf.mxu0
  %v1530 = vadd.f32 0.0, %v1529
  %v1531 = vpop.f32.mrf.mxu0
  %1532 = vdwg.mxu0
  %1533 = vst [vmem:[#allocation1] ss:$9 sm:$0xff] %v1001
  %s1534 = scalar_lea.vmem [#allocation1], 1
  %1535 = vst [vmem:[%s1534] ss:$9 sm:$0xff] %v1002
  %s1536 = scalar_lea.vmem [#allocation1], 2
  %1537 = vst [vmem:[%s1536] ss:$9 sm:$0xff] %v882
  %v1538 = vld [vmem:[#allocation1] sm:$0xff]
  %1540 = vrot.lane.b32.xlu0 %v1538, 56
  %v1541 = vpop.permute.xlu0 %1540
  %v1543 = vsel %vm1090, %v1448, 0
  %v1546 = vand.u32 %v1541, %v1097
  %1548 = vmatpush.bf16.msra.mxu0 0
  %1549 = vmatpush.bf16.msra.mxu0 0
  %1550 = vmatpush.bf16.msra.mxu0 0
  %1551 = vmatpush.bf16.msra.mxu0 0
  %1552 = vmatpush.bf16.msra.mxu0 0
  %1553 = vmatpush.bf16.msra.mxu0 0
  %1554 = vmatpush.bf16.msra.mxu0 0
  %1555 = vmatpush.bf16.msra.mxu0 %v1546
  %1556 = vmatmul.bf16.gmra.mxu0 %v1543
  %v1557 = vpop.f32.mrf.mxu0
  %v1558 = vadd.f32 0.0, %v1557
  %v1559 = vpop.f32.mrf.mxu0
  %1560 = vdwg.mxu0
  %v1561 = vrcp.pop %v1435
  %v1562 = vrcp.pop %v1438
  %v1563 = vrcp.pop %v1441
  %v1564 = vrcp.pop %v1444
  %v1565 = vmul.f32 %v1474, %v1561
  %v1566 = vmul.f32 %v1502, %v1562
  %v1567 = vmul.f32 %v1530, %v1563
  %v1568 = vmul.f32 %v1558, %v1564
  %v1573 = vrot.slane %v1565, 1
  %v1574 = vrot.slane %v1565, 2
  %v1575 = vrot.slane %v1565, 3
  %v1576 = vrot.slane %v1565, 4
  %v1577 = vrot.slane %v1566, 1
  %v1578 = vrot.slane %v1566, 2
  %v1579 = vrot.slane %v1566, 3
  %v1580 = vrot.slane %v1566, 4
  %v1581 = vrot.slane %v1567, 1
  %v1582 = vrot.slane %v1567, 2
  %v1583 = vrot.slane %v1567, 3
  %v1584 = vrot.slane %v1567, 4
  %v1585 = vrot.slane %v1568, 1
  %v1586 = vrot.slane %v1568, 2
  %v1587 = vrot.slane %v1568, 3
  %v1588 = vrot.slane %v1568, 4
  %1589 = vst [vmem:[#allocation1] ss:$9 sm:$0xff] %v1565
  %s1590 = scalar_lea.vmem [#allocation1], 1
  %1591 = vst [vmem:[%s1590] ss:$9 sm:$0xff] %v1573
  %s1592 = scalar_lea.vmem [#allocation1], 2
  %1593 = vst [vmem:[%s1592] ss:$9 sm:$0xff] %v1574
  %s1594 = scalar_lea.vmem [#allocation1], 3
  %1595 = vst [vmem:[%s1594] ss:$9 sm:$0xff] %v1575
  %s1596 = scalar_lea.vmem [#allocation1], 4
  %1597 = vst [vmem:[%s1596] ss:$9 sm:$0xff] %v1576
  %s1598 = scalar_lea.vmem [#allocation1], 5
  %1599 = vst [vmem:[%s1598] ss:$9 sm:$0xff] %v1566
  %s1600 = scalar_lea.vmem [#allocation1], 6
  %1601 = vst [vmem:[%s1600] ss:$9 sm:$0xff] %v1577
  %s1602 = scalar_lea.vmem [#allocation1], 7
  %1603 = vst [vmem:[%s1602] ss:$9 sm:$0xff] %v1578
  %v1604 = vld [vmem:[#allocation1] sm:$0xff]
  %1605 = vst [vmem:[#allocation1] ss:$9 sm:$0xff] %v1579
  %1606 = vst [vmem:[%s1590] ss:$9 sm:$0xff] %v1580
  %1607 = vst [vmem:[%s1592] ss:$9 sm:$0xff] %v1567
  %1608 = vst [vmem:[%s1594] ss:$9 sm:$0xff] %v1581
  %1609 = vst [vmem:[%s1596] ss:$9 sm:$0xff] %v1582
  %1610 = vst [vmem:[%s1598] ss:$9 sm:$0xff] %v1583
  %1611 = vst [vmem:[%s1600] ss:$9 sm:$0xff] %v1584
  %1612 = vst [vmem:[%s1602] ss:$9 sm:$0xff] %v1568
  %v1613 = vld [vmem:[#allocation1] sm:$0xff]
  %1614 = vst [vmem:[#allocation1] ss:$9 sm:$0xff] %v1585
  %1615 = vst [vmem:[%s1590] ss:$9 sm:$0xff] %v1586
  %1616 = vst [vmem:[%s1592] ss:$9 sm:$0xff] %v1587
  %1617 = vst [vmem:[%s1594] ss:$9 sm:$0xff] %v1588
  %v1618 = vld [vmem:[#allocation1] sm:$0xff]
  %v1622 = vpack.c.bf16 %v1613, %v1604
  %v1623 = vpack.c.bf16 %v1618, %v1618
  %v1625 = vsel %vm904, %v1622, 0
  %v1628 = vsel %vm904, %v1623, 0
  %vm1630 = vcmask 1043456
  %v1632 = vsel %vm1630, %v817, 0
  %1634 = vmatpush.bf16.msra.mxu0 0
  %1635 = vmatpush.bf16.msra.mxu0 0
  %1636 = vmatpush.bf16.msra.mxu0 0
  %1637 = vmatpush.bf16.msra.mxu0 0
  %1638 = vmatpush.bf16.msra.mxu0 0
  %1639 = vmatpush.bf16.msra.mxu0 0
  %1640 = vmatpush.bf16.msra.mxu0 0
  %1641 = vmatpush.bf16.msra.mxu0 %v1632
  %1642 = vmatmul.bf16.gmra.mxu0 %v1625
  %v1643 = vpop.f32.mrf.mxu0
  %v1644 = vadd.f32 0.0, %v1643
  %v1645 = vpop.f32.mrf.mxu0
  %v1646 = vadd.f32 0.0, %v1645
  %1647 = vmatmul.bf16.gmra.mxu0 %v1628
  %v1648 = vpop.f32.mrf.mxu0
  %v1649 = vadd.f32 0.0, %v1648
  %v1650 = vpop.f32.mrf.mxu0
  %1651 = vdwg.mxu0
  %v1653 = vsel %vm904, %v1259, 0
  %v1656 = vsel %vm904, %v1260, 0
  %v1659 = vsel %vm1630, %v816, 0
  %1661 = vmatpush.bf16.msra.mxu0 0
  %1662 = vmatpush.bf16.msra.mxu0 0
  %1663 = vmatpush.bf16.msra.mxu0 0
  %1664 = vmatpush.bf16.msra.mxu0 0
  %1665 = vmatpush.bf16.msra.mxu0 0
  %1666 = vmatpush.bf16.msra.mxu0 0
  %1667 = vmatpush.bf16.msra.mxu0 0
  %1668 = vmatpush.bf16.msra.mxu0 %v1659
  %1669 = vmatmul.bf16.gmra.mxu0 %v1653
  %v1670 = vpop.f32.mrf.mxu0
  %v1671 = vadd.f32 %v1644, %v1670
  %v1672 = vpop.f32.mrf.mxu0
  %v1673 = vadd.f32 %v1646, %v1672
  %1674 = vmatmul.bf16.gmra.mxu0 %v1656
  %v1675 = vpop.f32.mrf.mxu0
  %v1676 = vadd.f32 %v1649, %v1675
  %v1677 = vpop.f32.mrf.mxu0
  %1678 = vdwg.mxu0
  %1679 = vst [vmem:[#allocation1] ss:$9 sm:$0xff] %v883
  %s1680 = scalar_lea.vmem [#allocation1], 1
  %1681 = vst [vmem:[%s1680] ss:$9 sm:$0xff] %v884
  %s1682 = scalar_lea.vmem [#allocation1], 2
  %1683 = vst [vmem:[%s1682] ss:$9 sm:$0xff] %v867
  %v1684 = vld [vmem:[#allocation1] sm:$0xff]
  %1686 = vrot.lane.b32.xlu0 %v1684, 112
  %v1687 = vpop.permute.xlu0 %1686
  %1688 = vst [vmem:[#allocation1] ss:$9 sm:$0xff] %v883
  %s1689 = scalar_lea.vmem [#allocation1], 1
  %1690 = vst [vmem:[%s1689] ss:$9 sm:$0xff] %v884
  %s1691 = scalar_lea.vmem [#allocation1], 2
  %1692 = vst [vmem:[%s1691] ss:$9 sm:$0xff] %v867
  %v1693 = vld [vmem:[#allocation1] sm:$0xff]
  %1695 = vrot.lane.b32.xlu0 %v1693, 80
  %v1696 = vpop.permute.xlu0 %1695
  %v1698 = vsel %vm904, %v1687, 0
  %v1701 = vsel %vm904, %v1696, 0
  %1703 = vmatpush.bf16.xpose.msra.mxu0 0
  %1704 = vmatpush.bf16.xpose.msra.mxu0 0
  %1705 = vmatpush.bf16.xpose.msra.mxu0 0
  %1706 = vmatpush.bf16.xpose.msra.mxu0 0
  %1707 = vmatpush.bf16.xpose.msra.mxu0 0
  %1708 = vmatpush.bf16.xpose.msra.mxu0 0
  %1709 = vmatpush.bf16.xpose.msra.mxu0 0
  %1710 = vmatpush.bf16.xpose.msra.mxu0 %v1701
  %1711 = vmatmul.bf16.gmra.mxu0 %v1698
  %v1712 = vpop.f32.mrf.mxu0
  %v1713 = vadd.f32 0.0, %v1712
  %v1714 = vpop.f32.mrf.mxu0
  %1715 = vdwg.mxu0
  %1716 = vst [vmem:[#allocation1] ss:$9 sm:$0xff] %v923
  %s1717 = scalar_lea.vmem [#allocation1], 1
  %1718 = vst [vmem:[%s1717] ss:$9 sm:$0xff] %v924
  %s1719 = scalar_lea.vmem [#allocation1], 2
  %1720 = vst [vmem:[%s1719] ss:$9 sm:$0xff] %v872
  %v1721 = vld [vmem:[#allocation1] sm:$0xff]
  %1723 = vrot.lane.b32.xlu0 %v1721, 112
  %v1724 = vpop.permute.xlu0 %1723
  %1725 = vst [vmem:[#allocation1] ss:$9 sm:$0xff] %v923
  %s1726 = scalar_lea.vmem [#allocation1], 1
  %1727 = vst [vmem:[%s1726] ss:$9 sm:$0xff] %v924
  %s1728 = scalar_lea.vmem [#allocation1], 2
  %1729 = vst [vmem:[%s1728] ss:$9 sm:$0xff] %v872
  %v1730 = vld [vmem:[#allocation1] sm:$0xff]
  %1732 = vrot.lane.b32.xlu0 %v1730, 80
  %v1733 = vpop.permute.xlu0 %1732
  %v1735 = vsel %vm904, %v1724, 0
  %v1738 = vsel %vm904, %v1733, 0
  %1740 = vmatpush.bf16.xpose.msra.mxu0 0
  %1741 = vmatpush.bf16.xpose.msra.mxu0 0
  %1742 = vmatpush.bf16.xpose.msra.mxu0 0
  %1743 = vmatpush.bf16.xpose.msra.mxu0 0
  %1744 = vmatpush.bf16.xpose.msra.mxu0 0
  %1745 = vmatpush.bf16.xpose.msra.mxu0 0
  %1746 = vmatpush.bf16.xpose.msra.mxu0 0
  %1747 = vmatpush.bf16.xpose.msra.mxu0 %v1738
  %1748 = vmatmul.bf16.gmra.mxu0 %v1735
  %v1749 = vpop.f32.mrf.mxu0
  %v1750 = vadd.f32 0.0, %v1749
  %v1751 = vpop.f32.mrf.mxu0
  %1752 = vdwg.mxu0
  %1753 = vst [vmem:[#allocation1] ss:$9 sm:$0xff] %v962
  %s1754 = scalar_lea.vmem [#allocation1], 1
  %1755 = vst [vmem:[%s1754] ss:$9 sm:$0xff] %v963
  %s1756 = scalar_lea.vmem [#allocation1], 2
  %1757 = vst [vmem:[%s1756] ss:$9 sm:$0xff] %v877
  %v1758 = vld [vmem:[#allocation1] sm:$0xff]
  %1760 = vrot.lane.b32.xlu0 %v1758, 112
  %v1761 = vpop.permute.xlu0 %1760
  %1762 = vst [vmem:[#allocation1] ss:$9 sm:$0xff] %v962
  %s1763 = scalar_lea.vmem [#allocation1], 1
  %1764 = vst [vmem:[%s1763] ss:$9 sm:$0xff] %v963
  %s1765 = scalar_lea.vmem [#allocation1], 2
  %1766 = vst [vmem:[%s1765] ss:$9 sm:$0xff] %v877
  %v1767 = vld [vmem:[#allocation1] sm:$0xff]
  %1769 = vrot.lane.b32.xlu0 %v1767, 80
  %v1770 = vpop.permute.xlu0 %1769
  %v1772 = vsel %vm904, %v1761, 0
  %v1775 = vsel %vm904, %v1770, 0
  %1777 = vmatpush.bf16.xpose.msra.mxu0 0
  %1778 = vmatpush.bf16.xpose.msra.mxu0 0
  %1779 = vmatpush.bf16.xpose.msra.mxu0 0
  %1780 = vmatpush.bf16.xpose.msra.mxu0 0
  %1781 = vmatpush.bf16.xpose.msra.mxu0 0
  %1782 = vmatpush.bf16.xpose.msra.mxu0 0
  %1783 = vmatpush.bf16.xpose.msra.mxu0 0
  %1784 = vmatpush.bf16.xpose.msra.mxu0 %v1775
  %1785 = vmatmul.bf16.gmra.mxu0 %v1772
  %v1786 = vpop.f32.mrf.mxu0
  %v1787 = vadd.f32 0.0, %v1786
  %v1788 = vpop.f32.mrf.mxu0
  %1789 = vdwg.mxu0
  %1790 = vst [vmem:[#allocation1] ss:$9 sm:$0xff] %v1001
  %s1791 = scalar_lea.vmem [#allocation1], 1
  %1792 = vst [vmem:[%s1791] ss:$9 sm:$0xff] %v1002
  %s1793 = scalar_lea.vmem [#allocation1], 2
  %1794 = vst [vmem:[%s1793] ss:$9 sm:$0xff] %v882
  %v1795 = vld [vmem:[#allocation1] sm:$0xff]
  %1797 = vrot.lane.b32.xlu0 %v1795, 112
  %v1798 = vpop.permute.xlu0 %1797
  %1799 = vst [vmem:[#allocation1] ss:$9 sm:$0xff] %v1001
  %s1800 = scalar_lea.vmem [#allocation1], 1
  %1801 = vst [vmem:[%s1800] ss:$9 sm:$0xff] %v1002
  %s1802 = scalar_lea.vmem [#allocation1], 2
  %1803 = vst [vmem:[%s1802] ss:$9 sm:$0xff] %v882
  %v1804 = vld [vmem:[#allocation1] sm:$0xff]
  %1806 = vrot.lane.b32.xlu0 %v1804, 80
  %v1807 = vpop.permute.xlu0 %1806
  %v1809 = vsel %vm904, %v1798, 0
  %v1812 = vsel %vm904, %v1807, 0
  %1814 = vmatpush.bf16.xpose.msra.mxu0 0
  %1815 = vmatpush.bf16.xpose.msra.mxu0 0
  %1816 = vmatpush.bf16.xpose.msra.mxu0 0
  %1817 = vmatpush.bf16.xpose.msra.mxu0 0
  %1818 = vmatpush.bf16.xpose.msra.mxu0 0
  %1819 = vmatpush.bf16.xpose.msra.mxu0 0
  %1820 = vmatpush.bf16.xpose.msra.mxu0 0
  %1821 = vmatpush.bf16.xpose.msra.mxu0 %v1812
  %1822 = vmatmul.bf16.gmra.mxu0 %v1809
  %v1823 = vpop.f32.mrf.mxu0
  %v1824 = vadd.f32 0.0, %v1823
  %v1825 = vpop.f32.mrf.mxu0
  %1826 = vdwg.mxu0
  %v1827 = vsel %vm1040, %v1713, -inf
  %1828 = vmax.xlane.f32.xlu0 %v1827
  %v1829 = vpop.xlane.xlu0 %1828
  %v1830 = vsel %vm1040, %v1750, -inf
  %1831 = vmax.xlane.f32.xlu0 %v1830
  %v1832 = vpop.xlane.xlu0 %1831
  %v1833 = vsel %vm1040, %v1787, -inf
  %1834 = vmax.xlane.f32.xlu0 %v1833
  %v1835 = vpop.xlane.xlu0 %1834
  %v1836 = vsel %vm1040, %v1824, -inf
  %1837 = vmax.xlane.f32.xlu0 %v1836
  %v1838 = vpop.xlane.xlu0 %1837
  %v1839 = vsub.f32 %v1713, %v1829
  %v1840 = vsub.f32 %v1750, %v1832
  %v1841 = vsub.f32 %v1787, %v1835
  %v1842 = vsub.f32 %v1824, %v1838
  %v1843 = vmul.f32 %v1839, 1.442695
  %v1844 = vpow.pop %v1843
  %v1845 = vmul.f32 %v1840, 1.442695
  %v1846 = vpow.pop %v1845
  %v1847 = vmul.f32 %v1841, 1.442695
  %v1848 = vpow.pop %v1847
  %v1849 = vmul.f32 %v1842, 1.442695
  %v1850 = vpow.pop %v1849
  %v1851 = vsel %vm1040, %v1844, 0.0
  %1852 = vadd.xlane.f32.xlu0 %v1851
  %v1853 = vpop.xlane.xlu0 %1852
  %v1854 = vsel %vm1040, %v1846, 0.0
  %1855 = vadd.xlane.f32.xlu0 %v1854
  %v1856 = vpop.xlane.xlu0 %1855
  %v1857 = vsel %vm1040, %v1848, 0.0
  %1858 = vadd.xlane.f32.xlu0 %v1857
  %v1859 = vpop.xlane.xlu0 %1858
  %v1860 = vsel %vm1040, %v1850, 0.0
  %1861 = vadd.xlane.f32.xlu0 %v1860
  %v1862 = vpop.xlane.xlu0 %1861
  %v1863 = vpack.c.bf16 %v1844, %v1844
  %v1864 = vpack.c.bf16 %v1846, %v1846
  %v1865 = vpack.c.bf16 %v1848, %v1848
  %v1866 = vpack.c.bf16 %v1850, %v1850
  %1867 = vst [vmem:[#allocation1] ss:$9 sm:$0xff] %v883
  %s1868 = scalar_lea.vmem [#allocation1], 1
  %1869 = vst [vmem:[%s1868] ss:$9 sm:$0xff] %v884
  %s1870 = scalar_lea.vmem [#allocation1], 2
  %1871 = vst [vmem:[%s1870] ss:$9 sm:$0xff] %v867
  %v1872 = vld [vmem:[#allocation1] sm:$0xff]
  %1874 = vrot.lane.b32.xlu0 %v1872, 48
  %v1875 = vpop.permute.xlu0 %1874
  %v1877 = vsel %vm1090, %v1863, 0
  %v1880 = vand.u32 %v1875, %v1097
  %1882 = vmatpush.bf16.msra.mxu0 0
  %1883 = vmatpush.bf16.msra.mxu0 0
  %1884 = vmatpush.bf16.msra.mxu0 0
  %1885 = vmatpush.bf16.msra.mxu0 0
  %1886 = vmatpush.bf16.msra.mxu0 0
  %1887 = vmatpush.bf16.msra.mxu0 0
  %1888 = vmatpush.bf16.msra.mxu0 0
  %1889 = vmatpush.bf16.msra.mxu0 %v1880
  %1890 = vmatmul.bf16.gmra.mxu0 %v1877
  %v1891 = vpop.f32.mrf.mxu0
  %v1892 = vadd.f32 0.0, %v1891
  %v1893 = vpop.f32.mrf.mxu0
  %1894 = vdwg.mxu0
  %1895 = vst [vmem:[#allocation1] ss:$9 sm:$0xff] %v923
  %s1896 = scalar_lea.vmem [#allocation1], 1
  %1897 = vst [vmem:[%s1896] ss:$9 sm:$0xff] %v924
  %s1898 = scalar_lea.vmem [#allocation1], 2
  %1899 = vst [vmem:[%s1898] ss:$9 sm:$0xff] %v872
  %v1900 = vld [vmem:[#allocation1] sm:$0xff]
  %1902 = vrot.lane.b32.xlu0 %v1900, 48
  %v1903 = vpop.permute.xlu0 %1902
  %v1905 = vsel %vm1090, %v1864, 0
  %v1908 = vand.u32 %v1903, %v1097
  %1910 = vmatpush.bf16.msra.mxu0 0
  %1911 = vmatpush.bf16.msra.mxu0 0
  %1912 = vmatpush.bf16.msra.mxu0 0
  %1913 = vmatpush.bf16.msra.mxu0 0
  %1914 = vmatpush.bf16.msra.mxu0 0
  %1915 = vmatpush.bf16.msra.mxu0 0
  %1916 = vmatpush.bf16.msra.mxu0 0
  %1917 = vmatpush.bf16.msra.mxu0 %v1908
  %1918 = vmatmul.bf16.gmra.mxu0 %v1905
  %v1919 = vpop.f32.mrf.mxu0
  %v1920 = vadd.f32 0.0, %v1919
  %v1921 = vpop.f32.mrf.mxu0
  %1922 = vdwg.mxu0
  %1923 = vst [vmem:[#allocation1] ss:$9 sm:$0xff] %v962
  %s1924 = scalar_lea.vmem [#allocation1], 1
  %1925 = vst [vmem:[%s1924] ss:$9 sm:$0xff] %v963
  %s1926 = scalar_lea.vmem [#allocation1], 2
  %1927 = vst [vmem:[%s1926] ss:$9 sm:$0xff] %v877
  %v1928 = vld [vmem:[#allocation1] sm:$0xff]
  %1930 = vrot.lane.b32.xlu0 %v1928, 48
  %v1931 = vpop.permute.xlu0 %1930
  %v1933 = vsel %vm1090, %v1865, 0
  %v1936 = vand.u32 %v1931, %v1097
  %1938 = vmatpush.bf16.msra.mxu0 0
  %1939 = vmatpush.bf16.msra.mxu0 0
  %1940 = vmatpush.bf16.msra.mxu0 0
  %1941 = vmatpush.bf16.msra.mxu0 0
  %1942 = vmatpush.bf16.msra.mxu0 0
  %1943 = vmatpush.bf16.msra.mxu0 0
  %1944 = vmatpush.bf16.msra.mxu0 0
  %1945 = vmatpush.bf16.msra.mxu0 %v1936
  %1946 = vmatmul.bf16.gmra.mxu0 %v1933
  %v1947 = vpop.f32.mrf.mxu0
  %v1948 = vadd.f32 0.0, %v1947
  %v1949 = vpop.f32.mrf.mxu0
  %1950 = vdwg.mxu0
  %1951 = vst [vmem:[#allocation1] ss:$9 sm:$0xff] %v1001
  %s1952 = scalar_lea.vmem [#allocation1], 1
  %1953 = vst [vmem:[%s1952] ss:$9 sm:$0xff] %v1002
  %s1954 = scalar_lea.vmem [#allocation1], 2
  %1955 = vst [vmem:[%s1954] ss:$9 sm:$0xff] %v882
  %v1956 = vld [vmem:[#allocation1] sm:$0xff]
  %1958 = vrot.lane.b32.xlu0 %v1956, 48
  %v1959 = vpop.permute.xlu0 %1958
  %v1961 = vsel %vm1090, %v1866, 0
  %v1964 = vand.u32 %v1959, %v1097
  %1966 = vmatpush.bf16.msra.mxu0 0
  %1967 = vmatpush.bf16.msra.mxu0 0
  %1968 = vmatpush.bf16.msra.mxu0 0
  %1969 = vmatpush.bf16.msra.mxu0 0
  %1970 = vmatpush.bf16.msra.mxu0 0
  %1971 = vmatpush.bf16.msra.mxu0 0
  %1972 = vmatpush.bf16.msra.mxu0 0
  %1973 = vmatpush.bf16.msra.mxu0 %v1964
  %1974 = vmatmul.bf16.gmra.mxu0 %v1961
  %v1975 = vpop.f32.mrf.mxu0
  %v1976 = vadd.f32 0.0, %v1975
  %v1977 = vpop.f32.mrf.mxu0
  %1978 = vdwg.mxu0
  %v1979 = vrcp.pop %v1853
  %v1980 = vrcp.pop %v1856
  %v1981 = vrcp.pop %v1859
  %v1982 = vrcp.pop %v1862
  %v1983 = vmul.f32 %v1892, %v1979
  %v1984 = vmul.f32 %v1920, %v1980
  %v1985 = vmul.f32 %v1948, %v1981
  %v1986 = vmul.f32 %v1976, %v1982
  %v1991 = vrot.slane %v1983, 1
  %v1992 = vrot.slane %v1983, 2
  %v1993 = vrot.slane %v1983, 3
  %v1994 = vrot.slane %v1983, 4
  %v1995 = vrot.slane %v1984, 1
  %v1996 = vrot.slane %v1984, 2
  %v1997 = vrot.slane %v1984, 3
  %v1998 = vrot.slane %v1984, 4
  %v1999 = vrot.slane %v1985, 1
  %v2000 = vrot.slane %v1985, 2
  %v2001 = vrot.slane %v1985, 3
  %v2002 = vrot.slane %v1985, 4
  %v2003 = vrot.slane %v1986, 1
  %v2004 = vrot.slane %v1986, 2
  %v2005 = vrot.slane %v1986, 3
  %v2006 = vrot.slane %v1986, 4
  %2007 = vst [vmem:[#allocation1] ss:$9 sm:$0xff] %v1983
  %s2008 = scalar_lea.vmem [#allocation1], 1
  %2009 = vst [vmem:[%s2008] ss:$9 sm:$0xff] %v1991
  %s2010 = scalar_lea.vmem [#allocation1], 2
  %2011 = vst [vmem:[%s2010] ss:$9 sm:$0xff] %v1992
  %s2012 = scalar_lea.vmem [#allocation1], 3
  %2013 = vst [vmem:[%s2012] ss:$9 sm:$0xff] %v1993
  %s2014 = scalar_lea.vmem [#allocation1], 4
  %2015 = vst [vmem:[%s2014] ss:$9 sm:$0xff] %v1994
  %s2016 = scalar_lea.vmem [#allocation1], 5
  %2017 = vst [vmem:[%s2016] ss:$9 sm:$0xff] %v1984
  %s2018 = scalar_lea.vmem [#allocation1], 6
  %2019 = vst [vmem:[%s2018] ss:$9 sm:$0xff] %v1995
  %s2020 = scalar_lea.vmem [#allocation1], 7
  %2021 = vst [vmem:[%s2020] ss:$9 sm:$0xff] %v1996
  %v2022 = vld [vmem:[#allocation1] sm:$0xff]
  %2023 = vst [vmem:[#allocation1] ss:$9 sm:$0xff] %v1997
  %2024 = vst [vmem:[%s2008] ss:$9 sm:$0xff] %v1998
  %2025 = vst [vmem:[%s2010] ss:$9 sm:$0xff] %v1985
  %2026 = vst [vmem:[%s2012] ss:$9 sm:$0xff] %v1999
  %2027 = vst [vmem:[%s2014] ss:$9 sm:$0xff] %v2000
  %2028 = vst [vmem:[%s2016] ss:$9 sm:$0xff] %v2001
  %2029 = vst [vmem:[%s2018] ss:$9 sm:$0xff] %v2002
  %2030 = vst [vmem:[%s2020] ss:$9 sm:$0xff] %v1986
  %v2031 = vld [vmem:[#allocation1] sm:$0xff]
  %2032 = vst [vmem:[#allocation1] ss:$9 sm:$0xff] %v2003
  %2033 = vst [vmem:[%s2008] ss:$9 sm:$0xff] %v2004
  %2034 = vst [vmem:[%s2010] ss:$9 sm:$0xff] %v2005
  %2035 = vst [vmem:[%s2012] ss:$9 sm:$0xff] %v2006
  %v2036 = vld [vmem:[#allocation1] sm:$0xff]
  %v2040 = vpack.c.bf16 %v2031, %v2022
  %v2041 = vpack.c.bf16 %v2036, %v2036
  %v2043 = vsel %vm904, %v2040, 0
  %v2046 = vsel %vm904, %v2041, 0
  %v2049 = vsel %vm1630, %v818, 0
  %2051 = vmatpush.bf16.msra.mxu0 0
  %2052 = vmatpush.bf16.msra.mxu0 0
  %2053 = vmatpush.bf16.msra.mxu0 0
  %2054 = vmatpush.bf16.msra.mxu0 0
  %2055 = vmatpush.bf16.msra.mxu0 0
  %2056 = vmatpush.bf16.msra.mxu0 0
  %2057 = vmatpush.bf16.msra.mxu0 0
  %2058 = vmatpush.bf16.msra.mxu0 %v2049
  %2059 = vmatmul.bf16.gmra.mxu0 %v2043
  %v2060 = vpop.f32.mrf.mxu0
  %v2061 = vadd.f32 0.0, %v2060
  %v2062 = vpop.f32.mrf.mxu0
  %v2063 = vadd.f32 0.0, %v2062
  %2064 = vmatmul.bf16.gmra.mxu0 %v2046
  %v2065 = vpop.f32.mrf.mxu0
  %v2066 = vadd.f32 0.0, %v2065
  %v2067 = vpop.f32.mrf.mxu0
  %2068 = vdwg.mxu0
  %v2069 = vadd.f32 %v1671, %v2061
  %v2070 = vadd.f32 %v1673, %v2063
  %v2071 = vadd.f32 %v1676, %v2066
  %2072 = vst [vmem:[#allocation1] ss:$9 sm:$0xff] %v883
  %s2073 = scalar_lea.vmem [#allocation1], 1
  %2074 = vst [vmem:[%s2073] ss:$9 sm:$0xff] %v884
  %s2075 = scalar_lea.vmem [#allocation1], 2
  %2076 = vst [vmem:[%s2075] ss:$9 sm:$0xff] %v867
  %v2077 = vld [vmem:[#allocation1] sm:$0xff]
  %2079 = vrot.lane.b32.xlu0 %v2077, 104
  %v2080 = vpop.permute.xlu0 %2079
  %2081 = vst [vmem:[#allocation1] ss:$9 sm:$0xff] %v883
  %s2082 = scalar_lea.vmem [#allocation1], 1
  %2083 = vst [vmem:[%s2082] ss:$9 sm:$0xff] %v884
  %s2084 = scalar_lea.vmem [#allocation1], 2
  %2085 = vst [vmem:[%s2084] ss:$9 sm:$0xff] %v867
  %v2086 = vld [vmem:[#allocation1] sm:$0xff]
  %2088 = vrot.lane.b32.xlu0 %v2086, 72
  %v2089 = vpop.permute.xlu0 %2088
  %v2091 = vsel %vm904, %v2080, 0
  %v2094 = vsel %vm904, %v2089, 0
  %2096 = vmatpush.bf16.xpose.msra.mxu0 0
  %2097 = vmatpush.bf16.xpose.msra.mxu0 0
  %2098 = vmatpush.bf16.xpose.msra.mxu0 0
  %2099 = vmatpush.bf16.xpose.msra.mxu0 0
  %2100 = vmatpush.bf16.xpose.msra.mxu0 0
  %2101 = vmatpush.bf16.xpose.msra.mxu0 0
  %2102 = vmatpush.bf16.xpose.msra.mxu0 0
  %2103 = vmatpush.bf16.xpose.msra.mxu0 %v2094
  %2104 = vmatmul.bf16.gmra.mxu0 %v2091
  %v2105 = vpop.f32.mrf.mxu0
  %v2106 = vadd.f32 0.0, %v2105
  %v2107 = vpop.f32.mrf.mxu0
  %2108 = vdwg.mxu0
  %2109 = vst [vmem:[#allocation1] ss:$9 sm:$0xff] %v923
  %s2110 = scalar_lea.vmem [#allocation1], 1
  %2111 = vst [vmem:[%s2110] ss:$9 sm:$0xff] %v924
  %s2112 = scalar_lea.vmem [#allocation1], 2
  %2113 = vst [vmem:[%s2112] ss:$9 sm:$0xff] %v872
  %v2114 = vld [vmem:[#allocation1] sm:$0xff]
  %2116 = vrot.lane.b32.xlu0 %v2114, 104
  %v2117 = vpop.permute.xlu0 %2116
  %2118 = vst [vmem:[#allocation1] ss:$9 sm:$0xff] %v923
  %s2119 = scalar_lea.vmem [#allocation1], 1
  %2120 = vst [vmem:[%s2119] ss:$9 sm:$0xff] %v924
  %s2121 = scalar_lea.vmem [#allocation1], 2
  %2122 = vst [vmem:[%s2121] ss:$9 sm:$0xff] %v872
  %v2123 = vld [vmem:[#allocation1] sm:$0xff]
  %2125 = vrot.lane.b32.xlu0 %v2123, 72
  %v2126 = vpop.permute.xlu0 %2125
  %v2128 = vsel %vm904, %v2117, 0
  %v2131 = vsel %vm904, %v2126, 0
  %2133 = vmatpush.bf16.xpose.msra.mxu0 0
  %2134 = vmatpush.bf16.xpose.msra.mxu0 0
  %2135 = vmatpush.bf16.xpose.msra.mxu0 0
  %2136 = vmatpush.bf16.xpose.msra.mxu0 0
  %2137 = vmatpush.bf16.xpose.msra.mxu0 0
  %2138 = vmatpush.bf16.xpose.msra.mxu0 0
  %2139 = vmatpush.bf16.xpose.msra.mxu0 0
  %2140 = vmatpush.bf16.xpose.msra.mxu0 %v2131
  %2141 = vmatmul.bf16.gmra.mxu0 %v2128
  %v2142 = vpop.f32.mrf.mxu0
  %v2143 = vadd.f32 0.0, %v2142
  %v2144 = vpop.f32.mrf.mxu0
  %2145 = vdwg.mxu0
  %2146 = vst [vmem:[#allocation1] ss:$9 sm:$0xff] %v962
  %s2147 = scalar_lea.vmem [#allocation1], 1
  %2148 = vst [vmem:[%s2147] ss:$9 sm:$0xff] %v963
  %s2149 = scalar_lea.vmem [#allocation1], 2
  %2150 = vst [vmem:[%s2149] ss:$9 sm:$0xff] %v877
  %v2151 = vld [vmem:[#allocation1] sm:$0xff]
  %2153 = vrot.lane.b32.xlu0 %v2151, 104
  %v2154 = vpop.permute.xlu0 %2153
  %2155 = vst [vmem:[#allocation1] ss:$9 sm:$0xff] %v962
  %s2156 = scalar_lea.vmem [#allocation1], 1
  %2157 = vst [vmem:[%s2156] ss:$9 sm:$0xff] %v963
  %s2158 = scalar_lea.vmem [#allocation1], 2
  %2159 = vst [vmem:[%s2158] ss:$9 sm:$0xff] %v877
  %v2160 = vld [vmem:[#allocation1] sm:$0xff]
  %2162 = vrot.lane.b32.xlu0 %v2160, 72
  %v2163 = vpop.permute.xlu0 %2162
  %v2165 = vsel %vm904, %v2154, 0
  %v2168 = vsel %vm904, %v2163, 0
  %2170 = vmatpush.bf16.xpose.msra.mxu0 0
  %2171 = vmatpush.bf16.xpose.msra.mxu0 0
  %2172 = vmatpush.bf16.xpose.msra.mxu0 0
  %2173 = vmatpush.bf16.xpose.msra.mxu0 0
  %2174 = vmatpush.bf16.xpose.msra.mxu0 0
  %2175 = vmatpush.bf16.xpose.msra.mxu0 0
  %2176 = vmatpush.bf16.xpose.msra.mxu0 0
  %2177 = vmatpush.bf16.xpose.msra.mxu0 %v2168
  %2178 = vmatmul.bf16.gmra.mxu0 %v2165
  %v2179 = vpop.f32.mrf.mxu0
  %v2180 = vadd.f32 0.0, %v2179
  %v2181 = vpop.f32.mrf.mxu0
  %2182 = vdwg.mxu0
  %2183 = vst [vmem:[#allocation1] ss:$9 sm:$0xff] %v1001
  %s2184 = scalar_lea.vmem [#allocation1], 1
  %2185 = vst [vmem:[%s2184] ss:$9 sm:$0xff] %v1002
  %s2186 = scalar_lea.vmem [#allocation1], 2
  %2187 = vst [vmem:[%s2186] ss:$9 sm:$0xff] %v882
  %v2188 = vld [vmem:[#allocation1] sm:$0xff]
  %2190 = vrot.lane.b32.xlu0 %v2188, 104
  %v2191 = vpop.permute.xlu0 %2190
  %2192 = vst [vmem:[#allocation1] ss:$9 sm:$0xff] %v1001
  %s2193 = scalar_lea.vmem [#allocation1], 1
  %2194 = vst [vmem:[%s2193] ss:$9 sm:$0xff] %v1002
  %s2195 = scalar_lea.vmem [#allocation1], 2
  %2196 = vst [vmem:[%s2195] ss:$9 sm:$0xff] %v882
  %v2197 = vld [vmem:[#allocation1] sm:$0xff]
  %2199 = vrot.lane.b32.xlu0 %v2197, 72
  %v2200 = vpop.permute.xlu0 %2199
  %v2202 = vsel %vm904, %v2191, 0
  %v2205 = vsel %vm904, %v2200, 0
  %2207 = vmatpush.bf16.xpose.msra.mxu0 0
  %2208 = vmatpush.bf16.xpose.msra.mxu0 0
  %2209 = vmatpush.bf16.xpose.msra.mxu0 0
  %2210 = vmatpush.bf16.xpose.msra.mxu0 0
  %2211 = vmatpush.bf16.xpose.msra.mxu0 0
  %2212 = vmatpush.bf16.xpose.msra.mxu0 0
  %2213 = vmatpush.bf16.xpose.msra.mxu0 0
  %2214 = vmatpush.bf16.xpose.msra.mxu0 %v2205
  %2215 = vmatmul.bf16.gmra.mxu0 %v2202
  %v2216 = vpop.f32.mrf.mxu0
  %v2217 = vadd.f32 0.0, %v2216
  %v2218 = vpop.f32.mrf.mxu0
  %2219 = vdwg.mxu0
  %v2220 = vsel %vm1040, %v2106, -inf
  %2221 = vmax.xlane.f32.xlu0 %v2220
  %v2222 = vpop.xlane.xlu0 %2221
  %v2223 = vsel %vm1040, %v2143, -inf
  %2224 = vmax.xlane.f32.xlu0 %v2223
  %v2225 = vpop.xlane.xlu0 %2224
  %v2226 = vsel %vm1040, %v2180, -inf
  %2227 = vmax.xlane.f32.xlu0 %v2226
  %v2228 = vpop.xlane.xlu0 %2227
  %v2229 = vsel %vm1040, %v2217, -inf
  %2230 = vmax.xlane.f32.xlu0 %v2229
  %v2231 = vpop.xlane.xlu0 %2230
  %v2232 = vsub.f32 %v2106, %v2222
  %v2233 = vsub.f32 %v2143, %v2225
  %v2234 = vsub.f32 %v2180, %v2228
  %v2235 = vsub.f32 %v2217, %v2231
  %v2236 = vmul.f32 %v2232, 1.442695
  %v2237 = vpow.pop %v2236
  %v2238 = vmul.f32 %v2233, 1.442695
  %v2239 = vpow.pop %v2238
  %v2240 = vmul.f32 %v2234, 1.442695
  %v2241 = vpow.pop %v2240
  %v2242 = vmul.f32 %v2235, 1.442695
  %v2243 = vpow.pop %v2242
  %v2244 = vsel %vm1040, %v2237, 0.0
  %2245 = vadd.xlane.f32.xlu0 %v2244
  %v2246 = vpop.xlane.xlu0 %2245
  %v2247 = vsel %vm1040, %v2239, 0.0
  %2248 = vadd.xlane.f32.xlu0 %v2247
  %v2249 = vpop.xlane.xlu0 %2248
  %v2250 = vsel %vm1040, %v2241, 0.0
  %2251 = vadd.xlane.f32.xlu0 %v2250
  %v2252 = vpop.xlane.xlu0 %2251
  %v2253 = vsel %vm1040, %v2243, 0.0
  %2254 = vadd.xlane.f32.xlu0 %v2253
  %v2255 = vpop.xlane.xlu0 %2254
  %v2256 = vpack.c.bf16 %v2237, %v2237
  %v2257 = vpack.c.bf16 %v2239, %v2239
  %v2258 = vpack.c.bf16 %v2241, %v2241
  %v2259 = vpack.c.bf16 %v2243, %v2243
  %2260 = vst [vmem:[#allocation1] ss:$9 sm:$0xff] %v883
  %s2261 = scalar_lea.vmem [#allocation1], 1
  %2262 = vst [vmem:[%s2261] ss:$9 sm:$0xff] %v884
  %s2263 = scalar_lea.vmem [#allocation1], 2
  %2264 = vst [vmem:[%s2263] ss:$9 sm:$0xff] %v867
  %v2265 = vld [vmem:[#allocation1] sm:$0xff]
  %2267 = vrot.lane.b32.xlu0 %v2265, 40
  %v2268 = vpop.permute.xlu0 %2267
  %v2270 = vsel %vm1090, %v2256, 0
  %v2273 = vand.u32 %v2268, %v1097
  %2275 = vmatpush.bf16.msra.mxu0 0
  %2276 = vmatpush.bf16.msra.mxu0 0
  %2277 = vmatpush.bf16.msra.mxu0 0
  %2278 = vmatpush.bf16.msra.mxu0 0
  %2279 = vmatpush.bf16.msra.mxu0 0
  %2280 = vmatpush.bf16.msra.mxu0 0
  %2281 = vmatpush.bf16.msra.mxu0 0
  %2282 = vmatpush.bf16.msra.mxu0 %v2273
  %2283 = vmatmul.bf16.gmra.mxu0 %v2270
  %v2284 = vpop.f32.mrf.mxu0
  %v2285 = vadd.f32 0.0, %v2284
  %v2286 = vpop.f32.mrf.mxu0
  %2287 = vdwg.mxu0
  %2288 = vst [vmem:[#allocation1] ss:$9 sm:$0xff] %v923
  %s2289 = scalar_lea.vmem [#allocation1], 1
  %2290 = vst [vmem:[%s2289] ss:$9 sm:$0xff] %v924
  %s2291 = scalar_lea.vmem [#allocation1], 2
  %2292 = vst [vmem:[%s2291] ss:$9 sm:$0xff] %v872
  %v2293 = vld [vmem:[#allocation1] sm:$0xff]
  %2295 = vrot.lane.b32.xlu0 %v2293, 40
  %v2296 = vpop.permute.xlu0 %2295
  %v2298 = vsel %vm1090, %v2257, 0
  %v2301 = vand.u32 %v2296, %v1097
  %2303 = vmatpush.bf16.msra.mxu0 0
  %2304 = vmatpush.bf16.msra.mxu0 0
  %2305 = vmatpush.bf16.msra.mxu0 0
  %2306 = vmatpush.bf16.msra.mxu0 0
  %2307 = vmatpush.bf16.msra.mxu0 0
  %2308 = vmatpush.bf16.msra.mxu0 0
  %2309 = vmatpush.bf16.msra.mxu0 0
  %2310 = vmatpush.bf16.msra.mxu0 %v2301
  %2311 = vmatmul.bf16.gmra.mxu0 %v2298
  %v2312 = vpop.f32.mrf.mxu0
  %v2313 = vadd.f32 0.0, %v2312
  %v2314 = vpop.f32.mrf.mxu0
  %2315 = vdwg.mxu0
  %2316 = vst [vmem:[#allocation1] ss:$9 sm:$0xff] %v962
  %s2317 = scalar_lea.vmem [#allocation1], 1
  %2318 = vst [vmem:[%s2317] ss:$9 sm:$0xff] %v963
  %s2319 = scalar_lea.vmem [#allocation1], 2
  %2320 = vst [vmem:[%s2319] ss:$9 sm:$0xff] %v877
  %v2321 = vld [vmem:[#allocation1] sm:$0xff]
  %2323 = vrot.lane.b32.xlu0 %v2321, 40
  %v2324 = vpop.permute.xlu0 %2323
  %v2326 = vsel %vm1090, %v2258, 0
  %v2329 = vand.u32 %v2324, %v1097
  %2331 = vmatpush.bf16.msra.mxu0 0
  %2332 = vmatpush.bf16.msra.mxu0 0
  %2333 = vmatpush.bf16.msra.mxu0 0
  %2334 = vmatpush.bf16.msra.mxu0 0
  %2335 = vmatpush.bf16.msra.mxu0 0
  %2336 = vmatpush.bf16.msra.mxu0 0
  %2337 = vmatpush.bf16.msra.mxu0 0
  %2338 = vmatpush.bf16.msra.mxu0 %v2329
  %2339 = vmatmul.bf16.gmra.mxu0 %v2326
  %v2340 = vpop.f32.mrf.mxu0
  %v2341 = vadd.f32 0.0, %v2340
  %v2342 = vpop.f32.mrf.mxu0
  %2343 = vdwg.mxu0
  %2344 = vst [vmem:[#allocation1] ss:$9 sm:$0xff] %v1001
  %s2345 = scalar_lea.vmem [#allocation1], 1
  %2346 = vst [vmem:[%s2345] ss:$9 sm:$0xff] %v1002
  %s2347 = scalar_lea.vmem [#allocation1], 2
  %2348 = vst [vmem:[%s2347] ss:$9 sm:$0xff] %v882
  %v2349 = vld [vmem:[#allocation1] sm:$0xff]
  %2351 = vrot.lane.b32.xlu0 %v2349, 40
  %v2352 = vpop.permute.xlu0 %2351
  %v2354 = vsel %vm1090, %v2259, 0
  %v2357 = vand.u32 %v2352, %v1097
  %2359 = vmatpush.bf16.msra.mxu0 0
  %2360 = vmatpush.bf16.msra.mxu0 0
  %2361 = vmatpush.bf16.msra.mxu0 0
  %2362 = vmatpush.bf16.msra.mxu0 0
  %2363 = vmatpush.bf16.msra.mxu0 0
  %2364 = vmatpush.bf16.msra.mxu0 0
  %2365 = vmatpush.bf16.msra.mxu0 0
  %2366 = vmatpush.bf16.msra.mxu0 %v2357
  %2367 = vmatmul.bf16.gmra.mxu0 %v2354
  %v2368 = vpop.f32.mrf.mxu0
  %v2369 = vadd.f32 0.0, %v2368
  %v2370 = vpop.f32.mrf.mxu0
  %2371 = vdwg.mxu0
  %v2372 = vrcp.pop %v2246
  %v2373 = vrcp.pop %v2249
  %v2374 = vrcp.pop %v2252
  %v2375 = vrcp.pop %v2255
  %v2376 = vmul.f32 %v2285, %v2372
  %v2377 = vmul.f32 %v2313, %v2373
  %v2378 = vmul.f32 %v2341, %v2374
  %v2379 = vmul.f32 %v2369, %v2375
  %v2384 = vrot.slane %v2376, 1
  %v2385 = vrot.slane %v2376, 2
  %v2386 = vrot.slane %v2376, 3
  %v2387 = vrot.slane %v2376, 4
  %v2388 = vrot.slane %v2377, 1
  %v2389 = vrot.slane %v2377, 2
  %v2390 = vrot.slane %v2377, 3
  %v2391 = vrot.slane %v2377, 4
  %v2392 = vrot.slane %v2378, 1
  %v2393 = vrot.slane %v2378, 2
  %v2394 = vrot.slane %v2378, 3
  %v2395 = vrot.slane %v2378, 4
  %v2396 = vrot.slane %v2379, 1
  %v2397 = vrot.slane %v2379, 2
  %v2398 = vrot.slane %v2379, 3
  %v2399 = vrot.slane %v2379, 4
  %2400 = vst [vmem:[#allocation1] ss:$9 sm:$0xff] %v2376
  %s2401 = scalar_lea.vmem [#allocation1], 1
  %2402 = vst [vmem:[%s2401] ss:$9 sm:$0xff] %v2384
  %s2403 = scalar_lea.vmem [#allocation1], 2
  %2404 = vst [vmem:[%s2403] ss:$9 sm:$0xff] %v2385
  %s2405 = scalar_lea.vmem [#allocation1], 3
  %2406 = vst [vmem:[%s2405] ss:$9 sm:$0xff] %v2386
  %s2407 = scalar_lea.vmem [#allocation1], 4
  %2408 = vst [vmem:[%s2407] ss:$9 sm:$0xff] %v2387
  %s2409 = scalar_lea.vmem [#allocation1], 5
  %2410 = vst [vmem:[%s2409] ss:$9 sm:$0xff] %v2377
  %s2411 = scalar_lea.vmem [#allocation1], 6
  %2412 = vst [vmem:[%s2411] ss:$9 sm:$0xff] %v2388
  %s2413 = scalar_lea.vmem [#allocation1], 7
  %2414 = vst [vmem:[%s2413] ss:$9 sm:$0xff] %v2389
  %v2415 = vld [vmem:[#allocation1] sm:$0xff]
  %2416 = vst [vmem:[#allocation1] ss:$9 sm:$0xff] %v2390
  %2417 = vst [vmem:[%s2401] ss:$9 sm:$0xff] %v2391
  %2418 = vst [vmem:[%s2403] ss:$9 sm:$0xff] %v2378
  %2419 = vst [vmem:[%s2405] ss:$9 sm:$0xff] %v2392
  %2420 = vst [vmem:[%s2407] ss:$9 sm:$0xff] %v2393
  %2421 = vst [vmem:[%s2409] ss:$9 sm:$0xff] %v2394
  %2422 = vst [vmem:[%s2411] ss:$9 sm:$0xff] %v2395
  %2423 = vst [vmem:[%s2413] ss:$9 sm:$0xff] %v2379
  %v2424 = vld [vmem:[#allocation1] sm:$0xff]
  %2425 = vst [vmem:[#allocation1] ss:$9 sm:$0xff] %v2396
  %2426 = vst [vmem:[%s2401] ss:$9 sm:$0xff] %v2397
  %2427 = vst [vmem:[%s2403] ss:$9 sm:$0xff] %v2398
  %2428 = vst [vmem:[%s2405] ss:$9 sm:$0xff] %v2399
  %v2429 = vld [vmem:[#allocation1] sm:$0xff]
  %v2433 = vpack.c.bf16 %v2424, %v2415
  %v2434 = vpack.c.bf16 %v2429, %v2429
  %v2436 = vsel %vm904, %v2433, 0
  %v2439 = vsel %vm904, %v2434, 0
  %v2442 = vsel %vm1630, %v819, 0
  %2444 = vmatpush.bf16.msra.mxu0 0
  %2445 = vmatpush.bf16.msra.mxu0 0
  %2446 = vmatpush.bf16.msra.mxu0 0
  %2447 = vmatpush.bf16.msra.mxu0 0
  %2448 = vmatpush.bf16.msra.mxu0 0
  %2449 = vmatpush.bf16.msra.mxu0 0
  %2450 = vmatpush.bf16.msra.mxu0 0
  %2451 = vmatpush.bf16.msra.mxu0 %v2442
  %2452 = vmatmul.bf16.gmra.mxu0 %v2436
  %v2453 = vpop.f32.mrf.mxu0
  %v2454 = vadd.f32 0.0, %v2453
  %v2455 = vpop.f32.mrf.mxu0
  %v2456 = vadd.f32 0.0, %v2455
  %2457 = vmatmul.bf16.gmra.mxu0 %v2439
  %v2458 = vpop.f32.mrf.mxu0
  %v2459 = vadd.f32 0.0, %v2458
  %v2460 = vpop.f32.mrf.mxu0
  %2461 = vdwg.mxu0
  %v2462 = vadd.f32 %v2069, %v2454
  %v2463 = vadd.f32 %v2070, %v2456
  %v2464 = vadd.f32 %v2071, %v2459
  %v2468 = vrot.slane %v2462, 1
  %v2469 = vrot.slane %v2462, 2
  %v2470 = vrot.slane %v2462, 3
  %v2471 = vrot.slane %v2462, 4
  %v2472 = vrot.slane %v2462, 5
  %v2473 = vrot.slane %v2462, 6
  %v2474 = vrot.slane %v2462, 7
  %v2475 = vrot.slane %v2463, 1
  %v2476 = vrot.slane %v2463, 2
  %v2477 = vrot.slane %v2463, 3
  %v2478 = vrot.slane %v2463, 4
  %v2479 = vrot.slane %v2463, 5
  %v2480 = vrot.slane %v2463, 6
  %v2481 = vrot.slane %v2463, 7
  %v2482 = vrot.slane %v2464, 1
  %v2483 = vrot.slane %v2464, 2
  %v2484 = vrot.slane %v2464, 3
  %v2502 = vadd.f32 %v300, %v2462
  %v2503 = vadd.f32 %v308, %v2468
  %v2504 = vadd.f32 %v309, %v2469
  %v2505 = vadd.f32 %v310, %v2470
  %v2506 = vadd.f32 %v311, %v2471
  %v2507 = vadd.f32 %v301, %v2472
  %v2508 = vadd.f32 %v312, %v2473
  %v2509 = vadd.f32 %v313, %v2474
  %v2510 = vadd.f32 %v314, %v2463
  %v2511 = vadd.f32 %v315, %v2475
  %v2512 = vadd.f32 %v302, %v2476
  %v2513 = vadd.f32 %v316, %v2477
  %v2514 = vadd.f32 %v317, %v2478
  %v2515 = vadd.f32 %v318, %v2479
  %v2516 = vadd.f32 %v319, %v2480
  %v2517 = vadd.f32 %v303, %v2481
  %v2518 = vadd.f32 %v320, %v2464
  %v2519 = vadd.f32 %v321, %v2482
  %v2520 = vadd.f32 %v322, %v2483
  %v2521 = vadd.f32 %v323, %v2484
  %v2522 = vld [vmem:[%s10] sm:$0x1]
  %v2524 = vperm.slane %v2522, 0
  %v2526 = vrot.slane %v2524, 1
  %v2527 = vrot.slane %v2524, 2
  %v2528 = vrot.slane %v2524, 3
  %v2529 = vrot.slane %v2524, 4
  %v2530 = vrot.slane %v2524, 5
  %v2531 = vrot.slane %v2524, 6
  %v2532 = vrot.slane %v2524, 7
  %v2540 = vadd.f32 %v2502, %v2524
  %v2541 = vadd.f32 %v2503, %v2526
  %v2542 = vadd.f32 %v2504, %v2527
  %v2543 = vadd.f32 %v2505, %v2528
  %v2544 = vadd.f32 %v2506, %v2529
  %v2545 = vadd.f32 %v2507, %v2530
  %v2546 = vadd.f32 %v2508, %v2531
  %v2547 = vadd.f32 %v2509, %v2532
  %v2548 = vadd.f32 %v2510, %v2524
  %v2549 = vadd.f32 %v2511, %v2526
  %v2550 = vadd.f32 %v2512, %v2527
  %v2551 = vadd.f32 %v2513, %v2528
  %v2552 = vadd.f32 %v2514, %v2529
  %v2553 = vadd.f32 %v2515, %v2530
  %v2554 = vadd.f32 %v2516, %v2531
  %v2555 = vadd.f32 %v2517, %v2532
  %v2556 = vadd.f32 %v2518, %v2524
  %v2557 = vadd.f32 %v2519, %v2526
  %v2558 = vadd.f32 %v2520, %v2527
  %v2559 = vadd.f32 %v2521, %v2528
  %v2560 = vld [vmem:[%s11] sm:$0x1]
  %v2561 = vld [vmem:[%s12] sm:$0x1]
  %2582 = vst [vmem:[#allocation1] ss:$9 sm:$0xff] %v2540
  %s2583 = scalar_lea.vmem [#allocation1], 1
  %2584 = vst [vmem:[%s2583] ss:$9 sm:$0xff] %v2541
  %s2585 = scalar_lea.vmem [#allocation1], 2
  %2586 = vst [vmem:[%s2585] ss:$9 sm:$0xff] %v2542
  %s2587 = scalar_lea.vmem [#allocation1], 3
  %2588 = vst [vmem:[%s2587] ss:$9 sm:$0xff] %v2543
  %s2589 = scalar_lea.vmem [#allocation1], 4
  %2590 = vst [vmem:[%s2589] ss:$9 sm:$0xff] %v2544
  %s2591 = scalar_lea.vmem [#allocation1], 5
  %2592 = vst [vmem:[%s2591] ss:$9 sm:$0xff] %v2545
  %s2593 = scalar_lea.vmem [#allocation1], 6
  %2594 = vst [vmem:[%s2593] ss:$9 sm:$0xff] %v2546
  %s2595 = scalar_lea.vmem [#allocation1], 7
  %2596 = vst [vmem:[%s2595] ss:$9 sm:$0xff] %v2547
  %v2597 = vld [vmem:[#allocation1] sm:$0xff]
  %2598 = vst [vmem:[#allocation1] ss:$9 sm:$0xff] %v2548
  %2599 = vst [vmem:[%s2583] ss:$9 sm:$0xff] %v2549
  %2600 = vst [vmem:[%s2585] ss:$9 sm:$0xff] %v2550
  %2601 = vst [vmem:[%s2587] ss:$9 sm:$0xff] %v2551
  %2602 = vst [vmem:[%s2589] ss:$9 sm:$0xff] %v2552
  %2603 = vst [vmem:[%s2591] ss:$9 sm:$0xff] %v2553
  %2604 = vst [vmem:[%s2593] ss:$9 sm:$0xff] %v2554
  %2605 = vst [vmem:[%s2595] ss:$9 sm:$0xff] %v2555
  %v2606 = vld [vmem:[#allocation1] sm:$0xff]
  %2607 = vst [vmem:[#allocation1] ss:$9 sm:$0xff] %v2556
  %2608 = vst [vmem:[%s2583] ss:$9 sm:$0xff] %v2557
  %2609 = vst [vmem:[%s2585] ss:$9 sm:$0xff] %v2558
  %2610 = vst [vmem:[%s2587] ss:$9 sm:$0xff] %v2559
  %v2611 = vld [vmem:[#allocation1] sm:$0xff]
  %v2615 = vsel %vm375, %v2597, 0.0
  %2616 = vadd.xlane.f32.xlu0 %v2615
  %v2617 = vpop.xlane.xlu0 %2616
  %v2618 = vsel %vm375, %v2606, 0.0
  %2619 = vadd.xlane.f32.xlu0 %v2618
  %v2620 = vpop.xlane.xlu0 %2619
  %v2621 = vsel %vm382, %v2611, 0.0
  %2622 = vadd.xlane.f32.xlu0 %v2621
  %v2623 = vpop.xlane.xlu0 %2622
  %v2624 = vmul.f32 %v2617, %v392
  %v2625 = vmul.f32 %v2620, %v392
  %v2626 = vmul.f32 %v2623, %v392
  %v2630 = vperm.slane %v2624, 0
  %v2631 = vperm.slane %v2624, 1
  %v2632 = vperm.slane %v2624, 2
  %v2633 = vperm.slane %v2624, 3
  %v2634 = vperm.slane %v2624, 4
  %v2635 = vperm.slane %v2624, 5
  %v2636 = vperm.slane %v2624, 6
  %v2637 = vperm.slane %v2624, 7
  %v2638 = vperm.slane %v2625, 0
  %v2639 = vperm.slane %v2625, 1
  %v2640 = vperm.slane %v2625, 2
  %v2641 = vperm.slane %v2625, 3
  %v2642 = vperm.slane %v2625, 4
  %v2643 = vperm.slane %v2625, 5
  %v2644 = vperm.slane %v2625, 6
  %v2645 = vperm.slane %v2625, 7
  %v2646 = vperm.slane %v2626, 0
  %v2647 = vperm.slane %v2626, 1
  %v2648 = vperm.slane %v2626, 2
  %v2649 = vperm.slane %v2626, 3
  %v2670 = vsub.f32 %v2540, %v2630
  %v2671 = vsub.f32 %v2541, %v2631
  %v2672 = vsub.f32 %v2542, %v2632
  %v2673 = vsub.f32 %v2543, %v2633
  %v2674 = vsub.f32 %v2544, %v2634
  %v2675 = vsub.f32 %v2545, %v2635
  %v2676 = vsub.f32 %v2546, %v2636
  %v2677 = vsub.f32 %v2547, %v2637
  %v2678 = vsub.f32 %v2548, %v2638
  %v2679 = vsub.f32 %v2549, %v2639
  %v2680 = vsub.f32 %v2550, %v2640
  %v2681 = vsub.f32 %v2551, %v2641
  %v2682 = vsub.f32 %v2552, %v2642
  %v2683 = vsub.f32 %v2553, %v2643
  %v2684 = vsub.f32 %v2554, %v2644
  %v2685 = vsub.f32 %v2555, %v2645
  %v2686 = vsub.f32 %v2556, %v2646
  %v2687 = vsub.f32 %v2557, %v2647
  %v2688 = vsub.f32 %v2558, %v2648
  %v2689 = vsub.f32 %v2559, %v2649
  %v2690 = vmul.f32 %v2670, %v2670
  %v2691 = vmul.f32 %v2671, %v2671
  %v2692 = vmul.f32 %v2672, %v2672
  %v2693 = vmul.f32 %v2673, %v2673
  %v2694 = vmul.f32 %v2674, %v2674
  %v2695 = vmul.f32 %v2675, %v2675
  %v2696 = vmul.f32 %v2676, %v2676
  %v2697 = vmul.f32 %v2677, %v2677
  %v2698 = vmul.f32 %v2678, %v2678
  %v2699 = vmul.f32 %v2679, %v2679
  %v2700 = vmul.f32 %v2680, %v2680
  %v2701 = vmul.f32 %v2681, %v2681
  %v2702 = vmul.f32 %v2682, %v2682
  %v2703 = vmul.f32 %v2683, %v2683
  %v2704 = vmul.f32 %v2684, %v2684
  %v2705 = vmul.f32 %v2685, %v2685
  %v2706 = vmul.f32 %v2686, %v2686
  %v2707 = vmul.f32 %v2687, %v2687
  %v2708 = vmul.f32 %v2688, %v2688
  %v2709 = vmul.f32 %v2689, %v2689
  %2730 = vst [vmem:[#allocation1] ss:$9 sm:$0xff] %v2690
  %s2731 = scalar_lea.vmem [#allocation1], 1
  %2732 = vst [vmem:[%s2731] ss:$9 sm:$0xff] %v2691
  %s2733 = scalar_lea.vmem [#allocation1], 2
  %2734 = vst [vmem:[%s2733] ss:$9 sm:$0xff] %v2692
  %s2735 = scalar_lea.vmem [#allocation1], 3
  %2736 = vst [vmem:[%s2735] ss:$9 sm:$0xff] %v2693
  %s2737 = scalar_lea.vmem [#allocation1], 4
  %2738 = vst [vmem:[%s2737] ss:$9 sm:$0xff] %v2694
  %s2739 = scalar_lea.vmem [#allocation1], 5
  %2740 = vst [vmem:[%s2739] ss:$9 sm:$0xff] %v2695
  %s2741 = scalar_lea.vmem [#allocation1], 6
  %2742 = vst [vmem:[%s2741] ss:$9 sm:$0xff] %v2696
  %s2743 = scalar_lea.vmem [#allocation1], 7
  %2744 = vst [vmem:[%s2743] ss:$9 sm:$0xff] %v2697
  %v2745 = vld [vmem:[#allocation1] sm:$0xff]
  %2746 = vst [vmem:[#allocation1] ss:$9 sm:$0xff] %v2698
  %2747 = vst [vmem:[%s2731] ss:$9 sm:$0xff] %v2699
  %2748 = vst [vmem:[%s2733] ss:$9 sm:$0xff] %v2700
  %2749 = vst [vmem:[%s2735] ss:$9 sm:$0xff] %v2701
  %2750 = vst [vmem:[%s2737] ss:$9 sm:$0xff] %v2702
  %2751 = vst [vmem:[%s2739] ss:$9 sm:$0xff] %v2703
  %2752 = vst [vmem:[%s2741] ss:$9 sm:$0xff] %v2704
  %2753 = vst [vmem:[%s2743] ss:$9 sm:$0xff] %v2705
  %v2754 = vld [vmem:[#allocation1] sm:$0xff]
  %2755 = vst [vmem:[#allocation1] ss:$9 sm:$0xff] %v2706
  %2756 = vst [vmem:[%s2731] ss:$9 sm:$0xff] %v2707
  %2757 = vst [vmem:[%s2733] ss:$9 sm:$0xff] %v2708
  %2758 = vst [vmem:[%s2735] ss:$9 sm:$0xff] %v2709
  %v2759 = vld [vmem:[#allocation1] sm:$0xff]
  %v2763 = vsel %vm375, %v2745, 0.0
  %2764 = vadd.xlane.f32.xlu0 %v2763
  %v2765 = vpop.xlane.xlu0 %2764
  %v2766 = vsel %vm375, %v2754, 0.0
  %2767 = vadd.xlane.f32.xlu0 %v2766
  %v2768 = vpop.xlane.xlu0 %2767
  %v2769 = vsel %vm382, %v2759, 0.0
  %2770 = vadd.xlane.f32.xlu0 %v2769
  %v2771 = vpop.xlane.xlu0 %2770
  %v2772 = vmul.f32 %v2765, %v392
  %v2773 = vmul.f32 %v2768, %v392
  %v2774 = vmul.f32 %v2771, %v392
  %v2775 = vadd.f32 %v2772, 1e-12
  %v2776 = vadd.f32 %v2773, 1e-12
  %v2777 = vadd.f32 %v2774, 1e-12
  %v2778 = vrsqrt.pop %v2775
  %v2779 = vmul.f32 %v2778, %v2775
  %v2780 = vmul.f32 %v2779, %v2778
  %v2781 = vmul.f32 0.5, %v2780
  %v2782 = vsub.f32 1.5, %v2781
  %v2783 = vmul.f32 %v2778, %v2782
  %vm2784 = vweird.f32 %v2775
  %vm2785 = vweird.f32 %v2778
  %vm2786 = vmor %vm2784, %vm2785
  %v2787 = vsel %vm2786, %v2778, %v2783
  %v2788 = vrsqrt.pop %v2776
  %v2789 = vmul.f32 %v2788, %v2776
  %v2790 = vmul.f32 %v2789, %v2788
  %v2791 = vmul.f32 0.5, %v2790
  %v2792 = vsub.f32 1.5, %v2791
  %v2793 = vmul.f32 %v2788, %v2792
  %vm2794 = vweird.f32 %v2776
  %vm2795 = vweird.f32 %v2788
  %vm2796 = vmor %vm2794, %vm2795
  %v2797 = vsel %vm2796, %v2788, %v2793
  %v2798 = vrsqrt.pop %v2777
  %v2799 = vmul.f32 %v2798, %v2777
  %v2800 = vmul.f32 %v2799, %v2798
  %v2801 = vmul.f32 0.5, %v2800
  %v2802 = vsub.f32 1.5, %v2801
  %v2803 = vmul.f32 %v2798, %v2802
  %vm2804 = vweird.f32 %v2777
  %vm2805 = vweird.f32 %v2798
  %vm2806 = vmor %vm2804, %vm2805
  %v2807 = vsel %vm2806, %v2798, %v2803
  %v2811 = vperm.slane %v2787, 0
  %v2812 = vperm.slane %v2787, 1
  %v2813 = vperm.slane %v2787, 2
  %v2814 = vperm.slane %v2787, 3
  %v2815 = vperm.slane %v2787, 4
  %v2816 = vperm.slane %v2787, 5
  %v2817 = vperm.slane %v2787, 6
  %v2818 = vperm.slane %v2787, 7
  %v2819 = vperm.slane %v2797, 0
  %v2820 = vperm.slane %v2797, 1
  %v2821 = vperm.slane %v2797, 2
  %v2822 = vperm.slane %v2797, 3
  %v2823 = vperm.slane %v2797, 4
  %v2824 = vperm.slane %v2797, 5
  %v2825 = vperm.slane %v2797, 6
  %v2826 = vperm.slane %v2797, 7
  %v2827 = vperm.slane %v2807, 0
  %v2828 = vperm.slane %v2807, 1
  %v2829 = vperm.slane %v2807, 2
  %v2830 = vperm.slane %v2807, 3
  %v2851 = vmul.f32 %v2670, %v2811
  %v2852 = vmul.f32 %v2671, %v2812
  %v2853 = vmul.f32 %v2672, %v2813
  %v2854 = vmul.f32 %v2673, %v2814
  %v2855 = vmul.f32 %v2674, %v2815
  %v2856 = vmul.f32 %v2675, %v2816
  %v2857 = vmul.f32 %v2676, %v2817
  %v2858 = vmul.f32 %v2677, %v2818
  %v2859 = vmul.f32 %v2678, %v2819
  %v2860 = vmul.f32 %v2679, %v2820
  %v2861 = vmul.f32 %v2680, %v2821
  %v2862 = vmul.f32 %v2681, %v2822
  %v2863 = vmul.f32 %v2682, %v2823
  %v2864 = vmul.f32 %v2683, %v2824
  %v2865 = vmul.f32 %v2684, %v2825
  %v2866 = vmul.f32 %v2685, %v2826
  %v2867 = vmul.f32 %v2686, %v2827
  %v2868 = vmul.f32 %v2687, %v2828
  %v2869 = vmul.f32 %v2688, %v2829
  %v2870 = vmul.f32 %v2689, %v2830
  %v2872 = vperm.slane %v2560, 0
  %v2874 = vrot.slane %v2872, 1
  %v2875 = vrot.slane %v2872, 2
  %v2876 = vrot.slane %v2872, 3
  %v2877 = vrot.slane %v2872, 4
  %v2878 = vrot.slane %v2872, 5
  %v2879 = vrot.slane %v2872, 6
  %v2880 = vrot.slane %v2872, 7
  %v2888 = vmul.f32 %v2851, %v2872
  %v2889 = vmul.f32 %v2852, %v2874
  %v2890 = vmul.f32 %v2853, %v2875
  %v2891 = vmul.f32 %v2854, %v2876
  %v2892 = vmul.f32 %v2855, %v2877
  %v2893 = vmul.f32 %v2856, %v2878
  %v2894 = vmul.f32 %v2857, %v2879
  %v2895 = vmul.f32 %v2858, %v2880
  %v2896 = vmul.f32 %v2859, %v2872
  %v2897 = vmul.f32 %v2860, %v2874
  %v2898 = vmul.f32 %v2861, %v2875
  %v2899 = vmul.f32 %v2862, %v2876
  %v2900 = vmul.f32 %v2863, %v2877
  %v2901 = vmul.f32 %v2864, %v2878
  %v2902 = vmul.f32 %v2865, %v2879
  %v2903 = vmul.f32 %v2866, %v2880
  %v2904 = vmul.f32 %v2867, %v2872
  %v2905 = vmul.f32 %v2868, %v2874
  %v2906 = vmul.f32 %v2869, %v2875
  %v2907 = vmul.f32 %v2870, %v2876
  %v2909 = vperm.slane %v2561, 0
  %v2911 = vrot.slane %v2909, 1
  %v2912 = vrot.slane %v2909, 2
  %v2913 = vrot.slane %v2909, 3
  %v2914 = vrot.slane %v2909, 4
  %v2915 = vrot.slane %v2909, 5
  %v2916 = vrot.slane %v2909, 6
  %v2917 = vrot.slane %v2909, 7
  %v2925 = vadd.f32 %v2888, %v2909
  %v2926 = vadd.f32 %v2889, %v2911
  %v2927 = vadd.f32 %v2890, %v2912
  %v2928 = vadd.f32 %v2891, %v2913
  %v2929 = vadd.f32 %v2892, %v2914
  %v2930 = vadd.f32 %v2893, %v2915
  %v2931 = vadd.f32 %v2894, %v2916
  %v2932 = vadd.f32 %v2895, %v2917
  %v2933 = vadd.f32 %v2896, %v2909
  %v2934 = vadd.f32 %v2897, %v2911
  %v2935 = vadd.f32 %v2898, %v2912
  %v2936 = vadd.f32 %v2899, %v2913
  %v2937 = vadd.f32 %v2900, %v2914
  %v2938 = vadd.f32 %v2901, %v2915
  %v2939 = vadd.f32 %v2902, %v2916
  %v2940 = vadd.f32 %v2903, %v2917
  %v2941 = vadd.f32 %v2904, %v2909
  %v2942 = vadd.f32 %v2905, %v2911
  %v2943 = vadd.f32 %v2906, %v2912
  %v2944 = vadd.f32 %v2907, %v2913
  %2965 = vst [vmem:[#allocation1] ss:$9 sm:$0xff] %v2925
  %s2966 = scalar_lea.vmem [#allocation1], 1
  %2967 = vst [vmem:[%s2966] ss:$9 sm:$0xff] %v2926
  %s2968 = scalar_lea.vmem [#allocation1], 2
  %2969 = vst [vmem:[%s2968] ss:$9 sm:$0xff] %v2927
  %s2970 = scalar_lea.vmem [#allocation1], 3
  %2971 = vst [vmem:[%s2970] ss:$9 sm:$0xff] %v2928
  %s2972 = scalar_lea.vmem [#allocation1], 4
  %2973 = vst [vmem:[%s2972] ss:$9 sm:$0xff] %v2929
  %s2974 = scalar_lea.vmem [#allocation1], 5
  %2975 = vst [vmem:[%s2974] ss:$9 sm:$0xff] %v2930
  %s2976 = scalar_lea.vmem [#allocation1], 6
  %2977 = vst [vmem:[%s2976] ss:$9 sm:$0xff] %v2931
  %s2978 = scalar_lea.vmem [#allocation1], 7
  %2979 = vst [vmem:[%s2978] ss:$9 sm:$0xff] %v2932
  %v2980 = vld [vmem:[#allocation1] sm:$0xff]
  %2981 = vst [vmem:[#allocation1] ss:$9 sm:$0xff] %v2933
  %2982 = vst [vmem:[%s2966] ss:$9 sm:$0xff] %v2934
  %2983 = vst [vmem:[%s2968] ss:$9 sm:$0xff] %v2935
  %2984 = vst [vmem:[%s2970] ss:$9 sm:$0xff] %v2936
  %2985 = vst [vmem:[%s2972] ss:$9 sm:$0xff] %v2937
  %2986 = vst [vmem:[%s2974] ss:$9 sm:$0xff] %v2938
  %2987 = vst [vmem:[%s2976] ss:$9 sm:$0xff] %v2939
  %2988 = vst [vmem:[%s2978] ss:$9 sm:$0xff] %v2940
  %v2989 = vld [vmem:[#allocation1] sm:$0xff]
  %2990 = vst [vmem:[#allocation1] ss:$9 sm:$0xff] %v2941
  %2991 = vst [vmem:[%s2966] ss:$9 sm:$0xff] %v2942
  %2992 = vst [vmem:[%s2968] ss:$9 sm:$0xff] %v2943
  %2993 = vst [vmem:[%s2970] ss:$9 sm:$0xff] %v2944
  %v2994 = vld [vmem:[#allocation1] sm:$0xff]
  %v2998 = vpack.c.bf16 %v2989, %v2980
  %v2999 = vpack.c.bf16 %v2994, %v2994
  %v3000 = vld [vmem:[%s13] sm:$0xf]
  %v3001 = vld [vmem:[%s13 + $0x4] sm:$0xf]
  %v3002 = vld [vmem:[%s13 + $0x8] sm:$0xf]
  %v3003 = vld [vmem:[%s13 + $0xc] sm:$0xf]
  %v3004 = vld [vmem:[%s14] sm:$0x1]
  %v3006 = vperm.slane %v3004, 0
  %v3012 = vunpack.c.l.b16 %v3000
  %v3013 = vunpack.c.l.b16 %v3001
  %v3014 = vunpack.c.l.b16 %v3002
  %v3015 = vunpack.c.l.b16 %v3003
  %v3016 = vpack.c.b16 %v3013, %v3012
  %v3017 = vpack.c.b16 %v3015, %v3014
  %v3021 = vsel %vm375, %v2998, 0
  %v3024 = vsel %vm375, %v2999, 0
  %3026 = vmatpush.bf16.msra.mxu0 0
  %3027 = vmatpush.bf16.msra.mxu0 0
  %3028 = vmatpush.bf16.msra.mxu0 0
  %3029 = vmatpush.bf16.msra.mxu0 0
  %3030 = vmatpush.bf16.msra.mxu0 0
  %3031 = vmatpush.bf16.msra.mxu0 0
  %3032 = vmatpush.bf16.msra.mxu0 %v3017
  %3033 = vmatpush.bf16.msra.mxu0 %v3016
  %3034 = vmatmul.bf16.gmra.mxu0 %v3021
  %v3035 = vpop.f32.mrf.mxu0
  %v3036 = vadd.f32 %v3006, %v3035
  %v3037 = vpop.f32.mrf.mxu0
  %v3038 = vadd.f32 %v3006, %v3037
  %3039 = vmatmul.bf16.gmra.mxu0 %v3024
  %v3040 = vpop.f32.mrf.mxu0
  %v3041 = vadd.f32 %v3006, %v3040
  %v3042 = vpop.f32.mrf.mxu0
  %3043 = vdwg.mxu0
  %v3044 = vmul.f32 %v3036, %v3036
  %v3045 = vmul.f32 %v3038, %v3038
  %v3046 = vmul.f32 %v3041, %v3041
  %v3047 = vmul.f32 %v3036, %v3044
  %v3048 = vmul.f32 %v3038, %v3045
  %v3049 = vmul.f32 %v3041, %v3046
  %v3050 = vmul.f32 %v3047, 0.044715
  %v3051 = vmul.f32 %v3048, 0.044715
  %v3052 = vmul.f32 %v3049, 0.044715
  %v3053 = vadd.f32 %v3036, %v3050
  %v3054 = vadd.f32 %v3038, %v3051
  %v3055 = vadd.f32 %v3041, %v3052
  %v3056 = vmul.f32 %v3053, 0.7978846
  %v3057 = vmul.f32 %v3054, 0.7978846
  %v3058 = vmul.f32 %v3055, 0.7978846
  %v3059 = vtanh.pop %v3056
  %v3060 = vtanh.pop %v3057
  %v3061 = vtanh.pop %v3058
  %v3062 = vadd.f32 %v3059, 1.0
  %v3063 = vadd.f32 %v3060, 1.0
  %v3064 = vadd.f32 %v3061, 1.0
  %v3065 = vmul.f32 %v3062, 0.5
  %v3066 = vmul.f32 %v3063, 0.5
  %v3067 = vmul.f32 %v3064, 0.5
  %v3068 = vmul.f32 %v3036, %v3065
  %v3069 = vmul.f32 %v3038, %v3066
  %v3070 = vmul.f32 %v3041, %v3067
  %v3071 = vpack.c.bf16 %v3069, %v3068
  %v3072 = vpack.c.bf16 %v3070, %v3070
  %v3073 = vld [vmem:[%s15] sm:$0xf]
  %v3074 = vld [vmem:[%s15 + $0x4] sm:$0xf]
  %v3075 = vld [vmem:[%s15 + $0x8] sm:$0xf]
  %v3076 = vld [vmem:[%s15 + $0xc] sm:$0xf]
  %v3077 = vld [vmem:[%s15 + $0x10] sm:$0xf]
  %v3078 = vld [vmem:[%s15 + $0x14] sm:$0xf]
  %v3079 = vld [vmem:[%s15 + $0x18] sm:$0xf]
  %v3080 = vld [vmem:[%s15 + $0x1c] sm:$0xf]
  %v3081 = vld [vmem:[%s15 + $0x20] sm:$0xf]
  %v3082 = vld [vmem:[%s15 + $0x24] sm:$0xf]
  %v3083 = vld [vmem:[%s15 + $0x28] sm:$0xf]
  %v3084 = vld [vmem:[%s15 + $0x2c] sm:$0xf]
  %v3085 = vld [vmem:[%s15 + $0x30] sm:$0xf]
  %v3086 = vld [vmem:[%s15 + $0x34] sm:$0xf]
  %v3087 = vld [vmem:[%s15 + $0x38] sm:$0xf]
  %v3088 = vld [vmem:[%s15 + $0x3c] sm:$0xf]
  %v3089 = vld [vmem:[%s16] sm:$0x1]
  %v3091 = vperm.slane %v3089, 0
  %v3109 = vunpack.c.l.b16 %v3073
  %v3110 = vunpack.c.l.b16 %v3074
  %v3111 = vunpack.c.l.b16 %v3075
  %v3112 = vunpack.c.l.b16 %v3076
  %v3113 = vunpack.c.l.b16 %v3077
  %v3114 = vunpack.c.l.b16 %v3078
  %v3115 = vunpack.c.l.b16 %v3079
  %v3116 = vunpack.c.l.b16 %v3080
  %v3117 = vunpack.c.l.b16 %v3081
  %v3118 = vunpack.c.l.b16 %v3082
  %v3119 = vunpack.c.l.b16 %v3083
  %v3120 = vunpack.c.l.b16 %v3084
  %v3121 = vunpack.c.l.b16 %v3085
  %v3122 = vunpack.c.l.b16 %v3086
  %v3123 = vunpack.c.l.b16 %v3087
  %v3124 = vunpack.c.l.b16 %v3088
  %v3125 = vpack.c.b16 %v3110, %v3109
  %v3126 = vpack.c.b16 %v3112, %v3111
  %v3127 = vpack.c.b16 %v3114, %v3113
  %v3128 = vpack.c.b16 %v3116, %v3115
  %v3129 = vpack.c.b16 %v3118, %v3117
  %v3130 = vpack.c.b16 %v3120, %v3119
  %v3131 = vpack.c.b16 %v3122, %v3121
  %v3132 = vpack.c.b16 %v3124, %v3123
  %3141 = vmatpush.bf16.msra.mxu0 %v3132
  %3142 = vmatpush.bf16.msra.mxu0 %v3131
  %3143 = vmatpush.bf16.msra.mxu0 %v3130
  %3144 = vmatpush.bf16.msra.mxu0 %v3129
  %3145 = vmatpush.bf16.msra.mxu0 %v3128
  %3146 = vmatpush.bf16.msra.mxu0 %v3127
  %3147 = vmatpush.bf16.msra.mxu0 %v3126
  %3148 = vmatpush.bf16.msra.mxu0 %v3125
  %3149 = vmatmul.bf16.gmra.mxu0 %v3071
  %v3150 = vpop.f32.mrf.mxu0
  %v3151 = vadd.f32 %v3091, %v3150
  %v3152 = vpop.f32.mrf.mxu0
  %v3153 = vadd.f32 %v3091, %v3152
  %3154 = vmatmul.bf16.gmra.mxu0 %v3072
  %v3155 = vpop.f32.mrf.mxu0
  %v3156 = vadd.f32 %v3091, %v3155
  %v3157 = vpop.f32.mrf.mxu0
  %3158 = vdwg.mxu0
  %v3162 = vrot.slane %v3151, 1
  %v3163 = vrot.slane %v3151, 2
  %v3164 = vrot.slane %v3151, 3
  %v3165 = vrot.slane %v3151, 4
  %v3166 = vrot.slane %v3151, 5
  %v3167 = vrot.slane %v3151, 6
  %v3168 = vrot.slane %v3151, 7
  %v3169 = vrot.slane %v3153, 1
  %v3170 = vrot.slane %v3153, 2
  %v3171 = vrot.slane %v3153, 3
  %v3172 = vrot.slane %v3153, 4
  %v3173 = vrot.slane %v3153, 5
  %v3174 = vrot.slane %v3153, 6
  %v3175 = vrot.slane %v3153, 7
  %v3176 = vrot.slane %v3156, 1
  %v3177 = vrot.slane %v3156, 2
  %v3178 = vrot.slane %v3156, 3
  %v3196 = vadd.f32 %v2540, %v3151
  %v3197 = vadd.f32 %v2541, %v3162
  %v3198 = vadd.f32 %v2542, %v3163
  %v3199 = vadd.f32 %v2543, %v3164
  %v3200 = vadd.f32 %v2544, %v3165
  %v3201 = vadd.f32 %v2545, %v3166
  %v3202 = vadd.f32 %v2546, %v3167
  %v3203 = vadd.f32 %v2547, %v3168
  %v3204 = vadd.f32 %v2548, %v3153
  %v3205 = vadd.f32 %v2549, %v3169
  %v3206 = vadd.f32 %v2550, %v3170
  %v3207 = vadd.f32 %v2551, %v3171
  %v3208 = vadd.f32 %v2552, %v3172
  %v3209 = vadd.f32 %v2553, %v3173
  %v3210 = vadd.f32 %v2554, %v3174
  %v3211 = vadd.f32 %v2555, %v3175
  %v3212 = vadd.f32 %v2556, %v3156
  %v3213 = vadd.f32 %v2557, %v3176
  %v3214 = vadd.f32 %v2558, %v3177
  %v3215 = vadd.f32 %v2559, %v3178
  %s3216 = scalar_lea.vmem %s5, 1
  %v3217 = vld [vmem:[%s3216] sm:$0x1]
  %s3218 = scalar_lea.vmem %s6, 1
  %v3219 = vld [vmem:[%s3218] sm:$0x1]
  %3240 = vst [vmem:[#allocation1] ss:$9 sm:$0xff] %v3196
  %s3241 = scalar_lea.vmem [#allocation1], 1
  %3242 = vst [vmem:[%s3241] ss:$9 sm:$0xff] %v3197
  %s3243 = scalar_lea.vmem [#allocation1], 2
  %3244 = vst [vmem:[%s3243] ss:$9 sm:$0xff] %v3198
  %s3245 = scalar_lea.vmem [#allocation1], 3
  %3246 = vst [vmem:[%s3245] ss:$9 sm:$0xff] %v3199
  %s3247 = scalar_lea.vmem [#allocation1], 4
  %3248 = vst [vmem:[%s3247] ss:$9 sm:$0xff] %v3200
  %s3249 = scalar_lea.vmem [#allocation1], 5
  %3250 = vst [vmem:[%s3249] ss:$9 sm:$0xff] %v3201
  %s3251 = scalar_lea.vmem [#allocation1], 6
  %3252 = vst [vmem:[%s3251] ss:$9 sm:$0xff] %v3202
  %s3253 = scalar_lea.vmem [#allocation1], 7
  %3254 = vst [vmem:[%s3253] ss:$9 sm:$0xff] %v3203
  %v3255 = vld [vmem:[#allocation1] sm:$0xff]
  %3256 = vst [vmem:[#allocation1] ss:$9 sm:$0xff] %v3204
  %3257 = vst [vmem:[%s3241] ss:$9 sm:$0xff] %v3205
  %3258 = vst [vmem:[%s3243] ss:$9 sm:$0xff] %v3206
  %3259 = vst [vmem:[%s3245] ss:$9 sm:$0xff] %v3207
  %3260 = vst [vmem:[%s3247] ss:$9 sm:$0xff] %v3208
  %3261 = vst [vmem:[%s3249] ss:$9 sm:$0xff] %v3209
  %3262 = vst [vmem:[%s3251] ss:$9 sm:$0xff] %v3210
  %3263 = vst [vmem:[%s3253] ss:$9 sm:$0xff] %v3211
  %v3264 = vld [vmem:[#allocation1] sm:$0xff]
  %3265 = vst [vmem:[#allocation1] ss:$9 sm:$0xff] %v3212
  %3266 = vst [vmem:[%s3241] ss:$9 sm:$0xff] %v3213
  %3267 = vst [vmem:[%s3243] ss:$9 sm:$0xff] %v3214
  %3268 = vst [vmem:[%s3245] ss:$9 sm:$0xff] %v3215
  %v3269 = vld [vmem:[#allocation1] sm:$0xff]
  %v3273 = vsel %vm375, %v3255, 0.0
  %3274 = vadd.xlane.f32.xlu0 %v3273
  %v3275 = vpop.xlane.xlu0 %3274
  %v3276 = vsel %vm375, %v3264, 0.0
  %3277 = vadd.xlane.f32.xlu0 %v3276
  %v3278 = vpop.xlane.xlu0 %3277
  %v3279 = vsel %vm382, %v3269, 0.0
  %3280 = vadd.xlane.f32.xlu0 %v3279
  %v3281 = vpop.xlane.xlu0 %3280
  %v3282 = vmul.f32 %v3275, %v392
  %v3283 = vmul.f32 %v3278, %v392
  %v3284 = vmul.f32 %v3281, %v392
  %v3288 = vperm.slane %v3282, 0
  %v3289 = vperm.slane %v3282, 1
  %v3290 = vperm.slane %v3282, 2
  %v3291 = vperm.slane %v3282, 3
  %v3292 = vperm.slane %v3282, 4
  %v3293 = vperm.slane %v3282, 5
  %v3294 = vperm.slane %v3282, 6
  %v3295 = vperm.slane %v3282, 7
  %v3296 = vperm.slane %v3283, 0
  %v3297 = vperm.slane %v3283, 1
  %v3298 = vperm.slane %v3283, 2
  %v3299 = vperm.slane %v3283, 3
  %v3300 = vperm.slane %v3283, 4
  %v3301 = vperm.slane %v3283, 5
  %v3302 = vperm.slane %v3283, 6
  %v3303 = vperm.slane %v3283, 7
  %v3304 = vperm.slane %v3284, 0
  %v3305 = vperm.slane %v3284, 1
  %v3306 = vperm.slane %v3284, 2
  %v3307 = vperm.slane %v3284, 3
  %v3328 = vsub.f32 %v3196, %v3288
  %v3329 = vsub.f32 %v3197, %v3289
  %v3330 = vsub.f32 %v3198, %v3290
  %v3331 = vsub.f32 %v3199, %v3291
  %v3332 = vsub.f32 %v3200, %v3292
  %v3333 = vsub.f32 %v3201, %v3293
  %v3334 = vsub.f32 %v3202, %v3294
  %v3335 = vsub.f32 %v3203, %v3295
  %v3336 = vsub.f32 %v3204, %v3296
  %v3337 = vsub.f32 %v3205, %v3297
  %v3338 = vsub.f32 %v3206, %v3298
  %v3339 = vsub.f32 %v3207, %v3299
  %v3340 = vsub.f32 %v3208, %v3300
  %v3341 = vsub.f32 %v3209, %v3301
  %v3342 = vsub.f32 %v3210, %v3302
  %v3343 = vsub.f32 %v3211, %v3303
  %v3344 = vsub.f32 %v3212, %v3304
  %v3345 = vsub.f32 %v3213, %v3305
  %v3346 = vsub.f32 %v3214, %v3306
  %v3347 = vsub.f32 %v3215, %v3307
  %v3348 = vmul.f32 %v3328, %v3328
  %v3349 = vmul.f32 %v3329, %v3329
  %v3350 = vmul.f32 %v3330, %v3330
  %v3351 = vmul.f32 %v3331, %v3331
  %v3352 = vmul.f32 %v3332, %v3332
  %v3353 = vmul.f32 %v3333, %v3333
  %v3354 = vmul.f32 %v3334, %v3334
  %v3355 = vmul.f32 %v3335, %v3335
  %v3356 = vmul.f32 %v3336, %v3336
  %v3357 = vmul.f32 %v3337, %v3337
  %v3358 = vmul.f32 %v3338, %v3338
  %v3359 = vmul.f32 %v3339, %v3339
  %v3360 = vmul.f32 %v3340, %v3340
  %v3361 = vmul.f32 %v3341, %v3341
  %v3362 = vmul.f32 %v3342, %v3342
  %v3363 = vmul.f32 %v3343, %v3343
  %v3364 = vmul.f32 %v3344, %v3344
  %v3365 = vmul.f32 %v3345, %v3345
  %v3366 = vmul.f32 %v3346, %v3346
  %v3367 = vmul.f32 %v3347, %v3347
  %3388 = vst [vmem:[#allocation1] ss:$9 sm:$0xff] %v3348
  %s3389 = scalar_lea.vmem [#allocation1], 1
  %3390 = vst [vmem:[%s3389] ss:$9 sm:$0xff] %v3349
  %s3391 = scalar_lea.vmem [#allocation1], 2
  %3392 = vst [vmem:[%s3391] ss:$9 sm:$0xff] %v3350
  %s3393 = scalar_lea.vmem [#allocation1], 3
  %3394 = vst [vmem:[%s3393] ss:$9 sm:$0xff] %v3351
  %s3395 = scalar_lea.vmem [#allocation1], 4
  %3396 = vst [vmem:[%s3395] ss:$9 sm:$0xff] %v3352
  %s3397 = scalar_lea.vmem [#allocation1], 5
  %3398 = vst [vmem:[%s3397] ss:$9 sm:$0xff] %v3353
  %s3399 = scalar_lea.vmem [#allocation1], 6
  %3400 = vst [vmem:[%s3399] ss:$9 sm:$0xff] %v3354
  %s3401 = scalar_lea.vmem [#allocation1], 7
  %3402 = vst [vmem:[%s3401] ss:$9 sm:$0xff] %v3355
  %v3403 = vld [vmem:[#allocation1] sm:$0xff]
  %3404 = vst [vmem:[#allocation1] ss:$9 sm:$0xff] %v3356
  %3405 = vst [vmem:[%s3389] ss:$9 sm:$0xff] %v3357
  %3406 = vst [vmem:[%s3391] ss:$9 sm:$0xff] %v3358
  %3407 = vst [vmem:[%s3393] ss:$9 sm:$0xff] %v3359
  %3408 = vst [vmem:[%s3395] ss:$9 sm:$0xff] %v3360
  %3409 = vst [vmem:[%s3397] ss:$9 sm:$0xff] %v3361
  %3410 = vst [vmem:[%s3399] ss:$9 sm:$0xff] %v3362
  %3411 = vst [vmem:[%s3401] ss:$9 sm:$0xff] %v3363
  %v3412 = vld [vmem:[#allocation1] sm:$0xff]
  %3413 = vst [vmem:[#allocation1] ss:$9 sm:$0xff] %v3364
  %3414 = vst [vmem:[%s3389] ss:$9 sm:$0xff] %v3365
  %3415 = vst [vmem:[%s3391] ss:$9 sm:$0xff] %v3366
  %3416 = vst [vmem:[%s3393] ss:$9 sm:$0xff] %v3367
  %v3417 = vld [vmem:[#allocation1] sm:$0xff]
  %v3421 = vsel %vm375, %v3403, 0.0
  %3422 = vadd.xlane.f32.xlu0 %v3421
  %v3423 = vpop.xlane.xlu0 %3422
  %v3424 = vsel %vm375, %v3412, 0.0
  %3425 = vadd.xlane.f32.xlu0 %v3424
  %v3426 = vpop.xlane.xlu0 %3425
  %v3427 = vsel %vm382, %v3417, 0.0
  %3428 = vadd.xlane.f32.xlu0 %v3427
  %v3429 = vpop.xlane.xlu0 %3428
  %v3430 = vmul.f32 %v3423, %v392
  %v3431 = vmul.f32 %v3426, %v392
  %v3432 = vmul.f32 %v3429, %v392
  %v3433 = vadd.f32 %v3430, 1e-12
  %v3434 = vadd.f32 %v3431, 1e-12
  %v3435 = vadd.f32 %v3432, 1e-12
  %v3436 = vrsqrt.pop %v3433
  %v3437 = vmul.f32 %v3436, %v3433
  %v3438 = vmul.f32 %v3437, %v3436
  %v3439 = vmul.f32 0.5, %v3438
  %v3440 = vsub.f32 1.5, %v3439
  %v3441 = vmul.f32 %v3436, %v3440
  %vm3442 = vweird.f32 %v3433
  %vm3443 = vweird.f32 %v3436
  %vm3444 = vmor %vm3442, %vm3443
  %v3445 = vsel %vm3444, %v3436, %v3441
  %v3446 = vrsqrt.pop %v3434
  %v3447 = vmul.f32 %v3446, %v3434
  %v3448 = vmul.f32 %v3447, %v3446
  %v3449 = vmul.f32 0.5, %v3448
  %v3450 = vsub.f32 1.5, %v3449
  %v3451 = vmul.f32 %v3446, %v3450
  %vm3452 = vweird.f32 %v3434
  %vm3453 = vweird.f32 %v3446
  %vm3454 = vmor %vm3452, %vm3453
  %v3455 = vsel %vm3454, %v3446, %v3451
  %v3456 = vrsqrt.pop %v3435
  %v3457 = vmul.f32 %v3456, %v3435
  %v3458 = vmul.f32 %v3457, %v3456
  %v3459 = vmul.f32 0.5, %v3458
  %v3460 = vsub.f32 1.5, %v3459
  %v3461 = vmul.f32 %v3456, %v3460
  %vm3462 = vweird.f32 %v3435
  %vm3463 = vweird.f32 %v3456
  %vm3464 = vmor %vm3462, %vm3463
  %v3465 = vsel %vm3464, %v3456, %v3461
  %v3469 = vperm.slane %v3445, 0
  %v3470 = vperm.slane %v3445, 1
  %v3471 = vperm.slane %v3445, 2
  %v3472 = vperm.slane %v3445, 3
  %v3473 = vperm.slane %v3445, 4
  %v3474 = vperm.slane %v3445, 5
  %v3475 = vperm.slane %v3445, 6
  %v3476 = vperm.slane %v3445, 7
  %v3477 = vperm.slane %v3455, 0
  %v3478 = vperm.slane %v3455, 1
  %v3479 = vperm.slane %v3455, 2
  %v3480 = vperm.slane %v3455, 3
  %v3481 = vperm.slane %v3455, 4
  %v3482 = vperm.slane %v3455, 5
  %v3483 = vperm.slane %v3455, 6
  %v3484 = vperm.slane %v3455, 7
  %v3485 = vperm.slane %v3465, 0
  %v3486 = vperm.slane %v3465, 1
  %v3487 = vperm.slane %v3465, 2
  %v3488 = vperm.slane %v3465, 3
  %v3509 = vmul.f32 %v3328, %v3469
  %v3510 = vmul.f32 %v3329, %v3470
  %v3511 = vmul.f32 %v3330, %v3471
  %v3512 = vmul.f32 %v3331, %v3472
  %v3513 = vmul.f32 %v3332, %v3473
  %v3514 = vmul.f32 %v3333, %v3474
  %v3515 = vmul.f32 %v3334, %v3475
  %v3516 = vmul.f32 %v3335, %v3476
  %v3517 = vmul.f32 %v3336, %v3477
  %v3518 = vmul.f32 %v3337, %v3478
  %v3519 = vmul.f32 %v3338, %v3479
  %v3520 = vmul.f32 %v3339, %v3480
  %v3521 = vmul.f32 %v3340, %v3481
  %v3522 = vmul.f32 %v3341, %v3482
  %v3523 = vmul.f32 %v3342, %v3483
  %v3524 = vmul.f32 %v3343, %v3484
  %v3525 = vmul.f32 %v3344, %v3485
  %v3526 = vmul.f32 %v3345, %v3486
  %v3527 = vmul.f32 %v3346, %v3487
  %v3528 = vmul.f32 %v3347, %v3488
  %v3530 = vperm.slane %v3217, 0
  %v3532 = vrot.slane %v3530, 1
  %v3533 = vrot.slane %v3530, 2
  %v3534 = vrot.slane %v3530, 3
  %v3535 = vrot.slane %v3530, 4
  %v3536 = vrot.slane %v3530, 5
  %v3537 = vrot.slane %v3530, 6
  %v3538 = vrot.slane %v3530, 7
  %v3546 = vmul.f32 %v3509, %v3530
  %v3547 = vmul.f32 %v3510, %v3532
  %v3548 = vmul.f32 %v3511, %v3533
  %v3549 = vmul.f32 %v3512, %v3534
  %v3550 = vmul.f32 %v3513, %v3535
  %v3551 = vmul.f32 %v3514, %v3536
  %v3552 = vmul.f32 %v3515, %v3537
  %v3553 = vmul.f32 %v3516, %v3538
  %v3554 = vmul.f32 %v3517, %v3530
  %v3555 = vmul.f32 %v3518, %v3532
  %v3556 = vmul.f32 %v3519, %v3533
  %v3557 = vmul.f32 %v3520, %v3534
  %v3558 = vmul.f32 %v3521, %v3535
  %v3559 = vmul.f32 %v3522, %v3536
  %v3560 = vmul.f32 %v3523, %v3537
  %v3561 = vmul.f32 %v3524, %v3538
  %v3562 = vmul.f32 %v3525, %v3530
  %v3563 = vmul.f32 %v3526, %v3532
  %v3564 = vmul.f32 %v3527, %v3533
  %v3565 = vmul.f32 %v3528, %v3534
  %v3567 = vperm.slane %v3219, 0
  %v3569 = vrot.slane %v3567, 1
  %v3570 = vrot.slane %v3567, 2
  %v3571 = vrot.slane %v3567, 3
  %v3572 = vrot.slane %v3567, 4
  %v3573 = vrot.slane %v3567, 5
  %v3574 = vrot.slane %v3567, 6
  %v3575 = vrot.slane %v3567, 7
  %v3583 = vadd.f32 %v3546, %v3567
  %v3584 = vadd.f32 %v3547, %v3569
  %v3585 = vadd.f32 %v3548, %v3570
  %v3586 = vadd.f32 %v3549, %v3571
  %v3587 = vadd.f32 %v3550, %v3572
  %v3588 = vadd.f32 %v3551, %v3573
  %v3589 = vadd.f32 %v3552, %v3574
  %v3590 = vadd.f32 %v3553, %v3575
  %v3591 = vadd.f32 %v3554, %v3567
  %v3592 = vadd.f32 %v3555, %v3569
  %v3593 = vadd.f32 %v3556, %v3570
  %v3594 = vadd.f32 %v3557, %v3571
  %v3595 = vadd.f32 %v3558, %v3572
  %v3596 = vadd.f32 %v3559, %v3573
  %v3597 = vadd.f32 %v3560, %v3574
  %v3598 = vadd.f32 %v3561, %v3575
  %v3599 = vadd.f32 %v3562, %v3567
  %v3600 = vadd.f32 %v3563, %v3569
  %v3601 = vadd.f32 %v3564, %v3570
  %v3602 = vadd.f32 %v3565, %v3571
  %3623 = vst [vmem:[#allocation1] ss:$9 sm:$0xff] %v3583
  %s3624 = scalar_lea.vmem [#allocation1], 1
  %3625 = vst [vmem:[%s3624] ss:$9 sm:$0xff] %v3584
  %s3626 = scalar_lea.vmem [#allocation1], 2
  %3627 = vst [vmem:[%s3626] ss:$9 sm:$0xff] %v3585
  %s3628 = scalar_lea.vmem [#allocation1], 3
  %3629 = vst [vmem:[%s3628] ss:$9 sm:$0xff] %v3586
  %s3630 = scalar_lea.vmem [#allocation1], 4
  %3631 = vst [vmem:[%s3630] ss:$9 sm:$0xff] %v3587
  %s3632 = scalar_lea.vmem [#allocation1], 5
  %3633 = vst [vmem:[%s3632] ss:$9 sm:$0xff] %v3588
  %s3634 = scalar_lea.vmem [#allocation1], 6
  %3635 = vst [vmem:[%s3634] ss:$9 sm:$0xff] %v3589
  %s3636 = scalar_lea.vmem [#allocation1], 7
  %3637 = vst [vmem:[%s3636] ss:$9 sm:$0xff] %v3590
  %v3638 = vld [vmem:[#allocation1] sm:$0xff]
  %3639 = vst [vmem:[#allocation1] ss:$9 sm:$0xff] %v3591
  %3640 = vst [vmem:[%s3624] ss:$9 sm:$0xff] %v3592
  %3641 = vst [vmem:[%s3626] ss:$9 sm:$0xff] %v3593
  %3642 = vst [vmem:[%s3628] ss:$9 sm:$0xff] %v3594
  %3643 = vst [vmem:[%s3630] ss:$9 sm:$0xff] %v3595
  %3644 = vst [vmem:[%s3632] ss:$9 sm:$0xff] %v3596
  %3645 = vst [vmem:[%s3634] ss:$9 sm:$0xff] %v3597
  %3646 = vst [vmem:[%s3636] ss:$9 sm:$0xff] %v3598
  %v3647 = vld [vmem:[#allocation1] sm:$0xff]
  %3648 = vst [vmem:[#allocation1] ss:$9 sm:$0xff] %v3599
  %3649 = vst [vmem:[%s3624] ss:$9 sm:$0xff] %v3600
  %3650 = vst [vmem:[%s3626] ss:$9 sm:$0xff] %v3601
  %3651 = vst [vmem:[%s3628] ss:$9 sm:$0xff] %v3602
  %v3652 = vld [vmem:[#allocation1] sm:$0xff]
  %v3656 = vpack.c.bf16 %v3647, %v3638
  %v3657 = vpack.c.bf16 %v3652, %v3652
  %s3658 = scalar_lea.vmem %s7, 16
  %v3659 = vld [vmem:[%s3658] sm:$0xf]
  %v3660 = vld [vmem:[%s3658 + $0x4] sm:$0xf]
  %v3661 = vld [vmem:[%s3658 + $0x8] sm:$0xf]
  %v3662 = vld [vmem:[%s3658 + $0xc] sm:$0xf]
  %s3663 = scalar_lea.vmem %s8, 1
  %v3664 = vld [vmem:[%s3663] sm:$0x1]
  %v3666 = vperm.slane %v3664, 0
  %v3672 = vunpack.c.l.b16 %v3659
  %v3673 = vunpack.c.l.b16 %v3660
  %v3674 = vunpack.c.l.b16 %v3661
  %v3675 = vunpack.c.l.b16 %v3662
  %v3676 = vpack.c.b16 %v3673, %v3672
  %v3677 = vpack.c.b16 %v3675, %v3674
  %v3681 = vsel %vm375, %v3656, 0
  %v3684 = vsel %vm375, %v3657, 0
  %3686 = vmatpush.bf16.msra.mxu0 0
  %3687 = vmatpush.bf16.msra.mxu0 0
  %3688 = vmatpush.bf16.msra.mxu0 0
  %3689 = vmatpush.bf16.msra.mxu0 0
  %3690 = vmatpush.bf16.msra.mxu0 0
  %3691 = vmatpush.bf16.msra.mxu0 0
  %3692 = vmatpush.bf16.msra.mxu0 %v3677
  %3693 = vmatpush.bf16.msra.mxu0 %v3676
  %3694 = vmatmul.bf16.gmra.mxu0 %v3681
  %v3695 = vpop.f32.mrf.mxu0
  %v3696 = vadd.f32 %v3666, %v3695
  %v3697 = vpop.f32.mrf.mxu0
  %v3698 = vadd.f32 %v3666, %v3697
  %3699 = vmatmul.bf16.gmra.mxu0 %v3684
  %v3700 = vpop.f32.mrf.mxu0
  %v3701 = vadd.f32 %v3666, %v3700
  %v3702 = vpop.f32.mrf.mxu0
  %3703 = vdwg.mxu0
  %v3704 = vpack.c.bf16 %v3696, %v3696
  %v3705 = vpack.c.bf16 %v3698, %v3698
  %v3706 = vpack.c.bf16 %v3701, %v3701
  %s3707 = scalar_lea.vmem %s9, 16
  %v3708 = vld [vmem:[%s3707] sm:$0xf]
  %v3709 = vld [vmem:[%s3707 + $0x4] sm:$0xf]
  %v3710 = vld [vmem:[%s3707 + $0x8] sm:$0xf]
  %v3711 = vld [vmem:[%s3707 + $0xc] sm:$0xf]
  %v3715 = vrot.slane %v3704, 3
  %v3716 = vrot.slane %v3705, 3
  %v3717 = vrot.slane %v3706, 3
  %v3720 = vsel %vm826, %v3704, %v3715
  %v3722 = vsel %vm831, %v3704, %v3715
  %v3724 = vrot.slane %v3722, 1
  %v3725 = vsel %vm835, %v3704, %v3715
  %v3727 = vrot.slane %v3725, 2
  %v3728 = vsel %vm839, %v3704, %v3715
  %v3730 = vrot.slane %v3728, 3
  %v3733 = vsel %vm826, %v3705, %v3716
  %v3735 = vsel %vm831, %v3705, %v3716
  %v3737 = vrot.slane %v3735, 1
  %v3738 = vsel %vm835, %v3705, %v3716
  %v3740 = vrot.slane %v3738, 2
  %v3741 = vsel %vm839, %v3705, %v3716
  %v3743 = vrot.slane %v3741, 3
  %v3746 = vsel %vm826, %v3706, %v3717
  %v3748 = vsel %vm831, %v3706, %v3717
  %v3750 = vrot.slane %v3748, 1
  %v3751 = vunpack.i.l.s16 %v3720
  %v3752 = vunpack.i.h.s16 %v3720
  %v3753 = vunpack.i.l.s16 %v3724
  %v3754 = vunpack.i.h.s16 %v3724
  %v3755 = vunpack.i.l.s16 %v3727
  %v3756 = vunpack.i.h.s16 %v3727
  %v3757 = vunpack.i.l.s16 %v3730
  %v3758 = vunpack.i.h.s16 %v3730
  %v3759 = vunpack.i.l.s16 %v3733
  %v3760 = vunpack.i.h.s16 %v3733
  %v3761 = vunpack.i.l.s16 %v3737
  %v3762 = vunpack.i.h.s16 %v3737
  %v3763 = vunpack.i.l.s16 %v3740
  %v3764 = vunpack.i.h.s16 %v3740
  %v3765 = vunpack.i.l.s16 %v3743
  %v3766 = vunpack.i.h.s16 %v3743
  %v3767 = vunpack.i.l.s16 %v3746
  %v3768 = vunpack.i.h.s16 %v3746
  %v3769 = vunpack.i.l.s16 %v3750
  %v3770 = vunpack.i.h.s16 %v3750
  %v3771 = vpack.i.b16 %v3752, %v3751
  %v3772 = vpack.i.b16 %v3754, %v3753
  %3775 = vst [vmem:[#allocation1] ss:$9 sm:$0xff] %v3771
  %s3777 = scalar_lea.vmem [#allocation1], 1
  %3778 = vst [vmem:[%s3777] ss:$9 sm:$0xff] %v3772
  %s3780 = scalar_lea.vmem [#allocation1], 2
  %3781 = vst [vmem:[%s3780] ss:$9 sm:$0xff] %v3755
  %v3782 = vld [vmem:[#allocation1] sm:$0xff]
  %3783 = vst [vmem:[#allocation1] ss:$9 sm:$0xff] %v3771
  %s3784 = scalar_lea.vmem [#allocation1], 1
  %3785 = vst [vmem:[%s3784] ss:$9 sm:$0xff] %v3772
  %s3786 = scalar_lea.vmem [#allocation1], 2
  %3787 = vst [vmem:[%s3786] ss:$9 sm:$0xff] %v3755
  %v3788 = vld [vmem:[#allocation1] sm:$0xff]
  %3790 = vrot.lane.b32.xlu0 %v3788, 96
  %v3791 = vpop.permute.xlu0 %3790
  %v3792 = vsel %vm904, %v3782, 0
  %v3795 = vsel %vm904, %v3791, 0
  %3797 = vmatpush.bf16.xpose.msra.mxu0 0
  %3798 = vmatpush.bf16.xpose.msra.mxu0 0
  %3799 = vmatpush.bf16.xpose.msra.mxu0 0
  %3800 = vmatpush.bf16.xpose.msra.mxu0 0
  %3801 = vmatpush.bf16.xpose.msra.mxu0 0
  %3802 = vmatpush.bf16.xpose.msra.mxu0 0
  %3803 = vmatpush.bf16.xpose.msra.mxu0 0
  %3804 = vmatpush.bf16.xpose.msra.mxu0 %v3795
  %3805 = vmatmul.bf16.gmra.mxu0 %v3792
  %v3806 = vpop.f32.mrf.mxu0
  %v3807 = vadd.f32 0.0, %v3806
  %v3808 = vpop.f32.mrf.mxu0
  %3809 = vdwg.mxu0
  %v3810 = vpack.i.b16 %v3757, %v3756
  %v3811 = vpack.i.b16 %v3759, %v3758
  %3814 = vst [vmem:[#allocation1] ss:$9 sm:$0xff] %v3810
  %s3816 = scalar_lea.vmem [#allocation1], 1
  %3817 = vst [vmem:[%s3816] ss:$9 sm:$0xff] %v3811
  %s3819 = scalar_lea.vmem [#allocation1], 2
  %3820 = vst [vmem:[%s3819] ss:$9 sm:$0xff] %v3760
  %v3821 = vld [vmem:[#allocation1] sm:$0xff]
  %3822 = vst [vmem:[#allocation1] ss:$9 sm:$0xff] %v3810
  %s3823 = scalar_lea.vmem [#allocation1], 1
  %3824 = vst [vmem:[%s3823] ss:$9 sm:$0xff] %v3811
  %s3825 = scalar_lea.vmem [#allocation1], 2
  %3826 = vst [vmem:[%s3825] ss:$9 sm:$0xff] %v3760
  %v3827 = vld [vmem:[#allocation1] sm:$0xff]
  %3829 = vrot.lane.b32.xlu0 %v3827, 96
  %v3830 = vpop.permute.xlu0 %3829
  %v3831 = vsel %vm904, %v3821, 0
  %v3834 = vsel %vm904, %v3830, 0
  %3836 = vmatpush.bf16.xpose.msra.mxu0 0
  %3837 = vmatpush.bf16.xpose.msra.mxu0 0
  %3838 = vmatpush.bf16.xpose.msra.mxu0 0
  %3839 = vmatpush.bf16.xpose.msra.mxu0 0
  %3840 = vmatpush.bf16.xpose.msra.mxu0 0
  %3841 = vmatpush.bf16.xpose.msra.mxu0 0
  %3842 = vmatpush.bf16.xpose.msra.mxu0 0
  %3843 = vmatpush.bf16.xpose.msra.mxu0 %v3834
  %3844 = vmatmul.bf16.gmra.mxu0 %v3831
  %v3845 = vpop.f32.mrf.mxu0
  %v3846 = vadd.f32 0.0, %v3845
  %v3847 = vpop.f32.mrf.mxu0
  %3848 = vdwg.mxu0
  %v3849 = vpack.i.b16 %v3762, %v3761
  %v3850 = vpack.i.b16 %v3764, %v3763
  %3853 = vst [vmem:[#allocation1] ss:$9 sm:$0xff] %v3849
  %s3855 = scalar_lea.vmem [#allocation1], 1
  %3856 = vst [vmem:[%s3855] ss:$9 sm:$0xff] %v3850
  %s3858 = scalar_lea.vmem [#allocation1], 2
  %3859 = vst [vmem:[%s3858] ss:$9 sm:$0xff] %v3765
  %v3860 = vld [vmem:[#allocation1] sm:$0xff]
  %3861 = vst [vmem:[#allocation1] ss:$9 sm:$0xff] %v3849
  %s3862 = scalar_lea.vmem [#allocation1], 1
  %3863 = vst [vmem:[%s3862] ss:$9 sm:$0xff] %v3850
  %s3864 = scalar_lea.vmem [#allocation1], 2
  %3865 = vst [vmem:[%s3864] ss:$9 sm:$0xff] %v3765
  %v3866 = vld [vmem:[#allocation1] sm:$0xff]
  %3868 = vrot.lane.b32.xlu0 %v3866, 96
  %v3869 = vpop.permute.xlu0 %3868
  %v3870 = vsel %vm904, %v3860, 0
  %v3873 = vsel %vm904, %v3869, 0
  %3875 = vmatpush.bf16.xpose.msra.mxu0 0
  %3876 = vmatpush.bf16.xpose.msra.mxu0 0
  %3877 = vmatpush.bf16.xpose.msra.mxu0 0
  %3878 = vmatpush.bf16.xpose.msra.mxu0 0
  %3879 = vmatpush.bf16.xpose.msra.mxu0 0
  %3880 = vmatpush.bf16.xpose.msra.mxu0 0
  %3881 = vmatpush.bf16.xpose.msra.mxu0 0
  %3882 = vmatpush.bf16.xpose.msra.mxu0 %v3873
  %3883 = vmatmul.bf16.gmra.mxu0 %v3870
  %v3884 = vpop.f32.mrf.mxu0
  %v3885 = vadd.f32 0.0, %v3884
  %v3886 = vpop.f32.mrf.mxu0
  %3887 = vdwg.mxu0
  %v3888 = vpack.i.b16 %v3767, %v3766
  %v3889 = vpack.i.b16 %v3769, %v3768
  %3892 = vst [vmem:[#allocation1] ss:$9 sm:$0xff] %v3888
  %s3894 = scalar_lea.vmem [#allocation1], 1
  %3895 = vst [vmem:[%s3894] ss:$9 sm:$0xff] %v3889
  %s3897 = scalar_lea.vmem [#allocation1], 2
  %3898 = vst [vmem:[%s3897] ss:$9 sm:$0xff] %v3770
  %v3899 = vld [vmem:[#allocation1] sm:$0xff]
  %3900 = vst [vmem:[#allocation1] ss:$9 sm:$0xff] %v3888
  %s3901 = scalar_lea.vmem [#allocation1], 1
  %3902 = vst [vmem:[%s3901] ss:$9 sm:$0xff] %v3889
  %s3903 = scalar_lea.vmem [#allocation1], 2
  %3904 = vst [vmem:[%s3903] ss:$9 sm:$0xff] %v3770
  %v3905 = vld [vmem:[#allocation1] sm:$0xff]
  %3907 = vrot.lane.b32.xlu0 %v3905, 96
  %v3908 = vpop.permute.xlu0 %3907
  %v3909 = vsel %vm904, %v3899, 0
  %v3912 = vsel %vm904, %v3908, 0
  %3914 = vmatpush.bf16.xpose.msra.mxu0 0
  %3915 = vmatpush.bf16.xpose.msra.mxu0 0
  %3916 = vmatpush.bf16.xpose.msra.mxu0 0
  %3917 = vmatpush.bf16.xpose.msra.mxu0 0
  %3918 = vmatpush.bf16.xpose.msra.mxu0 0
  %3919 = vmatpush.bf16.xpose.msra.mxu0 0
  %3920 = vmatpush.bf16.xpose.msra.mxu0 0
  %3921 = vmatpush.bf16.xpose.msra.mxu0 %v3912
  %3922 = vmatmul.bf16.gmra.mxu0 %v3909
  %v3923 = vpop.f32.mrf.mxu0
  %v3924 = vadd.f32 0.0, %v3923
  %v3925 = vpop.f32.mrf.mxu0
  %3926 = vdwg.mxu0
  %v3927 = vsel %vm1040, %v3807, -inf
  %3928 = vmax.xlane.f32.xlu0 %v3927
  %v3929 = vpop.xlane.xlu0 %3928
  %v3930 = vsel %vm1040, %v3846, -inf
  %3931 = vmax.xlane.f32.xlu0 %v3930
  %v3932 = vpop.xlane.xlu0 %3931
  %v3933 = vsel %vm1040, %v3885, -inf
  %3934 = vmax.xlane.f32.xlu0 %v3933
  %v3935 = vpop.xlane.xlu0 %3934
  %v3936 = vsel %vm1040, %v3924, -inf
  %3937 = vmax.xlane.f32.xlu0 %v3936
  %v3938 = vpop.xlane.xlu0 %3937
  %v3939 = vsub.f32 %v3807, %v3929
  %v3940 = vsub.f32 %v3846, %v3932
  %v3941 = vsub.f32 %v3885, %v3935
  %v3942 = vsub.f32 %v3924, %v3938
  %v3943 = vmul.f32 %v3939, 1.442695
  %v3944 = vpow.pop %v3943
  %v3945 = vmul.f32 %v3940, 1.442695
  %v3946 = vpow.pop %v3945
  %v3947 = vmul.f32 %v3941, 1.442695
  %v3948 = vpow.pop %v3947
  %v3949 = vmul.f32 %v3942, 1.442695
  %v3950 = vpow.pop %v3949
  %v3951 = vsel %vm1040, %v3944, 0.0
  %3952 = vadd.xlane.f32.xlu0 %v3951
  %v3953 = vpop.xlane.xlu0 %3952
  %v3954 = vsel %vm1040, %v3946, 0.0
  %3955 = vadd.xlane.f32.xlu0 %v3954
  %v3956 = vpop.xlane.xlu0 %3955
  %v3957 = vsel %vm1040, %v3948, 0.0
  %3958 = vadd.xlane.f32.xlu0 %v3957
  %v3959 = vpop.xlane.xlu0 %3958
  %v3960 = vsel %vm1040, %v3950, 0.0
  %3961 = vadd.xlane.f32.xlu0 %v3960
  %v3962 = vpop.xlane.xlu0 %3961
  %v3963 = vpack.c.bf16 %v3944, %v3944
  %v3964 = vpack.c.bf16 %v3946, %v3946
  %v3965 = vpack.c.bf16 %v3948, %v3948
  %v3966 = vpack.c.bf16 %v3950, %v3950
  %3967 = vst [vmem:[#allocation1] ss:$9 sm:$0xff] %v3771
  %s3968 = scalar_lea.vmem [#allocation1], 1
  %3969 = vst [vmem:[%s3968] ss:$9 sm:$0xff] %v3772
  %s3970 = scalar_lea.vmem [#allocation1], 2
  %3971 = vst [vmem:[%s3970] ss:$9 sm:$0xff] %v3755
  %v3972 = vld [vmem:[#allocation1] sm:$0xff]
  %3974 = vrot.lane.b32.xlu0 %v3972, 64
  %v3975 = vpop.permute.xlu0 %3974
  %v3977 = vsel %vm1090, %v3963, 0
  %v3980 = vand.u32 %v3975, %v1097
  %3982 = vmatpush.bf16.msra.mxu0 0
  %3983 = vmatpush.bf16.msra.mxu0 0
  %3984 = vmatpush.bf16.msra.mxu0 0
  %3985 = vmatpush.bf16.msra.mxu0 0
  %3986 = vmatpush.bf16.msra.mxu0 0
  %3987 = vmatpush.bf16.msra.mxu0 0
  %3988 = vmatpush.bf16.msra.mxu0 0
  %3989 = vmatpush.bf16.msra.mxu0 %v3980
  %3990 = vmatmul.bf16.gmra.mxu0 %v3977
  %v3991 = vpop.f32.mrf.mxu0
  %v3992 = vadd.f32 0.0, %v3991
  %v3993 = vpop.f32.mrf.mxu0
  %3994 = vdwg.mxu0
  %3995 = vst [vmem:[#allocation1] ss:$9 sm:$0xff] %v3810
  %s3996 = scalar_lea.vmem [#allocation1], 1
  %3997 = vst [vmem:[%s3996] ss:$9 sm:$0xff] %v3811
  %s3998 = scalar_lea.vmem [#allocation1], 2
  %3999 = vst [vmem:[%s3998] ss:$9 sm:$0xff] %v3760
  %v4000 = vld [vmem:[#allocation1] sm:$0xff]
  %4002 = vrot.lane.b32.xlu0 %v4000, 64
  %v4003 = vpop.permute.xlu0 %4002
  %v4005 = vsel %vm1090, %v3964, 0
  %v4008 = vand.u32 %v4003, %v1097
  %4010 = vmatpush.bf16.msra.mxu0 0
  %4011 = vmatpush.bf16.msra.mxu0 0
  %4012 = vmatpush.bf16.msra.mxu0 0
  %4013 = vmatpush.bf16.msra.mxu0 0
  %4014 = vmatpush.bf16.msra.mxu0 0
  %4015 = vmatpush.bf16.msra.mxu0 0
  %4016 = vmatpush.bf16.msra.mxu0 0
  %4017 = vmatpush.bf16.msra.mxu0 %v4008
  %4018 = vmatmul.bf16.gmra.mxu0 %v4005
  %v4019 = vpop.f32.mrf.mxu0
  %v4020 = vadd.f32 0.0, %v4019
  %v4021 = vpop.f32.mrf.mxu0
  %4022 = vdwg.mxu0
  %4023 = vst [vmem:[#allocation1] ss:$9 sm:$0xff] %v3849
  %s4024 = scalar_lea.vmem [#allocation1], 1
  %4025 = vst [vmem:[%s4024] ss:$9 sm:$0xff] %v3850
  %s4026 = scalar_lea.vmem [#allocation1], 2
  %4027 = vst [vmem:[%s4026] ss:$9 sm:$0xff] %v3765
  %v4028 = vld [vmem:[#allocation1] sm:$0xff]
  %4030 = vrot.lane.b32.xlu0 %v4028, 64
  %v4031 = vpop.permute.xlu0 %4030
  %v4033 = vsel %vm1090, %v3965, 0
  %v4036 = vand.u32 %v4031, %v1097
  %4038 = vmatpush.bf16.msra.mxu0 0
  %4039 = vmatpush.bf16.msra.mxu0 0
  %4040 = vmatpush.bf16.msra.mxu0 0
  %4041 = vmatpush.bf16.msra.mxu0 0
  %4042 = vmatpush.bf16.msra.mxu0 0
  %4043 = vmatpush.bf16.msra.mxu0 0
  %4044 = vmatpush.bf16.msra.mxu0 0
  %4045 = vmatpush.bf16.msra.mxu0 %v4036
  %4046 = vmatmul.bf16.gmra.mxu0 %v4033
  %v4047 = vpop.f32.mrf.mxu0
  %v4048 = vadd.f32 0.0, %v4047
  %v4049 = vpop.f32.mrf.mxu0
  %4050 = vdwg.mxu0
  %4051 = vst [vmem:[#allocation1] ss:$9 sm:$0xff] %v3888
  %s4052 = scalar_lea.vmem [#allocation1], 1
  %4053 = vst [vmem:[%s4052] ss:$9 sm:$0xff] %v3889
  %s4054 = scalar_lea.vmem [#allocation1], 2
  %4055 = vst [vmem:[%s4054] ss:$9 sm:$0xff] %v3770
  %v4056 = vld [vmem:[#allocation1] sm:$0xff]
  %4058 = vrot.lane.b32.xlu0 %v4056, 64
  %v4059 = vpop.permute.xlu0 %4058
  %v4061 = vsel %vm1090, %v3966, 0
  %v4064 = vand.u32 %v4059, %v1097
  %4066 = vmatpush.bf16.msra.mxu0 0
  %4067 = vmatpush.bf16.msra.mxu0 0
  %4068 = vmatpush.bf16.msra.mxu0 0
  %4069 = vmatpush.bf16.msra.mxu0 0
  %4070 = vmatpush.bf16.msra.mxu0 0
  %4071 = vmatpush.bf16.msra.mxu0 0
  %4072 = vmatpush.bf16.msra.mxu0 0
  %4073 = vmatpush.bf16.msra.mxu0 %v4064
  %4074 = vmatmul.bf16.gmra.mxu0 %v4061
  %v4075 = vpop.f32.mrf.mxu0
  %v4076 = vadd.f32 0.0, %v4075
  %v4077 = vpop.f32.mrf.mxu0
  %4078 = vdwg.mxu0
  %v4079 = vrcp.pop %v3953
  %v4080 = vrcp.pop %v3956
  %v4081 = vrcp.pop %v3959
  %v4082 = vrcp.pop %v3962
  %v4083 = vmul.f32 %v3992, %v4079
  %v4084 = vmul.f32 %v4020, %v4080
  %v4085 = vmul.f32 %v4048, %v4081
  %v4086 = vmul.f32 %v4076, %v4082
  %v4091 = vrot.slane %v4083, 1
  %v4092 = vrot.slane %v4083, 2
  %v4093 = vrot.slane %v4083, 3
  %v4094 = vrot.slane %v4083, 4
  %v4095 = vrot.slane %v4084, 1
  %v4096 = vrot.slane %v4084, 2
  %v4097 = vrot.slane %v4084, 3
  %v4098 = vrot.slane %v4084, 4
  %v4099 = vrot.slane %v4085, 1
  %v4100 = vrot.slane %v4085, 2
  %v4101 = vrot.slane %v4085, 3
  %v4102 = vrot.slane %v4085, 4
  %v4103 = vrot.slane %v4086, 1
  %v4104 = vrot.slane %v4086, 2
  %v4105 = vrot.slane %v4086, 3
  %v4106 = vrot.slane %v4086, 4
  %4107 = vst [vmem:[#allocation1] ss:$9 sm:$0xff] %v4083
  %s4108 = scalar_lea.vmem [#allocation1], 1
  %4109 = vst [vmem:[%s4108] ss:$9 sm:$0xff] %v4091
  %s4110 = scalar_lea.vmem [#allocation1], 2
  %4111 = vst [vmem:[%s4110] ss:$9 sm:$0xff] %v4092
  %s4112 = scalar_lea.vmem [#allocation1], 3
  %4113 = vst [vmem:[%s4112] ss:$9 sm:$0xff] %v4093
  %s4114 = scalar_lea.vmem [#allocation1], 4
  %4115 = vst [vmem:[%s4114] ss:$9 sm:$0xff] %v4094
  %s4116 = scalar_lea.vmem [#allocation1], 5
  %4117 = vst [vmem:[%s4116] ss:$9 sm:$0xff] %v4084
  %s4118 = scalar_lea.vmem [#allocation1], 6
  %4119 = vst [vmem:[%s4118] ss:$9 sm:$0xff] %v4095
  %s4120 = scalar_lea.vmem [#allocation1], 7
  %4121 = vst [vmem:[%s4120] ss:$9 sm:$0xff] %v4096
  %v4122 = vld [vmem:[#allocation1] sm:$0xff]
  %4123 = vst [vmem:[#allocation1] ss:$9 sm:$0xff] %v4097
  %4124 = vst [vmem:[%s4108] ss:$9 sm:$0xff] %v4098
  %4125 = vst [vmem:[%s4110] ss:$9 sm:$0xff] %v4085
  %4126 = vst [vmem:[%s4112] ss:$9 sm:$0xff] %v4099
  %4127 = vst [vmem:[%s4114] ss:$9 sm:$0xff] %v4100
  %4128 = vst [vmem:[%s4116] ss:$9 sm:$0xff] %v4101
  %4129 = vst [vmem:[%s4118] ss:$9 sm:$0xff] %v4102
  %4130 = vst [vmem:[%s4120] ss:$9 sm:$0xff] %v4086
  %v4131 = vld [vmem:[#allocation1] sm:$0xff]
  %4132 = vst [vmem:[#allocation1] ss:$9 sm:$0xff] %v4103
  %4133 = vst [vmem:[%s4108] ss:$9 sm:$0xff] %v4104
  %4134 = vst [vmem:[%s4110] ss:$9 sm:$0xff] %v4105
  %4135 = vst [vmem:[%s4112] ss:$9 sm:$0xff] %v4106
  %v4136 = vld [vmem:[#allocation1] sm:$0xff]
  %v4140 = vpack.c.bf16 %v4131, %v4122
  %v4141 = vpack.c.bf16 %v4136, %v4136
  %4142 = vst [vmem:[#allocation1] ss:$9 sm:$0xff] %v3771
  %s4143 = scalar_lea.vmem [#allocation1], 1
  %4144 = vst [vmem:[%s4143] ss:$9 sm:$0xff] %v3772
  %s4145 = scalar_lea.vmem [#allocation1], 2
  %4146 = vst [vmem:[%s4145] ss:$9 sm:$0xff] %v3755
  %v4147 = vld [vmem:[#allocation1] sm:$0xff]
  %4149 = vrot.lane.b32.xlu0 %v4147, 120
  %v4150 = vpop.permute.xlu0 %4149
  %4151 = vst [vmem:[#allocation1] ss:$9 sm:$0xff] %v3771
  %s4152 = scalar_lea.vmem [#allocation1], 1
  %4153 = vst [vmem:[%s4152] ss:$9 sm:$0xff] %v3772
  %s4154 = scalar_lea.vmem [#allocation1], 2
  %4155 = vst [vmem:[%s4154] ss:$9 sm:$0xff] %v3755
  %v4156 = vld [vmem:[#allocation1] sm:$0xff]
  %4158 = vrot.lane.b32.xlu0 %v4156, 88
  %v4159 = vpop.permute.xlu0 %4158
  %v4161 = vsel %vm904, %v4150, 0
  %v4164 = vsel %vm904, %v4159, 0
  %4166 = vmatpush.bf16.xpose.msra.mxu0 0
  %4167 = vmatpush.bf16.xpose.msra.mxu0 0
  %4168 = vmatpush.bf16.xpose.msra.mxu0 0
  %4169 = vmatpush.bf16.xpose.msra.mxu0 0
  %4170 = vmatpush.bf16.xpose.msra.mxu0 0
  %4171 = vmatpush.bf16.xpose.msra.mxu0 0
  %4172 = vmatpush.bf16.xpose.msra.mxu0 0
  %4173 = vmatpush.bf16.xpose.msra.mxu0 %v4164
  %4174 = vmatmul.bf16.gmra.mxu0 %v4161
  %v4175 = vpop.f32.mrf.mxu0
  %v4176 = vadd.f32 0.0, %v4175
  %v4177 = vpop.f32.mrf.mxu0
  %4178 = vdwg.mxu0
  %4179 = vst [vmem:[#allocation1] ss:$9 sm:$0xff] %v3810
  %s4180 = scalar_lea.vmem [#allocation1], 1
  %4181 = vst [vmem:[%s4180] ss:$9 sm:$0xff] %v3811
  %s4182 = scalar_lea.vmem [#allocation1], 2
  %4183 = vst [vmem:[%s4182] ss:$9 sm:$0xff] %v3760
  %v4184 = vld [vmem:[#allocation1] sm:$0xff]
  %4186 = vrot.lane.b32.xlu0 %v4184, 120
  %v4187 = vpop.permute.xlu0 %4186
  %4188 = vst [vmem:[#allocation1] ss:$9 sm:$0xff] %v3810
  %s4189 = scalar_lea.vmem [#allocation1], 1
  %4190 = vst [vmem:[%s4189] ss:$9 sm:$0xff] %v3811
  %s4191 = scalar_lea.vmem [#allocation1], 2
  %4192 = vst [vmem:[%s4191] ss:$9 sm:$0xff] %v3760
  %v4193 = vld [vmem:[#allocation1] sm:$0xff]
  %4195 = vrot.lane.b32.xlu0 %v4193, 88
  %v4196 = vpop.permute.xlu0 %4195
  %v4198 = vsel %vm904, %v4187, 0
  %v4201 = vsel %vm904, %v4196, 0
  %4203 = vmatpush.bf16.xpose.msra.mxu0 0
  %4204 = vmatpush.bf16.xpose.msra.mxu0 0
  %4205 = vmatpush.bf16.xpose.msra.mxu0 0
  %4206 = vmatpush.bf16.xpose.msra.mxu0 0
  %4207 = vmatpush.bf16.xpose.msra.mxu0 0
  %4208 = vmatpush.bf16.xpose.msra.mxu0 0
  %4209 = vmatpush.bf16.xpose.msra.mxu0 0
  %4210 = vmatpush.bf16.xpose.msra.mxu0 %v4201
  %4211 = vmatmul.bf16.gmra.mxu0 %v4198
  %v4212 = vpop.f32.mrf.mxu0
  %v4213 = vadd.f32 0.0, %v4212
  %v4214 = vpop.f32.mrf.mxu0
  %4215 = vdwg.mxu0
  %4216 = vst [vmem:[#allocation1] ss:$9 sm:$0xff] %v3849
  %s4217 = scalar_lea.vmem [#allocation1], 1
  %4218 = vst [vmem:[%s4217] ss:$9 sm:$0xff] %v3850
  %s4219 = scalar_lea.vmem [#allocation1], 2
  %4220 = vst [vmem:[%s4219] ss:$9 sm:$0xff] %v3765
  %v4221 = vld [vmem:[#allocation1] sm:$0xff]
  %4223 = vrot.lane.b32.xlu0 %v4221, 120
  %v4224 = vpop.permute.xlu0 %4223
  %4225 = vst [vmem:[#allocation1] ss:$9 sm:$0xff] %v3849
  %s4226 = scalar_lea.vmem [#allocation1], 1
  %4227 = vst [vmem:[%s4226] ss:$9 sm:$0xff] %v3850
  %s4228 = scalar_lea.vmem [#allocation1], 2
  %4229 = vst [vmem:[%s4228] ss:$9 sm:$0xff] %v3765
  %v4230 = vld [vmem:[#allocation1] sm:$0xff]
  %4232 = vrot.lane.b32.xlu0 %v4230, 88
  %v4233 = vpop.permute.xlu0 %4232
  %v4235 = vsel %vm904, %v4224, 0
  %v4238 = vsel %vm904, %v4233, 0
  %4240 = vmatpush.bf16.xpose.msra.mxu0 0
  %4241 = vmatpush.bf16.xpose.msra.mxu0 0
  %4242 = vmatpush.bf16.xpose.msra.mxu0 0
  %4243 = vmatpush.bf16.xpose.msra.mxu0 0
  %4244 = vmatpush.bf16.xpose.msra.mxu0 0
  %4245 = vmatpush.bf16.xpose.msra.mxu0 0
  %4246 = vmatpush.bf16.xpose.msra.mxu0 0
  %4247 = vmatpush.bf16.xpose.msra.mxu0 %v4238
  %4248 = vmatmul.bf16.gmra.mxu0 %v4235
  %v4249 = vpop.f32.mrf.mxu0
  %v4250 = vadd.f32 0.0, %v4249
  %v4251 = vpop.f32.mrf.mxu0
  %4252 = vdwg.mxu0
  %4253 = vst [vmem:[#allocation1] ss:$9 sm:$0xff] %v3888
  %s4254 = scalar_lea.vmem [#allocation1], 1
  %4255 = vst [vmem:[%s4254] ss:$9 sm:$0xff] %v3889
  %s4256 = scalar_lea.vmem [#allocation1], 2
  %4257 = vst [vmem:[%s4256] ss:$9 sm:$0xff] %v3770
  %v4258 = vld [vmem:[#allocation1] sm:$0xff]
  %4260 = vrot.lane.b32.xlu0 %v4258, 120
  %v4261 = vpop.permute.xlu0 %4260
  %4262 = vst [vmem:[#allocation1] ss:$9 sm:$0xff] %v3888
  %s4263 = scalar_lea.vmem [#allocation1], 1
  %4264 = vst [vmem:[%s4263] ss:$9 sm:$0xff] %v3889
  %s4265 = scalar_lea.vmem [#allocation1], 2
  %4266 = vst [vmem:[%s4265] ss:$9 sm:$0xff] %v3770
  %v4267 = vld [vmem:[#allocation1] sm:$0xff]
  %4269 = vrot.lane.b32.xlu0 %v4267, 88
  %v4270 = vpop.permute.xlu0 %4269
  %v4272 = vsel %vm904, %v4261, 0
  %v4275 = vsel %vm904, %v4270, 0
  %4277 = vmatpush.bf16.xpose.msra.mxu0 0
  %4278 = vmatpush.bf16.xpose.msra.mxu0 0
  %4279 = vmatpush.bf16.xpose.msra.mxu0 0
  %4280 = vmatpush.bf16.xpose.msra.mxu0 0
  %4281 = vmatpush.bf16.xpose.msra.mxu0 0
  %4282 = vmatpush.bf16.xpose.msra.mxu0 0
  %4283 = vmatpush.bf16.xpose.msra.mxu0 0
  %4284 = vmatpush.bf16.xpose.msra.mxu0 %v4275
  %4285 = vmatmul.bf16.gmra.mxu0 %v4272
  %v4286 = vpop.f32.mrf.mxu0
  %v4287 = vadd.f32 0.0, %v4286
  %v4288 = vpop.f32.mrf.mxu0
  %4289 = vdwg.mxu0
  %v4290 = vsel %vm1040, %v4176, -inf
  %4291 = vmax.xlane.f32.xlu0 %v4290
  %v4292 = vpop.xlane.xlu0 %4291
  %v4293 = vsel %vm1040, %v4213, -inf
  %4294 = vmax.xlane.f32.xlu0 %v4293
  %v4295 = vpop.xlane.xlu0 %4294
  %v4296 = vsel %vm1040, %v4250, -inf
  %4297 = vmax.xlane.f32.xlu0 %v4296
  %v4298 = vpop.xlane.xlu0 %4297
  %v4299 = vsel %vm1040, %v4287, -inf
  %4300 = vmax.xlane.f32.xlu0 %v4299
  %v4301 = vpop.xlane.xlu0 %4300
  %v4302 = vsub.f32 %v4176, %v4292
  %v4303 = vsub.f32 %v4213, %v4295
  %v4304 = vsub.f32 %v4250, %v4298
  %v4305 = vsub.f32 %v4287, %v4301
  %v4306 = vmul.f32 %v4302, 1.442695
  %v4307 = vpow.pop %v4306
  %v4308 = vmul.f32 %v4303, 1.442695
  %v4309 = vpow.pop %v4308
  %v4310 = vmul.f32 %v4304, 1.442695
  %v4311 = vpow.pop %v4310
  %v4312 = vmul.f32 %v4305, 1.442695
  %v4313 = vpow.pop %v4312
  %v4314 = vsel %vm1040, %v4307, 0.0
  %4315 = vadd.xlane.f32.xlu0 %v4314
  %v4316 = vpop.xlane.xlu0 %4315
  %v4317 = vsel %vm1040, %v4309, 0.0
  %4318 = vadd.xlane.f32.xlu0 %v4317
  %v4319 = vpop.xlane.xlu0 %4318
  %v4320 = vsel %vm1040, %v4311, 0.0
  %4321 = vadd.xlane.f32.xlu0 %v4320
  %v4322 = vpop.xlane.xlu0 %4321
  %v4323 = vsel %vm1040, %v4313, 0.0
  %4324 = vadd.xlane.f32.xlu0 %v4323
  %v4325 = vpop.xlane.xlu0 %4324
  %v4326 = vpack.c.bf16 %v4307, %v4307
  %v4327 = vpack.c.bf16 %v4309, %v4309
  %v4328 = vpack.c.bf16 %v4311, %v4311
  %v4329 = vpack.c.bf16 %v4313, %v4313
  %4330 = vst [vmem:[#allocation1] ss:$9 sm:$0xff] %v3771
  %s4331 = scalar_lea.vmem [#allocation1], 1
  %4332 = vst [vmem:[%s4331] ss:$9 sm:$0xff] %v3772
  %s4333 = scalar_lea.vmem [#allocation1], 2
  %4334 = vst [vmem:[%s4333] ss:$9 sm:$0xff] %v3755
  %v4335 = vld [vmem:[#allocation1] sm:$0xff]
  %4337 = vrot.lane.b32.xlu0 %v4335, 56
  %v4338 = vpop.permute.xlu0 %4337
  %v4340 = vsel %vm1090, %v4326, 0
  %v4343 = vand.u32 %v4338, %v1097
  %4345 = vmatpush.bf16.msra.mxu0 0
  %4346 = vmatpush.bf16.msra.mxu0 0
  %4347 = vmatpush.bf16.msra.mxu0 0
  %4348 = vmatpush.bf16.msra.mxu0 0
  %4349 = vmatpush.bf16.msra.mxu0 0
  %4350 = vmatpush.bf16.msra.mxu0 0
  %4351 = vmatpush.bf16.msra.mxu0 0
  %4352 = vmatpush.bf16.msra.mxu0 %v4343
  %4353 = vmatmul.bf16.gmra.mxu0 %v4340
  %v4354 = vpop.f32.mrf.mxu0
  %v4355 = vadd.f32 0.0, %v4354
  %v4356 = vpop.f32.mrf.mxu0
  %4357 = vdwg.mxu0
  %4358 = vst [vmem:[#allocation1] ss:$9 sm:$0xff] %v3810
  %s4359 = scalar_lea.vmem [#allocation1], 1
  %4360 = vst [vmem:[%s4359] ss:$9 sm:$0xff] %v3811
  %s4361 = scalar_lea.vmem [#allocation1], 2
  %4362 = vst [vmem:[%s4361] ss:$9 sm:$0xff] %v3760
  %v4363 = vld [vmem:[#allocation1] sm:$0xff]
  %4365 = vrot.lane.b32.xlu0 %v4363, 56
  %v4366 = vpop.permute.xlu0 %4365
  %v4368 = vsel %vm1090, %v4327, 0
  %v4371 = vand.u32 %v4366, %v1097
  %4373 = vmatpush.bf16.msra.mxu0 0
  %4374 = vmatpush.bf16.msra.mxu0 0
  %4375 = vmatpush.bf16.msra.mxu0 0
  %4376 = vmatpush.bf16.msra.mxu0 0
  %4377 = vmatpush.bf16.msra.mxu0 0
  %4378 = vmatpush.bf16.msra.mxu0 0
  %4379 = vmatpush.bf16.msra.mxu0 0
  %4380 = vmatpush.bf16.msra.mxu0 %v4371
  %4381 = vmatmul.bf16.gmra.mxu0 %v4368
  %v4382 = vpop.f32.mrf.mxu0
  %v4383 = vadd.f32 0.0, %v4382
  %v4384 = vpop.f32.mrf.mxu0
  %4385 = vdwg.mxu0
  %4386 = vst [vmem:[#allocation1] ss:$9 sm:$0xff] %v3849
  %s4387 = scalar_lea.vmem [#allocation1], 1
  %4388 = vst [vmem:[%s4387] ss:$9 sm:$0xff] %v3850
  %s4389 = scalar_lea.vmem [#allocation1], 2
  %4390 = vst [vmem:[%s4389] ss:$9 sm:$0xff] %v3765
  %v4391 = vld [vmem:[#allocation1] sm:$0xff]
  %4393 = vrot.lane.b32.xlu0 %v4391, 56
  %v4394 = vpop.permute.xlu0 %4393
  %v4396 = vsel %vm1090, %v4328, 0
  %v4399 = vand.u32 %v4394, %v1097
  %4401 = vmatpush.bf16.msra.mxu0 0
  %4402 = vmatpush.bf16.msra.mxu0 0
  %4403 = vmatpush.bf16.msra.mxu0 0
  %4404 = vmatpush.bf16.msra.mxu0 0
  %4405 = vmatpush.bf16.msra.mxu0 0
  %4406 = vmatpush.bf16.msra.mxu0 0
  %4407 = vmatpush.bf16.msra.mxu0 0
  %4408 = vmatpush.bf16.msra.mxu0 %v4399
  %4409 = vmatmul.bf16.gmra.mxu0 %v4396
  %v4410 = vpop.f32.mrf.mxu0
  %v4411 = vadd.f32 0.0, %v4410
  %v4412 = vpop.f32.mrf.mxu0
  %4413 = vdwg.mxu0
  %4414 = vst [vmem:[#allocation1] ss:$9 sm:$0xff] %v3888
  %s4415 = scalar_lea.vmem [#allocation1], 1
  %4416 = vst [vmem:[%s4415] ss:$9 sm:$0xff] %v3889
  %s4417 = scalar_lea.vmem [#allocation1], 2
  %4418 = vst [vmem:[%s4417] ss:$9 sm:$0xff] %v3770
  %v4419 = vld [vmem:[#allocation1] sm:$0xff]
  %4421 = vrot.lane.b32.xlu0 %v4419, 56
  %v4422 = vpop.permute.xlu0 %4421
  %v4424 = vsel %vm1090, %v4329, 0
  %v4427 = vand.u32 %v4422, %v1097
  %4429 = vmatpush.bf16.msra.mxu0 0
  %4430 = vmatpush.bf16.msra.mxu0 0
  %4431 = vmatpush.bf16.msra.mxu0 0
  %4432 = vmatpush.bf16.msra.mxu0 0
  %4433 = vmatpush.bf16.msra.mxu0 0
  %4434 = vmatpush.bf16.msra.mxu0 0
  %4435 = vmatpush.bf16.msra.mxu0 0
  %4436 = vmatpush.bf16.msra.mxu0 %v4427
  %4437 = vmatmul.bf16.gmra.mxu0 %v4424
  %v4438 = vpop.f32.mrf.mxu0
  %v4439 = vadd.f32 0.0, %v4438
  %v4440 = vpop.f32.mrf.mxu0
  %4441 = vdwg.mxu0
  %v4442 = vrcp.pop %v4316
  %v4443 = vrcp.pop %v4319
  %v4444 = vrcp.pop %v4322
  %v4445 = vrcp.pop %v4325
  %v4446 = vmul.f32 %v4355, %v4442
  %v4447 = vmul.f32 %v4383, %v4443
  %v4448 = vmul.f32 %v4411, %v4444
  %v4449 = vmul.f32 %v4439, %v4445
  %v4454 = vrot.slane %v4446, 1
  %v4455 = vrot.slane %v4446, 2
  %v4456 = vrot.slane %v4446, 3
  %v4457 = vrot.slane %v4446, 4
  %v4458 = vrot.slane %v4447, 1
  %v4459 = vrot.slane %v4447, 2
  %v4460 = vrot.slane %v4447, 3
  %v4461 = vrot.slane %v4447, 4
  %v4462 = vrot.slane %v4448, 1
  %v4463 = vrot.slane %v4448, 2
  %v4464 = vrot.slane %v4448, 3
  %v4465 = vrot.slane %v4448, 4
  %v4466 = vrot.slane %v4449, 1
  %v4467 = vrot.slane %v4449, 2
  %v4468 = vrot.slane %v4449, 3
  %v4469 = vrot.slane %v4449, 4
  %4470 = vst [vmem:[#allocation1] ss:$9 sm:$0xff] %v4446
  %s4471 = scalar_lea.vmem [#allocation1], 1
  %4472 = vst [vmem:[%s4471] ss:$9 sm:$0xff] %v4454
  %s4473 = scalar_lea.vmem [#allocation1], 2
  %4474 = vst [vmem:[%s4473] ss:$9 sm:$0xff] %v4455
  %s4475 = scalar_lea.vmem [#allocation1], 3
  %4476 = vst [vmem:[%s4475] ss:$9 sm:$0xff] %v4456
  %s4477 = scalar_lea.vmem [#allocation1], 4
  %4478 = vst [vmem:[%s4477] ss:$9 sm:$0xff] %v4457
  %s4479 = scalar_lea.vmem [#allocation1], 5
  %4480 = vst [vmem:[%s4479] ss:$9 sm:$0xff] %v4447
  %s4481 = scalar_lea.vmem [#allocation1], 6
  %4482 = vst [vmem:[%s4481] ss:$9 sm:$0xff] %v4458
  %s4483 = scalar_lea.vmem [#allocation1], 7
  %4484 = vst [vmem:[%s4483] ss:$9 sm:$0xff] %v4459
  %v4485 = vld [vmem:[#allocation1] sm:$0xff]
  %4486 = vst [vmem:[#allocation1] ss:$9 sm:$0xff] %v4460
  %4487 = vst [vmem:[%s4471] ss:$9 sm:$0xff] %v4461
  %4488 = vst [vmem:[%s4473] ss:$9 sm:$0xff] %v4448
  %4489 = vst [vmem:[%s4475] ss:$9 sm:$0xff] %v4462
  %4490 = vst [vmem:[%s4477] ss:$9 sm:$0xff] %v4463
  %4491 = vst [vmem:[%s4479] ss:$9 sm:$0xff] %v4464
  %4492 = vst [vmem:[%s4481] ss:$9 sm:$0xff] %v4465
  %4493 = vst [vmem:[%s4483] ss:$9 sm:$0xff] %v4449
  %v4494 = vld [vmem:[#allocation1] sm:$0xff]
  %4495 = vst [vmem:[#allocation1] ss:$9 sm:$0xff] %v4466
  %4496 = vst [vmem:[%s4471] ss:$9 sm:$0xff] %v4467
  %4497 = vst [vmem:[%s4473] ss:$9 sm:$0xff] %v4468
  %4498 = vst [vmem:[%s4475] ss:$9 sm:$0xff] %v4469
  %v4499 = vld [vmem:[#allocation1] sm:$0xff]
  %v4503 = vpack.c.bf16 %v4494, %v4485
  %v4504 = vpack.c.bf16 %v4499, %v4499
  %v4506 = vsel %vm904, %v4503, 0
  %v4509 = vsel %vm904, %v4504, 0
  %v4512 = vsel %vm1630, %v3709, 0
  %4514 = vmatpush.bf16.msra.mxu0 0
  %4515 = vmatpush.bf16.msra.mxu0 0
  %4516 = vmatpush.bf16.msra.mxu0 0
  %4517 = vmatpush.bf16.msra.mxu0 0
  %4518 = vmatpush.bf16.msra.mxu0 0
  %4519 = vmatpush.bf16.msra.mxu0 0
  %4520 = vmatpush.bf16.msra.mxu0 0
  %4521 = vmatpush.bf16.msra.mxu0 %v4512
  %4522 = vmatmul.bf16.gmra.mxu0 %v4506
  %v4523 = vpop.f32.mrf.mxu0
  %v4524 = vadd.f32 0.0, %v4523
  %v4525 = vpop.f32.mrf.mxu0
  %v4526 = vadd.f32 0.0, %v4525
  %4527 = vmatmul.bf16.gmra.mxu0 %v4509
  %v4528 = vpop.f32.mrf.mxu0
  %v4529 = vadd.f32 0.0, %v4528
  %v4530 = vpop.f32.mrf.mxu0
  %4531 = vdwg.mxu0
  %v4533 = vsel %vm904, %v4140, 0
  %v4536 = vsel %vm904, %v4141, 0
  %v4539 = vsel %vm1630, %v3708, 0
  %4541 = vmatpush.bf16.msra.mxu0 0
  %4542 = vmatpush.bf16.msra.mxu0 0
  %4543 = vmatpush.bf16.msra.mxu0 0
  %4544 = vmatpush.bf16.msra.mxu0 0
  %4545 = vmatpush.bf16.msra.mxu0 0
  %4546 = vmatpush.bf16.msra.mxu0 0
  %4547 = vmatpush.bf16.msra.mxu0 0
  %4548 = vmatpush.bf16.msra.mxu0 %v4539
  %4549 = vmatmul.bf16.gmra.mxu0 %v4533
  %v4550 = vpop.f32.mrf.mxu0
  %v4551 = vadd.f32 %v4524, %v4550
  %v4552 = vpop.f32.mrf.mxu0
  %v4553 = vadd.f32 %v4526, %v4552
  %4554 = vmatmul.bf16.gmra.mxu0 %v4536
  %v4555 = vpop.f32.mrf.mxu0
  %v4556 = vadd.f32 %v4529, %v4555
  %v4557 = vpop.f32.mrf.mxu0
  %4558 = vdwg.mxu0
  %4559 = vst [vmem:[#allocation1] ss:$9 sm:$0xff] %v3771
  %s4560 = scalar_lea.vmem [#allocation1], 1
  %4561 = vst [vmem:[%s4560] ss:$9 sm:$0xff] %v3772
  %s4562 = scalar_lea.vmem [#allocation1], 2
  %4563 = vst [vmem:[%s4562] ss:$9 sm:$0xff] %v3755
  %v4564 = vld [vmem:[#allocation1] sm:$0xff]
  %4566 = vrot.lane.b32.xlu0 %v4564, 112
  %v4567 = vpop.permute.xlu0 %4566
  %4568 = vst [vmem:[#allocation1] ss:$9 sm:$0xff] %v3771
  %s4569 = scalar_lea.vmem [#allocation1], 1
  %4570 = vst [vmem:[%s4569] ss:$9 sm:$0xff] %v3772
  %s4571 = scalar_lea.vmem [#allocation1], 2
  %4572 = vst [vmem:[%s4571] ss:$9 sm:$0xff] %v3755
  %v4573 = vld [vmem:[#allocation1] sm:$0xff]
  %4575 = vrot.lane.b32.xlu0 %v4573, 80
  %v4576 = vpop.permute.xlu0 %4575
  %v4578 = vsel %vm904, %v4567, 0
  %v4581 = vsel %vm904, %v4576, 0
  %4583 = vmatpush.bf16.xpose.msra.mxu0 0
  %4584 = vmatpush.bf16.xpose.msra.mxu0 0
  %4585 = vmatpush.bf16.xpose.msra.mxu0 0
  %4586 = vmatpush.bf16.xpose.msra.mxu0 0
  %4587 = vmatpush.bf16.xpose.msra.mxu0 0
  %4588 = vmatpush.bf16.xpose.msra.mxu0 0
  %4589 = vmatpush.bf16.xpose.msra.mxu0 0
  %4590 = vmatpush.bf16.xpose.msra.mxu0 %v4581
  %4591 = vmatmul.bf16.gmra.mxu0 %v4578
  %v4592 = vpop.f32.mrf.mxu0
  %v4593 = vadd.f32 0.0, %v4592
  %v4594 = vpop.f32.mrf.mxu0
  %4595 = vdwg.mxu0
  %4596 = vst [vmem:[#allocation1] ss:$9 sm:$0xff] %v3810
  %s4597 = scalar_lea.vmem [#allocation1], 1
  %4598 = vst [vmem:[%s4597] ss:$9 sm:$0xff] %v3811
  %s4599 = scalar_lea.vmem [#allocation1], 2
  %4600 = vst [vmem:[%s4599] ss:$9 sm:$0xff] %v3760
  %v4601 = vld [vmem:[#allocation1] sm:$0xff]
  %4603 = vrot.lane.b32.xlu0 %v4601, 112
  %v4604 = vpop.permute.xlu0 %4603
  %4605 = vst [vmem:[#allocation1] ss:$9 sm:$0xff] %v3810
  %s4606 = scalar_lea.vmem [#allocation1], 1
  %4607 = vst [vmem:[%s4606] ss:$9 sm:$0xff] %v3811
  %s4608 = scalar_lea.vmem [#allocation1], 2
  %4609 = vst [vmem:[%s4608] ss:$9 sm:$0xff] %v3760
  %v4610 = vld [vmem:[#allocation1] sm:$0xff]
  %4612 = vrot.lane.b32.xlu0 %v4610, 80
  %v4613 = vpop.permute.xlu0 %4612
  %v4615 = vsel %vm904, %v4604, 0
  %v4618 = vsel %vm904, %v4613, 0
  %4620 = vmatpush.bf16.xpose.msra.mxu0 0
  %4621 = vmatpush.bf16.xpose.msra.mxu0 0
  %4622 = vmatpush.bf16.xpose.msra.mxu0 0
  %4623 = vmatpush.bf16.xpose.msra.mxu0 0
  %4624 = vmatpush.bf16.xpose.msra.mxu0 0
  %4625 = vmatpush.bf16.xpose.msra.mxu0 0
  %4626 = vmatpush.bf16.xpose.msra.mxu0 0
  %4627 = vmatpush.bf16.xpose.msra.mxu0 %v4618
  %4628 = vmatmul.bf16.gmra.mxu0 %v4615
  %v4629 = vpop.f32.mrf.mxu0
  %v4630 = vadd.f32 0.0, %v4629
  %v4631 = vpop.f32.mrf.mxu0
  %4632 = vdwg.mxu0
  %4633 = vst [vmem:[#allocation1] ss:$9 sm:$0xff] %v3849
  %s4634 = scalar_lea.vmem [#allocation1], 1
  %4635 = vst [vmem:[%s4634] ss:$9 sm:$0xff] %v3850
  %s4636 = scalar_lea.vmem [#allocation1], 2
  %4637 = vst [vmem:[%s4636] ss:$9 sm:$0xff] %v3765
  %v4638 = vld [vmem:[#allocation1] sm:$0xff]
  %4640 = vrot.lane.b32.xlu0 %v4638, 112
  %v4641 = vpop.permute.xlu0 %4640
  %4642 = vst [vmem:[#allocation1] ss:$9 sm:$0xff] %v3849
  %s4643 = scalar_lea.vmem [#allocation1], 1
  %4644 = vst [vmem:[%s4643] ss:$9 sm:$0xff] %v3850
  %s4645 = scalar_lea.vmem [#allocation1], 2
  %4646 = vst [vmem:[%s4645] ss:$9 sm:$0xff] %v3765
  %v4647 = vld [vmem:[#allocation1] sm:$0xff]
  %4649 = vrot.lane.b32.xlu0 %v4647, 80
  %v4650 = vpop.permute.xlu0 %4649
  %v4652 = vsel %vm904, %v4641, 0
  %v4655 = vsel %vm904, %v4650, 0
  %4657 = vmatpush.bf16.xpose.msra.mxu0 0
  %4658 = vmatpush.bf16.xpose.msra.mxu0 0
  %4659 = vmatpush.bf16.xpose.msra.mxu0 0
  %4660 = vmatpush.bf16.xpose.msra.mxu0 0
  %4661 = vmatpush.bf16.xpose.msra.mxu0 0
  %4662 = vmatpush.bf16.xpose.msra.mxu0 0
  %4663 = vmatpush.bf16.xpose.msra.mxu0 0
  %4664 = vmatpush.bf16.xpose.msra.mxu0 %v4655
  %4665 = vmatmul.bf16.gmra.mxu0 %v4652
  %v4666 = vpop.f32.mrf.mxu0
  %v4667 = vadd.f32 0.0, %v4666
  %v4668 = vpop.f32.mrf.mxu0
  %4669 = vdwg.mxu0
  %4670 = vst [vmem:[#allocation1] ss:$9 sm:$0xff] %v3888
  %s4671 = scalar_lea.vmem [#allocation1], 1
  %4672 = vst [vmem:[%s4671] ss:$9 sm:$0xff] %v3889
  %s4673 = scalar_lea.vmem [#allocation1], 2
  %4674 = vst [vmem:[%s4673] ss:$9 sm:$0xff] %v3770
  %v4675 = vld [vmem:[#allocation1] sm:$0xff]
  %4677 = vrot.lane.b32.xlu0 %v4675, 112
  %v4678 = vpop.permute.xlu0 %4677
  %4679 = vst [vmem:[#allocation1] ss:$9 sm:$0xff] %v3888
  %s4680 = scalar_lea.vmem [#allocation1], 1
  %4681 = vst [vmem:[%s4680] ss:$9 sm:$0xff] %v3889
  %s4682 = scalar_lea.vmem [#allocation1], 2
  %4683 = vst [vmem:[%s4682] ss:$9 sm:$0xff] %v3770
  %v4684 = vld [vmem:[#allocation1] sm:$0xff]
  %4686 = vrot.lane.b32.xlu0 %v4684, 80
  %v4687 = vpop.permute.xlu0 %4686
  %v4689 = vsel %vm904, %v4678, 0
  %v4692 = vsel %vm904, %v4687, 0
  %4694 = vmatpush.bf16.xpose.msra.mxu0 0
  %4695 = vmatpush.bf16.xpose.msra.mxu0 0
  %4696 = vmatpush.bf16.xpose.msra.mxu0 0
  %4697 = vmatpush.bf16.xpose.msra.mxu0 0
  %4698 = vmatpush.bf16.xpose.msra.mxu0 0
  %4699 = vmatpush.bf16.xpose.msra.mxu0 0
  %4700 = vmatpush.bf16.xpose.msra.mxu0 0
  %4701 = vmatpush.bf16.xpose.msra.mxu0 %v4692
  %4702 = vmatmul.bf16.gmra.mxu0 %v4689
  %v4703 = vpop.f32.mrf.mxu0
  %v4704 = vadd.f32 0.0, %v4703
  %v4705 = vpop.f32.mrf.mxu0
  %4706 = vdwg.mxu0
  %v4707 = vsel %vm1040, %v4593, -inf
  %4708 = vmax.xlane.f32.xlu0 %v4707
  %v4709 = vpop.xlane.xlu0 %4708
  %v4710 = vsel %vm1040, %v4630, -inf
  %4711 = vmax.xlane.f32.xlu0 %v4710
  %v4712 = vpop.xlane.xlu0 %4711
  %v4713 = vsel %vm1040, %v4667, -inf
  %4714 = vmax.xlane.f32.xlu0 %v4713
  %v4715 = vpop.xlane.xlu0 %4714
  %v4716 = vsel %vm1040, %v4704, -inf
  %4717 = vmax.xlane.f32.xlu0 %v4716
  %v4718 = vpop.xlane.xlu0 %4717
  %v4719 = vsub.f32 %v4593, %v4709
  %v4720 = vsub.f32 %v4630, %v4712
  %v4721 = vsub.f32 %v4667, %v4715
  %v4722 = vsub.f32 %v4704, %v4718
  %v4723 = vmul.f32 %v4719, 1.442695
  %v4724 = vpow.pop %v4723
  %v4725 = vmul.f32 %v4720, 1.442695
  %v4726 = vpow.pop %v4725
  %v4727 = vmul.f32 %v4721, 1.442695
  %v4728 = vpow.pop %v4727
  %v4729 = vmul.f32 %v4722, 1.442695
  %v4730 = vpow.pop %v4729
  %v4731 = vsel %vm1040, %v4724, 0.0
  %4732 = vadd.xlane.f32.xlu0 %v4731
  %v4733 = vpop.xlane.xlu0 %4732
  %v4734 = vsel %vm1040, %v4726, 0.0
  %4735 = vadd.xlane.f32.xlu0 %v4734
  %v4736 = vpop.xlane.xlu0 %4735
  %v4737 = vsel %vm1040, %v4728, 0.0
  %4738 = vadd.xlane.f32.xlu0 %v4737
  %v4739 = vpop.xlane.xlu0 %4738
  %v4740 = vsel %vm1040, %v4730, 0.0
  %4741 = vadd.xlane.f32.xlu0 %v4740
  %v4742 = vpop.xlane.xlu0 %4741
  %v4743 = vpack.c.bf16 %v4724, %v4724
  %v4744 = vpack.c.bf16 %v4726, %v4726
  %v4745 = vpack.c.bf16 %v4728, %v4728
  %v4746 = vpack.c.bf16 %v4730, %v4730
  %4747 = vst [vmem:[#allocation1] ss:$9 sm:$0xff] %v3771
  %s4748 = scalar_lea.vmem [#allocation1], 1
  %4749 = vst [vmem:[%s4748] ss:$9 sm:$0xff] %v3772
  %s4750 = scalar_lea.vmem [#allocation1], 2
  %4751 = vst [vmem:[%s4750] ss:$9 sm:$0xff] %v3755
  %v4752 = vld [vmem:[#allocation1] sm:$0xff]
  %4754 = vrot.lane.b32.xlu0 %v4752, 48
  %v4755 = vpop.permute.xlu0 %4754
  %v4757 = vsel %vm1090, %v4743, 0
  %v4760 = vand.u32 %v4755, %v1097
  %4762 = vmatpush.bf16.msra.mxu0 0
  %4763 = vmatpush.bf16.msra.mxu0 0
  %4764 = vmatpush.bf16.msra.mxu0 0
  %4765 = vmatpush.bf16.msra.mxu0 0
  %4766 = vmatpush.bf16.msra.mxu0 0
  %4767 = vmatpush.bf16.msra.mxu0 0
  %4768 = vmatpush.bf16.msra.mxu0 0
  %4769 = vmatpush.bf16.msra.mxu0 %v4760
  %4770 = vmatmul.bf16.gmra.mxu0 %v4757
  %v4771 = vpop.f32.mrf.mxu0
  %v4772 = vadd.f32 0.0, %v4771
  %v4773 = vpop.f32.mrf.mxu0
  %4774 = vdwg.mxu0
  %4775 = vst [vmem:[#allocation1] ss:$9 sm:$0xff] %v3810
  %s4776 = scalar_lea.vmem [#allocation1], 1
  %4777 = vst [vmem:[%s4776] ss:$9 sm:$0xff] %v3811
  %s4778 = scalar_lea.vmem [#allocation1], 2
  %4779 = vst [vmem:[%s4778] ss:$9 sm:$0xff] %v3760
  %v4780 = vld [vmem:[#allocation1] sm:$0xff]
  %4782 = vrot.lane.b32.xlu0 %v4780, 48
  %v4783 = vpop.permute.xlu0 %4782
  %v4785 = vsel %vm1090, %v4744, 0
  %v4788 = vand.u32 %v4783, %v1097
  %4790 = vmatpush.bf16.msra.mxu0 0
  %4791 = vmatpush.bf16.msra.mxu0 0
  %4792 = vmatpush.bf16.msra.mxu0 0
  %4793 = vmatpush.bf16.msra.mxu0 0
  %4794 = vmatpush.bf16.msra.mxu0 0
  %4795 = vmatpush.bf16.msra.mxu0 0
  %4796 = vmatpush.bf16.msra.mxu0 0
  %4797 = vmatpush.bf16.msra.mxu0 %v4788
  %4798 = vmatmul.bf16.gmra.mxu0 %v4785
  %v4799 = vpop.f32.mrf.mxu0
  %v4800 = vadd.f32 0.0, %v4799
  %v4801 = vpop.f32.mrf.mxu0
  %4802 = vdwg.mxu0
  %4803 = vst [vmem:[#allocation1] ss:$9 sm:$0xff] %v3849
  %s4804 = scalar_lea.vmem [#allocation1], 1
  %4805 = vst [vmem:[%s4804] ss:$9 sm:$0xff] %v3850
  %s4806 = scalar_lea.vmem [#allocation1], 2
  %4807 = vst [vmem:[%s4806] ss:$9 sm:$0xff] %v3765
  %v4808 = vld [vmem:[#allocation1] sm:$0xff]
  %4810 = vrot.lane.b32.xlu0 %v4808, 48
  %v4811 = vpop.permute.xlu0 %4810
  %v4813 = vsel %vm1090, %v4745, 0
  %v4816 = vand.u32 %v4811, %v1097
  %4818 = vmatpush.bf16.msra.mxu0 0
  %4819 = vmatpush.bf16.msra.mxu0 0
  %4820 = vmatpush.bf16.msra.mxu0 0
  %4821 = vmatpush.bf16.msra.mxu0 0
  %4822 = vmatpush.bf16.msra.mxu0 0
  %4823 = vmatpush.bf16.msra.mxu0 0
  %4824 = vmatpush.bf16.msra.mxu0 0
  %4825 = vmatpush.bf16.msra.mxu0 %v4816
  %4826 = vmatmul.bf16.gmra.mxu0 %v4813
  %v4827 = vpop.f32.mrf.mxu0
  %v4828 = vadd.f32 0.0, %v4827
  %v4829 = vpop.f32.mrf.mxu0
  %4830 = vdwg.mxu0
  %4831 = vst [vmem:[#allocation1] ss:$9 sm:$0xff] %v3888
  %s4832 = scalar_lea.vmem [#allocation1], 1
  %4833 = vst [vmem:[%s4832] ss:$9 sm:$0xff] %v3889
  %s4834 = scalar_lea.vmem [#allocation1], 2
  %4835 = vst [vmem:[%s4834] ss:$9 sm:$0xff] %v3770
  %v4836 = vld [vmem:[#allocation1] sm:$0xff]
  %4838 = vrot.lane.b32.xlu0 %v4836, 48
  %v4839 = vpop.permute.xlu0 %4838
  %v4841 = vsel %vm1090, %v4746, 0
  %v4844 = vand.u32 %v4839, %v1097
  %4846 = vmatpush.bf16.msra.mxu0 0
  %4847 = vmatpush.bf16.msra.mxu0 0
  %4848 = vmatpush.bf16.msra.mxu0 0
  %4849 = vmatpush.bf16.msra.mxu0 0
  %4850 = vmatpush.bf16.msra.mxu0 0
  %4851 = vmatpush.bf16.msra.mxu0 0
  %4852 = vmatpush.bf16.msra.mxu0 0
  %4853 = vmatpush.bf16.msra.mxu0 %v4844
  %4854 = vmatmul.bf16.gmra.mxu0 %v4841
  %v4855 = vpop.f32.mrf.mxu0
  %v4856 = vadd.f32 0.0, %v4855
  %v4857 = vpop.f32.mrf.mxu0
  %4858 = vdwg.mxu0
  %v4859 = vrcp.pop %v4733
  %v4860 = vrcp.pop %v4736
  %v4861 = vrcp.pop %v4739
  %v4862 = vrcp.pop %v4742
  %v4863 = vmul.f32 %v4772, %v4859
  %v4864 = vmul.f32 %v4800, %v4860
  %v4865 = vmul.f32 %v4828, %v4861
  %v4866 = vmul.f32 %v4856, %v4862
  %v4871 = vrot.slane %v4863, 1
  %v4872 = vrot.slane %v4863, 2
  %v4873 = vrot.slane %v4863, 3
  %v4874 = vrot.slane %v4863, 4
  %v4875 = vrot.slane %v4864, 1
  %v4876 = vrot.slane %v4864, 2
  %v4877 = vrot.slane %v4864, 3
  %v4878 = vrot.slane %v4864, 4
  %v4879 = vrot.slane %v4865, 1
  %v4880 = vrot.slane %v4865, 2
  %v4881 = vrot.slane %v4865, 3
  %v4882 = vrot.slane %v4865, 4
  %v4883 = vrot.slane %v4866, 1
  %v4884 = vrot.slane %v4866, 2
  %v4885 = vrot.slane %v4866, 3
  %v4886 = vrot.slane %v4866, 4
  %4887 = vst [vmem:[#allocation1] ss:$9 sm:$0xff] %v4863
  %s4888 = scalar_lea.vmem [#allocation1], 1
  %4889 = vst [vmem:[%s4888] ss:$9 sm:$0xff] %v4871
  %s4890 = scalar_lea.vmem [#allocation1], 2
  %4891 = vst [vmem:[%s4890] ss:$9 sm:$0xff] %v4872
  %s4892 = scalar_lea.vmem [#allocation1], 3
  %4893 = vst [vmem:[%s4892] ss:$9 sm:$0xff] %v4873
  %s4894 = scalar_lea.vmem [#allocation1], 4
  %4895 = vst [vmem:[%s4894] ss:$9 sm:$0xff] %v4874
  %s4896 = scalar_lea.vmem [#allocation1], 5
  %4897 = vst [vmem:[%s4896] ss:$9 sm:$0xff] %v4864
  %s4898 = scalar_lea.vmem [#allocation1], 6
  %4899 = vst [vmem:[%s4898] ss:$9 sm:$0xff] %v4875
  %s4900 = scalar_lea.vmem [#allocation1], 7
  %4901 = vst [vmem:[%s4900] ss:$9 sm:$0xff] %v4876
  %v4902 = vld [vmem:[#allocation1] sm:$0xff]
  %4903 = vst [vmem:[#allocation1] ss:$9 sm:$0xff] %v4877
  %4904 = vst [vmem:[%s4888] ss:$9 sm:$0xff] %v4878
  %4905 = vst [vmem:[%s4890] ss:$9 sm:$0xff] %v4865
  %4906 = vst [vmem:[%s4892] ss:$9 sm:$0xff] %v4879
  %4907 = vst [vmem:[%s4894] ss:$9 sm:$0xff] %v4880
  %4908 = vst [vmem:[%s4896] ss:$9 sm:$0xff] %v4881
  %4909 = vst [vmem:[%s4898] ss:$9 sm:$0xff] %v4882
  %4910 = vst [vmem:[%s4900] ss:$9 sm:$0xff] %v4866
  %v4911 = vld [vmem:[#allocation1] sm:$0xff]
  %4912 = vst [vmem:[#allocation1] ss:$9 sm:$0xff] %v4883
  %4913 = vst [vmem:[%s4888] ss:$9 sm:$0xff] %v4884
  %4914 = vst [vmem:[%s4890] ss:$9 sm:$0xff] %v4885
  %4915 = vst [vmem:[%s4892] ss:$9 sm:$0xff] %v4886
  %v4916 = vld [vmem:[#allocation1] sm:$0xff]
  %v4920 = vpack.c.bf16 %v4911, %v4902
  %v4921 = vpack.c.bf16 %v4916, %v4916
  %v4923 = vsel %vm904, %v4920, 0
  %v4926 = vsel %vm904, %v4921, 0
  %v4929 = vsel %vm1630, %v3710, 0
  %4931 = vmatpush.bf16.msra.mxu0 0
  %4932 = vmatpush.bf16.msra.mxu0 0
  %4933 = vmatpush.bf16.msra.mxu0 0
  %4934 = vmatpush.bf16.msra.mxu0 0
  %4935 = vmatpush.bf16.msra.mxu0 0
  %4936 = vmatpush.bf16.msra.mxu0 0
  %4937 = vmatpush.bf16.msra.mxu0 0
  %4938 = vmatpush.bf16.msra.mxu0 %v4929
  %4939 = vmatmul.bf16.gmra.mxu0 %v4923
  %v4940 = vpop.f32.mrf.mxu0
  %v4941 = vadd.f32 0.0, %v4940
  %v4942 = vpop.f32.mrf.mxu0
  %v4943 = vadd.f32 0.0, %v4942
  %4944 = vmatmul.bf16.gmra.mxu0 %v4926
  %v4945 = vpop.f32.mrf.mxu0
  %v4946 = vadd.f32 0.0, %v4945
  %v4947 = vpop.f32.mrf.mxu0
  %4948 = vdwg.mxu0
  %v4949 = vadd.f32 %v4551, %v4941
  %v4950 = vadd.f32 %v4553, %v4943
  %v4951 = vadd.f32 %v4556, %v4946
  %4952 = vst [vmem:[#allocation1] ss:$9 sm:$0xff] %v3771
  %s4953 = scalar_lea.vmem [#allocation1], 1
  %4954 = vst [vmem:[%s4953] ss:$9 sm:$0xff] %v3772
  %s4955 = scalar_lea.vmem [#allocation1], 2
  %4956 = vst [vmem:[%s4955] ss:$9 sm:$0xff] %v3755
  %v4957 = vld [vmem:[#allocation1] sm:$0xff]
  %4959 = vrot.lane.b32.xlu0 %v4957, 104
  %v4960 = vpop.permute.xlu0 %4959
  %4961 = vst [vmem:[#allocation1] ss:$9 sm:$0xff] %v3771
  %s4962 = scalar_lea.vmem [#allocation1], 1
  %4963 = vst [vmem:[%s4962] ss:$9 sm:$0xff] %v3772
  %s4964 = scalar_lea.vmem [#allocation1], 2
  %4965 = vst [vmem:[%s4964] ss:$9 sm:$0xff] %v3755
  %v4966 = vld [vmem:[#allocation1] sm:$0xff]
  %4968 = vrot.lane.b32.xlu0 %v4966, 72
  %v4969 = vpop.permute.xlu0 %4968
  %v4971 = vsel %vm904, %v4960, 0
  %v4974 = vsel %vm904, %v4969, 0
  %4976 = vmatpush.bf16.xpose.msra.mxu0 0
  %4977 = vmatpush.bf16.xpose.msra.mxu0 0
  %4978 = vmatpush.bf16.xpose.msra.mxu0 0
  %4979 = vmatpush.bf16.xpose.msra.mxu0 0
  %4980 = vmatpush.bf16.xpose.msra.mxu0 0
  %4981 = vmatpush.bf16.xpose.msra.mxu0 0
  %4982 = vmatpush.bf16.xpose.msra.mxu0 0
  %4983 = vmatpush.bf16.xpose.msra.mxu0 %v4974
  %4984 = vmatmul.bf16.gmra.mxu0 %v4971
  %v4985 = vpop.f32.mrf.mxu0
  %v4986 = vadd.f32 0.0, %v4985
  %v4987 = vpop.f32.mrf.mxu0
  %4988 = vdwg.mxu0
  %4989 = vst [vmem:[#allocation1] ss:$9 sm:$0xff] %v3810
  %s4990 = scalar_lea.vmem [#allocation1], 1
  %4991 = vst [vmem:[%s4990] ss:$9 sm:$0xff] %v3811
  %s4992 = scalar_lea.vmem [#allocation1], 2
  %4993 = vst [vmem:[%s4992] ss:$9 sm:$0xff] %v3760
  %v4994 = vld [vmem:[#allocation1] sm:$0xff]
  %4996 = vrot.lane.b32.xlu0 %v4994, 104
  %v4997 = vpop.permute.xlu0 %4996
  %4998 = vst [vmem:[#allocation1] ss:$9 sm:$0xff] %v3810
  %s4999 = scalar_lea.vmem [#allocation1], 1
  %5000 = vst [vmem:[%s4999] ss:$9 sm:$0xff] %v3811
  %s5001 = scalar_lea.vmem [#allocation1], 2
  %5002 = vst [vmem:[%s5001] ss:$9 sm:$0xff] %v3760
  %v5003 = vld [vmem:[#allocation1] sm:$0xff]
  %5005 = vrot.lane.b32.xlu0 %v5003, 72
  %v5006 = vpop.permute.xlu0 %5005
  %v5008 = vsel %vm904, %v4997, 0
  %v5011 = vsel %vm904, %v5006, 0
  %5013 = vmatpush.bf16.xpose.msra.mxu0 0
  %5014 = vmatpush.bf16.xpose.msra.mxu0 0
  %5015 = vmatpush.bf16.xpose.msra.mxu0 0
  %5016 = vmatpush.bf16.xpose.msra.mxu0 0
  %5017 = vmatpush.bf16.xpose.msra.mxu0 0
  %5018 = vmatpush.bf16.xpose.msra.mxu0 0
  %5019 = vmatpush.bf16.xpose.msra.mxu0 0
  %5020 = vmatpush.bf16.xpose.msra.mxu0 %v5011
  %5021 = vmatmul.bf16.gmra.mxu0 %v5008
  %v5022 = vpop.f32.mrf.mxu0
  %v5023 = vadd.f32 0.0, %v5022
  %v5024 = vpop.f32.mrf.mxu0
  %5025 = vdwg.mxu0
  %5026 = vst [vmem:[#allocation1] ss:$9 sm:$0xff] %v3849
  %s5027 = scalar_lea.vmem [#allocation1], 1
  %5028 = vst [vmem:[%s5027] ss:$9 sm:$0xff] %v3850
  %s5029 = scalar_lea.vmem [#allocation1], 2
  %5030 = vst [vmem:[%s5029] ss:$9 sm:$0xff] %v3765
  %v5031 = vld [vmem:[#allocation1] sm:$0xff]
  %5033 = vrot.lane.b32.xlu0 %v5031, 104
  %v5034 = vpop.permute.xlu0 %5033
  %5035 = vst [vmem:[#allocation1] ss:$9 sm:$0xff] %v3849
  %s5036 = scalar_lea.vmem [#allocation1], 1
  %5037 = vst [vmem:[%s5036] ss:$9 sm:$0xff] %v3850
  %s5038 = scalar_lea.vmem [#allocation1], 2
  %5039 = vst [vmem:[%s5038] ss:$9 sm:$0xff] %v3765
  %v5040 = vld [vmem:[#allocation1] sm:$0xff]
  %5042 = vrot.lane.b32.xlu0 %v5040, 72
  %v5043 = vpop.permute.xlu0 %5042
  %v5045 = vsel %vm904, %v5034, 0
  %v5048 = vsel %vm904, %v5043, 0
  %5050 = vmatpush.bf16.xpose.msra.mxu0 0
  %5051 = vmatpush.bf16.xpose.msra.mxu0 0
  %5052 = vmatpush.bf16.xpose.msra.mxu0 0
  %5053 = vmatpush.bf16.xpose.msra.mxu0 0
  %5054 = vmatpush.bf16.xpose.msra.mxu0 0
  %5055 = vmatpush.bf16.xpose.msra.mxu0 0
  %5056 = vmatpush.bf16.xpose.msra.mxu0 0
  %5057 = vmatpush.bf16.xpose.msra.mxu0 %v5048
  %5058 = vmatmul.bf16.gmra.mxu0 %v5045
  %v5059 = vpop.f32.mrf.mxu0
  %v5060 = vadd.f32 0.0, %v5059
  %v5061 = vpop.f32.mrf.mxu0
  %5062 = vdwg.mxu0
  %5063 = vst [vmem:[#allocation1] ss:$9 sm:$0xff] %v3888
  %s5064 = scalar_lea.vmem [#allocation1], 1
  %5065 = vst [vmem:[%s5064] ss:$9 sm:$0xff] %v3889
  %s5066 = scalar_lea.vmem [#allocation1], 2
  %5067 = vst [vmem:[%s5066] ss:$9 sm:$0xff] %v3770
  %v5068 = vld [vmem:[#allocation1] sm:$0xff]
  %5070 = vrot.lane.b32.xlu0 %v5068, 104
  %v5071 = vpop.permute.xlu0 %5070
  %5072 = vst [vmem:[#allocation1] ss:$9 sm:$0xff] %v3888
  %s5073 = scalar_lea.vmem [#allocation1], 1
  %5074 = vst [vmem:[%s5073] ss:$9 sm:$0xff] %v3889
  %s5075 = scalar_lea.vmem [#allocation1], 2
  %5076 = vst [vmem:[%s5075] ss:$9 sm:$0xff] %v3770
  %v5077 = vld [vmem:[#allocation1] sm:$0xff]
  %5079 = vrot.lane.b32.xlu0 %v5077, 72
  %v5080 = vpop.permute.xlu0 %5079
  %v5082 = vsel %vm904, %v5071, 0
  %v5085 = vsel %vm904, %v5080, 0
  %5087 = vmatpush.bf16.xpose.msra.mxu0 0
  %5088 = vmatpush.bf16.xpose.msra.mxu0 0
  %5089 = vmatpush.bf16.xpose.msra.mxu0 0
  %5090 = vmatpush.bf16.xpose.msra.mxu0 0
  %5091 = vmatpush.bf16.xpose.msra.mxu0 0
  %5092 = vmatpush.bf16.xpose.msra.mxu0 0
  %5093 = vmatpush.bf16.xpose.msra.mxu0 0
  %5094 = vmatpush.bf16.xpose.msra.mxu0 %v5085
  %5095 = vmatmul.bf16.gmra.mxu0 %v5082
  %v5096 = vpop.f32.mrf.mxu0
  %v5097 = vadd.f32 0.0, %v5096
  %v5098 = vpop.f32.mrf.mxu0
  %5099 = vdwg.mxu0
  %v5100 = vsel %vm1040, %v4986, -inf
  %5101 = vmax.xlane.f32.xlu0 %v5100
  %v5102 = vpop.xlane.xlu0 %5101
  %v5103 = vsel %vm1040, %v5023, -inf
  %5104 = vmax.xlane.f32.xlu0 %v5103
  %v5105 = vpop.xlane.xlu0 %5104
  %v5106 = vsel %vm1040, %v5060, -inf
  %5107 = vmax.xlane.f32.xlu0 %v5106
  %v5108 = vpop.xlane.xlu0 %5107
  %v5109 = vsel %vm1040, %v5097, -inf
  %5110 = vmax.xlane.f32.xlu0 %v5109
  %v5111 = vpop.xlane.xlu0 %5110
  %v5112 = vsub.f32 %v4986, %v5102
  %v5113 = vsub.f32 %v5023, %v5105
  %v5114 = vsub.f32 %v5060, %v5108
  %v5115 = vsub.f32 %v5097, %v5111
  %v5116 = vmul.f32 %v5112, 1.442695
  %v5117 = vpow.pop %v5116
  %v5118 = vmul.f32 %v5113, 1.442695
  %v5119 = vpow.pop %v5118
  %v5120 = vmul.f32 %v5114, 1.442695
  %v5121 = vpow.pop %v5120
  %v5122 = vmul.f32 %v5115, 1.442695
  %v5123 = vpow.pop %v5122
  %v5124 = vsel %vm1040, %v5117, 0.0
  %5125 = vadd.xlane.f32.xlu0 %v5124
  %v5126 = vpop.xlane.xlu0 %5125
  %v5127 = vsel %vm1040, %v5119, 0.0
  %5128 = vadd.xlane.f32.xlu0 %v5127
  %v5129 = vpop.xlane.xlu0 %5128
  %v5130 = vsel %vm1040, %v5121, 0.0
  %5131 = vadd.xlane.f32.xlu0 %v5130
  %v5132 = vpop.xlane.xlu0 %5131
  %v5133 = vsel %vm1040, %v5123, 0.0
  %5134 = vadd.xlane.f32.xlu0 %v5133
  %v5135 = vpop.xlane.xlu0 %5134
  %v5136 = vpack.c.bf16 %v5117, %v5117
  %v5137 = vpack.c.bf16 %v5119, %v5119
  %v5138 = vpack.c.bf16 %v5121, %v5121
  %v5139 = vpack.c.bf16 %v5123, %v5123
  %5140 = vst [vmem:[#allocation1] ss:$9 sm:$0xff] %v3771
  %s5141 = scalar_lea.vmem [#allocation1], 1
  %5142 = vst [vmem:[%s5141] ss:$9 sm:$0xff] %v3772
  %s5143 = scalar_lea.vmem [#allocation1], 2
  %5144 = vst [vmem:[%s5143] ss:$9 sm:$0xff] %v3755
  %v5145 = vld [vmem:[#allocation1] sm:$0xff]
  %5147 = vrot.lane.b32.xlu0 %v5145, 40
  %v5148 = vpop.permute.xlu0 %5147
  %v5150 = vsel %vm1090, %v5136, 0
  %v5153 = vand.u32 %v5148, %v1097
  %5155 = vmatpush.bf16.msra.mxu0 0
  %5156 = vmatpush.bf16.msra.mxu0 0
  %5157 = vmatpush.bf16.msra.mxu0 0
  %5158 = vmatpush.bf16.msra.mxu0 0
  %5159 = vmatpush.bf16.msra.mxu0 0
  %5160 = vmatpush.bf16.msra.mxu0 0
  %5161 = vmatpush.bf16.msra.mxu0 0
  %5162 = vmatpush.bf16.msra.mxu0 %v5153
  %5163 = vmatmul.bf16.gmra.mxu0 %v5150
  %v5164 = vpop.f32.mrf.mxu0
  %v5165 = vadd.f32 0.0, %v5164
  %v5166 = vpop.f32.mrf.mxu0
  %5167 = vdwg.mxu0
  %5168 = vst [vmem:[#allocation1] ss:$9 sm:$0xff] %v3810
  %s5169 = scalar_lea.vmem [#allocation1], 1
  %5170 = vst [vmem:[%s5169] ss:$9 sm:$0xff] %v3811
  %s5171 = scalar_lea.vmem [#allocation1], 2
  %5172 = vst [vmem:[%s5171] ss:$9 sm:$0xff] %v3760
  %v5173 = vld [vmem:[#allocation1] sm:$0xff]
  %5175 = vrot.lane.b32.xlu0 %v5173, 40
  %v5176 = vpop.permute.xlu0 %5175
  %v5178 = vsel %vm1090, %v5137, 0
  %v5181 = vand.u32 %v5176, %v1097
  %5183 = vmatpush.bf16.msra.mxu0 0
  %5184 = vmatpush.bf16.msra.mxu0 0
  %5185 = vmatpush.bf16.msra.mxu0 0
  %5186 = vmatpush.bf16.msra.mxu0 0
  %5187 = vmatpush.bf16.msra.mxu0 0
  %5188 = vmatpush.bf16.msra.mxu0 0
  %5189 = vmatpush.bf16.msra.mxu0 0
  %5190 = vmatpush.bf16.msra.mxu0 %v5181
  %5191 = vmatmul.bf16.gmra.mxu0 %v5178
  %v5192 = vpop.f32.mrf.mxu0
  %v5193 = vadd.f32 0.0, %v5192
  %v5194 = vpop.f32.mrf.mxu0
  %5195 = vdwg.mxu0
  %5196 = vst [vmem:[#allocation1] ss:$9 sm:$0xff] %v3849
  %s5197 = scalar_lea.vmem [#allocation1], 1
  %5198 = vst [vmem:[%s5197] ss:$9 sm:$0xff] %v3850
  %s5199 = scalar_lea.vmem [#allocation1], 2
  %5200 = vst [vmem:[%s5199] ss:$9 sm:$0xff] %v3765
  %v5201 = vld [vmem:[#allocation1] sm:$0xff]
  %5203 = vrot.lane.b32.xlu0 %v5201, 40
  %v5204 = vpop.permute.xlu0 %5203
  %v5206 = vsel %vm1090, %v5138, 0
  %v5209 = vand.u32 %v5204, %v1097
  %5211 = vmatpush.bf16.msra.mxu0 0
  %5212 = vmatpush.bf16.msra.mxu0 0
  %5213 = vmatpush.bf16.msra.mxu0 0
  %5214 = vmatpush.bf16.msra.mxu0 0
  %5215 = vmatpush.bf16.msra.mxu0 0
  %5216 = vmatpush.bf16.msra.mxu0 0
  %5217 = vmatpush.bf16.msra.mxu0 0
  %5218 = vmatpush.bf16.msra.mxu0 %v5209
  %5219 = vmatmul.bf16.gmra.mxu0 %v5206
  %v5220 = vpop.f32.mrf.mxu0
  %v5221 = vadd.f32 0.0, %v5220
  %v5222 = vpop.f32.mrf.mxu0
  %5223 = vdwg.mxu0
  %5224 = vst [vmem:[#allocation1] ss:$9 sm:$0xff] %v3888
  %s5225 = scalar_lea.vmem [#allocation1], 1
  %5226 = vst [vmem:[%s5225] ss:$9 sm:$0xff] %v3889
  %s5227 = scalar_lea.vmem [#allocation1], 2
  %5228 = vst [vmem:[%s5227] ss:$9 sm:$0xff] %v3770
  %v5229 = vld [vmem:[#allocation1] sm:$0xff]
  %5231 = vrot.lane.b32.xlu0 %v5229, 40
  %v5232 = vpop.permute.xlu0 %5231
  %v5234 = vsel %vm1090, %v5139, 0
  %v5237 = vand.u32 %v5232, %v1097
  %5239 = vmatpush.bf16.msra.mxu0 0
  %5240 = vmatpush.bf16.msra.mxu0 0
  %5241 = vmatpush.bf16.msra.mxu0 0
  %5242 = vmatpush.bf16.msra.mxu0 0
  %5243 = vmatpush.bf16.msra.mxu0 0
  %5244 = vmatpush.bf16.msra.mxu0 0
  %5245 = vmatpush.bf16.msra.mxu0 0
  %5246 = vmatpush.bf16.msra.mxu0 %v5237
  %5247 = vmatmul.bf16.gmra.mxu0 %v5234
  %v5248 = vpop.f32.mrf.mxu0
  %v5249 = vadd.f32 0.0, %v5248
  %v5250 = vpop.f32.mrf.mxu0
  %5251 = vdwg.mxu0
  %v5252 = vrcp.pop %v5126
  %v5253 = vrcp.pop %v5129
  %v5254 = vrcp.pop %v5132
  %v5255 = vrcp.pop %v5135
  %v5256 = vmul.f32 %v5165, %v5252
  %v5257 = vmul.f32 %v5193, %v5253
  %v5258 = vmul.f32 %v5221, %v5254
  %v5259 = vmul.f32 %v5249, %v5255
  %v5264 = vrot.slane %v5256, 1
  %v5265 = vrot.slane %v5256, 2
  %v5266 = vrot.slane %v5256, 3
  %v5267 = vrot.slane %v5256, 4
  %v5268 = vrot.slane %v5257, 1
  %v5269 = vrot.slane %v5257, 2
  %v5270 = vrot.slane %v5257, 3
  %v5271 = vrot.slane %v5257, 4
  %v5272 = vrot.slane %v5258, 1
  %v5273 = vrot.slane %v5258, 2
  %v5274 = vrot.slane %v5258, 3
  %v5275 = vrot.slane %v5258, 4
  %v5276 = vrot.slane %v5259, 1
  %v5277 = vrot.slane %v5259, 2
  %v5278 = vrot.slane %v5259, 3
  %v5279 = vrot.slane %v5259, 4
  %5280 = vst [vmem:[#allocation1] ss:$9 sm:$0xff] %v5256
  %s5281 = scalar_lea.vmem [#allocation1], 1
  %5282 = vst [vmem:[%s5281] ss:$9 sm:$0xff] %v5264
  %s5283 = scalar_lea.vmem [#allocation1], 2
  %5284 = vst [vmem:[%s5283] ss:$9 sm:$0xff] %v5265
  %s5285 = scalar_lea.vmem [#allocation1], 3
  %5286 = vst [vmem:[%s5285] ss:$9 sm:$0xff] %v5266
  %s5287 = scalar_lea.vmem [#allocation1], 4
  %5288 = vst [vmem:[%s5287] ss:$9 sm:$0xff] %v5267
  %s5289 = scalar_lea.vmem [#allocation1], 5
  %5290 = vst [vmem:[%s5289] ss:$9 sm:$0xff] %v5257
  %s5291 = scalar_lea.vmem [#allocation1], 6
  %5292 = vst [vmem:[%s5291] ss:$9 sm:$0xff] %v5268
  %s5293 = scalar_lea.vmem [#allocation1], 7
  %5294 = vst [vmem:[%s5293] ss:$9 sm:$0xff] %v5269
  %v5295 = vld [vmem:[#allocation1] sm:$0xff]
  %5296 = vst [vmem:[#allocation1] ss:$9 sm:$0xff] %v5270
  %5297 = vst [vmem:[%s5281] ss:$9 sm:$0xff] %v5271
  %5298 = vst [vmem:[%s5283] ss:$9 sm:$0xff] %v5258
  %5299 = vst [vmem:[%s5285] ss:$9 sm:$0xff] %v5272
  %5300 = vst [vmem:[%s5287] ss:$9 sm:$0xff] %v5273
  %5301 = vst [vmem:[%s5289] ss:$9 sm:$0xff] %v5274
  %5302 = vst [vmem:[%s5291] ss:$9 sm:$0xff] %v5275
  %5303 = vst [vmem:[%s5293] ss:$9 sm:$0xff] %v5259
  %v5304 = vld [vmem:[#allocation1] sm:$0xff]
  %5305 = vst [vmem:[#allocation1] ss:$9 sm:$0xff] %v5276
  %5306 = vst [vmem:[%s5281] ss:$9 sm:$0xff] %v5277
  %5307 = vst [vmem:[%s5283] ss:$9 sm:$0xff] %v5278
  %5308 = vst [vmem:[%s5285] ss:$9 sm:$0xff] %v5279
  %v5309 = vld [vmem:[#allocation1] sm:$0xff]
  %v5313 = vpack.c.bf16 %v5304, %v5295
  %v5314 = vpack.c.bf16 %v5309, %v5309
  %v5316 = vsel %vm904, %v5313, 0
  %v5319 = vsel %vm904, %v5314, 0
  %v5322 = vsel %vm1630, %v3711, 0
  %5324 = vmatpush.bf16.msra.mxu0 0
  %5325 = vmatpush.bf16.msra.mxu0 0
  %5326 = vmatpush.bf16.msra.mxu0 0
  %5327 = vmatpush.bf16.msra.mxu0 0
  %5328 = vmatpush.bf16.msra.mxu0 0
  %5329 = vmatpush.bf16.msra.mxu0 0
  %5330 = vmatpush.bf16.msra.mxu0 0
  %5331 = vmatpush.bf16.msra.mxu0 %v5322
  %5332 = vmatmul.bf16.gmra.mxu0 %v5316
  %v5333 = vpop.f32.mrf.mxu0
  %v5334 = vadd.f32 0.0, %v5333
  %v5335 = vpop.f32.mrf.mxu0
  %v5336 = vadd.f32 0.0, %v5335
  %5337 = vmatmul.bf16.gmra.mxu0 %v5319
  %v5338 = vpop.f32.mrf.mxu0
  %v5339 = vadd.f32 0.0, %v5338
  %v5340 = vpop.f32.mrf.mxu0
  %5341 = vdwg.mxu0
  %v5342 = vadd.f32 %v4949, %v5334
  %v5343 = vadd.f32 %v4950, %v5336
  %v5344 = vadd.f32 %v4951, %v5339
  %v5348 = vrot.slane %v5342, 1
  %v5349 = vrot.slane %v5342, 2
  %v5350 = vrot.slane %v5342, 3
  %v5351 = vrot.slane %v5342, 4
  %v5352 = vrot.slane %v5342, 5
  %v5353 = vrot.slane %v5342, 6
  %v5354 = vrot.slane %v5342, 7
  %v5355 = vrot.slane %v5343, 1
  %v5356 = vrot.slane %v5343, 2
  %v5357 = vrot.slane %v5343, 3
  %v5358 = vrot.slane %v5343, 4
  %v5359 = vrot.slane %v5343, 5
  %v5360 = vrot.slane %v5343, 6
  %v5361 = vrot.slane %v5343, 7
  %v5362 = vrot.slane %v5344, 1
  %v5363 = vrot.slane %v5344, 2
  %v5364 = vrot.slane %v5344, 3
  %v5382 = vadd.f32 %v3196, %v5342
  %v5383 = vadd.f32 %v3197, %v5348
  %v5384 = vadd.f32 %v3198, %v5349
  %v5385 = vadd.f32 %v3199, %v5350
  %v5386 = vadd.f32 %v3200, %v5351
  %v5387 = vadd.f32 %v3201, %v5352
  %v5388 = vadd.f32 %v3202, %v5353
  %v5389 = vadd.f32 %v3203, %v5354
  %v5390 = vadd.f32 %v3204, %v5343
  %v5391 = vadd.f32 %v3205, %v5355
  %v5392 = vadd.f32 %v3206, %v5356
  %v5393 = vadd.f32 %v3207, %v5357
  %v5394 = vadd.f32 %v3208, %v5358
  %v5395 = vadd.f32 %v3209, %v5359
  %v5396 = vadd.f32 %v3210, %v5360
  %v5397 = vadd.f32 %v3211, %v5361
  %v5398 = vadd.f32 %v3212, %v5344
  %v5399 = vadd.f32 %v3213, %v5362
  %v5400 = vadd.f32 %v3214, %v5363
  %v5401 = vadd.f32 %v3215, %v5364
  %s5402 = scalar_lea.vmem %s10, 1
  %v5403 = vld [vmem:[%s5402] sm:$0x1]
  %v5405 = vperm.slane %v5403, 0
  %v5407 = vrot.slane %v5405, 1
  %v5408 = vrot.slane %v5405, 2
  %v5409 = vrot.slane %v5405, 3
  %v5410 = vrot.slane %v5405, 4
  %v5411 = vrot.slane %v5405, 5
  %v5412 = vrot.slane %v5405, 6
  %v5413 = vrot.slane %v5405, 7
  %v5421 = vadd.f32 %v5382, %v5405
  %v5422 = vadd.f32 %v5383, %v5407
  %v5423 = vadd.f32 %v5384, %v5408
  %v5424 = vadd.f32 %v5385, %v5409
  %v5425 = vadd.f32 %v5386, %v5410
  %v5426 = vadd.f32 %v5387, %v5411
  %v5427 = vadd.f32 %v5388, %v5412
  %v5428 = vadd.f32 %v5389, %v5413
  %v5429 = vadd.f32 %v5390, %v5405
  %v5430 = vadd.f32 %v5391, %v5407
  %v5431 = vadd.f32 %v5392, %v5408
  %v5432 = vadd.f32 %v5393, %v5409
  %v5433 = vadd.f32 %v5394, %v5410
  %v5434 = vadd.f32 %v5395, %v5411
  %v5435 = vadd.f32 %v5396, %v5412
  %v5436 = vadd.f32 %v5397, %v5413
  %v5437 = vadd.f32 %v5398, %v5405
  %v5438 = vadd.f32 %v5399, %v5407
  %v5439 = vadd.f32 %v5400, %v5408
  %v5440 = vadd.f32 %v5401, %v5409
  %s5441 = scalar_lea.vmem %s11, 1
  %v5442 = vld [vmem:[%s5441] sm:$0x1]
  %s5443 = scalar_lea.vmem %s12, 1
  %v5444 = vld [vmem:[%s5443] sm:$0x1]
  %5465 = vst [vmem:[#allocation1] ss:$9 sm:$0xff] %v5421
  %s5466 = scalar_lea.vmem [#allocation1], 1
  %5467 = vst [vmem:[%s5466] ss:$9 sm:$0xff] %v5422
  %s5468 = scalar_lea.vmem [#allocation1], 2
  %5469 = vst [vmem:[%s5468] ss:$9 sm:$0xff] %v5423
  %s5470 = scalar_lea.vmem [#allocation1], 3
  %5471 = vst [vmem:[%s5470] ss:$9 sm:$0xff] %v5424
  %s5472 = scalar_lea.vmem [#allocation1], 4
  %5473 = vst [vmem:[%s5472] ss:$9 sm:$0xff] %v5425
  %s5474 = scalar_lea.vmem [#allocation1], 5
  %5475 = vst [vmem:[%s5474] ss:$9 sm:$0xff] %v5426
  %s5476 = scalar_lea.vmem [#allocation1], 6
  %5477 = vst [vmem:[%s5476] ss:$9 sm:$0xff] %v5427
  %s5478 = scalar_lea.vmem [#allocation1], 7
  %5479 = vst [vmem:[%s5478] ss:$9 sm:$0xff] %v5428
  %v5480 = vld [vmem:[#allocation1] sm:$0xff]
  %5481 = vst [vmem:[#allocation1] ss:$9 sm:$0xff] %v5429
  %5482 = vst [vmem:[%s5466] ss:$9 sm:$0xff] %v5430
  %5483 = vst [vmem:[%s5468] ss:$9 sm:$0xff] %v5431
  %5484 = vst [vmem:[%s5470] ss:$9 sm:$0xff] %v5432
  %5485 = vst [vmem:[%s5472] ss:$9 sm:$0xff] %v5433
  %5486 = vst [vmem:[%s5474] ss:$9 sm:$0xff] %v5434
  %5487 = vst [vmem:[%s5476] ss:$9 sm:$0xff] %v5435
  %5488 = vst [vmem:[%s5478] ss:$9 sm:$0xff] %v5436
  %v5489 = vld [vmem:[#allocation1] sm:$0xff]
  %5490 = vst [vmem:[#allocation1] ss:$9 sm:$0xff] %v5437
  %5491 = vst [vmem:[%s5466] ss:$9 sm:$0xff] %v5438
  %5492 = vst [vmem:[%s5468] ss:$9 sm:$0xff] %v5439
  %5493 = vst [vmem:[%s5470] ss:$9 sm:$0xff] %v5440
  %v5494 = vld [vmem:[#allocation1] sm:$0xff]
  %v5498 = vsel %vm375, %v5480, 0.0
  %5499 = vadd.xlane.f32.xlu0 %v5498
  %v5500 = vpop.xlane.xlu0 %5499
  %v5501 = vsel %vm375, %v5489, 0.0
  %5502 = vadd.xlane.f32.xlu0 %v5501
  %v5503 = vpop.xlane.xlu0 %5502
  %v5504 = vsel %vm382, %v5494, 0.0
  %5505 = vadd.xlane.f32.xlu0 %v5504
  %v5506 = vpop.xlane.xlu0 %5505
  %v5507 = vmul.f32 %v5500, %v392
  %v5508 = vmul.f32 %v5503, %v392
  %v5509 = vmul.f32 %v5506, %v392
  %v5513 = vperm.slane %v5507, 0
  %v5514 = vperm.slane %v5507, 1
  %v5515 = vperm.slane %v5507, 2
  %v5516 = vperm.slane %v5507, 3
  %v5517 = vperm.slane %v5507, 4
  %v5518 = vperm.slane %v5507, 5
  %v5519 = vperm.slane %v5507, 6
  %v5520 = vperm.slane %v5507, 7
  %v5521 = vperm.slane %v5508, 0
  %v5522 = vperm.slane %v5508, 1
  %v5523 = vperm.slane %v5508, 2
  %v5524 = vperm.slane %v5508, 3
  %v5525 = vperm.slane %v5508, 4
  %v5526 = vperm.slane %v5508, 5
  %v5527 = vperm.slane %v5508, 6
  %v5528 = vperm.slane %v5508, 7
  %v5529 = vperm.slane %v5509, 0
  %v5530 = vperm.slane %v5509, 1
  %v5531 = vperm.slane %v5509, 2
  %v5532 = vperm.slane %v5509, 3
  %v5553 = vsub.f32 %v5421, %v5513
  %v5554 = vsub.f32 %v5422, %v5514
  %v5555 = vsub.f32 %v5423, %v5515
  %v5556 = vsub.f32 %v5424, %v5516
  %v5557 = vsub.f32 %v5425, %v5517
  %v5558 = vsub.f32 %v5426, %v5518
  %v5559 = vsub.f32 %v5427, %v5519
  %v5560 = vsub.f32 %v5428, %v5520
  %v5561 = vsub.f32 %v5429, %v5521
  %v5562 = vsub.f32 %v5430, %v5522
  %v5563 = vsub.f32 %v5431, %v5523
  %v5564 = vsub.f32 %v5432, %v5524
  %v5565 = vsub.f32 %v5433, %v5525
  %v5566 = vsub.f32 %v5434, %v5526
  %v5567 = vsub.f32 %v5435, %v5527
  %v5568 = vsub.f32 %v5436, %v5528
  %v5569 = vsub.f32 %v5437, %v5529
  %v5570 = vsub.f32 %v5438, %v5530
  %v5571 = vsub.f32 %v5439, %v5531
  %v5572 = vsub.f32 %v5440, %v5532
  %v5573 = vmul.f32 %v5553, %v5553
  %v5574 = vmul.f32 %v5554, %v5554
  %v5575 = vmul.f32 %v5555, %v5555
  %v5576 = vmul.f32 %v5556, %v5556
  %v5577 = vmul.f32 %v5557, %v5557
  %v5578 = vmul.f32 %v5558, %v5558
  %v5579 = vmul.f32 %v5559, %v5559
  %v5580 = vmul.f32 %v5560, %v5560
  %v5581 = vmul.f32 %v5561, %v5561
  %v5582 = vmul.f32 %v5562, %v5562
  %v5583 = vmul.f32 %v5563, %v5563
  %v5584 = vmul.f32 %v5564, %v5564
  %v5585 = vmul.f32 %v5565, %v5565
  %v5586 = vmul.f32 %v5566, %v5566
  %v5587 = vmul.f32 %v5567, %v5567
  %v5588 = vmul.f32 %v5568, %v5568
  %v5589 = vmul.f32 %v5569, %v5569
  %v5590 = vmul.f32 %v5570, %v5570
  %v5591 = vmul.f32 %v5571, %v5571
  %v5592 = vmul.f32 %v5572, %v5572
  %5613 = vst [vmem:[#allocation1] ss:$9 sm:$0xff] %v5573
  %s5614 = scalar_lea.vmem [#allocation1], 1
  %5615 = vst [vmem:[%s5614] ss:$9 sm:$0xff] %v5574
  %s5616 = scalar_lea.vmem [#allocation1], 2
  %5617 = vst [vmem:[%s5616] ss:$9 sm:$0xff] %v5575
  %s5618 = scalar_lea.vmem [#allocation1], 3
  %5619 = vst [vmem:[%s5618] ss:$9 sm:$0xff] %v5576
  %s5620 = scalar_lea.vmem [#allocation1], 4
  %5621 = vst [vmem:[%s5620] ss:$9 sm:$0xff] %v5577
  %s5622 = scalar_lea.vmem [#allocation1], 5
  %5623 = vst [vmem:[%s5622] ss:$9 sm:$0xff] %v5578
  %s5624 = scalar_lea.vmem [#allocation1], 6
  %5625 = vst [vmem:[%s5624] ss:$9 sm:$0xff] %v5579
  %s5626 = scalar_lea.vmem [#allocation1], 7
  %5627 = vst [vmem:[%s5626] ss:$9 sm:$0xff] %v5580
  %v5628 = vld [vmem:[#allocation1] sm:$0xff]
  %5629 = vst [vmem:[#allocation1] ss:$9 sm:$0xff] %v5581
  %5630 = vst [vmem:[%s5614] ss:$9 sm:$0xff] %v5582
  %5631 = vst [vmem:[%s5616] ss:$9 sm:$0xff] %v5583
  %5632 = vst [vmem:[%s5618] ss:$9 sm:$0xff] %v5584
  %5633 = vst [vmem:[%s5620] ss:$9 sm:$0xff] %v5585
  %5634 = vst [vmem:[%s5622] ss:$9 sm:$0xff] %v5586
  %5635 = vst [vmem:[%s5624] ss:$9 sm:$0xff] %v5587
  %5636 = vst [vmem:[%s5626] ss:$9 sm:$0xff] %v5588
  %v5637 = vld [vmem:[#allocation1] sm:$0xff]
  %5638 = vst [vmem:[#allocation1] ss:$9 sm:$0xff] %v5589
  %5639 = vst [vmem:[%s5614] ss:$9 sm:$0xff] %v5590
  %5640 = vst [vmem:[%s5616] ss:$9 sm:$0xff] %v5591
  %5641 = vst [vmem:[%s5618] ss:$9 sm:$0xff] %v5592
  %v5642 = vld [vmem:[#allocation1] sm:$0xff]
  %v5646 = vsel %vm375, %v5628, 0.0
  %5647 = vadd.xlane.f32.xlu0 %v5646
  %v5648 = vpop.xlane.xlu0 %5647
  %v5649 = vsel %vm375, %v5637, 0.0
  %5650 = vadd.xlane.f32.xlu0 %v5649
  %v5651 = vpop.xlane.xlu0 %5650
  %v5652 = vsel %vm382, %v5642, 0.0
  %5653 = vadd.xlane.f32.xlu0 %v5652
  %v5654 = vpop.xlane.xlu0 %5653
  %v5655 = vmul.f32 %v5648, %v392
  %v5656 = vmul.f32 %v5651, %v392
  %v5657 = vmul.f32 %v5654, %v392
  %v5658 = vadd.f32 %v5655, 1e-12
  %v5659 = vadd.f32 %v5656, 1e-12
  %v5660 = vadd.f32 %v5657, 1e-12
  %v5661 = vrsqrt.pop %v5658
  %v5662 = vmul.f32 %v5661, %v5658
  %v5663 = vmul.f32 %v5662, %v5661
  %v5664 = vmul.f32 0.5, %v5663
  %v5665 = vsub.f32 1.5, %v5664
  %v5666 = vmul.f32 %v5661, %v5665
  %vm5667 = vweird.f32 %v5658
  %vm5668 = vweird.f32 %v5661
  %vm5669 = vmor %vm5667, %vm5668
  %v5670 = vsel %vm5669, %v5661, %v5666
  %v5671 = vrsqrt.pop %v5659
  %v5672 = vmul.f32 %v5671, %v5659
  %v5673 = vmul.f32 %v5672, %v5671
  %v5674 = vmul.f32 0.5, %v5673
  %v5675 = vsub.f32 1.5, %v5674
  %v5676 = vmul.f32 %v5671, %v5675
  %vm5677 = vweird.f32 %v5659
  %vm5678 = vweird.f32 %v5671
  %vm5679 = vmor %vm5677, %vm5678
  %v5680 = vsel %vm5679, %v5671, %v5676
  %v5681 = vrsqrt.pop %v5660
  %v5682 = vmul.f32 %v5681, %v5660
  %v5683 = vmul.f32 %v5682, %v5681
  %v5684 = vmul.f32 0.5, %v5683
  %v5685 = vsub.f32 1.5, %v5684
  %v5686 = vmul.f32 %v5681, %v5685
  %vm5687 = vweird.f32 %v5660
  %vm5688 = vweird.f32 %v5681
  %vm5689 = vmor %vm5687, %vm5688
  %v5690 = vsel %vm5689, %v5681, %v5686
  %v5694 = vperm.slane %v5670, 0
  %v5695 = vperm.slane %v5670, 1
  %v5696 = vperm.slane %v5670, 2
  %v5697 = vperm.slane %v5670, 3
  %v5698 = vperm.slane %v5670, 4
  %v5699 = vperm.slane %v5670, 5
  %v5700 = vperm.slane %v5670, 6
  %v5701 = vperm.slane %v5670, 7
  %v5702 = vperm.slane %v5680, 0
  %v5703 = vperm.slane %v5680, 1
  %v5704 = vperm.slane %v5680, 2
  %v5705 = vperm.slane %v5680, 3
  %v5706 = vperm.slane %v5680, 4
  %v5707 = vperm.slane %v5680, 5
  %v5708 = vperm.slane %v5680, 6
  %v5709 = vperm.slane %v5680, 7
  %v5710 = vperm.slane %v5690, 0
  %v5711 = vperm.slane %v5690, 1
  %v5712 = vperm.slane %v5690, 2
  %v5713 = vperm.slane %v5690, 3
  %v5734 = vmul.f32 %v5553, %v5694
  %v5735 = vmul.f32 %v5554, %v5695
  %v5736 = vmul.f32 %v5555, %v5696
  %v5737 = vmul.f32 %v5556, %v5697
  %v5738 = vmul.f32 %v5557, %v5698
  %v5739 = vmul.f32 %v5558, %v5699
  %v5740 = vmul.f32 %v5559, %v5700
  %v5741 = vmul.f32 %v5560, %v5701
  %v5742 = vmul.f32 %v5561, %v5702
  %v5743 = vmul.f32 %v5562, %v5703
  %v5744 = vmul.f32 %v5563, %v5704
  %v5745 = vmul.f32 %v5564, %v5705
  %v5746 = vmul.f32 %v5565, %v5706
  %v5747 = vmul.f32 %v5566, %v5707
  %v5748 = vmul.f32 %v5567, %v5708
  %v5749 = vmul.f32 %v5568, %v5709
  %v5750 = vmul.f32 %v5569, %v5710
  %v5751 = vmul.f32 %v5570, %v5711
  %v5752 = vmul.f32 %v5571, %v5712
  %v5753 = vmul.f32 %v5572, %v5713
  %v5755 = vperm.slane %v5442, 0
  %v5757 = vrot.slane %v5755, 1
  %v5758 = vrot.slane %v5755, 2
  %v5759 = vrot.slane %v5755, 3
  %v5760 = vrot.slane %v5755, 4
  %v5761 = vrot.slane %v5755, 5
  %v5762 = vrot.slane %v5755, 6
  %v5763 = vrot.slane %v5755, 7
  %v5771 = vmul.f32 %v5734, %v5755
  %v5772 = vmul.f32 %v5735, %v5757
  %v5773 = vmul.f32 %v5736, %v5758
  %v5774 = vmul.f32 %v5737, %v5759
  %v5775 = vmul.f32 %v5738, %v5760
  %v5776 = vmul.f32 %v5739, %v5761
  %v5777 = vmul.f32 %v5740, %v5762
  %v5778 = vmul.f32 %v5741, %v5763
  %v5779 = vmul.f32 %v5742, %v5755
  %v5780 = vmul.f32 %v5743, %v5757
  %v5781 = vmul.f32 %v5744, %v5758
  %v5782 = vmul.f32 %v5745, %v5759
  %v5783 = vmul.f32 %v5746, %v5760
  %v5784 = vmul.f32 %v5747, %v5761
  %v5785 = vmul.f32 %v5748, %v5762
  %v5786 = vmul.f32 %v5749, %v5763
  %v5787 = vmul.f32 %v5750, %v5755
  %v5788 = vmul.f32 %v5751, %v5757
  %v5789 = vmul.f32 %v5752, %v5758
  %v5790 = vmul.f32 %v5753, %v5759
  %v5792 = vperm.slane %v5444, 0
  %v5794 = vrot.slane %v5792, 1
  %v5795 = vrot.slane %v5792, 2
  %v5796 = vrot.slane %v5792, 3
  %v5797 = vrot.slane %v5792, 4
  %v5798 = vrot.slane %v5792, 5
  %v5799 = vrot.slane %v5792, 6
  %v5800 = vrot.slane %v5792, 7
  %v5808 = vadd.f32 %v5771, %v5792
  %v5809 = vadd.f32 %v5772, %v5794
  %v5810 = vadd.f32 %v5773, %v5795
  %v5811 = vadd.f32 %v5774, %v5796
  %v5812 = vadd.f32 %v5775, %v5797
  %v5813 = vadd.f32 %v5776, %v5798
  %v5814 = vadd.f32 %v5777, %v5799
  %v5815 = vadd.f32 %v5778, %v5800
  %v5816 = vadd.f32 %v5779, %v5792
  %v5817 = vadd.f32 %v5780, %v5794
  %v5818 = vadd.f32 %v5781, %v5795
  %v5819 = vadd.f32 %v5782, %v5796
  %v5820 = vadd.f32 %v5783, %v5797
  %v5821 = vadd.f32 %v5784, %v5798
  %v5822 = vadd.f32 %v5785, %v5799
  %v5823 = vadd.f32 %v5786, %v5800
  %v5824 = vadd.f32 %v5787, %v5792
  %v5825 = vadd.f32 %v5788, %v5794
  %v5826 = vadd.f32 %v5789, %v5795
  %v5827 = vadd.f32 %v5790, %v5796
  %5848 = vst [vmem:[#allocation1] ss:$9 sm:$0xff] %v5808
  %s5849 = scalar_lea.vmem [#allocation1], 1
  %5850 = vst [vmem:[%s5849] ss:$9 sm:$0xff] %v5809
  %s5851 = scalar_lea.vmem [#allocation1], 2
  %5852 = vst [vmem:[%s5851] ss:$9 sm:$0xff] %v5810
  %s5853 = scalar_lea.vmem [#allocation1], 3
  %5854 = vst [vmem:[%s5853] ss:$9 sm:$0xff] %v5811
  %s5855 = scalar_lea.vmem [#allocation1], 4
  %5856 = vst [vmem:[%s5855] ss:$9 sm:$0xff] %v5812
  %s5857 = scalar_lea.vmem [#allocation1], 5
  %5858 = vst [vmem:[%s5857] ss:$9 sm:$0xff] %v5813
  %s5859 = scalar_lea.vmem [#allocation1], 6
  %5860 = vst [vmem:[%s5859] ss:$9 sm:$0xff] %v5814
  %s5861 = scalar_lea.vmem [#allocation1], 7
  %5862 = vst [vmem:[%s5861] ss:$9 sm:$0xff] %v5815
  %v5863 = vld [vmem:[#allocation1] sm:$0xff]
  %5864 = vst [vmem:[#allocation1] ss:$9 sm:$0xff] %v5816
  %5865 = vst [vmem:[%s5849] ss:$9 sm:$0xff] %v5817
  %5866 = vst [vmem:[%s5851] ss:$9 sm:$0xff] %v5818
  %5867 = vst [vmem:[%s5853] ss:$9 sm:$0xff] %v5819
  %5868 = vst [vmem:[%s5855] ss:$9 sm:$0xff] %v5820
  %5869 = vst [vmem:[%s5857] ss:$9 sm:$0xff] %v5821
  %5870 = vst [vmem:[%s5859] ss:$9 sm:$0xff] %v5822
  %5871 = vst [vmem:[%s5861] ss:$9 sm:$0xff] %v5823
  %v5872 = vld [vmem:[#allocation1] sm:$0xff]
  %5873 = vst [vmem:[#allocation1] ss:$9 sm:$0xff] %v5824
  %5874 = vst [vmem:[%s5849] ss:$9 sm:$0xff] %v5825
  %5875 = vst [vmem:[%s5851] ss:$9 sm:$0xff] %v5826
  %5876 = vst [vmem:[%s5853] ss:$9 sm:$0xff] %v5827
  %v5877 = vld [vmem:[#allocation1] sm:$0xff]
  %v5881 = vpack.c.bf16 %v5872, %v5863
  %v5882 = vpack.c.bf16 %v5877, %v5877
  %s5883 = scalar_lea.vmem %s13, 16
  %v5884 = vld [vmem:[%s5883] sm:$0xf]
  %v5885 = vld [vmem:[%s5883 + $0x4] sm:$0xf]
  %v5886 = vld [vmem:[%s5883 + $0x8] sm:$0xf]
  %v5887 = vld [vmem:[%s5883 + $0xc] sm:$0xf]
  %s5888 = scalar_lea.vmem %s14, 1
  %v5889 = vld [vmem:[%s5888] sm:$0x1]
  %v5891 = vperm.slane %v5889, 0
  %v5897 = vunpack.c.l.b16 %v5884
  %v5898 = vunpack.c.l.b16 %v5885
  %v5899 = vunpack.c.l.b16 %v5886
  %v5900 = vunpack.c.l.b16 %v5887
  %v5901 = vpack.c.b16 %v5898, %v5897
  %v5902 = vpack.c.b16 %v5900, %v5899
  %v5906 = vsel %vm375, %v5881, 0
  %v5909 = vsel %vm375, %v5882, 0
  %5911 = vmatpush.bf16.msra.mxu0 0
  %5912 = vmatpush.bf16.msra.mxu0 0
  %5913 = vmatpush.bf16.msra.mxu0 0
  %5914 = vmatpush.bf16.msra.mxu0 0
  %5915 = vmatpush.bf16.msra.mxu0 0
  %5916 = vmatpush.bf16.msra.mxu0 0
  %5917 = vmatpush.bf16.msra.mxu0 %v5902
  %5918 = vmatpush.bf16.msra.mxu0 %v5901
  %5919 = vmatmul.bf16.gmra.mxu0 %v5906
  %v5920 = vpop.f32.mrf.mxu0
  %v5921 = vadd.f32 %v5891, %v5920
  %v5922 = vpop.f32.mrf.mxu0
  %v5923 = vadd.f32 %v5891, %v5922
  %5924 = vmatmul.bf16.gmra.mxu0 %v5909
  %v5925 = vpop.f32.mrf.mxu0
  %v5926 = vadd.f32 %v5891, %v5925
  %v5927 = vpop.f32.mrf.mxu0
  %5928 = vdwg.mxu0
  %v5929 = vmul.f32 %v5921, %v5921
  %v5930 = vmul.f32 %v5923, %v5923
  %v5931 = vmul.f32 %v5926, %v5926
  %v5932 = vmul.f32 %v5921, %v5929
  %v5933 = vmul.f32 %v5923, %v5930
  %v5934 = vmul.f32 %v5926, %v5931
  %v5935 = vmul.f32 %v5932, 0.044715
  %v5936 = vmul.f32 %v5933, 0.044715
  %v5937 = vmul.f32 %v5934, 0.044715
  %v5938 = vadd.f32 %v5921, %v5935
  %v5939 = vadd.f32 %v5923, %v5936
  %v5940 = vadd.f32 %v5926, %v5937
  %v5941 = vmul.f32 %v5938, 0.7978846
  %v5942 = vmul.f32 %v5939, 0.7978846
  %v5943 = vmul.f32 %v5940, 0.7978846
  %v5944 = vtanh.pop %v5941
  %v5945 = vtanh.pop %v5942
  %v5946 = vtanh.pop %v5943
  %v5947 = vadd.f32 %v5944, 1.0
  %v5948 = vadd.f32 %v5945, 1.0
  %v5949 = vadd.f32 %v5946, 1.0
  %v5950 = vmul.f32 %v5947, 0.5
  %v5951 = vmul.f32 %v5948, 0.5
  %v5952 = vmul.f32 %v5949, 0.5
  %v5953 = vmul.f32 %v5921, %v5950
  %v5954 = vmul.f32 %v5923, %v5951
  %v5955 = vmul.f32 %v5926, %v5952
  %v5956 = vpack.c.bf16 %v5954, %v5953
  %v5957 = vpack.c.bf16 %v5955, %v5955
  %s5958 = scalar_lea.vmem %s15, 64
  %v5959 = vld [vmem:[%s5958] sm:$0xf]
  %v5960 = vld [vmem:[%s5958 + $0x4] sm:$0xf]
  %v5961 = vld [vmem:[%s5958 + $0x8] sm:$0xf]
  %v5962 = vld [vmem:[%s5958 + $0xc] sm:$0xf]
  %v5963 = vld [vmem:[%s5958 + $0x10] sm:$0xf]
  %v5964 = vld [vmem:[%s5958 + $0x14] sm:$0xf]
  %v5965 = vld [vmem:[%s5958 + $0x18] sm:$0xf]
  %v5966 = vld [vmem:[%s5958 + $0x1c] sm:$0xf]
  %v5967 = vld [vmem:[%s5958 + $0x20] sm:$0xf]
  %v5968 = vld [vmem:[%s5958 + $0x24] sm:$0xf]
  %v5969 = vld [vmem:[%s5958 + $0x28] sm:$0xf]
  %v5970 = vld [vmem:[%s5958 + $0x2c] sm:$0xf]
  %v5971 = vld [vmem:[%s5958 + $0x30] sm:$0xf]
  %v5972 = vld [vmem:[%s5958 + $0x34] sm:$0xf]
  %v5973 = vld [vmem:[%s5958 + $0x38] sm:$0xf]
  %v5974 = vld [vmem:[%s5958 + $0x3c] sm:$0xf]
  %s5975 = scalar_lea.vmem %s16, 1
  %v5976 = vld [vmem:[%s5975] sm:$0x1]
  %v5978 = vperm.slane %v5976, 0
  %v5996 = vunpack.c.l.b16 %v5959
  %v5997 = vunpack.c.l.b16 %v5960
  %v5998 = vunpack.c.l.b16 %v5961
  %v5999 = vunpack.c.l.b16 %v5962
  %v6000 = vunpack.c.l.b16 %v5963
  %v6001 = vunpack.c.l.b16 %v5964
  %v6002 = vunpack.c.l.b16 %v5965
  %v6003 = vunpack.c.l.b16 %v5966
  %v6004 = vunpack.c.l.b16 %v5967
  %v6005 = vunpack.c.l.b16 %v5968
  %v6006 = vunpack.c.l.b16 %v5969
  %v6007 = vunpack.c.l.b16 %v5970
  %v6008 = vunpack.c.l.b16 %v5971
  %v6009 = vunpack.c.l.b16 %v5972
  %v6010 = vunpack.c.l.b16 %v5973
  %v6011 = vunpack.c.l.b16 %v5974
  %v6012 = vpack.c.b16 %v5997, %v5996
  %v6013 = vpack.c.b16 %v5999, %v5998
  %v6014 = vpack.c.b16 %v6001, %v6000
  %v6015 = vpack.c.b16 %v6003, %v6002
  %v6016 = vpack.c.b16 %v6005, %v6004
  %v6017 = vpack.c.b16 %v6007, %v6006
  %v6018 = vpack.c.b16 %v6009, %v6008
  %v6019 = vpack.c.b16 %v6011, %v6010
  %6028 = vmatpush.bf16.msra.mxu0 %v6019
  %6029 = vmatpush.bf16.msra.mxu0 %v6018
  %6030 = vmatpush.bf16.msra.mxu0 %v6017
  %6031 = vmatpush.bf16.msra.mxu0 %v6016
  %6032 = vmatpush.bf16.msra.mxu0 %v6015
  %6033 = vmatpush.bf16.msra.mxu0 %v6014
  %6034 = vmatpush.bf16.msra.mxu0 %v6013
  %6035 = vmatpush.bf16.msra.mxu0 %v6012
  %6036 = vmatmul.bf16.gmra.mxu0 %v5956
  %v6037 = vpop.f32.mrf.mxu0
  %v6038 = vadd.f32 %v5978, %v6037
  %v6039 = vpop.f32.mrf.mxu0
  %v6040 = vadd.f32 %v5978, %v6039
  %6041 = vmatmul.bf16.gmra.mxu0 %v5957
  %v6042 = vpop.f32.mrf.mxu0
  %v6043 = vpop.f32.mrf.mxu0
  %6044 = vdwg.mxu0
  %v6047 = vrot.slane %v6038, 5
  %v6048 = vrot.slane %v6040, 2
  %v6049 = vrot.slane %v6040, 7
  %v6053 = vadd.f32 %v5421, %v6038
  %v6054 = vadd.f32 %v5426, %v6047
  %v6055 = vadd.f32 %v5431, %v6048
  %v6056 = vadd.f32 %v5436, %v6049
  %v6057 = vld [vmem:[%s17] sm:$0x1]
  %v6058 = vld [vmem:[%s18] sm:$0x1]
  %6063 = vst [vmem:[#allocation1] ss:$9 sm:$0xff] %v6053
  %s6064 = scalar_lea.vmem [#allocation1], 1
  %6065 = vst [vmem:[%s6064] ss:$9 sm:$0xff] %v6054
  %s6066 = scalar_lea.vmem [#allocation1], 2
  %6067 = vst [vmem:[%s6066] ss:$9 sm:$0xff] %v6055
  %s6068 = scalar_lea.vmem [#allocation1], 3
  %6069 = vst [vmem:[%s6068] ss:$9 sm:$0xff] %v6056
  %v6070 = vld [vmem:[#allocation1] sm:$0xff]
  %v6072 = vsel %vm382, %v6070, 0.0
  %6073 = vadd.xlane.f32.xlu0 %v6072
  %v6074 = vpop.xlane.xlu0 %6073
  %v6075 = vmul.f32 %v6074, %v392
  %v6077 = vperm.slane %v6075, 0
  %v6078 = vperm.slane %v6075, 1
  %v6079 = vperm.slane %v6075, 2
  %v6080 = vperm.slane %v6075, 3
  %v6085 = vsub.f32 %v6053, %v6077
  %v6086 = vsub.f32 %v6054, %v6078
  %v6087 = vsub.f32 %v6055, %v6079
  %v6088 = vsub.f32 %v6056, %v6080
  %v6089 = vmul.f32 %v6085, %v6085
  %v6090 = vmul.f32 %v6086, %v6086
  %v6091 = vmul.f32 %v6087, %v6087
  %v6092 = vmul.f32 %v6088, %v6088
  %6097 = vst [vmem:[#allocation1] ss:$9 sm:$0xff] %v6089
  %s6098 = scalar_lea.vmem [#allocation1], 1
  %6099 = vst [vmem:[%s6098] ss:$9 sm:$0xff] %v6090
  %s6100 = scalar_lea.vmem [#allocation1], 2
  %6101 = vst [vmem:[%s6100] ss:$9 sm:$0xff] %v6091
  %s6102 = scalar_lea.vmem [#allocation1], 3
  %6103 = vst [vmem:[%s6102] ss:$9 sm:$0xff] %v6092
  %v6104 = vld [vmem:[#allocation1] sm:$0xff]
  %v6106 = vsel %vm382, %v6104, 0.0
  %6107 = vadd.xlane.f32.xlu0 %v6106
  %v6108 = vpop.xlane.xlu0 %6107
  %v6109 = vmul.f32 %v6108, %v392
  %v6110 = vadd.f32 %v6109, 1e-12
  %v6111 = vrsqrt.pop %v6110
  %v6112 = vmul.f32 %v6111, %v6110
  %v6113 = vmul.f32 %v6112, %v6111
  %v6114 = vmul.f32 0.5, %v6113
  %v6115 = vsub.f32 1.5, %v6114
  %v6116 = vmul.f32 %v6111, %v6115
  %vm6117 = vweird.f32 %v6110
  %vm6118 = vweird.f32 %v6111
  %vm6119 = vmor %vm6117, %vm6118
  %v6120 = vsel %vm6119, %v6111, %v6116
  %v6122 = vperm.slane %v6120, 0
  %v6123 = vperm.slane %v6120, 1
  %v6124 = vperm.slane %v6120, 2
  %v6125 = vperm.slane %v6120, 3
  %v6130 = vmul.f32 %v6085, %v6122
  %v6131 = vmul.f32 %v6086, %v6123
  %v6132 = vmul.f32 %v6087, %v6124
  %v6133 = vmul.f32 %v6088, %v6125
  %v6135 = vperm.slane %v6057, 0
  %v6137 = vrot.slane %v6135, 1
  %v6138 = vrot.slane %v6135, 2
  %v6139 = vrot.slane %v6135, 3
  %v6143 = vmul.f32 %v6130, %v6135
  %v6144 = vmul.f32 %v6131, %v6137
  %v6145 = vmul.f32 %v6132, %v6138
  %v6146 = vmul.f32 %v6133, %v6139
  %v6148 = vperm.slane %v6058, 0
  %v6150 = vrot.slane %v6148, 1
  %v6151 = vrot.slane %v6148, 2
  %v6152 = vrot.slane %v6148, 3
  %v6156 = vadd.f32 %v6143, %v6148
  %v6157 = vadd.f32 %v6144, %v6150
  %v6158 = vadd.f32 %v6145, %v6151
  %v6159 = vadd.f32 %v6146, %v6152
  %v6160 = vpack.c.bf16 %v6156, %v6156
  %v6161 = vpack.c.bf16 %v6157, %v6157
  %v6162 = vpack.c.bf16 %v6158, %v6158
  %v6163 = vpack.c.bf16 %v6159, %v6159
  %v6164 = vld [vmem:[%s19] sm:$0xf]
  %v6165 = vld [vmem:[%s19 + $0x4] sm:$0xf]
  %v6166 = vld [vmem:[%s19 + $0x8] sm:$0xf]
  %v6167 = vld [vmem:[%s19 + $0xc] sm:$0xf]
  %v6168 = vld [vmem:[%s20] sm:$0x1]
  %v6170 = vperm.slane %v6168, 0
  %v6176 = vunpack.c.l.b16 %v6160
  %v6177 = vunpack.c.l.b16 %v6161
  %v6178 = vunpack.c.l.b16 %v6162
  %v6179 = vunpack.c.l.b16 %v6163
  %v6180 = vrot.slane %v6177, 7
  %v6181 = vsel %vm831, %v6180, %v6176
  %v6182 = vrot.slane %v6178, 6
  %v6183 = vsel %vm835, %v6182, %v6181
  %v6184 = vrot.slane %v6179, 5
  %v6185 = vsel %vm839, %v6184, %v6183
  %v6186 = vpack.c.b16 %v6185, %v6185
  %v6191 = vunpack.c.l.b16 %v6164
  %v6192 = vunpack.c.l.b16 %v6165
  %v6193 = vunpack.c.l.b16 %v6166
  %v6194 = vunpack.c.l.b16 %v6167
  %v6195 = vpack.c.b16 %v6192, %v6191
  %v6196 = vpack.c.b16 %v6194, %v6193
  %v6200 = vsel %vm375, %v6186, 0
  %6202 = vmatpush.bf16.msra.mxu0 0
  %6203 = vmatpush.bf16.msra.mxu0 0
  %6204 = vmatpush.bf16.msra.mxu0 0
  %6205 = vmatpush.bf16.msra.mxu0 0
  %6206 = vmatpush.bf16.msra.mxu0 0
  %6207 = vmatpush.bf16.msra.mxu0 0
  %6208 = vmatpush.bf16.msra.mxu0 %v6196
  %6209 = vmatpush.bf16.msra.mxu0 %v6195
  %6210 = vmatmul.bf16.gmra.mxu0 %v6200
  %v6211 = vpop.f32.mrf.mxu0
  %v6212 = vadd.f32 %v6170, %v6211
  %v6213 = vpop.f32.mrf.mxu0
  %6214 = vdwg.mxu0
  %v6215 = vtanh.pop %v6212
  %v6217 = vrot.slane %v6215, 2
  %vm6219 = vcmask 254976
  %v6220 = vsel %vm6219, %v6215, 0.0
  %v6221 = vrot.slane %v6220, 4
  %v6222 = vadd.f32 %v6220, %v6221
  %v6223 = vrot.slane %v6222, 2
  %v6224 = vadd.f32 %v6222, %v6223
  %v6225 = vrot.slane %v6224, 1
  %v6226 = vadd.f32 %v6224, %v6225
  %v6227 = vsel %vm6219, %v6217, 0.0
  %v6228 = vrot.slane %v6227, 4
  %v6229 = vadd.f32 %v6227, %v6228
  %v6230 = vrot.slane %v6229, 2
  %v6231 = vadd.f32 %v6229, %v6230
  %v6232 = vrot.slane %v6231, 1
  %v6233 = vadd.f32 %v6231, %v6232
  %v6234 = vrcp.pop 2.0
  %v6235 = vmul.f32 2.0, %v6234
  %v6236 = vsub.f32 1.0, %v6235
  %v6237 = vmul.f32 %v6234, %v6236
  %v6238 = vadd.f32 %v6234, %v6237
  %vm6239 = vweird.f32 %v6234
  %v6240 = vsel %vm6239, %v6234, %v6238
  %v6241 = vmul.f32 %v6226, %v6240
  %v6242 = vmul.f32 %v6233, %v6240
  %v6243 = vpack.c.bf16 %v6241, %v6241
  %v6244 = vpack.c.bf16 %v6242, %v6242
  %v6245 = vld [vmem:[%s21] sm:$0xf]
  %v6246 = vld [vmem:[%s21 + $0x4] sm:$0xf]
  %v6247 = vld [vmem:[%s21 + $0x8] sm:$0xf]
  %v6248 = vld [vmem:[%s21 + $0xc] sm:$0xf]
  %v6249 = vld [vmem:[%s22] sm:$0x1]
  %v6251 = vperm.slane %v6249, 0
  %v6255 = vunpack.c.l.b16 %v6243
  %v6256 = vunpack.c.l.b16 %v6244
  %v6257 = vsel %vm831, %v6256, %v6255
  %v6258 = vpack.c.b16 %v6257, %v6257
  %v6263 = vunpack.c.l.b16 %v6245
  %v6264 = vunpack.c.l.b16 %v6246
  %v6265 = vunpack.c.l.b16 %v6247
  %v6266 = vunpack.c.l.b16 %v6248
  %v6267 = vpack.c.b16 %v6264, %v6263
  %v6268 = vpack.c.b16 %v6266, %v6265
  %v6272 = vsel %vm375, %v6258, 0
  %6274 = vmatpush.bf16.msra.mxu0 0
  %6275 = vmatpush.bf16.msra.mxu0 0
  %6276 = vmatpush.bf16.msra.mxu0 0
  %6277 = vmatpush.bf16.msra.mxu0 0
  %6278 = vmatpush.bf16.msra.mxu0 0
  %6279 = vmatpush.bf16.msra.mxu0 0
  %6280 = vmatpush.bf16.msra.mxu0 %v6268
  %6281 = vmatpush.bf16.msra.mxu0 %v6267
  %6282 = vmatmul.bf16.gmra.mxu0 %v6272
  %v6283 = vpop.f32.mrf.mxu0
  %v6284 = vadd.f32 %v6251, %v6283
  %v6285 = vpop.f32.mrf.mxu0
  %6286 = vdwg.mxu0
  %vm6287 = vcmask 91136
  %6288 = vst.msk [vmem:[%s23] sm:$0x3] %vm6287, %v6284
  // Predicated region
  $region94: #{vit_multilabel_forward.1} parent=0 // pred_check
    _
  $region95: #{vit_multilabel_forward.1} parent=0 // pred_check_branch
    %6290 = sbr.rel (0) target = $region97
  $region96: #{vit_multilabel_forward.1} parent=0 // pred_region
    _
  $region97: #{vit_multilabel_forward.1} parent=0 // pred_fallthru
    _
  // Predicated region
  $region98: #{vit_multilabel_forward.1} parent=0 // pred_check
    _
  $region99: #{vit_multilabel_forward.1} parent=0 // pred_check_branch
    %6292 = sbr.rel (0) target = $region101
  $region100: #{vit_multilabel_forward.1} parent=0 // pred_region
    _
  $region101: #{vit_multilabel_forward.1} parent=0 // pred_fallthru
    _

</llo_original>
